<compile_context>
chip_gen: v7x
topology: tpu7x:2x2x1
jax: 0.10.0
libtpu: 0.0.40
codegen_flags: <defaults>
</compile_context>

<pallas_src>
import jax
import jax.numpy as jnp
from jax.experimental import pallas as pl
from jax.experimental.pallas import tpu as pltpu


LANE = 128


# ------------------------------ small helpers -------------------------------

def _round_up(x, m):
    return ((x + m - 1) // m) * m


def _row_tiles(M, tm):
    """Pick an effective row tile (multiple of 8) and the padded row count."""
    tm_eff = min(tm, _round_up(M, 8))
    Mp = _round_up(M, tm_eff)
    return tm_eff, Mp


def _pad_rows(x, Mp):
    M = x.shape[0]
    if Mp == M:
        return x
    return jnp.pad(x, ((0, Mp - M),) + ((0, 0),) * (x.ndim - 1))


def _pad_cols_to_lane(w, b):
    """Zero-pad (K, N) weight and (N,) bias so N -> multiple of 128 (lane-dense)."""
    K, N = w.shape
    Np = _round_up(N, LANE)
    if Np != N:
        w = jnp.pad(w, ((0, 0), (0, Np - N)))
        b = jnp.pad(b, ((0, Np - N),))
    return w, b, Np


# ----------------------------- Pallas kernels --------------------------------

def _matmul_bias_kernel(x_ref, w_ref, b_ref, o_ref):
    acc = jnp.dot(x_ref[...], w_ref[...], preferred_element_type=jnp.float32)
    acc = acc + b_ref[...]                       # bias add kept in f32 (VPU)
    o_ref[...] = acc.astype(o_ref.dtype)


def _dual_matmul_bias_kernel(a_ref, wa_ref, c_ref, wc_ref, bias_ref, o_ref):
    # fused: conv3x3(stride 2) + conv1x1 skip + combined bias, one store.
    acc = jnp.dot(a_ref[...], wa_ref[...], preferred_element_type=jnp.float32)
    acc = acc + jnp.dot(c_ref[...], wc_ref[...], preferred_element_type=jnp.float32)
    acc = acc + bias_ref[...]
    o_ref[...] = acc.astype(o_ref.dtype)


def _imnet_fused_kernel(qf_ref, qf2_ref, qf4_ref, qf8_ref, ex_ref, res_ref,
                        w1a_ref, w1b_ref, w1c_ref, w1d_ref, w1e_ref, b1_ref,
                        w2_ref, b2_ref, w3_ref, b3_ref, o_ref):
    # Layer 1 of the imnet: x @ w1 computed as row-block dots over the
    # un-concatenated inputs (no (M, 36) intermediate anywhere).
    h = jnp.dot(qf_ref[...], w1a_ref[...], preferred_element_type=jnp.float32)
    h = h + jnp.dot(qf2_ref[...], w1b_ref[...], preferred_element_type=jnp.float32)
    h = h + jnp.dot(qf4_ref[...], w1c_ref[...], preferred_element_type=jnp.float32)
    h = h + jnp.dot(qf8_ref[...], w1d_ref[...], preferred_element_type=jnp.float32)
    h = h + jnp.dot(ex_ref[...], w1e_ref[...], preferred_element_type=jnp.float32)
    h = jnp.maximum(h + b1_ref[...], 0.0)
    h = jnp.maximum(
        jnp.dot(h, w2_ref[...], preferred_element_type=jnp.float32) + b2_ref[...], 0.0)
    out = jnp.dot(h, w3_ref[...], preferred_element_type=jnp.float32) + b3_ref[...]
    # Residual (bilinear-sampled RGB, zero-padded to lane width) fused here.
    o_ref[...] = out + res_ref[...]


# ----------------------------- Pallas wrappers -------------------------------

def pallas_matmul_bias(x, w, b, *, tm=1024, out_dtype=jnp.bfloat16):
    """(M, K) @ (K, N) + b with a lane-dense (128-wide) padded output slab."""
    M, K = x.shape
    N = w.shape[1]
    wp, bp, Np = _pad_cols_to_lane(w, b)
    wp = wp.astype(x.dtype)
    tm_eff, Mp = _row_tiles(M, tm)
    xp = _pad_rows(x, Mp)
    bytes_accessed = (xp.size * xp.dtype.itemsize + wp.size * wp.dtype.itemsize
                      + Np * 4 + Mp * Np * jnp.dtype(out_dtype).itemsize)
    out = pl.pallas_call(
        _matmul_bias_kernel,
        out_shape=jax.ShapeDtypeStruct((Mp, Np), out_dtype),
        grid=(Mp // tm_eff,),
        in_specs=[
            pl.BlockSpec((tm_eff, K), lambda i: (i, 0)),
            pl.BlockSpec((K, Np), lambda i: (0, 0)),
            pl.BlockSpec((1, Np), lambda i: (0, 0)),
        ],
        out_specs=pl.BlockSpec((tm_eff, Np), lambda i: (i, 0)),
        compiler_params=pltpu.CompilerParams(dimension_semantics=("parallel",)),
        cost_estimate=pl.CostEstimate(flops=2 * Mp * K * Np, transcendentals=0,
                                      bytes_accessed=bytes_accessed),
    )(xp, wp, bp.reshape(1, Np).astype(jnp.float32))
    return out[:M, :N]


def pallas_dual_matmul_bias(a, wa, c, wc, bias, *, tm=1024, out_dtype=jnp.bfloat16):
    """dot(a, wa) + dot(c, wc) + bias in one pallas_call (downsample + skip)."""
    M, Ka = a.shape
    Kc = c.shape[1]
    N = wa.shape[1]
    wap, biasp, Np = _pad_cols_to_lane(wa, bias)
    wcp = jnp.pad(wc, ((0, 0), (0, Np - N))) if Np != N else wc
    wap = wap.astype(a.dtype)
    wcp = wcp.astype(c.dtype)
    tm_eff, Mp = _row_tiles(M, tm)
    ap = _pad_rows(a, Mp)
    cp = _pad_rows(c, Mp)
    bytes_accessed = (ap.size * ap.dtype.itemsize + cp.size * cp.dtype.itemsize
                      + wap.size * wap.dtype.itemsize + wcp.size * wcp.dtype.itemsize
                      + Np * 4 + Mp * Np * jnp.dtype(out_dtype).itemsize)
    out = pl.pallas_call(
        _dual_matmul_bias_kernel,
        out_shape=jax.ShapeDtypeStruct((Mp, Np), out_dtype),
        grid=(Mp // tm_eff,),
        in_specs=[
            pl.BlockSpec((tm_eff, Ka), lambda i: (i, 0)),
            pl.BlockSpec((Ka, Np), lambda i: (0, 0)),
            pl.BlockSpec((tm_eff, Kc), lambda i: (i, 0)),
            pl.BlockSpec((Kc, Np), lambda i: (0, 0)),
            pl.BlockSpec((1, Np), lambda i: (0, 0)),
        ],
        out_specs=pl.BlockSpec((tm_eff, Np), lambda i: (i, 0)),
        compiler_params=pltpu.CompilerParams(dimension_semantics=("parallel",)),
        cost_estimate=pl.CostEstimate(flops=2 * Mp * (Ka + Kc) * Np, transcendentals=0,
                                      bytes_accessed=bytes_accessed),
    )(ap, wap, cp, wcp, biasp.reshape(1, Np).astype(jnp.float32))
    return out[:M, :N]


def pallas_imnet_fused(q_feats, rel_coord, rel_cell, resid, imnet_params, *, tm=1024):
    """Fused imnet MLP over un-concatenated inputs + residual epilogue.

    q_feats: 4 x (M, C) bf16 gathered features; rel_coord/rel_cell: (M, 2) f32;
    resid: (M, 3) f32 bilinear RGB residual.  Returns (M, 3) f32.
    """
    (w1, b1), (w2, b2), (w3, b3) = imnet_params
    qf, qf2, qf4, qf8 = q_feats
    M, C = qf.shape
    H1, H2, Dout = w1.shape[1], w2.shape[1], w3.shape[1]

    # w1 split into row blocks matching the un-concatenated inputs.
    w1a = w1[0 * C:1 * C].astype(qf.dtype)
    w1b = w1[1 * C:2 * C].astype(qf.dtype)
    w1c = w1[2 * C:3 * C].astype(qf.dtype)
    w1d = w1[3 * C:4 * C].astype(qf.dtype)
    # rel_coord (2) + rel_cell (2) -> one (M, 8) "extras" operand (zero-padded
    # so the contraction dim is 8); matching (8, H1) weight tail, kept f32.
    w1e = jnp.pad(w1[4 * C:], ((0, 4), (0, 0)))
    extras = jnp.pad(jnp.concatenate([rel_coord, rel_cell], axis=-1), ((0, 0), (0, 4)))

    # Lane-dense output: pad Dout 3 -> 128 with zero weight/bias columns.
    w3p, b3p, Np = _pad_cols_to_lane(w3, b3)

    tm_eff, Mp = _row_tiles(M, tm)
    qf, qf2, qf4, qf8 = (_pad_rows(t, Mp) for t in (qf, qf2, qf4, qf8))
    extras = _pad_rows(extras, Mp)
    resid_p = _pad_rows(jnp.pad(resid, ((0, 0), (0, Np - Dout))), Mp)

    row = lambda i: (i, 0)
    rep = lambda i: (0, 0)
    flops = 2 * Mp * ((4 * C + 8) * H1 + H1 * H2 + H2 * Np)
    out = pl.pallas_call(
        _imnet_fused_kernel,
        out_shape=jax.ShapeDtypeStruct((Mp, Np), jnp.float32),
        grid=(Mp // tm_eff,),
        in_specs=[
            pl.BlockSpec((tm_eff, C), row),      # qf
            pl.BlockSpec((tm_eff, C), row),      # qf2
            pl.BlockSpec((tm_eff, C), row),      # qf4
            pl.BlockSpec((tm_eff, C), row),      # qf8
            pl.BlockSpec((tm_eff, 8), row),      # extras (rel_coord | rel_cell | 0)
            pl.BlockSpec((tm_eff, Np), row),     # residual (lane-padded)
            pl.BlockSpec((C, H1), rep),          # w1a
            pl.BlockSpec((C, H1), rep),          # w1b
            pl.BlockSpec((C, H1), rep),          # w1c
            pl.BlockSpec((C, H1), rep),          # w1d
            pl.BlockSpec((8, H1), rep),          # w1e
            pl.BlockSpec((1, H1), rep),          # b1
            pl.BlockSpec((H1, H2), rep),         # w2
            pl.BlockSpec((1, H2), rep),          # b2
            pl.BlockSpec((H2, Np), rep),         # w3 (lane-padded)
            pl.BlockSpec((1, Np), rep),          # b3 (lane-padded)
        ],
        out_specs=pl.BlockSpec((tm_eff, Np), row),
        compiler_params=pltpu.CompilerParams(dimension_semantics=("parallel",)),
        cost_estimate=pl.CostEstimate(flops=flops, transcendentals=0,
                                      bytes_accessed=(qf.size * 2 * 4
                                                      + extras.size * 4
                                                      + resid_p.size * 4
                                                      + Mp * Np * 4)),
    )(qf, qf2, qf4, qf8, extras, resid_p,
      w1a, w1b, w1c, w1d, w1e, b1.reshape(1, H1),
      w2, b2.reshape(1, H2), w3p, b3p.reshape(1, Np))
    return out[:M, :Dout]


# ------------------------------- conv glue (NHWC) ----------------------------
# TODO(synk): im2col still materialises a 9x-wide patch tensor per 3x3 conv; a
# halo-tile Pallas conv (9 shifted dots on a (th+2, tw+2, C) block) would avoid
# that, but the NHWC im2col path already removes all per-conv transposes.

def _im2col_3x3(x, stride=1):
    """x: (B, H, W, C) -> ((B*Ho*Wo, 9*C) patch rows in (kh, kw, c) order, Ho, Wo)."""
    B, H, W, C = x.shape
    Ho = (H + 2 - 3) // stride + 1
    Wo = (W + 2 - 3) // stride + 1
    xp = jnp.pad(x, ((0, 0), (1, 1), (1, 1), (0, 0)))
    cols = []
    for ki in range(3):
        for kj in range(3):
            cols.append(xp[:, ki:ki + stride * Ho:stride, kj:kj + stride * Wo:stride, :])
    patches = jnp.concatenate(cols, axis=-1)              # (B, Ho, Wo, 9*C)
    return patches.reshape(B * Ho * Wo, 9 * C), Ho, Wo


def _conv3x3_weight_matrix(w):
    """PyTorch (Cout, Cin, 3, 3) -> (9*Cin, Cout) matching (kh, kw, c) patch order."""
    Cout = w.shape[0]
    return jnp.transpose(w, (2, 3, 1, 0)).reshape(-1, Cout)


def conv2d_3x3_nhwc(x, w, b, stride=1):
    B = x.shape[0]
    Cout = w.shape[0]
    rows, Ho, Wo = _im2col_3x3(x, stride)
    out = pallas_matmul_bias(rows, _conv3x3_weight_matrix(w), b)
    return out.reshape(B, Ho, Wo, Cout)


def conv3x3_s2_plus_conv1x1(x_a, w_a, b_a, x_c, w_c, b_c):
    """conv3x3(x_a, stride=2, pad=1) + conv1x1(x_c), fused into one Pallas call."""
    B = x_a.shape[0]
    Cout = w_a.shape[0]
    rows_a, Ho, Wo = _im2col_3x3(x_a, stride=2)
    rows_c = x_c.reshape(B * Ho * Wo, x_c.shape[-1])
    wmc = w_c.reshape(Cout, -1).T
    out = pallas_dual_matmul_bias(rows_a, _conv3x3_weight_matrix(w_a),
                                  rows_c, wmc, b_a + b_c)
    return out.reshape(B, Ho, Wo, Cout)


def pixel_shuffle_nhwc(x, r=2):
    B, H, W, C = x.shape
    Co = C // (r * r)
    x = x.reshape(B, H, W, Co, r, r)
    x = x.transpose(0, 1, 4, 2, 5, 3)
    return x.reshape(B, H * r, W * r, Co)


# ---------------------------- grid-sample glue --------------------------------

def make_coord(shape):
    """LIIF make_coord, flatten=False: (H, W, 2) coords of pixel centers in [-1,1]."""
    seqs = []
    for n in shape:
        r = 1.0 / n
        seqs.append(-1.0 + r + (2.0 * r) * jnp.arange(n, dtype=jnp.float32))
    yy, xx = jnp.meshgrid(seqs[0], seqs[1], indexing="ij")
    return jnp.stack([yy, xx], axis=-1)


def _nearest_indices(coord, Hf, Wf):
    """coord (B, Q, 2) = (y, x) in [-1, 1] -> flat nearest indices (B, Q) int32.
    Matches grid_sample(mode='nearest', align_corners=False)."""
    iy = ((coord[..., 0] + 1.0) * Hf - 1.0) / 2.0
    ix = ((coord[..., 1] + 1.0) * Wf - 1.0) / 2.0
    iy = jnp.clip(jnp.round(iy).astype(jnp.int32), 0, Hf - 1)
    ix = jnp.clip(jnp.round(ix).astype(jnp.int32), 0, Wf - 1)
    return iy * Wf + ix


def nearest_sample_nhwc(feat, idx):
    """feat (B, H, W, C), idx (B, Q) -> (B, Q, C)."""
    B, H, W, C = feat.shape
    flat = feat.reshape(B, H * W, C)
    return jnp.take_along_axis(flat, idx[:, :, None], axis=1)


def bilinear_sample_border_nhwc(img, coord):
    """grid_sample(img_nchw, coord.flip(-1)[:,None], bilinear, border,
    align_corners=False) with img given in NHWC.  Returns (B, Q, C) f32."""
    B, H, W, C = img.shape
    iy = ((coord[..., 0] + 1.0) * H - 1.0) / 2.0
    ix = ((coord[..., 1] + 1.0) * W - 1.0) / 2.0
    iy = jnp.clip(iy, 0.0, H - 1.0)
    ix = jnp.clip(ix, 0.0, W - 1.0)
    y0 = jnp.floor(iy)
    x0 = jnp.floor(ix)
    wy1 = iy - y0
    wx1 = ix - x0
    wy0 = 1.0 - wy1
    wx0 = 1.0 - wx1
    y0i = jnp.clip(y0.astype(jnp.int32), 0, H - 1)
    y1i = jnp.clip(y0i + 1, 0, H - 1)
    x0i = jnp.clip(x0.astype(jnp.int32), 0, W - 1)
    x1i = jnp.clip(x0i + 1, 0, W - 1)
    flat = img.reshape(B, H * W, C)

    def gat(yi, xi):
        return jnp.take_along_axis(flat, (yi * W + xi)[:, :, None], axis=1)

    return (gat(y0i, x0i) * (wy0 * wx0)[..., None]
            + gat(y0i, x1i) * (wy0 * wx1)[..., None]
            + gat(y1i, x0i) * (wy1 * wx0)[..., None]
            + gat(y1i, x1i) * (wy1 * wx1)[..., None])


# ------------------------------ full forward ----------------------------------

def liif_fpn_pred_forward(params, inp, coord, cell):
    # one-time NCHW -> NHWC; bf16 copy feeds the conv/matmul chain.
    inp_nhwc = jnp.transpose(inp, (0, 2, 3, 1))
    x = inp_nhwc.astype(jnp.bfloat16)

    # gen_feat: synthetic encoder = single 3x3 conv (out_dim = C)
    feat = conv2d_3x3_nhwc(x, params["enc_w"], params["enc_b"])
    B, Hf, Wf, C = feat.shape

    # FPN: 3x pixel-shuffle upsample, 2x strided downsample with fused skips.
    feat_1 = pixel_shuffle_nhwc(conv2d_3x3_nhwc(feat, params["up1_w"], params["up1_b"]))
    feat_2 = pixel_shuffle_nhwc(conv2d_3x3_nhwc(feat_1, params["up2_w"], params["up2_b"]))
    feat_3 = pixel_shuffle_nhwc(conv2d_3x3_nhwc(feat_2, params["up3_w"], params["up3_b"]))
    feat_4 = conv3x3_s2_plus_conv1x1(feat_3, params["down4_w"], params["down4_b"],
                                     feat_2, params["skip1_w"], params["skip1_b"])
    feat_5 = conv3x3_s2_plus_conv1x1(feat_4, params["down5_w"], params["down5_b"],
                                     feat_1, params["skip2_w"], params["skip2_b"])

    # local_ensemble=False, cell_decode=True -> single (vx, vy) = (0, 0) pass;
    # the ensemble weight spaces/tot_area is identically 1 and is dropped.
    coord_ = jnp.clip(coord, -1.0 + 1e-6, 1.0 - 1e-6)

    idx_feat = _nearest_indices(coord_, Hf, Wf)
    q_feat = nearest_sample_nhwc(feat, idx_feat)
    q_feat2x = nearest_sample_nhwc(feat_5, _nearest_indices(coord_, *feat_5.shape[1:3]))
    q_feat4x = nearest_sample_nhwc(feat_4, _nearest_indices(coord_, *feat_4.shape[1:3]))
    q_feat8x = nearest_sample_nhwc(feat_3, _nearest_indices(coord_, *feat_3.shape[1:3]))

    feat_coord = make_coord((Hf, Wf)).reshape(Hf * Wf, 2)          # (Hf*Wf, 2)
    q_coord = feat_coord[idx_feat]                                  # (B, Q, 2)

    scale_hw = jnp.array([Hf, Wf], dtype=jnp.float32)
    rel_coord = (coord - q_coord) * scale_hw
    rel_cell = cell * scale_hw

    # residual bilinear sample of the original (f32) input image
    resid = bilinear_sample_border_nhwc(inp_nhwc, coord)            # (B, Q, 3)

    Bq, Q, _ = coord.shape
    M = Bq * Q
    pred = pallas_imnet_fused(
        (q_feat.reshape(M, C), q_feat2x.reshape(M, C),
         q_feat4x.reshape(M, C), q_feat8x.reshape(M, C)),
        rel_coord.reshape(M, 2), rel_cell.reshape(M, 2),
        resid.reshape(M, 3), params["imnet"])
    return pred.reshape(Bq, Q, -1)


# -------------------------------- params --------------------------------------

def init_params(key, cin=3, c=8, hidden=32, out_dim=3):
    counter = [0]

    def w(shape):
        counter[0] += 1
        k = jax.random.fold_in(key, counter[0])
        return jax.random.normal(k, shape, jnp.float32) * 0.1

    din = 4 * c + 2 + 2   # 4 feature levels + rel_coord + rel_cell
    params = {
        "enc_w": w((c, cin, 3, 3)), "enc_b": w((c,)),
        "up1_w": w((4 * c, c, 3, 3)), "up1_b": w((4 * c,)),
        "up2_w": w((4 * c, c, 3, 3)), "up2_b": w((4 * c,)),
        "up3_w": w((4 * c, c, 3, 3)), "up3_b": w((4 * c,)),
        "skip1_w": w((c, c, 1, 1)), "skip1_b": w((c,)),
        "skip2_w": w((c, c, 1, 1)), "skip2_b": w((c,)),
        "down4_w": w((c, c, 3, 3)), "down4_b": w((c,)),
        "down5_w": w((c, c, 3, 3)), "down5_b": w((c,)),
        "imnet": [
            (w((din, hidden)), w((hidden,))),
            (w((hidden, hidden)), w((hidden,))),
            (w((hidden, out_dim)), w((out_dim,))),
        ],
    }
    return params


# --------------------------------- main ----------------------------------------

if __name__ == "__main__":
    key = jax.random.PRNGKey(0)
    k_param, k_inp = jax.random.split(key)

    B, Cin, H, W = 2, 3, 8, 8
    C = 8
    Ht, Wt = 16, 16                      # target resolution -> Q = 256 queries

    params = init_params(k_param, cin=Cin, c=C)
    inp = jax.random.normal(k_inp, (B, Cin, H, W), jnp.float32)

    coord = make_coord((Ht, Wt)).reshape(-1, 2)                  # (Q, 2)
    coord = jnp.broadcast_to(coord[None], (B, Ht * Wt, 2)).astype(jnp.float32)
    cell = jnp.stack(
        [jnp.full((B, Ht * Wt), 2.0 / Ht, jnp.float32),
         jnp.full((B, Ht * Wt), 2.0 / Wt, jnp.float32)], axis=-1)

    fwd = jax.jit(liif_fpn_pred_forward)
    out = fwd(params, inp, coord, cell)
    out = jax.block_until_ready(out)

    assert out.shape == (B, Ht * Wt, 3), out.shape
    assert bool(jnp.all(jnp.isfinite(out)))
    print("KERNEL_OK")
</pallas_src>

<mosaic_0001>
module attributes {stable_mosaic.version = 11 : i64} {
  func.func @_matmul_bias_kernel(%arg0: i32, %arg1: memref<128x27xbf16, #tpu.memory_space<vmem>>, %arg2: memref<27x128xbf16, #tpu.memory_space<vmem>>, %arg3: memref<1x128xf32, #tpu.memory_space<vmem>>, %arg4: memref<128x128xbf16, #tpu.memory_space<vmem>>) attributes {dimension_semantics = [#tpu.dimension_semantics<parallel>], iteration_bounds = array<i64: 1>, scalar_prefetch = 0 : i64, scratch_operands = 0 : i64, tpu.core_type = #tpu.core_type<tc>, window_params = [{transform_indices = @transform_0, window_bounds = array<i64: 128, 27>}, {pipeline_mode = #tpu.pipeline_mode<synchronous>, transform_indices = @transform_1, window_bounds = array<i64: 27, 128>}, {pipeline_mode = #tpu.pipeline_mode<synchronous>, transform_indices = @transform_2, window_bounds = array<i64: 1, 128>}, {transform_indices = @transform_3, window_bounds = array<i64: 128, 128>}]} {
    %c0 = arith.constant 0 : index
    %c0_0 = arith.constant 0 : index
    %0 = vector.load %arg1[%c0, %c0_0] : memref<128x27xbf16, #tpu.memory_space<vmem>>, vector<128x27xbf16>
    %c0_1 = arith.constant 0 : index
    %c0_2 = arith.constant 0 : index
    %1 = vector.load %arg2[%c0_1, %c0_2] : memref<27x128xbf16, #tpu.memory_space<vmem>>, vector<27x128xbf16>
    %cst = arith.constant dense<0.000000e+00> : vector<128x128xf32>
    %2 = tpu.matmul %0, %1, %cst {dimension_numbers = #tpu.dot_dimension_numbers<[1], [0], [0], [1], [0, 0, 1, 1], [], []>} : vector<128x27xbf16>, vector<27x128xbf16>, vector<128x128xf32> -> vector<128x128xf32>
    %c0_3 = arith.constant 0 : index
    %c0_4 = arith.constant 0 : index
    %3 = vector.load %arg3[%c0_3, %c0_4] : memref<1x128xf32, #tpu.memory_space<vmem>>, vector<1x128xf32>
    %4 = vector.broadcast %3 : vector<1x128xf32> to vector<128x128xf32>
    %5 = arith.addf %2, %4 : vector<128x128xf32>
    %6 = arith.truncf %5 : vector<128x128xf32> to vector<128x128xbf16>
    %c0_5 = arith.constant 0 : index
    %c0_6 = arith.constant 0 : index
    %7 = vector.load %arg4[%c0_5, %c0_6] : memref<128x128xbf16, #tpu.memory_space<vmem>>, vector<128x128xbf16>
    tpu.vector_store %arg4[%c0_5, %c0_6], %6 {strides = array<i32>} : memref<128x128xbf16, #tpu.memory_space<vmem>>, vector<128x128xbf16>,
    return
  }
  func.func @transform_0(%arg0: i32) -> (i32, i32) {
    %c0_i32 = arith.constant 0 : i32
    %c0_i32_0 = arith.constant 0 : i32
    return %arg0, %c0_i32 : i32, i32
  }
  func.func @transform_1(%arg0: i32) -> (i32, i32) {
    %c0_i32 = arith.constant 0 : i32
    %c0_i32_0 = arith.constant 0 : i32
    %c0_i32_1 = arith.constant 0 : i32
    return %c0_i32, %c0_i32_0 : i32, i32
  }
  func.func @transform_2(%arg0: i32) -> (i32, i32) {
    %c0_i32 = arith.constant 0 : i32
    %c0_i32_0 = arith.constant 0 : i32
    %c0_i32_1 = arith.constant 0 : i32
    return %c0_i32, %c0_i32_0 : i32, i32
  }
  func.func @transform_3(%arg0: i32) -> (i32, i32) {
    %c0_i32 = arith.constant 0 : i32
    %c0_i32_0 = arith.constant 0 : i32
    return %arg0, %c0_i32 : i32, i32
  }
}

module attributes {stable_mosaic.version = 11 : i64} {
  func.func @_matmul_bias_kernel(%arg0: i32, %arg1: memref<128x72xbf16, #tpu.memory_space<vmem>>, %arg2: memref<72x128xbf16, #tpu.memory_space<vmem>>, %arg3: memref<1x128xf32, #tpu.memory_space<vmem>>, %arg4: memref<128x128xbf16, #tpu.memory_space<vmem>>) attributes {dimension_semantics = [#tpu.dimension_semantics<parallel>], iteration_bounds = array<i64: 1>, scalar_prefetch = 0 : i64, scratch_operands = 0 : i64, tpu.core_type = #tpu.core_type<tc>, window_params = [{transform_indices = @transform_0, window_bounds = array<i64: 128, 72>}, {pipeline_mode = #tpu.pipeline_mode<synchronous>, transform_indices = @transform_1, window_bounds = array<i64: 72, 128>}, {pipeline_mode = #tpu.pipeline_mode<synchronous>, transform_indices = @transform_2, window_bounds = array<i64: 1, 128>}, {transform_indices = @transform_3, window_bounds = array<i64: 128, 128>}]} {
    %c0 = arith.constant 0 : index
    %c0_0 = arith.constant 0 : index
    %0 = vector.load %arg1[%c0, %c0_0] : memref<128x72xbf16, #tpu.memory_space<vmem>>, vector<128x72xbf16>
    %c0_1 = arith.constant 0 : index
    %c0_2 = arith.constant 0 : index
    %1 = vector.load %arg2[%c0_1, %c0_2] : memref<72x128xbf16, #tpu.memory_space<vmem>>, vector<72x128xbf16>
    %cst = arith.constant dense<0.000000e+00> : vector<128x128xf32>
    %2 = tpu.matmul %0, %1, %cst {dimension_numbers = #tpu.dot_dimension_numbers<[1], [0], [0], [1], [0, 0, 1, 1], [], []>} : vector<128x72xbf16>, vector<72x128xbf16>, vector<128x128xf32> -> vector<128x128xf32>
    %c0_3 = arith.constant 0 : index
    %c0_4 = arith.constant 0 : index
    %3 = vector.load %arg3[%c0_3, %c0_4] : memref<1x128xf32, #tpu.memory_space<vmem>>, vector<1x128xf32>
    %4 = vector.broadcast %3 : vector<1x128xf32> to vector<128x128xf32>
    %5 = arith.addf %2, %4 : vector<128x128xf32>
    %6 = arith.truncf %5 : vector<128x128xf32> to vector<128x128xbf16>
    %c0_5 = arith.constant 0 : index
    %c0_6 = arith.constant 0 : index
    %7 = vector.load %arg4[%c0_5, %c0_6] : memref<128x128xbf16, #tpu.memory_space<vmem>>, vector<128x128xbf16>
    tpu.vector_store %arg4[%c0_5, %c0_6], %6 {strides = array<i32>} : memref<128x128xbf16, #tpu.memory_space<vmem>>, vector<128x128xbf16>,
    return
  }
  func.func @transform_0(%arg0: i32) -> (i32, i32) {
    %c0_i32 = arith.constant 0 : i32
    %c0_i32_0 = arith.constant 0 : i32
    return %arg0, %c0_i32 : i32, i32
  }
  func.func @transform_1(%arg0: i32) -> (i32, i32) {
    %c0_i32 = arith.constant 0 : i32
    %c0_i32_0 = arith.constant 0 : i32
    %c0_i32_1 = arith.constant 0 : i32
    return %c0_i32, %c0_i32_0 : i32, i32
  }
  func.func @transform_2(%arg0: i32) -> (i32, i32) {
    %c0_i32 = arith.constant 0 : i32
    %c0_i32_0 = arith.constant 0 : i32
    %c0_i32_1 = arith.constant 0 : i32
    return %c0_i32, %c0_i32_0 : i32, i32
  }
  func.func @transform_3(%arg0: i32) -> (i32, i32) {
    %c0_i32 = arith.constant 0 : i32
    %c0_i32_0 = arith.constant 0 : i32
    return %arg0, %c0_i32 : i32, i32
  }
}

module attributes {stable_mosaic.version = 11 : i64} {
  func.func @_matmul_bias_kernel(%arg0: i32, %arg1: memref<512x72xbf16, #tpu.memory_space<vmem>>, %arg2: memref<72x128xbf16, #tpu.memory_space<vmem>>, %arg3: memref<1x128xf32, #tpu.memory_space<vmem>>, %arg4: memref<512x128xbf16, #tpu.memory_space<vmem>>) attributes {dimension_semantics = [#tpu.dimension_semantics<parallel>], iteration_bounds = array<i64: 1>, scalar_prefetch = 0 : i64, scratch_operands = 0 : i64, tpu.core_type = #tpu.core_type<tc>, window_params = [{transform_indices = @transform_0, window_bounds = array<i64: 512, 72>}, {pipeline_mode = #tpu.pipeline_mode<synchronous>, transform_indices = @transform_1, window_bounds = array<i64: 72, 128>}, {pipeline_mode = #tpu.pipeline_mode<synchronous>, transform_indices = @transform_2, window_bounds = array<i64: 1, 128>}, {transform_indices = @transform_3, window_bounds = array<i64: 512, 128>}]} {
    %c0 = arith.constant 0 : index
    %c0_0 = arith.constant 0 : index
    %0 = vector.load %arg1[%c0, %c0_0] : memref<512x72xbf16, #tpu.memory_space<vmem>>, vector<512x72xbf16>
    %c0_1 = arith.constant 0 : index
    %c0_2 = arith.constant 0 : index
    %1 = vector.load %arg2[%c0_1, %c0_2] : memref<72x128xbf16, #tpu.memory_space<vmem>>, vector<72x128xbf16>
    %cst = arith.constant dense<0.000000e+00> : vector<512x128xf32>
    %2 = tpu.matmul %0, %1, %cst {dimension_numbers = #tpu.dot_dimension_numbers<[1], [0], [0], [1], [0, 0, 1, 1], [], []>} : vector<512x72xbf16>, vector<72x128xbf16>, vector<512x128xf32> -> vector<512x128xf32>
    %c0_3 = arith.constant 0 : index
    %c0_4 = arith.constant 0 : index
    %3 = vector.load %arg3[%c0_3, %c0_4] : memref<1x128xf32, #tpu.memory_space<vmem>>, vector<1x128xf32>
    %4 = vector.broadcast %3 : vector<1x128xf32> to vector<512x128xf32>
    %5 = arith.addf %2, %4 : vector<512x128xf32>
    %6 = arith.truncf %5 : vector<512x128xf32> to vector<512x128xbf16>
    %c0_5 = arith.constant 0 : index
    %c0_6 = arith.constant 0 : index
    %7 = vector.load %arg4[%c0_5, %c0_6] : memref<512x128xbf16, #tpu.memory_space<vmem>>, vector<512x128xbf16>
    tpu.vector_store %arg4[%c0_5, %c0_6], %6 {strides = array<i32>} : memref<512x128xbf16, #tpu.memory_space<vmem>>, vector<512x128xbf16>,
    return
  }
  func.func @transform_0(%arg0: i32) -> (i32, i32) {
    %c0_i32 = arith.constant 0 : i32
    %c0_i32_0 = arith.constant 0 : i32
    return %arg0, %c0_i32 : i32, i32
  }
  func.func @transform_1(%arg0: i32) -> (i32, i32) {
    %c0_i32 = arith.constant 0 : i32
    %c0_i32_0 = arith.constant 0 : i32
    %c0_i32_1 = arith.constant 0 : i32
    return %c0_i32, %c0_i32_0 : i32, i32
  }
  func.func @transform_2(%arg0: i32) -> (i32, i32) {
    %c0_i32 = arith.constant 0 : i32
    %c0_i32_0 = arith.constant 0 : i32
    %c0_i32_1 = arith.constant 0 : i32
    return %c0_i32, %c0_i32_0 : i32, i32
  }
  func.func @transform_3(%arg0: i32) -> (i32, i32) {
    %c0_i32 = arith.constant 0 : i32
    %c0_i32_0 = arith.constant 0 : i32
    return %arg0, %c0_i32 : i32, i32
  }
}

module attributes {stable_mosaic.version = 11 : i64} {
  func.func @_matmul_bias_kernel(%arg0: i32, %arg1: memref<1024x72xbf16, #tpu.memory_space<vmem>>, %arg2: memref<72x128xbf16, #tpu.memory_space<vmem>>, %arg3: memref<1x128xf32, #tpu.memory_space<vmem>>, %arg4: memref<1024x128xbf16, #tpu.memory_space<vmem>>) attributes {dimension_semantics = [#tpu.dimension_semantics<parallel>], iteration_bounds = array<i64: 2>, scalar_prefetch = 0 : i64, scratch_operands = 0 : i64, tpu.core_type = #tpu.core_type<tc>, window_params = [{transform_indices = @transform_0, window_bounds = array<i64: 1024, 72>}, {pipeline_mode = #tpu.pipeline_mode<synchronous>, transform_indices = @transform_1, window_bounds = array<i64: 72, 128>}, {pipeline_mode = #tpu.pipeline_mode<synchronous>, transform_indices = @transform_2, window_bounds = array<i64: 1, 128>}, {transform_indices = @transform_3, window_bounds = array<i64: 1024, 128>}]} {
    %c0 = arith.constant 0 : index
    %c0_0 = arith.constant 0 : index
    %0 = vector.load %arg1[%c0, %c0_0] : memref<1024x72xbf16, #tpu.memory_space<vmem>>, vector<1024x72xbf16>
    %c0_1 = arith.constant 0 : index
    %c0_2 = arith.constant 0 : index
    %1 = vector.load %arg2[%c0_1, %c0_2] : memref<72x128xbf16, #tpu.memory_space<vmem>>, vector<72x128xbf16>
    %cst = arith.constant dense<0.000000e+00> : vector<1024x128xf32>
    %2 = tpu.matmul %0, %1, %cst {dimension_numbers = #tpu.dot_dimension_numbers<[1], [0], [0], [1], [0, 0, 1, 1], [], []>} : vector<1024x72xbf16>, vector<72x128xbf16>, vector<1024x128xf32> -> vector<1024x128xf32>
    %c0_3 = arith.constant 0 : index
    %c0_4 = arith.constant 0 : index
    %3 = vector.load %arg3[%c0_3, %c0_4] : memref<1x128xf32, #tpu.memory_space<vmem>>, vector<1x128xf32>
    %4 = vector.broadcast %3 : vector<1x128xf32> to vector<1024x128xf32>
    %5 = arith.addf %2, %4 : vector<1024x128xf32>
    %6 = arith.truncf %5 : vector<1024x128xf32> to vector<1024x128xbf16>
    %c0_5 = arith.constant 0 : index
    %c0_6 = arith.constant 0 : index
    %7 = vector.load %arg4[%c0_5, %c0_6] : memref<1024x128xbf16, #tpu.memory_space<vmem>>, vector<1024x128xbf16>
    tpu.vector_store %arg4[%c0_5, %c0_6], %6 {strides = array<i32>} : memref<1024x128xbf16, #tpu.memory_space<vmem>>, vector<1024x128xbf16>,
    return
  }
  func.func @transform_0(%arg0: i32) -> (i32, i32) {
    %c0_i32 = arith.constant 0 : i32
    %c0_i32_0 = arith.constant 0 : i32
    return %arg0, %c0_i32 : i32, i32
  }
  func.func @transform_1(%arg0: i32) -> (i32, i32) {
    %c0_i32 = arith.constant 0 : i32
    %c0_i32_0 = arith.constant 0 : i32
    %c0_i32_1 = arith.constant 0 : i32
    return %c0_i32, %c0_i32_0 : i32, i32
  }
  func.func @transform_2(%arg0: i32) -> (i32, i32) {
    %c0_i32 = arith.constant 0 : i32
    %c0_i32_0 = arith.constant 0 : i32
    %c0_i32_1 = arith.constant 0 : i32
    return %c0_i32, %c0_i32_0 : i32, i32
  }
  func.func @transform_3(%arg0: i32) -> (i32, i32) {
    %c0_i32 = arith.constant 0 : i32
    %c0_i32_0 = arith.constant 0 : i32
    return %arg0, %c0_i32 : i32, i32
  }
}

module attributes {stable_mosaic.version = 11 : i64} {
  func.func @_dual_matmul_bias_kernel(%arg0: i32, %arg1: memref<1024x72xbf16, #tpu.memory_space<vmem>>, %arg2: memref<72x128xbf16, #tpu.memory_space<vmem>>, %arg3: memref<1024x8xbf16, #tpu.memory_space<vmem>>, %arg4: memref<8x128xbf16, #tpu.memory_space<vmem>>, %arg5: memref<1x128xf32, #tpu.memory_space<vmem>>, %arg6: memref<1024x128xbf16, #tpu.memory_space<vmem>>) attributes {dimension_semantics = [#tpu.dimension_semantics<parallel>], iteration_bounds = array<i64: 2>, scalar_prefetch = 0 : i64, scratch_operands = 0 : i64, tpu.core_type = #tpu.core_type<tc>, window_params = [{transform_indices = @transform_0, window_bounds = array<i64: 1024, 72>}, {pipeline_mode = #tpu.pipeline_mode<synchronous>, transform_indices = @transform_1, window_bounds = array<i64: 72, 128>}, {transform_indices = @transform_2, window_bounds = array<i64: 1024, 8>}, {pipeline_mode = #tpu.pipeline_mode<synchronous>, transform_indices = @transform_3, window_bounds = array<i64: 8, 128>}, {pipeline_mode = #tpu.pipeline_mode<synchronous>, transform_indices = @transform_4, window_bounds = array<i64: 1, 128>}, {transform_indices = @transform_5, window_bounds = array<i64: 1024, 128>}]} {
    %c0 = arith.constant 0 : index
    %c0_0 = arith.constant 0 : index
    %0 = vector.load %arg1[%c0, %c0_0] : memref<1024x72xbf16, #tpu.memory_space<vmem>>, vector<1024x72xbf16>
    %c0_1 = arith.constant 0 : index
    %c0_2 = arith.constant 0 : index
    %1 = vector.load %arg2[%c0_1, %c0_2] : memref<72x128xbf16, #tpu.memory_space<vmem>>, vector<72x128xbf16>
    %cst = arith.constant dense<0.000000e+00> : vector<1024x128xf32>
    %2 = tpu.matmul %0, %1, %cst {dimension_numbers = #tpu.dot_dimension_numbers<[1], [0], [0], [1], [0, 0, 1, 1], [], []>} : vector<1024x72xbf16>, vector<72x128xbf16>, vector<1024x128xf32> -> vector<1024x128xf32>
    %c0_3 = arith.constant 0 : index
    %c0_4 = arith.constant 0 : index
    %3 = vector.load %arg3[%c0_3, %c0_4] : memref<1024x8xbf16, #tpu.memory_space<vmem>>, vector<1024x8xbf16>
    %c0_5 = arith.constant 0 : index
    %c0_6 = arith.constant 0 : index
    %4 = vector.load %arg4[%c0_5, %c0_6] : memref<8x128xbf16, #tpu.memory_space<vmem>>, vector<8x128xbf16>
    %cst_7 = arith.constant dense<0.000000e+00> : vector<1024x128xf32>
    %5 = tpu.matmul %3, %4, %cst_7 {dimension_numbers = #tpu.dot_dimension_numbers<[1], [0], [0], [1], [0, 0, 1, 1], [], []>} : vector<1024x8xbf16>, vector<8x128xbf16>, vector<1024x128xf32> -> vector<1024x128xf32>
    %6 = arith.addf %2, %5 : vector<1024x128xf32>
    %c0_8 = arith.constant 0 : index
    %c0_9 = arith.constant 0 : index
    %7 = vector.load %arg5[%c0_8, %c0_9] : memref<1x128xf32, #tpu.memory_space<vmem>>, vector<1x128xf32>
    %8 = vector.broadcast %7 : vector<1x128xf32> to vector<1024x128xf32>
    %9 = arith.addf %6, %8 : vector<1024x128xf32>
    %10 = arith.truncf %9 : vector<1024x128xf32> to vector<1024x128xbf16>
    %c0_10 = arith.constant 0 : index
    %c0_11 = arith.constant 0 : index
    %11 = vector.load %arg6[%c0_10, %c0_11] : memref<1024x128xbf16, #tpu.memory_space<vmem>>, vector<1024x128xbf16>
    tpu.vector_store %arg6[%c0_10, %c0_11], %10 {strides = array<i32>} : memref<1024x128xbf16, #tpu.memory_space<vmem>>, vector<1024x128xbf16>,
    return
  }
  func.func @transform_0(%arg0: i32) -> (i32, i32) {
    %c0_i32 = arith.constant 0 : i32
    %c0_i32_0 = arith.constant 0 : i32
    return %arg0, %c0_i32 : i32, i32
  }
  func.func @transform_1(%arg0: i32) -> (i32, i32) {
    %c0_i32 = arith.constant 0 : i32
    %c0_i32_0 = arith.constant 0 : i32
    %c0_i32_1 = arith.constant 0 : i32
    return %c0_i32, %c0_i32_0 : i32, i32
  }
  func.func @transform_2(%arg0: i32) -> (i32, i32) {
    %c0_i32 = arith.constant 0 : i32
    %c0_i32_0 = arith.constant 0 : i32
    return %arg0, %c0_i32 : i32, i32
  }
  func.func @transform_3(%arg0: i32) -> (i32, i32) {
    %c0_i32 = arith.constant 0 : i32
    %c0_i32_0 = arith.constant 0 : i32
    %c0_i32_1 = arith.constant 0 : i32
    return %c0_i32, %c0_i32_0 : i32, i32
  }
  func.func @transform_4(%arg0: i32) -> (i32, i32) {
    %c0_i32 = arith.constant 0 : i32
    %c0_i32_0 = arith.constant 0 : i32
    %c0_i32_1 = arith.constant 0 : i32
    return %c0_i32, %c0_i32_0 : i32, i32
  }
  func.func @transform_5(%arg0: i32) -> (i32, i32) {
    %c0_i32 = arith.constant 0 : i32
    %c0_i32_0 = arith.constant 0 : i32
    return %arg0, %c0_i32 : i32, i32
  }
}

module attributes {stable_mosaic.version = 11 : i64} {
  func.func @_dual_matmul_bias_kernel(%arg0: i32, %arg1: memref<512x72xbf16, #tpu.memory_space<vmem>>, %arg2: memref<72x128xbf16, #tpu.memory_space<vmem>>, %arg3: memref<512x8xbf16, #tpu.memory_space<vmem>>, %arg4: memref<8x128xbf16, #tpu.memory_space<vmem>>, %arg5: memref<1x128xf32, #tpu.memory_space<vmem>>, %arg6: memref<512x128xbf16, #tpu.memory_space<vmem>>) attributes {dimension_semantics = [#tpu.dimension_semantics<parallel>], iteration_bounds = array<i64: 1>, scalar_prefetch = 0 : i64, scratch_operands = 0 : i64, tpu.core_type = #tpu.core_type<tc>, window_params = [{transform_indices = @transform_0, window_bounds = array<i64: 512, 72>}, {pipeline_mode = #tpu.pipeline_mode<synchronous>, transform_indices = @transform_1, window_bounds = array<i64: 72, 128>}, {transform_indices = @transform_2, window_bounds = array<i64: 512, 8>}, {pipeline_mode = #tpu.pipeline_mode<synchronous>, transform_indices = @transform_3, window_bounds = array<i64: 8, 128>}, {pipeline_mode = #tpu.pipeline_mode<synchronous>, transform_indices = @transform_4, window_bounds = array<i64: 1, 128>}, {transform_indices = @transform_5, window_bounds = array<i64: 512, 128>}]} {
    %c0 = arith.constant 0 : index
    %c0_0 = arith.constant 0 : index
    %0 = vector.load %arg1[%c0, %c0_0] : memref<512x72xbf16, #tpu.memory_space<vmem>>, vector<512x72xbf16>
    %c0_1 = arith.constant 0 : index
    %c0_2 = arith.constant 0 : index
    %1 = vector.load %arg2[%c0_1, %c0_2] : memref<72x128xbf16, #tpu.memory_space<vmem>>, vector<72x128xbf16>
    %cst = arith.constant dense<0.000000e+00> : vector<512x128xf32>
    %2 = tpu.matmul %0, %1, %cst {dimension_numbers = #tpu.dot_dimension_numbers<[1], [0], [0], [1], [0, 0, 1, 1], [], []>} : vector<512x72xbf16>, vector<72x128xbf16>, vector<512x128xf32> -> vector<512x128xf32>
    %c0_3 = arith.constant 0 : index
    %c0_4 = arith.constant 0 : index
    %3 = vector.load %arg3[%c0_3, %c0_4] : memref<512x8xbf16, #tpu.memory_space<vmem>>, vector<512x8xbf16>
    %c0_5 = arith.constant 0 : index
    %c0_6 = arith.constant 0 : index
    %4 = vector.load %arg4[%c0_5, %c0_6] : memref<8x128xbf16, #tpu.memory_space<vmem>>, vector<8x128xbf16>
    %cst_7 = arith.constant dense<0.000000e+00> : vector<512x128xf32>
    %5 = tpu.matmul %3, %4, %cst_7 {dimension_numbers = #tpu.dot_dimension_numbers<[1], [0], [0], [1], [0, 0, 1, 1], [], []>} : vector<512x8xbf16>, vector<8x128xbf16>, vector<512x128xf32> -> vector<512x128xf32>
    %6 = arith.addf %2, %5 : vector<512x128xf32>
    %c0_8 = arith.constant 0 : index
    %c0_9 = arith.constant 0 : index
    %7 = vector.load %arg5[%c0_8, %c0_9] : memref<1x128xf32, #tpu.memory_space<vmem>>, vector<1x128xf32>
    %8 = vector.broadcast %7 : vector<1x128xf32> to vector<512x128xf32>
    %9 = arith.addf %6, %8 : vector<512x128xf32>
    %10 = arith.truncf %9 : vector<512x128xf32> to vector<512x128xbf16>
    %c0_10 = arith.constant 0 : index
    %c0_11 = arith.constant 0 : index
    %11 = vector.load %arg6[%c0_10, %c0_11] : memref<512x128xbf16, #tpu.memory_space<vmem>>, vector<512x128xbf16>
    tpu.vector_store %arg6[%c0_10, %c0_11], %10 {strides = array<i32>} : memref<512x128xbf16, #tpu.memory_space<vmem>>, vector<512x128xbf16>,
    return
  }
  func.func @transform_0(%arg0: i32) -> (i32, i32) {
    %c0_i32 = arith.constant 0 : i32
    %c0_i32_0 = arith.constant 0 : i32
    return %arg0, %c0_i32 : i32, i32
  }
  func.func @transform_1(%arg0: i32) -> (i32, i32) {
    %c0_i32 = arith.constant 0 : i32
    %c0_i32_0 = arith.constant 0 : i32
    %c0_i32_1 = arith.constant 0 : i32
    return %c0_i32, %c0_i32_0 : i32, i32
  }
  func.func @transform_2(%arg0: i32) -> (i32, i32) {
    %c0_i32 = arith.constant 0 : i32
    %c0_i32_0 = arith.constant 0 : i32
    return %arg0, %c0_i32 : i32, i32
  }
  func.func @transform_3(%arg0: i32) -> (i32, i32) {
    %c0_i32 = arith.constant 0 : i32
    %c0_i32_0 = arith.constant 0 : i32
    %c0_i32_1 = arith.constant 0 : i32
    return %c0_i32, %c0_i32_0 : i32, i32
  }
  func.func @transform_4(%arg0: i32) -> (i32, i32) {
    %c0_i32 = arith.constant 0 : i32
    %c0_i32_0 = arith.constant 0 : i32
    %c0_i32_1 = arith.constant 0 : i32
    return %c0_i32, %c0_i32_0 : i32, i32
  }
  func.func @transform_5(%arg0: i32) -> (i32, i32) {
    %c0_i32 = arith.constant 0 : i32
    %c0_i32_0 = arith.constant 0 : i32
    return %arg0, %c0_i32 : i32, i32
  }
}

module attributes {stable_mosaic.version = 11 : i64} {
  func.func @_imnet_fused_kernel(%arg0: i32, %arg1: memref<512x8xbf16, #tpu.memory_space<vmem>>, %arg2: memref<512x8xbf16, #tpu.memory_space<vmem>>, %arg3: memref<512x8xbf16, #tpu.memory_space<vmem>>, %arg4: memref<512x8xbf16, #tpu.memory_space<vmem>>, %arg5: memref<512x8xf32, #tpu.memory_space<vmem>>, %arg6: memref<512x128xf32, #tpu.memory_space<vmem>>, %arg7: memref<8x32xbf16, #tpu.memory_space<vmem>>, %arg8: memref<8x32xbf16, #tpu.memory_space<vmem>>, %arg9: memref<8x32xbf16, #tpu.memory_space<vmem>>, %arg10: memref<8x32xbf16, #tpu.memory_space<vmem>>, %arg11: memref<8x32xf32, #tpu.memory_space<vmem>>, %arg12: memref<1x32xf32, #tpu.memory_space<vmem>>, %arg13: memref<32x32xf32, #tpu.memory_space<vmem>>, %arg14: memref<1x32xf32, #tpu.memory_space<vmem>>, %arg15: memref<32x128xf32, #tpu.memory_space<vmem>>, %arg16: memref<1x128xf32, #tpu.memory_space<vmem>>, %arg17: memref<512x128xf32, #tpu.memory_space<vmem>>) attributes {dimension_semantics = [#tpu.dimension_semantics<parallel>], iteration_bounds = array<i64: 1>, scalar_prefetch = 0 : i64, scratch_operands = 0 : i64, tpu.core_type = #tpu.core_type<tc>, window_params = [{transform_indices = @transform_0, window_bounds = array<i64: 512, 8>}, {transform_indices = @transform_1, window_bounds = array<i64: 512, 8>}, {transform_indices = @transform_2, window_bounds = array<i64: 512, 8>}, {transform_indices = @transform_3, window_bounds = array<i64: 512, 8>}, {transform_indices = @transform_4, window_bounds = array<i64: 512, 8>}, {transform_indices = @transform_5, window_bounds = array<i64: 512, 128>}, {pipeline_mode = #tpu.pipeline_mode<synchronous>, transform_indices = @transform_6, window_bounds = array<i64: 8, 32>}, {pipeline_mode = #tpu.pipeline_mode<synchronous>, transform_indices = @transform_7, window_bounds = array<i64: 8, 32>}, {pipeline_mode = #tpu.pipeline_mode<synchronous>, transform_indices = @transform_8, window_bounds = array<i64: 8, 32>}, {pipeline_mode = #tpu.pipeline_mode<synchronous>, transform_indices = @transform_9, window_bounds = array<i64: 8, 32>}, {pipeline_mode = #tpu.pipeline_mode<synchronous>, transform_indices = @transform_10, window_bounds = array<i64: 8, 32>}, {pipeline_mode = #tpu.pipeline_mode<synchronous>, transform_indices = @transform_11, window_bounds = array<i64: 1, 32>}, {pipeline_mode = #tpu.pipeline_mode<synchronous>, transform_indices = @transform_12, window_bounds = array<i64: 32, 32>}, {pipeline_mode = #tpu.pipeline_mode<synchronous>, transform_indices = @transform_13, window_bounds = array<i64: 1, 32>}, {pipeline_mode = #tpu.pipeline_mode<synchronous>, transform_indices = @transform_14, window_bounds = array<i64: 32, 128>}, {pipeline_mode = #tpu.pipeline_mode<synchronous>, transform_indices = @transform_15, window_bounds = array<i64: 1, 128>}, {transform_indices = @transform_16, window_bounds = array<i64: 512, 128>}]} {
    %c0 = arith.constant 0 : index
    %c0_0 = arith.constant 0 : index
    %0 = vector.load %arg1[%c0, %c0_0] : memref<512x8xbf16, #tpu.memory_space<vmem>>, vector<512x8xbf16>
    %c0_1 = arith.constant 0 : index
    %c0_2 = arith.constant 0 : index
    %1 = vector.load %arg7[%c0_1, %c0_2] : memref<8x32xbf16, #tpu.memory_space<vmem>>, vector<8x32xbf16>
    %cst = arith.constant dense<0.000000e+00> : vector<512x32xf32>
    %2 = tpu.matmul %0, %1, %cst {dimension_numbers = #tpu.dot_dimension_numbers<[1], [0], [0], [1], [0, 0, 1, 1], [], []>} : vector<512x8xbf16>, vector<8x32xbf16>, vector<512x32xf32> -> vector<512x32xf32>
    %c0_3 = arith.constant 0 : index
    %c0_4 = arith.constant 0 : index
    %3 = vector.load %arg2[%c0_3, %c0_4] : memref<512x8xbf16, #tpu.memory_space<vmem>>, vector<512x8xbf16>
    %c0_5 = arith.constant 0 : index
    %c0_6 = arith.constant 0 : index
    %4 = vector.load %arg8[%c0_5, %c0_6] : memref<8x32xbf16, #tpu.memory_space<vmem>>, vector<8x32xbf16>
    %cst_7 = arith.constant dense<0.000000e+00> : vector<512x32xf32>
    %5 = tpu.matmul %3, %4, %cst_7 {dimension_numbers = #tpu.dot_dimension_numbers<[1], [0], [0], [1], [0, 0, 1, 1], [], []>} : vector<512x8xbf16>, vector<8x32xbf16>, vector<512x32xf32> -> vector<512x32xf32>
    %6 = arith.addf %2, %5 : vector<512x32xf32>
    %c0_8 = arith.constant 0 : index
    %c0_9 = arith.constant 0 : index
    %7 = vector.load %arg3[%c0_8, %c0_9] : memref<512x8xbf16, #tpu.memory_space<vmem>>, vector<512x8xbf16>
    %c0_10 = arith.constant 0 : index
    %c0_11 = arith.constant 0 : index
    %8 = vector.load %arg9[%c0_10, %c0_11] : memref<8x32xbf16, #tpu.memory_space<vmem>>, vector<8x32xbf16>
    %cst_12 = arith.constant dense<0.000000e+00> : vector<512x32xf32>
    %9 = tpu.matmul %7, %8, %cst_12 {dimension_numbers = #tpu.dot_dimension_numbers<[1], [0], [0], [1], [0, 0, 1, 1], [], []>} : vector<512x8xbf16>, vector<8x32xbf16>, vector<512x32xf32> -> vector<512x32xf32>
    %10 = arith.addf %6, %9 : vector<512x32xf32>
    %c0_13 = arith.constant 0 : index
    %c0_14 = arith.constant 0 : index
    %11 = vector.load %arg4[%c0_13, %c0_14] : memref<512x8xbf16, #tpu.memory_space<vmem>>, vector<512x8xbf16>
    %c0_15 = arith.constant 0 : index
    %c0_16 = arith.constant 0 : index
    %12 = vector.load %arg10[%c0_15, %c0_16] : memref<8x32xbf16, #tpu.memory_space<vmem>>, vector<8x32xbf16>
    %cst_17 = arith.constant dense<0.000000e+00> : vector<512x32xf32>
    %13 = tpu.matmul %11, %12, %cst_17 {dimension_numbers = #tpu.dot_dimension_numbers<[1], [0], [0], [1], [0, 0, 1, 1], [], []>} : vector<512x8xbf16>, vector<8x32xbf16>, vector<512x32xf32> -> vector<512x32xf32>
    %14 = arith.addf %10, %13 : vector<512x32xf32>
    %c0_18 = arith.constant 0 : index
    %c0_19 = arith.constant 0 : index
    %15 = vector.load %arg5[%c0_18, %c0_19] : memref<512x8xf32, #tpu.memory_space<vmem>>, vector<512x8xf32>
    %c0_20 = arith.constant 0 : index
    %c0_21 = arith.constant 0 : index
    %16 = vector.load %arg11[%c0_20, %c0_21] : memref<8x32xf32, #tpu.memory_space<vmem>>, vector<8x32xf32>
    %cst_22 = arith.constant dense<0.000000e+00> : vector<512x32xf32>
    %17 = tpu.matmul %15, %16, %cst_22 {dimension_numbers = #tpu.dot_dimension_numbers<[1], [0], [0], [1], [0, 0, 1, 1], [], []>} : vector<512x8xf32>, vector<8x32xf32>, vector<512x32xf32> -> vector<512x32xf32>
    %18 = arith.addf %14, %17 : vector<512x32xf32>
    %c0_23 = arith.constant 0 : index
    %c0_24 = arith.constant 0 : index
    %19 = vector.load %arg12[%c0_23, %c0_24] : memref<1x32xf32, #tpu.memory_space<vmem>>, vector<1x32xf32>
    %20 = vector.broadcast %19 : vector<1x32xf32> to vector<512x32xf32>
    %21 = arith.addf %18, %20 : vector<512x32xf32>
    %cst_25 = arith.constant 0.000000e+00 : f32
    %22 = vector.broadcast %cst_25 : f32 to vector<512x32xf32>
    %23 = arith.maximumf %21, %22 : vector<512x32xf32>
    %c0_26 = arith.constant 0 : index
    %c0_27 = arith.constant 0 : index
    %24 = vector.load %arg13[%c0_26, %c0_27] : memref<32x32xf32, #tpu.memory_space<vmem>>, vector<32x32xf32>
    %cst_28 = arith.constant dense<0.000000e+00> : vector<512x32xf32>
    %25 = tpu.matmul %23, %24, %cst_28 {dimension_numbers = #tpu.dot_dimension_numbers<[1], [0], [0], [1], [0, 0, 1, 1], [], []>} : vector<512x32xf32>, vector<32x32xf32>, vector<512x32xf32> -> vector<512x32xf32>
    %c0_29 = arith.constant 0 : index
    %c0_30 = arith.constant 0 : index
    %26 = vector.load %arg14[%c0_29, %c0_30] : memref<1x32xf32, #tpu.memory_space<vmem>>, vector<1x32xf32>
    %27 = vector.broadcast %26 : vector<1x32xf32> to vector<512x32xf32>
    %28 = arith.addf %25, %27 : vector<512x32xf32>
    %cst_31 = arith.constant 0.000000e+00 : f32
    %29 = vector.broadcast %cst_31 : f32 to vector<512x32xf32>
    %30 = arith.maximumf %28, %29 : vector<512x32xf32>
    %c0_32 = arith.constant 0 : index
    %c0_33 = arith.constant 0 : index
    %31 = vector.load %arg15[%c0_32, %c0_33] : memref<32x128xf32, #tpu.memory_space<vmem>>, vector<32x128xf32>
    %cst_34 = arith.constant dense<0.000000e+00> : vector<512x128xf32>
    %32 = tpu.matmul %30, %31, %cst_34 {dimension_numbers = #tpu.dot_dimension_numbers<[1], [0], [0], [1], [0, 0, 1, 1], [], []>} : vector<512x32xf32>, vector<32x128xf32>, vector<512x128xf32> -> vector<512x128xf32>
    %c0_35 = arith.constant 0 : index
    %c0_36 = arith.constant 0 : index
    %33 = vector.load %arg16[%c0_35, %c0_36] : memref<1x128xf32, #tpu.memory_space<vmem>>, vector<1x128xf32>
    %34 = vector.broadcast %33 : vector<1x128xf32> to vector<512x128xf32>
    %35 = arith.addf %32, %34 : vector<512x128xf32>
    %c0_37 = arith.constant 0 : index
    %c0_38 = arith.constant 0 : index
    %36 = vector.load %arg6[%c0_37, %c0_38] : memref<512x128xf32, #tpu.memory_space<vmem>>, vector<512x128xf32>
    %37 = arith.addf %35, %36 : vector<512x128xf32>
    %c0_39 = arith.constant 0 : index
    %c0_40 = arith.constant 0 : index
    %38 = vector.load %arg17[%c0_39, %c0_40] : memref<512x128xf32, #tpu.memory_space<vmem>>, vector<512x128xf32>
    tpu.vector_store %arg17[%c0_39, %c0_40], %37 {strides = array<i32>} : memref<512x128xf32, #tpu.memory_space<vmem>>, vector<512x128xf32>,
    return
  }
  func.func @transform_0(%arg0: i32) -> (i32, i32) {
    %c0_i32 = arith.constant 0 : i32
    %c0_i32_0 = arith.constant 0 : i32
    return %arg0, %c0_i32 : i32, i32
  }
  func.func @transform_1(%arg0: i32) -> (i32, i32) {
    %c0_i32 = arith.constant 0 : i32
    %c0_i32_0 = arith.constant 0 : i32
    return %arg0, %c0_i32 : i32, i32
  }
  func.func @transform_2(%arg0: i32) -> (i32, i32) {
    %c0_i32 = arith.constant 0 : i32
    %c0_i32_0 = arith.constant 0 : i32
    return %arg0, %c0_i32 : i32, i32
  }
  func.func @transform_3(%arg0: i32) -> (i32, i32) {
    %c0_i32 = arith.constant 0 : i32
    %c0_i32_0 = arith.constant 0 : i32
    return %arg0, %c0_i32 : i32, i32
  }
  func.func @transform_4(%arg0: i32) -> (i32, i32) {
    %c0_i32 = arith.constant 0 : i32
    %c0_i32_0 = arith.constant 0 : i32
    return %arg0, %c0_i32 : i32, i32
  }
  func.func @transform_5(%arg0: i32) -> (i32, i32) {
    %c0_i32 = arith.constant 0 : i32
    %c0_i32_0 = arith.constant 0 : i32
    return %arg0, %c0_i32 : i32, i32
  }
  func.func @transform_6(%arg0: i32) -> (i32, i32) {
    %c0_i32 = arith.constant 0 : i32
    %c0_i32_0 = arith.constant 0 : i32
    %c0_i32_1 = arith.constant 0 : i32
    return %c0_i32, %c0_i32_0 : i32, i32
  }
  func.func @transform_7(%arg0: i32) -> (i32, i32) {
    %c0_i32 = arith.constant 0 : i32
    %c0_i32_0 = arith.constant 0 : i32
    %c0_i32_1 = arith.constant 0 : i32
    return %c0_i32, %c0_i32_0 : i32, i32
  }
  func.func @transform_8(%arg0: i32) -> (i32, i32) {
    %c0_i32 = arith.constant 0 : i32
    %c0_i32_0 = arith.constant 0 : i32
    %c0_i32_1 = arith.constant 0 : i32
    return %c0_i32, %c0_i32_0 : i32, i32
  }
  func.func @transform_9(%arg0: i32) -> (i32, i32) {
    %c0_i32 = arith.constant 0 : i32
    %c0_i32_0 = arith.constant 0 : i32
    %c0_i32_1 = arith.constant 0 : i32
    return %c0_i32, %c0_i32_0 : i32, i32
  }
  func.func @transform_10(%arg0: i32) -> (i32, i32) {
    %c0_i32 = arith.constant 0 : i32
    %c0_i32_0 = arith.constant 0 : i32
    %c0_i32_1 = arith.constant 0 : i32
    return %c0_i32, %c0_i32_0 : i32, i32
  }
  func.func @transform_11(%arg0: i32) -> (i32, i32) {
    %c0_i32 = arith.constant 0 : i32
    %c0_i32_0 = arith.constant 0 : i32
    %c0_i32_1 = arith.constant 0 : i32
    return %c0_i32, %c0_i32_0 : i32, i32
  }
  func.func @transform_12(%arg0: i32) -> (i32, i32) {
    %c0_i32 = arith.constant 0 : i32
    %c0_i32_0 = arith.constant 0 : i32
    %c0_i32_1 = arith.constant 0 : i32
    return %c0_i32, %c0_i32_0 : i32, i32
  }
  func.func @transform_13(%arg0: i32) -> (i32, i32) {
    %c0_i32 = arith.constant 0 : i32
    %c0_i32_0 = arith.constant 0 : i32
    %c0_i32_1 = arith.constant 0 : i32
    return %c0_i32, %c0_i32_0 : i32, i32
  }
  func.func @transform_14(%arg0: i32) -> (i32, i32) {
    %c0_i32 = arith.constant 0 : i32
    %c0_i32_0 = arith.constant 0 : i32
    %c0_i32_1 = arith.constant 0 : i32
    return %c0_i32, %c0_i32_0 : i32, i32
  }
  func.func @transform_15(%arg0: i32) -> (i32, i32) {
    %c0_i32 = arith.constant 0 : i32
    %c0_i32_0 = arith.constant 0 : i32
    %c0_i32_1 = arith.constant 0 : i32
    return %c0_i32, %c0_i32_0 : i32, i32
  }
  func.func @transform_16(%arg0: i32) -> (i32, i32) {
    %c0_i32 = arith.constant 0 : i32
    %c0_i32_0 = arith.constant 0 : i32
    return %arg0, %c0_i32 : i32, i32
  }
}

</mosaic_0001>

<llo_original>
// kernel: liif_fpn_pred_forward.7
$region0: #{liif_fpn_pred_forward.7}
  #allocation0 [shape = 'u32[]', space=smem, size = 0x4, offset = 0x4, fixed_abs, tag = 'smem constant byte address 0x4 - core index']
  #allocation1 [shape = 'u32[144,128]{1,0:T(1,128)}', space=vmem, size = 0x12000, scoped, tag = 'internal scratch']
  %s0 = inlined_call_operand.vmem [shape: bf16[128,27], index: 0, kind: input, shape index: {}]
  %s1 = inlined_call_operand.vmem [shape: bf16[27,128], index: 1, kind: input, shape index: {}]
  %s2 = inlined_call_operand.vmem [shape: f32[1,128], index: 2, kind: input, shape index: {}]
  %s3 = inlined_call_operand.vmem [shape: bf16[128,128], index: 3, kind: output, shape index: {}]
  %s4 = sld [smem:[#allocation0]]
  $region22: #{liif_fpn_pred_forward.7} parent=0
    _
  %s6 = ssub.s32 1, %s4
  %s7 = scalar_select 0, %s6, %s4
  // Predicated region
  $region2: #{liif_fpn_pred_forward.7} parent=0 // pred_check
    _
  $region3: #{liif_fpn_pred_forward.7} parent=0 // pred_check_branch
    %9 = sbr.rel (0) target = $region5
  $region4: #{liif_fpn_pred_forward.7} parent=0 // pred_region
    _
  $region5: #{liif_fpn_pred_forward.7} parent=0 // pred_fallthru
    _
  // Predicated region
  $region6: #{liif_fpn_pred_forward.7} parent=0 // pred_check
    _
  $region7: #{liif_fpn_pred_forward.7} parent=0 // pred_check_branch
    %11 = sbr.rel (0) target = $region9
  $region8: #{liif_fpn_pred_forward.7} parent=0 // pred_region
    _
  $region9: #{liif_fpn_pred_forward.7} parent=0 // pred_fallthru
    _
  // Predicated region
  $region10: #{liif_fpn_pred_forward.7} parent=0 // pred_check
    _
  $region11: #{liif_fpn_pred_forward.7} parent=0 // pred_check_branch
    %13 = sbr.rel (0) target = $region13
  $region12: #{liif_fpn_pred_forward.7} parent=0 // pred_region
    _
  $region13: #{liif_fpn_pred_forward.7} parent=0 // pred_fallthru
    _
  %v15 = vld [vmem:[%s0] sm:$0xf]
  %v16 = vld [vmem:[%s0 + $0x4] sm:$0xf]
  %v17 = vld [vmem:[%s0 + $0x8] sm:$0xf]
  %v18 = vld [vmem:[%s0 + $0xc] sm:$0xf]
  %v19 = vld [vmem:[%s0 + $0x10] sm:$0xf]
  %v20 = vld [vmem:[%s0 + $0x14] sm:$0xf]
  %v21 = vld [vmem:[%s0 + $0x18] sm:$0xf]
  %v22 = vld [vmem:[%s0 + $0x1c] sm:$0xf]
  %v23 = vld [vmem:[%s0 + $0x20] sm:$0xf]
  %v24 = vld [vmem:[%s0 + $0x24] sm:$0xf]
  %v25 = vld [vmem:[%s0 + $0x28] sm:$0xf]
  %v26 = vld [vmem:[%s0 + $0x2c] sm:$0xf]
  %v27 = vld [vmem:[%s0 + $0x30] sm:$0xf]
  %v28 = vld [vmem:[%s0 + $0x34] sm:$0xf]
  %v29 = vld [vmem:[%s0 + $0x38] sm:$0xf]
  %v30 = vld [vmem:[%s0 + $0x3c] sm:$0xf]
  %v31 = vld [vmem:[%s1] sm:$0xf]
  %v32 = vld [vmem:[%s1 + $0x4] sm:$0xf]
  %v33 = vld [vmem:[%s1 + $0x8] sm:$0xf]
  %v34 = vld [vmem:[%s1 + $0xc] sm:$0x3]
  %v35 = vld [vmem:[%s2] sm:$0x1]
  %v37 = vlaneseq
  %v38 = vshrl.u32 %v37, 7
  %v39 = vsub.s32 0, %v38
  %v40 = vrot.slane %v35, %v39
  %v58 = vunpack.c.l.b16 %v15
  %v59 = vunpack.c.l.b16 %v16
  %v60 = vunpack.c.l.b16 %v17
  %v61 = vunpack.c.l.b16 %v18
  %v62 = vunpack.c.l.b16 %v19
  %v63 = vunpack.c.l.b16 %v20
  %v64 = vunpack.c.l.b16 %v21
  %v65 = vunpack.c.l.b16 %v22
  %v66 = vunpack.c.l.b16 %v23
  %v67 = vunpack.c.l.b16 %v24
  %v68 = vunpack.c.l.b16 %v25
  %v69 = vunpack.c.l.b16 %v26
  %v70 = vunpack.c.l.b16 %v27
  %v71 = vunpack.c.l.b16 %v28
  %v72 = vunpack.c.l.b16 %v29
  %v73 = vunpack.c.l.b16 %v30
  %v74 = vpack.c.b16 %v59, %v58
  %v75 = vpack.c.b16 %v61, %v60
  %v76 = vpack.c.b16 %v63, %v62
  %v77 = vpack.c.b16 %v65, %v64
  %v78 = vpack.c.b16 %v67, %v66
  %v79 = vpack.c.b16 %v69, %v68
  %v80 = vpack.c.b16 %v71, %v70
  %v81 = vpack.c.b16 %v73, %v72
  %v86 = vunpack.c.l.b16 %v31
  %v87 = vunpack.c.l.b16 %v32
  %v88 = vunpack.c.l.b16 %v33
  %v89 = vunpack.c.l.b16 %v34
  %v90 = vpack.c.b16 %v87, %v86
  %v91 = vpack.c.b16 %v89, %v88
  %vm93 = vcmask 220160
  %v95 = vsel %vm93, %v74, 0
  %v98 = vsel %vm93, %v75, 0
  %v101 = vsel %vm93, %v76, 0
  %v104 = vsel %vm93, %v77, 0
  %v107 = vsel %vm93, %v78, 0
  %v110 = vsel %vm93, %v79, 0
  %v113 = vsel %vm93, %v80, 0
  %v116 = vsel %vm93, %v81, 0
  %vm118 = vcmask 1044480
  %vm119 = vcmask 1045504
  %v120 = vsel %vm118, 4294967295, 65535
  %v121 = vsel %vm119, %v120, 0
  %v123 = vand.u32 %v91, %v121
  %125 = vmatprep.subr.bf16.mxu0 0
  %126 = vmatpush1.bf16.msra.mxu0 %v90
  %127 = vmatprep.subr.bf16.mxu0 0
  %128 = vmatpush1.bf16.msra.mxu0 %v123
  %129 = vmatprep.subr.bf16.mxu0 0
  %130 = vmatpush1.bf16.msra.mxu0 0
  %131 = vmatprep.subr.bf16.mxu0 0
  %132 = vmatpush1.bf16.msra.mxu0 0
  %133 = vmatprep.subr.bf16.mxu0 0
  %134 = vmatpush1.bf16.msra.mxu0 0
  %135 = vmatprep.subr.bf16.mxu0 0
  %136 = vmatpush1.bf16.msra.mxu0 0
  %137 = vmatprep.subr.bf16.mxu0 0
  %138 = vmatpush1.bf16.msra.mxu0 0
  %139 = vmatprep.subr.bf16.mxu0 0
  %140 = vmatpush1.bf16.msra.mxu0 0
  %141 = vmatprep.subr.bf16.mxu0 0
  %142 = vmatpush1.bf16.msra.mxu0 0
  %143 = vmatprep.subr.bf16.mxu0 0
  %144 = vmatpush1.bf16.msra.mxu0 0
  %145 = vmatprep.subr.bf16.mxu0 0
  %146 = vmatpush1.bf16.msra.mxu0 0
  %147 = vmatprep.subr.bf16.mxu0 0
  %148 = vmatpush1.bf16.msra.mxu0 0
  %149 = vmatprep.subr.bf16.mxu0 0
  %150 = vmatpush1.bf16.msra.mxu0 0
  %151 = vmatprep.subr.bf16.mxu0 0
  %152 = vmatpush1.bf16.msra.mxu0 0
  %153 = vmatprep.subr.bf16.mxu0 0
  %154 = vmatpush1.bf16.msra.mxu0 0
  %155 = vmatprep.subr.bf16.mxu0 0
  %156 = vmatpush1.bf16.msra.mxu0 0
  %157 = vmatprep.mubr.bf16.mxu0 0
  %158 = vmatmul.mubr.bf16.gmra.mrb[0].mxu0 %v95
  %v159 = vpop.f32.mrb[0].mxu0
  %v160 = vadd.f32 %v40, %v159
  %v161 = vpop.f32.mrb[0].mxu0
  %v162 = vpop.f32.mrb[0].mxu0
  %v163 = vadd.f32 %v40, %v162
  %v164 = vpop.f32.mrb[0].mxu0
  %165 = vmatprep.mubr.bf16.mxu0 0
  %166 = vmatmul.mubr.bf16.gmra.mrb[0].mxu0 %v98
  %v167 = vpop.f32.mrb[0].mxu0
  %v168 = vadd.f32 %v40, %v167
  %v169 = vpop.f32.mrb[0].mxu0
  %v170 = vpop.f32.mrb[0].mxu0
  %v171 = vadd.f32 %v40, %v170
  %v172 = vpop.f32.mrb[0].mxu0
  %173 = vmatprep.mubr.bf16.mxu0 0
  %174 = vmatmul.mubr.bf16.gmra.mrb[0].mxu0 %v101
  %v175 = vpop.f32.mrb[0].mxu0
  %v176 = vadd.f32 %v40, %v175
  %v177 = vpop.f32.mrb[0].mxu0
  %v178 = vpop.f32.mrb[0].mxu0
  %v179 = vadd.f32 %v40, %v178
  %v180 = vpop.f32.mrb[0].mxu0
  %181 = vmatprep.mubr.bf16.mxu0 0
  %182 = vmatmul.mubr.bf16.gmra.mrb[0].mxu0 %v104
  %v183 = vpop.f32.mrb[0].mxu0
  %v184 = vadd.f32 %v40, %v183
  %v185 = vpop.f32.mrb[0].mxu0
  %v186 = vpop.f32.mrb[0].mxu0
  %v187 = vadd.f32 %v40, %v186
  %v188 = vpop.f32.mrb[0].mxu0
  %189 = vmatprep.mubr.bf16.mxu0 0
  %190 = vmatmul.mubr.bf16.gmra.mrb[0].mxu0 %v107
  %v191 = vpop.f32.mrb[0].mxu0
  %v192 = vadd.f32 %v40, %v191
  %v193 = vpop.f32.mrb[0].mxu0
  %v194 = vpop.f32.mrb[0].mxu0
  %v195 = vadd.f32 %v40, %v194
  %v196 = vpop.f32.mrb[0].mxu0
  %197 = vmatprep.mubr.bf16.mxu0 0
  %198 = vmatmul.mubr.bf16.gmra.mrb[0].mxu0 %v110
  %v199 = vpop.f32.mrb[0].mxu0
  %v200 = vadd.f32 %v40, %v199
  %v201 = vpop.f32.mrb[0].mxu0
  %v202 = vpop.f32.mrb[0].mxu0
  %v203 = vadd.f32 %v40, %v202
  %v204 = vpop.f32.mrb[0].mxu0
  %205 = vmatprep.mubr.bf16.mxu0 0
  %206 = vmatmul.mubr.bf16.gmra.mrb[0].mxu0 %v113
  %v207 = vpop.f32.mrb[0].mxu0
  %v208 = vadd.f32 %v40, %v207
  %v209 = vpop.f32.mrb[0].mxu0
  %v210 = vpop.f32.mrb[0].mxu0
  %v211 = vadd.f32 %v40, %v210
  %v212 = vpop.f32.mrb[0].mxu0
  %213 = vmatprep.mubr.bf16.mxu0 0
  %214 = vmatmul.mubr.bf16.gmra.mrb[0].mxu0 %v116
  %v215 = vpop.f32.mrb[0].mxu0
  %v216 = vadd.f32 %v40, %v215
  %v217 = vpop.f32.mrb[0].mxu0
  %v218 = vpop.f32.mrb[0].mxu0
  %v219 = vadd.f32 %v40, %v218
  %v220 = vpop.f32.mrb[0].mxu0
  %221 = vdwg.mxu0
  %v222 = vpack.c.bf16 %v163, %v160
  %v223 = vpack.c.bf16 %v171, %v168
  %v224 = vpack.c.bf16 %v179, %v176
  %v225 = vpack.c.bf16 %v187, %v184
  %v226 = vpack.c.bf16 %v195, %v192
  %v227 = vpack.c.bf16 %v203, %v200
  %v228 = vpack.c.bf16 %v211, %v208
  %v229 = vpack.c.bf16 %v219, %v216
  %v238 = vunpack.c.l.b16 %v222
  %v239 = vunpack.c.h.b16 %v222
  %v240 = vunpack.c.l.b16 %v223
  %v241 = vunpack.c.h.b16 %v223
  %v242 = vunpack.c.l.b16 %v224
  %v243 = vunpack.c.h.b16 %v224
  %v244 = vunpack.c.l.b16 %v225
  %v245 = vunpack.c.h.b16 %v225
  %v246 = vunpack.c.l.b16 %v226
  %v247 = vunpack.c.h.b16 %v226
  %v248 = vunpack.c.l.b16 %v227
  %v249 = vunpack.c.h.b16 %v227
  %v250 = vunpack.c.l.b16 %v228
  %v251 = vunpack.c.h.b16 %v228
  %v252 = vunpack.c.l.b16 %v229
  %v253 = vunpack.c.h.b16 %v229
  %v254 = vpack.c.b16 %v238, %v238
  %v255 = vpack.c.b16 %v239, %v239
  %v256 = vpack.c.b16 %v240, %v240
  %v257 = vpack.c.b16 %v241, %v241
  %v258 = vpack.c.b16 %v242, %v242
  %v259 = vpack.c.b16 %v243, %v243
  %v260 = vpack.c.b16 %v244, %v244
  %v261 = vpack.c.b16 %v245, %v245
  %v262 = vpack.c.b16 %v246, %v246
  %v263 = vpack.c.b16 %v247, %v247
  %v264 = vpack.c.b16 %v248, %v248
  %v265 = vpack.c.b16 %v249, %v249
  %v266 = vpack.c.b16 %v250, %v250
  %v267 = vpack.c.b16 %v251, %v251
  %v268 = vpack.c.b16 %v252, %v252
  %v269 = vpack.c.b16 %v253, %v253
  %286 = vst [vmem:[%s3] sm:$0xf] %v254
  %287 = vst [vmem:[%s3 + $0x4] sm:$0xf] %v255
  %288 = vst [vmem:[%s3 + $0x8] sm:$0xf] %v256
  %289 = vst [vmem:[%s3 + $0xc] sm:$0xf] %v257
  %290 = vst [vmem:[%s3 + $0x10] sm:$0xf] %v258
  %291 = vst [vmem:[%s3 + $0x14] sm:$0xf] %v259
  %292 = vst [vmem:[%s3 + $0x18] sm:$0xf] %v260
  %293 = vst [vmem:[%s3 + $0x1c] sm:$0xf] %v261
  %294 = vst [vmem:[%s3 + $0x20] sm:$0xf] %v262
  %295 = vst [vmem:[%s3 + $0x24] sm:$0xf] %v263
  %296 = vst [vmem:[%s3 + $0x28] sm:$0xf] %v264
  %297 = vst [vmem:[%s3 + $0x2c] sm:$0xf] %v265
  %298 = vst [vmem:[%s3 + $0x30] sm:$0xf] %v266
  %299 = vst [vmem:[%s3 + $0x34] sm:$0xf] %v267
  %300 = vst [vmem:[%s3 + $0x38] sm:$0xf] %v268
  %301 = vst [vmem:[%s3 + $0x3c] sm:$0xf] %v269
  // Predicated region
  $region14: #{liif_fpn_pred_forward.7} parent=0 // pred_check
    _
  $region15: #{liif_fpn_pred_forward.7} parent=0 // pred_check_branch
    %303 = sbr.rel (0) target = $region17
  $region16: #{liif_fpn_pred_forward.7} parent=0 // pred_region
    _
  $region17: #{liif_fpn_pred_forward.7} parent=0 // pred_fallthru
    _
  // Predicated region
  $region18: #{liif_fpn_pred_forward.7} parent=0 // pred_check
    _
  $region19: #{liif_fpn_pred_forward.7} parent=0 // pred_check_branch
    %305 = sbr.rel (0) target = $region21
  $region20: #{liif_fpn_pred_forward.7} parent=0 // pred_region
    _
  $region21: #{liif_fpn_pred_forward.7} parent=0 // pred_fallthru
    _

// kernel: liif_fpn_pred_forward.8
$region0: #{liif_fpn_pred_forward.8}
  #allocation0 [shape = 'u32[]', space=smem, size = 0x4, offset = 0x4, fixed_abs, tag = 'smem constant byte address 0x4 - core index']
  #allocation1 [shape = 'u32[144,128]{1,0:T(1,128)}', space=vmem, size = 0x12000, scoped, tag = 'internal scratch']
  %s0 = inlined_call_operand.vmem [shape: bf16[128,72], index: 0, kind: input, shape index: {}]
  %s1 = inlined_call_operand.vmem [shape: bf16[72,128], index: 1, kind: input, shape index: {}]
  %s2 = inlined_call_operand.vmem [shape: f32[1,128], index: 2, kind: input, shape index: {}]
  %s3 = inlined_call_operand.vmem [shape: bf16[128,128], index: 3, kind: output, shape index: {}]
  %s4 = sld [smem:[#allocation0]]
  $region22: #{liif_fpn_pred_forward.8} parent=0
    _
  %s6 = ssub.s32 1, %s4
  %s7 = scalar_select 0, %s6, %s4
  // Predicated region
  $region2: #{liif_fpn_pred_forward.8} parent=0 // pred_check
    _
  $region3: #{liif_fpn_pred_forward.8} parent=0 // pred_check_branch
    %9 = sbr.rel (0) target = $region5
  $region4: #{liif_fpn_pred_forward.8} parent=0 // pred_region
    _
  $region5: #{liif_fpn_pred_forward.8} parent=0 // pred_fallthru
    _
  // Predicated region
  $region6: #{liif_fpn_pred_forward.8} parent=0 // pred_check
    _
  $region7: #{liif_fpn_pred_forward.8} parent=0 // pred_check_branch
    %11 = sbr.rel (0) target = $region9
  $region8: #{liif_fpn_pred_forward.8} parent=0 // pred_region
    _
  $region9: #{liif_fpn_pred_forward.8} parent=0 // pred_fallthru
    _
  // Predicated region
  $region10: #{liif_fpn_pred_forward.8} parent=0 // pred_check
    _
  $region11: #{liif_fpn_pred_forward.8} parent=0 // pred_check_branch
    %13 = sbr.rel (0) target = $region13
  $region12: #{liif_fpn_pred_forward.8} parent=0 // pred_region
    _
  $region13: #{liif_fpn_pred_forward.8} parent=0 // pred_fallthru
    _
  %v15 = vld [vmem:[%s0] sm:$0xf]
  %v16 = vld [vmem:[%s0 + $0x4] sm:$0xf]
  %v17 = vld [vmem:[%s0 + $0x8] sm:$0xf]
  %v18 = vld [vmem:[%s0 + $0xc] sm:$0xf]
  %v19 = vld [vmem:[%s0 + $0x10] sm:$0xf]
  %v20 = vld [vmem:[%s0 + $0x14] sm:$0xf]
  %v21 = vld [vmem:[%s0 + $0x18] sm:$0xf]
  %v22 = vld [vmem:[%s0 + $0x1c] sm:$0xf]
  %v23 = vld [vmem:[%s0 + $0x20] sm:$0xf]
  %v24 = vld [vmem:[%s0 + $0x24] sm:$0xf]
  %v25 = vld [vmem:[%s0 + $0x28] sm:$0xf]
  %v26 = vld [vmem:[%s0 + $0x2c] sm:$0xf]
  %v27 = vld [vmem:[%s0 + $0x30] sm:$0xf]
  %v28 = vld [vmem:[%s0 + $0x34] sm:$0xf]
  %v29 = vld [vmem:[%s0 + $0x38] sm:$0xf]
  %v30 = vld [vmem:[%s0 + $0x3c] sm:$0xf]
  %v31 = vld [vmem:[%s1] sm:$0xf]
  %v32 = vld [vmem:[%s1 + $0x4] sm:$0xf]
  %v33 = vld [vmem:[%s1 + $0x8] sm:$0xf]
  %v34 = vld [vmem:[%s1 + $0xc] sm:$0xf]
  %v35 = vld [vmem:[%s1 + $0x10] sm:$0xf]
  %v36 = vld [vmem:[%s1 + $0x14] sm:$0xf]
  %v37 = vld [vmem:[%s1 + $0x18] sm:$0xf]
  %v38 = vld [vmem:[%s1 + $0x1c] sm:$0xf]
  %v39 = vld [vmem:[%s1 + $0x20] sm:$0xf]
  %v40 = vld [vmem:[%s2] sm:$0x1]
  %v42 = vlaneseq
  %v43 = vshrl.u32 %v42, 7
  %v44 = vsub.s32 0, %v43
  %v45 = vrot.slane %v40, %v44
  %v63 = vunpack.c.l.b16 %v15
  %v64 = vunpack.c.l.b16 %v16
  %v65 = vunpack.c.l.b16 %v17
  %v66 = vunpack.c.l.b16 %v18
  %v67 = vunpack.c.l.b16 %v19
  %v68 = vunpack.c.l.b16 %v20
  %v69 = vunpack.c.l.b16 %v21
  %v70 = vunpack.c.l.b16 %v22
  %v71 = vunpack.c.l.b16 %v23
  %v72 = vunpack.c.l.b16 %v24
  %v73 = vunpack.c.l.b16 %v25
  %v74 = vunpack.c.l.b16 %v26
  %v75 = vunpack.c.l.b16 %v27
  %v76 = vunpack.c.l.b16 %v28
  %v77 = vunpack.c.l.b16 %v29
  %v78 = vunpack.c.l.b16 %v30
  %v79 = vpack.c.b16 %v64, %v63
  %v80 = vpack.c.b16 %v66, %v65
  %v81 = vpack.c.b16 %v68, %v67
  %v82 = vpack.c.b16 %v70, %v69
  %v83 = vpack.c.b16 %v72, %v71
  %v84 = vpack.c.b16 %v74, %v73
  %v85 = vpack.c.b16 %v76, %v75
  %v86 = vpack.c.b16 %v78, %v77
  %v96 = vunpack.c.l.b16 %v31
  %v97 = vunpack.c.l.b16 %v32
  %v98 = vunpack.c.l.b16 %v33
  %v99 = vunpack.c.l.b16 %v34
  %v100 = vunpack.c.l.b16 %v35
  %v101 = vunpack.c.l.b16 %v36
  %v102 = vunpack.c.l.b16 %v37
  %v103 = vunpack.c.l.b16 %v38
  %v104 = vunpack.c.l.b16 %v39
  %v105 = vpack.c.b16 %v97, %v96
  %v106 = vpack.c.b16 %v99, %v98
  %v107 = vpack.c.b16 %v101, %v100
  %v108 = vpack.c.b16 %v103, %v102
  %v109 = vpack.c.b16 %v104, %v104
  %vm114 = vcmask 588800
  %v116 = vsel %vm114, %v79, 0
  %v119 = vsel %vm114, %v80, 0
  %v122 = vsel %vm114, %v81, 0
  %v125 = vsel %vm114, %v82, 0
  %v128 = vsel %vm114, %v83, 0
  %v131 = vsel %vm114, %v84, 0
  %v134 = vsel %vm114, %v85, 0
  %v137 = vsel %vm114, %v86, 0
  %vm139 = vcmask 1043456
  %v141 = vsel %vm139, %v109, 0
  %143 = vmatprep.subr.bf16.mxu0 0
  %144 = vmatpush1.bf16.msra.mxu0 %v105
  %145 = vmatprep.subr.bf16.mxu0 0
  %146 = vmatpush1.bf16.msra.mxu0 %v106
  %147 = vmatprep.subr.bf16.mxu0 0
  %148 = vmatpush1.bf16.msra.mxu0 %v107
  %149 = vmatprep.subr.bf16.mxu0 0
  %150 = vmatpush1.bf16.msra.mxu0 %v108
  %151 = vmatprep.subr.bf16.mxu0 0
  %152 = vmatpush1.bf16.msra.mxu0 %v141
  %153 = vmatprep.subr.bf16.mxu0 0
  %154 = vmatpush1.bf16.msra.mxu0 0
  %155 = vmatprep.subr.bf16.mxu0 0
  %156 = vmatpush1.bf16.msra.mxu0 0
  %157 = vmatprep.subr.bf16.mxu0 0
  %158 = vmatpush1.bf16.msra.mxu0 0
  %159 = vmatprep.subr.bf16.mxu0 0
  %160 = vmatpush1.bf16.msra.mxu0 0
  %161 = vmatprep.subr.bf16.mxu0 0
  %162 = vmatpush1.bf16.msra.mxu0 0
  %163 = vmatprep.subr.bf16.mxu0 0
  %164 = vmatpush1.bf16.msra.mxu0 0
  %165 = vmatprep.subr.bf16.mxu0 0
  %166 = vmatpush1.bf16.msra.mxu0 0
  %167 = vmatprep.subr.bf16.mxu0 0
  %168 = vmatpush1.bf16.msra.mxu0 0
  %169 = vmatprep.subr.bf16.mxu0 0
  %170 = vmatpush1.bf16.msra.mxu0 0
  %171 = vmatprep.subr.bf16.mxu0 0
  %172 = vmatpush1.bf16.msra.mxu0 0
  %173 = vmatprep.subr.bf16.mxu0 0
  %174 = vmatpush1.bf16.msra.mxu0 0
  %175 = vmatprep.mubr.bf16.mxu0 0
  %176 = vmatmul.mubr.bf16.gmra.mrb[0].mxu0 %v116
  %v177 = vpop.f32.mrb[0].mxu0
  %v178 = vadd.f32 %v45, %v177
  %v179 = vpop.f32.mrb[0].mxu0
  %v180 = vpop.f32.mrb[0].mxu0
  %v181 = vadd.f32 %v45, %v180
  %v182 = vpop.f32.mrb[0].mxu0
  %183 = vmatprep.mubr.bf16.mxu0 0
  %184 = vmatmul.mubr.bf16.gmra.mrb[0].mxu0 %v119
  %v185 = vpop.f32.mrb[0].mxu0
  %v186 = vadd.f32 %v45, %v185
  %v187 = vpop.f32.mrb[0].mxu0
  %v188 = vpop.f32.mrb[0].mxu0
  %v189 = vadd.f32 %v45, %v188
  %v190 = vpop.f32.mrb[0].mxu0
  %191 = vmatprep.mubr.bf16.mxu0 0
  %192 = vmatmul.mubr.bf16.gmra.mrb[0].mxu0 %v122
  %v193 = vpop.f32.mrb[0].mxu0
  %v194 = vadd.f32 %v45, %v193
  %v195 = vpop.f32.mrb[0].mxu0
  %v196 = vpop.f32.mrb[0].mxu0
  %v197 = vadd.f32 %v45, %v196
  %v198 = vpop.f32.mrb[0].mxu0
  %199 = vmatprep.mubr.bf16.mxu0 0
  %200 = vmatmul.mubr.bf16.gmra.mrb[0].mxu0 %v125
  %v201 = vpop.f32.mrb[0].mxu0
  %v202 = vadd.f32 %v45, %v201
  %v203 = vpop.f32.mrb[0].mxu0
  %v204 = vpop.f32.mrb[0].mxu0
  %v205 = vadd.f32 %v45, %v204
  %v206 = vpop.f32.mrb[0].mxu0
  %207 = vmatprep.mubr.bf16.mxu0 0
  %208 = vmatmul.mubr.bf16.gmra.mrb[0].mxu0 %v128
  %v209 = vpop.f32.mrb[0].mxu0
  %v210 = vadd.f32 %v45, %v209
  %v211 = vpop.f32.mrb[0].mxu0
  %v212 = vpop.f32.mrb[0].mxu0
  %v213 = vadd.f32 %v45, %v212
  %v214 = vpop.f32.mrb[0].mxu0
  %215 = vmatprep.mubr.bf16.mxu0 0
  %216 = vmatmul.mubr.bf16.gmra.mrb[0].mxu0 %v131
  %v217 = vpop.f32.mrb[0].mxu0
  %v218 = vadd.f32 %v45, %v217
  %v219 = vpop.f32.mrb[0].mxu0
  %v220 = vpop.f32.mrb[0].mxu0
  %v221 = vadd.f32 %v45, %v220
  %v222 = vpop.f32.mrb[0].mxu0
  %223 = vmatprep.mubr.bf16.mxu0 0
  %224 = vmatmul.mubr.bf16.gmra.mrb[0].mxu0 %v134
  %v225 = vpop.f32.mrb[0].mxu0
  %v226 = vadd.f32 %v45, %v225
  %v227 = vpop.f32.mrb[0].mxu0
  %v228 = vpop.f32.mrb[0].mxu0
  %v229 = vadd.f32 %v45, %v228
  %v230 = vpop.f32.mrb[0].mxu0
  %231 = vmatprep.mubr.bf16.mxu0 0
  %232 = vmatmul.mubr.bf16.gmra.mrb[0].mxu0 %v137
  %v233 = vpop.f32.mrb[0].mxu0
  %v234 = vadd.f32 %v45, %v233
  %v235 = vpop.f32.mrb[0].mxu0
  %v236 = vpop.f32.mrb[0].mxu0
  %v237 = vadd.f32 %v45, %v236
  %v238 = vpop.f32.mrb[0].mxu0
  %239 = vdwg.mxu0
  %v240 = vpack.c.bf16 %v181, %v178
  %v241 = vpack.c.bf16 %v189, %v186
  %v242 = vpack.c.bf16 %v197, %v194
  %v243 = vpack.c.bf16 %v205, %v202
  %v244 = vpack.c.bf16 %v213, %v210
  %v245 = vpack.c.bf16 %v221, %v218
  %v246 = vpack.c.bf16 %v229, %v226
  %v247 = vpack.c.bf16 %v237, %v234
  %v256 = vunpack.c.l.b16 %v240
  %v257 = vunpack.c.h.b16 %v240
  %v258 = vunpack.c.l.b16 %v241
  %v259 = vunpack.c.h.b16 %v241
  %v260 = vunpack.c.l.b16 %v242
  %v261 = vunpack.c.h.b16 %v242
  %v262 = vunpack.c.l.b16 %v243
  %v263 = vunpack.c.h.b16 %v243
  %v264 = vunpack.c.l.b16 %v244
  %v265 = vunpack.c.h.b16 %v244
  %v266 = vunpack.c.l.b16 %v245
  %v267 = vunpack.c.h.b16 %v245
  %v268 = vunpack.c.l.b16 %v246
  %v269 = vunpack.c.h.b16 %v246
  %v270 = vunpack.c.l.b16 %v247
  %v271 = vunpack.c.h.b16 %v247
  %v272 = vpack.c.b16 %v256, %v256
  %v273 = vpack.c.b16 %v257, %v257
  %v274 = vpack.c.b16 %v258, %v258
  %v275 = vpack.c.b16 %v259, %v259
  %v276 = vpack.c.b16 %v260, %v260
  %v277 = vpack.c.b16 %v261, %v261
  %v278 = vpack.c.b16 %v262, %v262
  %v279 = vpack.c.b16 %v263, %v263
  %v280 = vpack.c.b16 %v264, %v264
  %v281 = vpack.c.b16 %v265, %v265
  %v282 = vpack.c.b16 %v266, %v266
  %v283 = vpack.c.b16 %v267, %v267
  %v284 = vpack.c.b16 %v268, %v268
  %v285 = vpack.c.b16 %v269, %v269
  %v286 = vpack.c.b16 %v270, %v270
  %v287 = vpack.c.b16 %v271, %v271
  %304 = vst [vmem:[%s3] sm:$0xf] %v272
  %305 = vst [vmem:[%s3 + $0x4] sm:$0xf] %v273
  %306 = vst [vmem:[%s3 + $0x8] sm:$0xf] %v274
  %307 = vst [vmem:[%s3 + $0xc] sm:$0xf] %v275
  %308 = vst [vmem:[%s3 + $0x10] sm:$0xf] %v276
  %309 = vst [vmem:[%s3 + $0x14] sm:$0xf] %v277
  %310 = vst [vmem:[%s3 + $0x18] sm:$0xf] %v278
  %311 = vst [vmem:[%s3 + $0x1c] sm:$0xf] %v279
  %312 = vst [vmem:[%s3 + $0x20] sm:$0xf] %v280
  %313 = vst [vmem:[%s3 + $0x24] sm:$0xf] %v281
  %314 = vst [vmem:[%s3 + $0x28] sm:$0xf] %v282
  %315 = vst [vmem:[%s3 + $0x2c] sm:$0xf] %v283
  %316 = vst [vmem:[%s3 + $0x30] sm:$0xf] %v284
  %317 = vst [vmem:[%s3 + $0x34] sm:$0xf] %v285
  %318 = vst [vmem:[%s3 + $0x38] sm:$0xf] %v286
  %319 = vst [vmem:[%s3 + $0x3c] sm:$0xf] %v287
  // Predicated region
  $region14: #{liif_fpn_pred_forward.8} parent=0 // pred_check
    _
  $region15: #{liif_fpn_pred_forward.8} parent=0 // pred_check_branch
    %321 = sbr.rel (0) target = $region17
  $region16: #{liif_fpn_pred_forward.8} parent=0 // pred_region
    _
  $region17: #{liif_fpn_pred_forward.8} parent=0 // pred_fallthru
    _
  // Predicated region
  $region18: #{liif_fpn_pred_forward.8} parent=0 // pred_check
    _
  $region19: #{liif_fpn_pred_forward.8} parent=0 // pred_check_branch
    %323 = sbr.rel (0) target = $region21
  $region20: #{liif_fpn_pred_forward.8} parent=0 // pred_region
    _
  $region21: #{liif_fpn_pred_forward.8} parent=0 // pred_fallthru
    _

// kernel: liif_fpn_pred_forward.9
$region0: #{liif_fpn_pred_forward.9}
  #allocation0 [shape = 'u32[]', space=smem, size = 0x4, offset = 0x4, fixed_abs, tag = 'smem constant byte address 0x4 - core index']
  #allocation1 [shape = 'u32[144,128]{1,0:T(1,128)}', space=vmem, size = 0x12000, scoped, tag = 'internal scratch']
  %s0 = inlined_call_operand.vmem [shape: bf16[512,72], index: 0, kind: input, shape index: {}]
  %s1 = inlined_call_operand.vmem [shape: bf16[72,128], index: 1, kind: input, shape index: {}]
  %s2 = inlined_call_operand.vmem [shape: f32[1,128], index: 2, kind: input, shape index: {}]
  %s3 = inlined_call_operand.vmem [shape: bf16[512,128], index: 3, kind: output, shape index: {}]
  %s4 = sld [smem:[#allocation0]]
  $region22: #{liif_fpn_pred_forward.9} parent=0
    _
  %s6 = ssub.s32 1, %s4
  %s7 = scalar_select 0, %s6, %s4
  // Predicated region
  $region2: #{liif_fpn_pred_forward.9} parent=0 // pred_check
    _
  $region3: #{liif_fpn_pred_forward.9} parent=0 // pred_check_branch
    %9 = sbr.rel (0) target = $region5
  $region4: #{liif_fpn_pred_forward.9} parent=0 // pred_region
    _
  $region5: #{liif_fpn_pred_forward.9} parent=0 // pred_fallthru
    _
  // Predicated region
  $region6: #{liif_fpn_pred_forward.9} parent=0 // pred_check
    _
  $region7: #{liif_fpn_pred_forward.9} parent=0 // pred_check_branch
    %11 = sbr.rel (0) target = $region9
  $region8: #{liif_fpn_pred_forward.9} parent=0 // pred_region
    _
  $region9: #{liif_fpn_pred_forward.9} parent=0 // pred_fallthru
    _
  // Predicated region
  $region10: #{liif_fpn_pred_forward.9} parent=0 // pred_check
    _
  $region11: #{liif_fpn_pred_forward.9} parent=0 // pred_check_branch
    %13 = sbr.rel (0) target = $region13
  $region12: #{liif_fpn_pred_forward.9} parent=0 // pred_region
    _
  $region13: #{liif_fpn_pred_forward.9} parent=0 // pred_fallthru
    _
  %v15 = vld [vmem:[%s0] sm:$0xf]
  %v16 = vld [vmem:[%s0 + $0x4] sm:$0xf]
  %v17 = vld [vmem:[%s0 + $0x8] sm:$0xf]
  %v18 = vld [vmem:[%s0 + $0xc] sm:$0xf]
  %v19 = vld [vmem:[%s0 + $0x10] sm:$0xf]
  %v20 = vld [vmem:[%s0 + $0x14] sm:$0xf]
  %v21 = vld [vmem:[%s0 + $0x18] sm:$0xf]
  %v22 = vld [vmem:[%s0 + $0x1c] sm:$0xf]
  %v23 = vld [vmem:[%s0 + $0x20] sm:$0xf]
  %v24 = vld [vmem:[%s0 + $0x24] sm:$0xf]
  %v25 = vld [vmem:[%s0 + $0x28] sm:$0xf]
  %v26 = vld [vmem:[%s0 + $0x2c] sm:$0xf]
  %v27 = vld [vmem:[%s0 + $0x30] sm:$0xf]
  %v28 = vld [vmem:[%s0 + $0x34] sm:$0xf]
  %v29 = vld [vmem:[%s0 + $0x38] sm:$0xf]
  %v30 = vld [vmem:[%s0 + $0x3c] sm:$0xf]
  %v31 = vld [vmem:[%s0 + $0x40] sm:$0xf]
  %v32 = vld [vmem:[%s0 + $0x44] sm:$0xf]
  %v33 = vld [vmem:[%s0 + $0x48] sm:$0xf]
  %v34 = vld [vmem:[%s0 + $0x4c] sm:$0xf]
  %v35 = vld [vmem:[%s0 + $0x50] sm:$0xf]
  %v36 = vld [vmem:[%s0 + $0x54] sm:$0xf]
  %v37 = vld [vmem:[%s0 + $0x58] sm:$0xf]
  %v38 = vld [vmem:[%s0 + $0x5c] sm:$0xf]
  %v39 = vld [vmem:[%s0 + $0x60] sm:$0xf]
  %v40 = vld [vmem:[%s0 + $0x64] sm:$0xf]
  %v41 = vld [vmem:[%s0 + $0x68] sm:$0xf]
  %v42 = vld [vmem:[%s0 + $0x6c] sm:$0xf]
  %v43 = vld [vmem:[%s0 + $0x70] sm:$0xf]
  %v44 = vld [vmem:[%s0 + $0x74] sm:$0xf]
  %v45 = vld [vmem:[%s0 + $0x78] sm:$0xf]
  %v46 = vld [vmem:[%s0 + $0x7c] sm:$0xf]
  %v47 = vld [vmem:[%s0 + $0x80] sm:$0xf]
  %v48 = vld [vmem:[%s0 + $0x84] sm:$0xf]
  %v49 = vld [vmem:[%s0 + $0x88] sm:$0xf]
  %v50 = vld [vmem:[%s0 + $0x8c] sm:$0xf]
  %v51 = vld [vmem:[%s0 + $0x90] sm:$0xf]
  %v52 = vld [vmem:[%s0 + $0x94] sm:$0xf]
  %v53 = vld [vmem:[%s0 + $0x98] sm:$0xf]
  %v54 = vld [vmem:[%s0 + $0x9c] sm:$0xf]
  %v55 = vld [vmem:[%s0 + $0xa0] sm:$0xf]
  %v56 = vld [vmem:[%s0 + $0xa4] sm:$0xf]
  %v57 = vld [vmem:[%s0 + $0xa8] sm:$0xf]
  %v58 = vld [vmem:[%s0 + $0xac] sm:$0xf]
  %v59 = vld [vmem:[%s0 + $0xb0] sm:$0xf]
  %v60 = vld [vmem:[%s0 + $0xb4] sm:$0xf]
  %v61 = vld [vmem:[%s0 + $0xb8] sm:$0xf]
  %v62 = vld [vmem:[%s0 + $0xbc] sm:$0xf]
  %v63 = vld [vmem:[%s0 + $0xc0] sm:$0xf]
  %v64 = vld [vmem:[%s0 + $0xc4] sm:$0xf]
  %v65 = vld [vmem:[%s0 + $0xc8] sm:$0xf]
  %v66 = vld [vmem:[%s0 + $0xcc] sm:$0xf]
  %v67 = vld [vmem:[%s0 + $0xd0] sm:$0xf]
  %v68 = vld [vmem:[%s0 + $0xd4] sm:$0xf]
  %v69 = vld [vmem:[%s0 + $0xd8] sm:$0xf]
  %v70 = vld [vmem:[%s0 + $0xdc] sm:$0xf]
  %v71 = vld [vmem:[%s0 + $0xe0] sm:$0xf]
  %v72 = vld [vmem:[%s0 + $0xe4] sm:$0xf]
  %v73 = vld [vmem:[%s0 + $0xe8] sm:$0xf]
  %v74 = vld [vmem:[%s0 + $0xec] sm:$0xf]
  %v75 = vld [vmem:[%s0 + $0xf0] sm:$0xf]
  %v76 = vld [vmem:[%s0 + $0xf4] sm:$0xf]
  %v77 = vld [vmem:[%s0 + $0xf8] sm:$0xf]
  %v78 = vld [vmem:[%s0 + $0xfc] sm:$0xf]
  %v79 = vld [vmem:[%s1] sm:$0xf]
  %v80 = vld [vmem:[%s1 + $0x4] sm:$0xf]
  %v81 = vld [vmem:[%s1 + $0x8] sm:$0xf]
  %v82 = vld [vmem:[%s1 + $0xc] sm:$0xf]
  %v83 = vld [vmem:[%s1 + $0x10] sm:$0xf]
  %v84 = vld [vmem:[%s1 + $0x14] sm:$0xf]
  %v85 = vld [vmem:[%s1 + $0x18] sm:$0xf]
  %v86 = vld [vmem:[%s1 + $0x1c] sm:$0xf]
  %v87 = vld [vmem:[%s1 + $0x20] sm:$0xf]
  %v88 = vld [vmem:[%s2] sm:$0x1]
  %v90 = vlaneseq
  %v91 = vshrl.u32 %v90, 7
  %v92 = vsub.s32 0, %v91
  %v93 = vrot.slane %v88, %v92
  %v159 = vunpack.c.l.b16 %v15
  %v160 = vunpack.c.l.b16 %v16
  %v161 = vunpack.c.l.b16 %v17
  %v162 = vunpack.c.l.b16 %v18
  %v163 = vunpack.c.l.b16 %v19
  %v164 = vunpack.c.l.b16 %v20
  %v165 = vunpack.c.l.b16 %v21
  %v166 = vunpack.c.l.b16 %v22
  %v167 = vunpack.c.l.b16 %v23
  %v168 = vunpack.c.l.b16 %v24
  %v169 = vunpack.c.l.b16 %v25
  %v170 = vunpack.c.l.b16 %v26
  %v171 = vunpack.c.l.b16 %v27
  %v172 = vunpack.c.l.b16 %v28
  %v173 = vunpack.c.l.b16 %v29
  %v174 = vunpack.c.l.b16 %v30
  %v175 = vunpack.c.l.b16 %v31
  %v176 = vunpack.c.l.b16 %v32
  %v177 = vunpack.c.l.b16 %v33
  %v178 = vunpack.c.l.b16 %v34
  %v179 = vunpack.c.l.b16 %v35
  %v180 = vunpack.c.l.b16 %v36
  %v181 = vunpack.c.l.b16 %v37
  %v182 = vunpack.c.l.b16 %v38
  %v183 = vunpack.c.l.b16 %v39
  %v184 = vunpack.c.l.b16 %v40
  %v185 = vunpack.c.l.b16 %v41
  %v186 = vunpack.c.l.b16 %v42
  %v187 = vunpack.c.l.b16 %v43
  %v188 = vunpack.c.l.b16 %v44
  %v189 = vunpack.c.l.b16 %v45
  %v190 = vunpack.c.l.b16 %v46
  %v191 = vunpack.c.l.b16 %v47
  %v192 = vunpack.c.l.b16 %v48
  %v193 = vunpack.c.l.b16 %v49
  %v194 = vunpack.c.l.b16 %v50
  %v195 = vunpack.c.l.b16 %v51
  %v196 = vunpack.c.l.b16 %v52
  %v197 = vunpack.c.l.b16 %v53
  %v198 = vunpack.c.l.b16 %v54
  %v199 = vunpack.c.l.b16 %v55
  %v200 = vunpack.c.l.b16 %v56
  %v201 = vunpack.c.l.b16 %v57
  %v202 = vunpack.c.l.b16 %v58
  %v203 = vunpack.c.l.b16 %v59
  %v204 = vunpack.c.l.b16 %v60
  %v205 = vunpack.c.l.b16 %v61
  %v206 = vunpack.c.l.b16 %v62
  %v207 = vunpack.c.l.b16 %v63
  %v208 = vunpack.c.l.b16 %v64
  %v209 = vunpack.c.l.b16 %v65
  %v210 = vunpack.c.l.b16 %v66
  %v211 = vunpack.c.l.b16 %v67
  %v212 = vunpack.c.l.b16 %v68
  %v213 = vunpack.c.l.b16 %v69
  %v214 = vunpack.c.l.b16 %v70
  %v215 = vunpack.c.l.b16 %v71
  %v216 = vunpack.c.l.b16 %v72
  %v217 = vunpack.c.l.b16 %v73
  %v218 = vunpack.c.l.b16 %v74
  %v219 = vunpack.c.l.b16 %v75
  %v220 = vunpack.c.l.b16 %v76
  %v221 = vunpack.c.l.b16 %v77
  %v222 = vunpack.c.l.b16 %v78
  %v223 = vpack.c.b16 %v160, %v159
  %v224 = vpack.c.b16 %v162, %v161
  %v225 = vpack.c.b16 %v164, %v163
  %v226 = vpack.c.b16 %v166, %v165
  %v227 = vpack.c.b16 %v168, %v167
  %v228 = vpack.c.b16 %v170, %v169
  %v229 = vpack.c.b16 %v172, %v171
  %v230 = vpack.c.b16 %v174, %v173
  %v231 = vpack.c.b16 %v176, %v175
  %v232 = vpack.c.b16 %v178, %v177
  %v233 = vpack.c.b16 %v180, %v179
  %v234 = vpack.c.b16 %v182, %v181
  %v235 = vpack.c.b16 %v184, %v183
  %v236 = vpack.c.b16 %v186, %v185
  %v237 = vpack.c.b16 %v188, %v187
  %v238 = vpack.c.b16 %v190, %v189
  %v239 = vpack.c.b16 %v192, %v191
  %v240 = vpack.c.b16 %v194, %v193
  %v241 = vpack.c.b16 %v196, %v195
  %v242 = vpack.c.b16 %v198, %v197
  %v243 = vpack.c.b16 %v200, %v199
  %v244 = vpack.c.b16 %v202, %v201
  %v245 = vpack.c.b16 %v204, %v203
  %v246 = vpack.c.b16 %v206, %v205
  %v247 = vpack.c.b16 %v208, %v207
  %v248 = vpack.c.b16 %v210, %v209
  %v249 = vpack.c.b16 %v212, %v211
  %v250 = vpack.c.b16 %v214, %v213
  %v251 = vpack.c.b16 %v216, %v215
  %v252 = vpack.c.b16 %v218, %v217
  %v253 = vpack.c.b16 %v220, %v219
  %v254 = vpack.c.b16 %v222, %v221
  %v264 = vunpack.c.l.b16 %v79
  %v265 = vunpack.c.l.b16 %v80
  %v266 = vunpack.c.l.b16 %v81
  %v267 = vunpack.c.l.b16 %v82
  %v268 = vunpack.c.l.b16 %v83
  %v269 = vunpack.c.l.b16 %v84
  %v270 = vunpack.c.l.b16 %v85
  %v271 = vunpack.c.l.b16 %v86
  %v272 = vunpack.c.l.b16 %v87
  %v273 = vpack.c.b16 %v265, %v264
  %v274 = vpack.c.b16 %v267, %v266
  %v275 = vpack.c.b16 %v269, %v268
  %v276 = vpack.c.b16 %v271, %v270
  %v277 = vpack.c.b16 %v272, %v272
  %vm282 = vcmask 588800
  %v284 = vsel %vm282, %v223, 0
  %v287 = vsel %vm282, %v224, 0
  %v290 = vsel %vm282, %v225, 0
  %v293 = vsel %vm282, %v226, 0
  %v296 = vsel %vm282, %v227, 0
  %v299 = vsel %vm282, %v228, 0
  %v302 = vsel %vm282, %v229, 0
  %v305 = vsel %vm282, %v230, 0
  %v308 = vsel %vm282, %v231, 0
  %v311 = vsel %vm282, %v232, 0
  %v314 = vsel %vm282, %v233, 0
  %v317 = vsel %vm282, %v234, 0
  %v320 = vsel %vm282, %v235, 0
  %v323 = vsel %vm282, %v236, 0
  %v326 = vsel %vm282, %v237, 0
  %v329 = vsel %vm282, %v238, 0
  %v332 = vsel %vm282, %v239, 0
  %v335 = vsel %vm282, %v240, 0
  %v338 = vsel %vm282, %v241, 0
  %v341 = vsel %vm282, %v242, 0
  %v344 = vsel %vm282, %v243, 0
  %v347 = vsel %vm282, %v244, 0
  %v350 = vsel %vm282, %v245, 0
  %v353 = vsel %vm282, %v246, 0
  %v356 = vsel %vm282, %v247, 0
  %v359 = vsel %vm282, %v248, 0
  %v362 = vsel %vm282, %v249, 0
  %v365 = vsel %vm282, %v250, 0
  %v368 = vsel %vm282, %v251, 0
  %v371 = vsel %vm282, %v252, 0
  %v374 = vsel %vm282, %v253, 0
  %v377 = vsel %vm282, %v254, 0
  %vm379 = vcmask 1043456
  %v381 = vsel %vm379, %v277, 0
  %383 = vmatprep.subr.bf16.mxu0 0
  %384 = vmatpush1.bf16.msra.mxu0 %v273
  %385 = vmatprep.subr.bf16.mxu0 0
  %386 = vmatpush1.bf16.msra.mxu0 %v274
  %387 = vmatprep.subr.bf16.mxu0 0
  %388 = vmatpush1.bf16.msra.mxu0 %v275
  %389 = vmatprep.subr.bf16.mxu0 0
  %390 = vmatpush1.bf16.msra.mxu0 %v276
  %391 = vmatprep.subr.bf16.mxu0 0
  %392 = vmatpush1.bf16.msra.mxu0 %v381
  %393 = vmatprep.subr.bf16.mxu0 0
  %394 = vmatpush1.bf16.msra.mxu0 0
  %395 = vmatprep.subr.bf16.mxu0 0
  %396 = vmatpush1.bf16.msra.mxu0 0
  %397 = vmatprep.subr.bf16.mxu0 0
  %398 = vmatpush1.bf16.msra.mxu0 0
  %399 = vmatprep.subr.bf16.mxu0 0
  %400 = vmatpush1.bf16.msra.mxu0 0
  %401 = vmatprep.subr.bf16.mxu0 0
  %402 = vmatpush1.bf16.msra.mxu0 0
  %403 = vmatprep.subr.bf16.mxu0 0
  %404 = vmatpush1.bf16.msra.mxu0 0
  %405 = vmatprep.subr.bf16.mxu0 0
  %406 = vmatpush1.bf16.msra.mxu0 0
  %407 = vmatprep.subr.bf16.mxu0 0
  %408 = vmatpush1.bf16.msra.mxu0 0
  %409 = vmatprep.subr.bf16.mxu0 0
  %410 = vmatpush1.bf16.msra.mxu0 0
  %411 = vmatprep.subr.bf16.mxu0 0
  %412 = vmatpush1.bf16.msra.mxu0 0
  %413 = vmatprep.subr.bf16.mxu0 0
  %414 = vmatpush1.bf16.msra.mxu0 0
  %415 = vmatprep.mubr.bf16.mxu0 0
  %416 = vmatmul.mubr.bf16.gmra.mrb[0].mxu0 %v284
  %v417 = vpop.f32.mrb[0].mxu0
  %v418 = vadd.f32 %v93, %v417
  %v419 = vpop.f32.mrb[0].mxu0
  %v420 = vpop.f32.mrb[0].mxu0
  %v421 = vadd.f32 %v93, %v420
  %v422 = vpop.f32.mrb[0].mxu0
  %423 = vmatprep.mubr.bf16.mxu0 0
  %424 = vmatmul.mubr.bf16.gmra.mrb[0].mxu0 %v287
  %v425 = vpop.f32.mrb[0].mxu0
  %v426 = vadd.f32 %v93, %v425
  %v427 = vpop.f32.mrb[0].mxu0
  %v428 = vpop.f32.mrb[0].mxu0
  %v429 = vadd.f32 %v93, %v428
  %v430 = vpop.f32.mrb[0].mxu0
  %431 = vmatprep.mubr.bf16.mxu0 0
  %432 = vmatmul.mubr.bf16.gmra.mrb[0].mxu0 %v290
  %v433 = vpop.f32.mrb[0].mxu0
  %v434 = vadd.f32 %v93, %v433
  %v435 = vpop.f32.mrb[0].mxu0
  %v436 = vpop.f32.mrb[0].mxu0
  %v437 = vadd.f32 %v93, %v436
  %v438 = vpop.f32.mrb[0].mxu0
  %439 = vmatprep.mubr.bf16.mxu0 0
  %440 = vmatmul.mubr.bf16.gmra.mrb[0].mxu0 %v293
  %v441 = vpop.f32.mrb[0].mxu0
  %v442 = vadd.f32 %v93, %v441
  %v443 = vpop.f32.mrb[0].mxu0
  %v444 = vpop.f32.mrb[0].mxu0
  %v445 = vadd.f32 %v93, %v444
  %v446 = vpop.f32.mrb[0].mxu0
  %447 = vmatprep.mubr.bf16.mxu0 0
  %448 = vmatmul.mubr.bf16.gmra.mrb[0].mxu0 %v296
  %v449 = vpop.f32.mrb[0].mxu0
  %v450 = vadd.f32 %v93, %v449
  %v451 = vpop.f32.mrb[0].mxu0
  %v452 = vpop.f32.mrb[0].mxu0
  %v453 = vadd.f32 %v93, %v452
  %v454 = vpop.f32.mrb[0].mxu0
  %455 = vmatprep.mubr.bf16.mxu0 0
  %456 = vmatmul.mubr.bf16.gmra.mrb[0].mxu0 %v299
  %v457 = vpop.f32.mrb[0].mxu0
  %v458 = vadd.f32 %v93, %v457
  %v459 = vpop.f32.mrb[0].mxu0
  %v460 = vpop.f32.mrb[0].mxu0
  %v461 = vadd.f32 %v93, %v460
  %v462 = vpop.f32.mrb[0].mxu0
  %463 = vmatprep.mubr.bf16.mxu0 0
  %464 = vmatmul.mubr.bf16.gmra.mrb[0].mxu0 %v302
  %v465 = vpop.f32.mrb[0].mxu0
  %v466 = vadd.f32 %v93, %v465
  %v467 = vpop.f32.mrb[0].mxu0
  %v468 = vpop.f32.mrb[0].mxu0
  %v469 = vadd.f32 %v93, %v468
  %v470 = vpop.f32.mrb[0].mxu0
  %471 = vmatprep.mubr.bf16.mxu0 0
  %472 = vmatmul.mubr.bf16.gmra.mrb[0].mxu0 %v305
  %v473 = vpop.f32.mrb[0].mxu0
  %v474 = vadd.f32 %v93, %v473
  %v475 = vpop.f32.mrb[0].mxu0
  %v476 = vpop.f32.mrb[0].mxu0
  %v477 = vadd.f32 %v93, %v476
  %v478 = vpop.f32.mrb[0].mxu0
  %479 = vmatprep.mubr.bf16.mxu0 0
  %480 = vmatmul.mubr.bf16.gmra.mrb[0].mxu0 %v308
  %v481 = vpop.f32.mrb[0].mxu0
  %v482 = vadd.f32 %v93, %v481
  %v483 = vpop.f32.mrb[0].mxu0
  %v484 = vpop.f32.mrb[0].mxu0
  %v485 = vadd.f32 %v93, %v484
  %v486 = vpop.f32.mrb[0].mxu0
  %487 = vmatprep.mubr.bf16.mxu0 0
  %488 = vmatmul.mubr.bf16.gmra.mrb[0].mxu0 %v311
  %v489 = vpop.f32.mrb[0].mxu0
  %v490 = vadd.f32 %v93, %v489
  %v491 = vpop.f32.mrb[0].mxu0
  %v492 = vpop.f32.mrb[0].mxu0
  %v493 = vadd.f32 %v93, %v492
  %v494 = vpop.f32.mrb[0].mxu0
  %495 = vmatprep.mubr.bf16.mxu0 0
  %496 = vmatmul.mubr.bf16.gmra.mrb[0].mxu0 %v314
  %v497 = vpop.f32.mrb[0].mxu0
  %v498 = vadd.f32 %v93, %v497
  %v499 = vpop.f32.mrb[0].mxu0
  %v500 = vpop.f32.mrb[0].mxu0
  %v501 = vadd.f32 %v93, %v500
  %v502 = vpop.f32.mrb[0].mxu0
  %503 = vmatprep.mubr.bf16.mxu0 0
  %504 = vmatmul.mubr.bf16.gmra.mrb[0].mxu0 %v317
  %v505 = vpop.f32.mrb[0].mxu0
  %v506 = vadd.f32 %v93, %v505
  %v507 = vpop.f32.mrb[0].mxu0
  %v508 = vpop.f32.mrb[0].mxu0
  %v509 = vadd.f32 %v93, %v508
  %v510 = vpop.f32.mrb[0].mxu0
  %511 = vmatprep.mubr.bf16.mxu0 0
  %512 = vmatmul.mubr.bf16.gmra.mrb[0].mxu0 %v320
  %v513 = vpop.f32.mrb[0].mxu0
  %v514 = vadd.f32 %v93, %v513
  %v515 = vpop.f32.mrb[0].mxu0
  %v516 = vpop.f32.mrb[0].mxu0
  %v517 = vadd.f32 %v93, %v516
  %v518 = vpop.f32.mrb[0].mxu0
  %519 = vmatprep.mubr.bf16.mxu0 0
  %520 = vmatmul.mubr.bf16.gmra.mrb[0].mxu0 %v323
  %v521 = vpop.f32.mrb[0].mxu0
  %v522 = vadd.f32 %v93, %v521
  %v523 = vpop.f32.mrb[0].mxu0
  %v524 = vpop.f32.mrb[0].mxu0
  %v525 = vadd.f32 %v93, %v524
  %v526 = vpop.f32.mrb[0].mxu0
  %527 = vmatprep.mubr.bf16.mxu0 0
  %528 = vmatmul.mubr.bf16.gmra.mrb[0].mxu0 %v326
  %v529 = vpop.f32.mrb[0].mxu0
  %v530 = vadd.f32 %v93, %v529
  %v531 = vpop.f32.mrb[0].mxu0
  %v532 = vpop.f32.mrb[0].mxu0
  %v533 = vadd.f32 %v93, %v532
  %v534 = vpop.f32.mrb[0].mxu0
  %535 = vmatprep.mubr.bf16.mxu0 0
  %536 = vmatmul.mubr.bf16.gmra.mrb[0].mxu0 %v329
  %v537 = vpop.f32.mrb[0].mxu0
  %v538 = vadd.f32 %v93, %v537
  %v539 = vpop.f32.mrb[0].mxu0
  %v540 = vpop.f32.mrb[0].mxu0
  %v541 = vadd.f32 %v93, %v540
  %v542 = vpop.f32.mrb[0].mxu0
  %543 = vmatprep.mubr.bf16.mxu0 0
  %544 = vmatmul.mubr.bf16.gmra.mrb[0].mxu0 %v332
  %v545 = vpop.f32.mrb[0].mxu0
  %v546 = vadd.f32 %v93, %v545
  %v547 = vpop.f32.mrb[0].mxu0
  %v548 = vpop.f32.mrb[0].mxu0
  %v549 = vadd.f32 %v93, %v548
  %v550 = vpop.f32.mrb[0].mxu0
  %551 = vmatprep.mubr.bf16.mxu0 0
  %552 = vmatmul.mubr.bf16.gmra.mrb[0].mxu0 %v335
  %v553 = vpop.f32.mrb[0].mxu0
  %v554 = vadd.f32 %v93, %v553
  %v555 = vpop.f32.mrb[0].mxu0
  %v556 = vpop.f32.mrb[0].mxu0
  %v557 = vadd.f32 %v93, %v556
  %v558 = vpop.f32.mrb[0].mxu0
  %559 = vmatprep.mubr.bf16.mxu0 0
  %560 = vmatmul.mubr.bf16.gmra.mrb[0].mxu0 %v338
  %v561 = vpop.f32.mrb[0].mxu0
  %v562 = vadd.f32 %v93, %v561
  %v563 = vpop.f32.mrb[0].mxu0
  %v564 = vpop.f32.mrb[0].mxu0
  %v565 = vadd.f32 %v93, %v564
  %v566 = vpop.f32.mrb[0].mxu0
  %567 = vmatprep.mubr.bf16.mxu0 0
  %568 = vmatmul.mubr.bf16.gmra.mrb[0].mxu0 %v341
  %v569 = vpop.f32.mrb[0].mxu0
  %v570 = vadd.f32 %v93, %v569
  %v571 = vpop.f32.mrb[0].mxu0
  %v572 = vpop.f32.mrb[0].mxu0
  %v573 = vadd.f32 %v93, %v572
  %v574 = vpop.f32.mrb[0].mxu0
  %575 = vmatprep.mubr.bf16.mxu0 0
  %576 = vmatmul.mubr.bf16.gmra.mrb[0].mxu0 %v344
  %v577 = vpop.f32.mrb[0].mxu0
  %v578 = vadd.f32 %v93, %v577
  %v579 = vpop.f32.mrb[0].mxu0
  %v580 = vpop.f32.mrb[0].mxu0
  %v581 = vadd.f32 %v93, %v580
  %v582 = vpop.f32.mrb[0].mxu0
  %583 = vmatprep.mubr.bf16.mxu0 0
  %584 = vmatmul.mubr.bf16.gmra.mrb[0].mxu0 %v347
  %v585 = vpop.f32.mrb[0].mxu0
  %v586 = vadd.f32 %v93, %v585
  %v587 = vpop.f32.mrb[0].mxu0
  %v588 = vpop.f32.mrb[0].mxu0
  %v589 = vadd.f32 %v93, %v588
  %v590 = vpop.f32.mrb[0].mxu0
  %591 = vmatprep.mubr.bf16.mxu0 0
  %592 = vmatmul.mubr.bf16.gmra.mrb[0].mxu0 %v350
  %v593 = vpop.f32.mrb[0].mxu0
  %v594 = vadd.f32 %v93, %v593
  %v595 = vpop.f32.mrb[0].mxu0
  %v596 = vpop.f32.mrb[0].mxu0
  %v597 = vadd.f32 %v93, %v596
  %v598 = vpop.f32.mrb[0].mxu0
  %599 = vmatprep.mubr.bf16.mxu0 0
  %600 = vmatmul.mubr.bf16.gmra.mrb[0].mxu0 %v353
  %v601 = vpop.f32.mrb[0].mxu0
  %v602 = vadd.f32 %v93, %v601
  %v603 = vpop.f32.mrb[0].mxu0
  %v604 = vpop.f32.mrb[0].mxu0
  %v605 = vadd.f32 %v93, %v604
  %v606 = vpop.f32.mrb[0].mxu0
  %607 = vmatprep.mubr.bf16.mxu0 0
  %608 = vmatmul.mubr.bf16.gmra.mrb[0].mxu0 %v356
  %v609 = vpop.f32.mrb[0].mxu0
  %v610 = vadd.f32 %v93, %v609
  %v611 = vpop.f32.mrb[0].mxu0
  %v612 = vpop.f32.mrb[0].mxu0
  %v613 = vadd.f32 %v93, %v612
  %v614 = vpop.f32.mrb[0].mxu0
  %615 = vmatprep.mubr.bf16.mxu0 0
  %616 = vmatmul.mubr.bf16.gmra.mrb[0].mxu0 %v359
  %v617 = vpop.f32.mrb[0].mxu0
  %v618 = vadd.f32 %v93, %v617
  %v619 = vpop.f32.mrb[0].mxu0
  %v620 = vpop.f32.mrb[0].mxu0
  %v621 = vadd.f32 %v93, %v620
  %v622 = vpop.f32.mrb[0].mxu0
  %623 = vmatprep.mubr.bf16.mxu0 0
  %624 = vmatmul.mubr.bf16.gmra.mrb[0].mxu0 %v362
  %v625 = vpop.f32.mrb[0].mxu0
  %v626 = vadd.f32 %v93, %v625
  %v627 = vpop.f32.mrb[0].mxu0
  %v628 = vpop.f32.mrb[0].mxu0
  %v629 = vadd.f32 %v93, %v628
  %v630 = vpop.f32.mrb[0].mxu0
  %631 = vmatprep.mubr.bf16.mxu0 0
  %632 = vmatmul.mubr.bf16.gmra.mrb[0].mxu0 %v365
  %v633 = vpop.f32.mrb[0].mxu0
  %v634 = vadd.f32 %v93, %v633
  %v635 = vpop.f32.mrb[0].mxu0
  %v636 = vpop.f32.mrb[0].mxu0
  %v637 = vadd.f32 %v93, %v636
  %v638 = vpop.f32.mrb[0].mxu0
  %639 = vmatprep.mubr.bf16.mxu0 0
  %640 = vmatmul.mubr.bf16.gmra.mrb[0].mxu0 %v368
  %v641 = vpop.f32.mrb[0].mxu0
  %v642 = vadd.f32 %v93, %v641
  %v643 = vpop.f32.mrb[0].mxu0
  %v644 = vpop.f32.mrb[0].mxu0
  %v645 = vadd.f32 %v93, %v644
  %v646 = vpop.f32.mrb[0].mxu0
  %647 = vmatprep.mubr.bf16.mxu0 0
  %648 = vmatmul.mubr.bf16.gmra.mrb[0].mxu0 %v371
  %v649 = vpop.f32.mrb[0].mxu0
  %v650 = vadd.f32 %v93, %v649
  %v651 = vpop.f32.mrb[0].mxu0
  %v652 = vpop.f32.mrb[0].mxu0
  %v653 = vadd.f32 %v93, %v652
  %v654 = vpop.f32.mrb[0].mxu0
  %655 = vmatprep.mubr.bf16.mxu0 0
  %656 = vmatmul.mubr.bf16.gmra.mrb[0].mxu0 %v374
  %v657 = vpop.f32.mrb[0].mxu0
  %v658 = vadd.f32 %v93, %v657
  %v659 = vpop.f32.mrb[0].mxu0
  %v660 = vpop.f32.mrb[0].mxu0
  %v661 = vadd.f32 %v93, %v660
  %v662 = vpop.f32.mrb[0].mxu0
  %663 = vmatprep.mubr.bf16.mxu0 0
  %664 = vmatmul.mubr.bf16.gmra.mrb[0].mxu0 %v377
  %v665 = vpop.f32.mrb[0].mxu0
  %v666 = vadd.f32 %v93, %v665
  %v667 = vpop.f32.mrb[0].mxu0
  %v668 = vpop.f32.mrb[0].mxu0
  %v669 = vadd.f32 %v93, %v668
  %v670 = vpop.f32.mrb[0].mxu0
  %671 = vdwg.mxu0
  %v672 = vpack.c.bf16 %v421, %v418
  %v673 = vpack.c.bf16 %v429, %v426
  %v674 = vpack.c.bf16 %v437, %v434
  %v675 = vpack.c.bf16 %v445, %v442
  %v676 = vpack.c.bf16 %v453, %v450
  %v677 = vpack.c.bf16 %v461, %v458
  %v678 = vpack.c.bf16 %v469, %v466
  %v679 = vpack.c.bf16 %v477, %v474
  %v680 = vpack.c.bf16 %v485, %v482
  %v681 = vpack.c.bf16 %v493, %v490
  %v682 = vpack.c.bf16 %v501, %v498
  %v683 = vpack.c.bf16 %v509, %v506
  %v684 = vpack.c.bf16 %v517, %v514
  %v685 = vpack.c.bf16 %v525, %v522
  %v686 = vpack.c.bf16 %v533, %v530
  %v687 = vpack.c.bf16 %v541, %v538
  %v688 = vpack.c.bf16 %v549, %v546
  %v689 = vpack.c.bf16 %v557, %v554
  %v690 = vpack.c.bf16 %v565, %v562
  %v691 = vpack.c.bf16 %v573, %v570
  %v692 = vpack.c.bf16 %v581, %v578
  %v693 = vpack.c.bf16 %v589, %v586
  %v694 = vpack.c.bf16 %v597, %v594
  %v695 = vpack.c.bf16 %v605, %v602
  %v696 = vpack.c.bf16 %v613, %v610
  %v697 = vpack.c.bf16 %v621, %v618
  %v698 = vpack.c.bf16 %v629, %v626
  %v699 = vpack.c.bf16 %v637, %v634
  %v700 = vpack.c.bf16 %v645, %v642
  %v701 = vpack.c.bf16 %v653, %v650
  %v702 = vpack.c.bf16 %v661, %v658
  %v703 = vpack.c.bf16 %v669, %v666
  %v736 = vunpack.c.l.b16 %v672
  %v737 = vunpack.c.h.b16 %v672
  %v738 = vunpack.c.l.b16 %v673
  %v739 = vunpack.c.h.b16 %v673
  %v740 = vunpack.c.l.b16 %v674
  %v741 = vunpack.c.h.b16 %v674
  %v742 = vunpack.c.l.b16 %v675
  %v743 = vunpack.c.h.b16 %v675
  %v744 = vunpack.c.l.b16 %v676
  %v745 = vunpack.c.h.b16 %v676
  %v746 = vunpack.c.l.b16 %v677
  %v747 = vunpack.c.h.b16 %v677
  %v748 = vunpack.c.l.b16 %v678
  %v749 = vunpack.c.h.b16 %v678
  %v750 = vunpack.c.l.b16 %v679
  %v751 = vunpack.c.h.b16 %v679
  %v752 = vunpack.c.l.b16 %v680
  %v753 = vunpack.c.h.b16 %v680
  %v754 = vunpack.c.l.b16 %v681
  %v755 = vunpack.c.h.b16 %v681
  %v756 = vunpack.c.l.b16 %v682
  %v757 = vunpack.c.h.b16 %v682
  %v758 = vunpack.c.l.b16 %v683
  %v759 = vunpack.c.h.b16 %v683
  %v760 = vunpack.c.l.b16 %v684
  %v761 = vunpack.c.h.b16 %v684
  %v762 = vunpack.c.l.b16 %v685
  %v763 = vunpack.c.h.b16 %v685
  %v764 = vunpack.c.l.b16 %v686
  %v765 = vunpack.c.h.b16 %v686
  %v766 = vunpack.c.l.b16 %v687
  %v767 = vunpack.c.h.b16 %v687
  %v768 = vunpack.c.l.b16 %v688
  %v769 = vunpack.c.h.b16 %v688
  %v770 = vunpack.c.l.b16 %v689
  %v771 = vunpack.c.h.b16 %v689
  %v772 = vunpack.c.l.b16 %v690
  %v773 = vunpack.c.h.b16 %v690
  %v774 = vunpack.c.l.b16 %v691
  %v775 = vunpack.c.h.b16 %v691
  %v776 = vunpack.c.l.b16 %v692
  %v777 = vunpack.c.h.b16 %v692
  %v778 = vunpack.c.l.b16 %v693
  %v779 = vunpack.c.h.b16 %v693
  %v780 = vunpack.c.l.b16 %v694
  %v781 = vunpack.c.h.b16 %v694
  %v782 = vunpack.c.l.b16 %v695
  %v783 = vunpack.c.h.b16 %v695
  %v784 = vunpack.c.l.b16 %v696
  %v785 = vunpack.c.h.b16 %v696
  %v786 = vunpack.c.l.b16 %v697
  %v787 = vunpack.c.h.b16 %v697
  %v788 = vunpack.c.l.b16 %v698
  %v789 = vunpack.c.h.b16 %v698
  %v790 = vunpack.c.l.b16 %v699
  %v791 = vunpack.c.h.b16 %v699
  %v792 = vunpack.c.l.b16 %v700
  %v793 = vunpack.c.h.b16 %v700
  %v794 = vunpack.c.l.b16 %v701
  %v795 = vunpack.c.h.b16 %v701
  %v796 = vunpack.c.l.b16 %v702
  %v797 = vunpack.c.h.b16 %v702
  %v798 = vunpack.c.l.b16 %v703
  %v799 = vunpack.c.h.b16 %v703
  %v800 = vpack.c.b16 %v736, %v736
  %v801 = vpack.c.b16 %v737, %v737
  %v802 = vpack.c.b16 %v738, %v738
  %v803 = vpack.c.b16 %v739, %v739
  %v804 = vpack.c.b16 %v740, %v740
  %v805 = vpack.c.b16 %v741, %v741
  %v806 = vpack.c.b16 %v742, %v742
  %v807 = vpack.c.b16 %v743, %v743
  %v808 = vpack.c.b16 %v744, %v744
  %v809 = vpack.c.b16 %v745, %v745
  %v810 = vpack.c.b16 %v746, %v746
  %v811 = vpack.c.b16 %v747, %v747
  %v812 = vpack.c.b16 %v748, %v748
  %v813 = vpack.c.b16 %v749, %v749
  %v814 = vpack.c.b16 %v750, %v750
  %v815 = vpack.c.b16 %v751, %v751
  %v816 = vpack.c.b16 %v752, %v752
  %v817 = vpack.c.b16 %v753, %v753
  %v818 = vpack.c.b16 %v754, %v754
  %v819 = vpack.c.b16 %v755, %v755
  %v820 = vpack.c.b16 %v756, %v756
  %v821 = vpack.c.b16 %v757, %v757
  %v822 = vpack.c.b16 %v758, %v758
  %v823 = vpack.c.b16 %v759, %v759
  %v824 = vpack.c.b16 %v760, %v760
  %v825 = vpack.c.b16 %v761, %v761
  %v826 = vpack.c.b16 %v762, %v762
  %v827 = vpack.c.b16 %v763, %v763
  %v828 = vpack.c.b16 %v764, %v764
  %v829 = vpack.c.b16 %v765, %v765
  %v830 = vpack.c.b16 %v766, %v766
  %v831 = vpack.c.b16 %v767, %v767
  %v832 = vpack.c.b16 %v768, %v768
  %v833 = vpack.c.b16 %v769, %v769
  %v834 = vpack.c.b16 %v770, %v770
  %v835 = vpack.c.b16 %v771, %v771
  %v836 = vpack.c.b16 %v772, %v772
  %v837 = vpack.c.b16 %v773, %v773
  %v838 = vpack.c.b16 %v774, %v774
  %v839 = vpack.c.b16 %v775, %v775
  %v840 = vpack.c.b16 %v776, %v776
  %v841 = vpack.c.b16 %v777, %v777
  %v842 = vpack.c.b16 %v778, %v778
  %v843 = vpack.c.b16 %v779, %v779
  %v844 = vpack.c.b16 %v780, %v780
  %v845 = vpack.c.b16 %v781, %v781
  %v846 = vpack.c.b16 %v782, %v782
  %v847 = vpack.c.b16 %v783, %v783
  %v848 = vpack.c.b16 %v784, %v784
  %v849 = vpack.c.b16 %v785, %v785
  %v850 = vpack.c.b16 %v786, %v786
  %v851 = vpack.c.b16 %v787, %v787
  %v852 = vpack.c.b16 %v788, %v788
  %v853 = vpack.c.b16 %v789, %v789
  %v854 = vpack.c.b16 %v790, %v790
  %v855 = vpack.c.b16 %v791, %v791
  %v856 = vpack.c.b16 %v792, %v792
  %v857 = vpack.c.b16 %v793, %v793
  %v858 = vpack.c.b16 %v794, %v794
  %v859 = vpack.c.b16 %v795, %v795
  %v860 = vpack.c.b16 %v796, %v796
  %v861 = vpack.c.b16 %v797, %v797
  %v862 = vpack.c.b16 %v798, %v798
  %v863 = vpack.c.b16 %v799, %v799
  %928 = vst [vmem:[%s3] sm:$0xf] %v800
  %929 = vst [vmem:[%s3 + $0x4] sm:$0xf] %v801
  %930 = vst [vmem:[%s3 + $0x8] sm:$0xf] %v802
  %931 = vst [vmem:[%s3 + $0xc] sm:$0xf] %v803
  %932 = vst [vmem:[%s3 + $0x10] sm:$0xf] %v804
  %933 = vst [vmem:[%s3 + $0x14] sm:$0xf] %v805
  %934 = vst [vmem:[%s3 + $0x18] sm:$0xf] %v806
  %935 = vst [vmem:[%s3 + $0x1c] sm:$0xf] %v807
  %936 = vst [vmem:[%s3 + $0x20] sm:$0xf] %v808
  %937 = vst [vmem:[%s3 + $0x24] sm:$0xf] %v809
  %938 = vst [vmem:[%s3 + $0x28] sm:$0xf] %v810
  %939 = vst [vmem:[%s3 + $0x2c] sm:$0xf] %v811
  %940 = vst [vmem:[%s3 + $0x30] sm:$0xf] %v812
  %941 = vst [vmem:[%s3 + $0x34] sm:$0xf] %v813
  %942 = vst [vmem:[%s3 + $0x38] sm:$0xf] %v814
  %943 = vst [vmem:[%s3 + $0x3c] sm:$0xf] %v815
  %944 = vst [vmem:[%s3 + $0x40] sm:$0xf] %v816
  %945 = vst [vmem:[%s3 + $0x44] sm:$0xf] %v817
  %946 = vst [vmem:[%s3 + $0x48] sm:$0xf] %v818
  %947 = vst [vmem:[%s3 + $0x4c] sm:$0xf] %v819
  %948 = vst [vmem:[%s3 + $0x50] sm:$0xf] %v820
  %949 = vst [vmem:[%s3 + $0x54] sm:$0xf] %v821
  %950 = vst [vmem:[%s3 + $0x58] sm:$0xf] %v822
  %951 = vst [vmem:[%s3 + $0x5c] sm:$0xf] %v823
  %952 = vst [vmem:[%s3 + $0x60] sm:$0xf] %v824
  %953 = vst [vmem:[%s3 + $0x64] sm:$0xf] %v825
  %954 = vst [vmem:[%s3 + $0x68] sm:$0xf] %v826
  %955 = vst [vmem:[%s3 + $0x6c] sm:$0xf] %v827
  %956 = vst [vmem:[%s3 + $0x70] sm:$0xf] %v828
  %957 = vst [vmem:[%s3 + $0x74] sm:$0xf] %v829
  %958 = vst [vmem:[%s3 + $0x78] sm:$0xf] %v830
  %959 = vst [vmem:[%s3 + $0x7c] sm:$0xf] %v831
  %960 = vst [vmem:[%s3 + $0x80] sm:$0xf] %v832
  %961 = vst [vmem:[%s3 + $0x84] sm:$0xf] %v833
  %962 = vst [vmem:[%s3 + $0x88] sm:$0xf] %v834
  %963 = vst [vmem:[%s3 + $0x8c] sm:$0xf] %v835
  %964 = vst [vmem:[%s3 + $0x90] sm:$0xf] %v836
  %965 = vst [vmem:[%s3 + $0x94] sm:$0xf] %v837
  %966 = vst [vmem:[%s3 + $0x98] sm:$0xf] %v838
  %967 = vst [vmem:[%s3 + $0x9c] sm:$0xf] %v839
  %968 = vst [vmem:[%s3 + $0xa0] sm:$0xf] %v840
  %969 = vst [vmem:[%s3 + $0xa4] sm:$0xf] %v841
  %970 = vst [vmem:[%s3 + $0xa8] sm:$0xf] %v842
  %971 = vst [vmem:[%s3 + $0xac] sm:$0xf] %v843
  %972 = vst [vmem:[%s3 + $0xb0] sm:$0xf] %v844
  %973 = vst [vmem:[%s3 + $0xb4] sm:$0xf] %v845
  %974 = vst [vmem:[%s3 + $0xb8] sm:$0xf] %v846
  %975 = vst [vmem:[%s3 + $0xbc] sm:$0xf] %v847
  %976 = vst [vmem:[%s3 + $0xc0] sm:$0xf] %v848
  %977 = vst [vmem:[%s3 + $0xc4] sm:$0xf] %v849
  %978 = vst [vmem:[%s3 + $0xc8] sm:$0xf] %v850
  %979 = vst [vmem:[%s3 + $0xcc] sm:$0xf] %v851
  %980 = vst [vmem:[%s3 + $0xd0] sm:$0xf] %v852
  %981 = vst [vmem:[%s3 + $0xd4] sm:$0xf] %v853
  %982 = vst [vmem:[%s3 + $0xd8] sm:$0xf] %v854
  %983 = vst [vmem:[%s3 + $0xdc] sm:$0xf] %v855
  %984 = vst [vmem:[%s3 + $0xe0] sm:$0xf] %v856
  %985 = vst [vmem:[%s3 + $0xe4] sm:$0xf] %v857
  %986 = vst [vmem:[%s3 + $0xe8] sm:$0xf] %v858
  %987 = vst [vmem:[%s3 + $0xec] sm:$0xf] %v859
  %988 = vst [vmem:[%s3 + $0xf0] sm:$0xf] %v860
  %989 = vst [vmem:[%s3 + $0xf4] sm:$0xf] %v861
  %990 = vst [vmem:[%s3 + $0xf8] sm:$0xf] %v862
  %991 = vst [vmem:[%s3 + $0xfc] sm:$0xf] %v863
  // Predicated region
  $region14: #{liif_fpn_pred_forward.9} parent=0 // pred_check
    _
  $region15: #{liif_fpn_pred_forward.9} parent=0 // pred_check_branch
    %993 = sbr.rel (0) target = $region17
  $region16: #{liif_fpn_pred_forward.9} parent=0 // pred_region
    _
  $region17: #{liif_fpn_pred_forward.9} parent=0 // pred_fallthru
    _
  // Predicated region
  $region18: #{liif_fpn_pred_forward.9} parent=0 // pred_check
    _
  $region19: #{liif_fpn_pred_forward.9} parent=0 // pred_check_branch
    %995 = sbr.rel (0) target = $region21
  $region20: #{liif_fpn_pred_forward.9} parent=0 // pred_region
    _
  $region21: #{liif_fpn_pred_forward.9} parent=0 // pred_fallthru
    _

// kernel: liif_fpn_pred_forward.10
$region0: #{liif_fpn_pred_forward.10}
  #allocation0 [shape = 'u32[]', space=smem, size = 0x4, offset = 0x4, fixed_abs, tag = 'smem constant byte address 0x4 - core index']
  #allocation1 [shape = 'u32[144,128]{1,0:T(1,128)}', space=vmem, size = 0x12000, scoped, tag = 'internal scratch']
  %s0 = inlined_call_operand.vmem [shape: bf16[2048,72], index: 0, kind: input, shape index: {}]
  %s1 = inlined_call_operand.vmem [shape: bf16[72,128], index: 1, kind: input, shape index: {}]
  %s2 = inlined_call_operand.vmem [shape: f32[1,128], index: 2, kind: input, shape index: {}]
  %s3 = inlined_call_operand.vmem [shape: bf16[2048,128], index: 3, kind: output, shape index: {}]
  %s4 = sld [smem:[#allocation0]]
  $region45: #{liif_fpn_pred_forward.10} parent=0
    _
  %s6 = ssub.s32 1, %s4
  %s7 = scalar_select 0, %s6, %s4
  loop: start=0, step=1, limit=4
  $region2: #{liif_fpn_pred_forward.10} parent=0 // loop_pre_header
    _
  $region3: #{liif_fpn_pred_forward.10} parent=0 // loop_header
    %s9 = sphi 0, %s13
    %p10 = scmp.ge.s32.totalorder %s9, 4
    %s19 = sphi 0, %s21
    %s22 = sphi 0, %s19
    %s23 = sphi 0, %s22
    %s39 = sphi 0, %s23
    %s43 = sphi 0, %s43
    %s45 = sphi 0, %s43
    %s46 = sphi 0, %s45
    %s60 = sphi 0, %s46
    %s64 = sphi 0, %s64
    %s66 = sphi 0, %s64
    %s67 = sphi 0, %s66
    %s81 = sphi 0, %s67
    %s87 = sphi 0, %s89
    %s90 = sphi 0, %s87
    %s91 = sphi 0, %s90
    %s107 = sphi 0, %s91
  $region4: #{liif_fpn_pred_forward.10} parent=0 // loop_header_branch
    %12 = sbr.rel (%p10) target = $region8
  $region5: #{liif_fpn_pred_forward.10} parent=0 // loop_body
    %s14 = ssub.s32 %s9, 1
    %s15 = ssub.s32 %s9, 2
    %s16 = sadd.s32 %s9, 1
    %s17 = ssub.s32 %s9, %s16
    %p18 = scmp.eq.s32.totalorder %s17, 0
    %s20 = sadd.s32 %s19, 1
    %s21 = scalar_select %p18, %s19, %s20
    %p24 = pneg %p18
    %p25 = scmp.eq.s32.totalorder %s9, 1
    %p26 = por %p24, %p25
    %p27 = scmp.ne.s32.totalorder %s19, %s22
    %p28 = scmp.eq.s32.totalorder %s9, 0
    %p29 = por %p27, %p28
    %p30 = scmp.ne.s32.totalorder %s19, %s22
    %p31 = scmp.eq.s32.totalorder %s14, 1
    %p32 = por %p30, %p31
    %p33 = scmp.ne.s32.totalorder %s22, %s23
    %p34 = scmp.eq.s32.totalorder %s14, 0
    %p35 = por %p33, %p34
    %p36 = scmp.ne.s32.totalorder %s22, %s23
    %p37 = scmp.eq.s32.totalorder %s15, 1
    %p38 = por %p36, %p37
    %p40 = scmp.ne.s32.totalorder %s23, %s39
    %p41 = scmp.eq.s32.totalorder %s15, 0
    %p42 = por %p40, %p41
    %s44 = sadd.s32 %s43, 1
    %p47 = scmp.eq.s32.totalorder %s9, 1
    %p48 = scmp.ne.s32.totalorder %s43, %s45
    %p49 = scmp.eq.s32.totalorder %s9, 0
    %p50 = por %p48, %p49
    %p51 = scmp.ne.s32.totalorder %s43, %s45
    %p52 = scmp.eq.s32.totalorder %s14, 1
    %p53 = por %p51, %p52
    %p54 = scmp.ne.s32.totalorder %s45, %s46
    %p55 = scmp.eq.s32.totalorder %s14, 0
    %p56 = por %p54, %p55
    %p57 = scmp.ne.s32.totalorder %s45, %s46
    %p58 = scmp.eq.s32.totalorder %s15, 1
    %p59 = por %p57, %p58
    %p61 = scmp.ne.s32.totalorder %s46, %s60
    %p62 = scmp.eq.s32.totalorder %s15, 0
    %p63 = por %p61, %p62
    %s65 = sadd.s32 %s64, 1
    %p68 = scmp.eq.s32.totalorder %s9, 1
    %p69 = scmp.ne.s32.totalorder %s64, %s66
    %p70 = scmp.eq.s32.totalorder %s9, 0
    %p71 = por %p69, %p70
    %p72 = scmp.ne.s32.totalorder %s64, %s66
    %p73 = scmp.eq.s32.totalorder %s14, 1
    %p74 = por %p72, %p73
    %p75 = scmp.ne.s32.totalorder %s66, %s67
    %p76 = scmp.eq.s32.totalorder %s14, 0
    %p77 = por %p75, %p76
    %p78 = scmp.ne.s32.totalorder %s66, %s67
    %p79 = scmp.eq.s32.totalorder %s15, 1
    %p80 = por %p78, %p79
    %p82 = scmp.ne.s32.totalorder %s67, %s81
    %p83 = scmp.eq.s32.totalorder %s15, 0
    %p84 = por %p82, %p83
    %s85 = ssub.s32 %s9, %s16
    %p86 = scmp.eq.s32.totalorder %s85, 0
    %s88 = sadd.s32 %s87, 1
    %s89 = scalar_select %p86, %s87, %s88
    %p92 = pneg %p86
    %p93 = scmp.eq.s32.totalorder %s9, 1
    %p94 = por %p92, %p93
    %p95 = scmp.ne.s32.totalorder %s87, %s90
    %p96 = scmp.eq.s32.totalorder %s9, 0
    %p97 = por %p95, %p96
    %p98 = scmp.ne.s32.totalorder %s87, %s90
    %p99 = scmp.eq.s32.totalorder %s14, 1
    %p100 = por %p98, %p99
    %p101 = scmp.ne.s32.totalorder %s90, %s91
    %p102 = scmp.eq.s32.totalorder %s14, 0
    %p103 = por %p101, %p102
    %p104 = scmp.ne.s32.totalorder %s90, %s91
    %p105 = scmp.eq.s32.totalorder %s15, 1
    %p106 = por %p104, %p105
    %p108 = scmp.ne.s32.totalorder %s91, %s107
    %p109 = scmp.eq.s32.totalorder %s15, 0
    %p110 = por %p108, %p109
    %p111 = scmp.le.s32.totalorder 1, %s9
    %p112 = scmp.lt.s32.totalorder %s9, 3
    %p113 = pnand %p111, %p112
    %p114 = pneg %p113
    // Predicated region
    $region9: #{liif_fpn_pred_forward.10} parent=5 // pred_check
      _
    $region10: #{liif_fpn_pred_forward.10} parent=5 // pred_check_branch
      %116 = sbr.rel (%p113) target = $region12
    $region11: #{liif_fpn_pred_forward.10} parent=5 // pred_region
      %s117 = ssub.s32 %s9, 1
      // Predicated region
      $region13: #{liif_fpn_pred_forward.10} parent=11 // pred_check
        %p118 = pneg %p56
      $region14: #{liif_fpn_pred_forward.10} parent=11 // pred_check_branch
        %120 = sbr.rel (%p118) target = $region16
      $region15: #{liif_fpn_pred_forward.10} parent=11 // pred_region
        _
      $region16: #{liif_fpn_pred_forward.10} parent=11 // pred_fallthru
        _
      // Predicated region
      $region17: #{liif_fpn_pred_forward.10} parent=11 // pred_check
        %p121 = pneg %p77
      $region18: #{liif_fpn_pred_forward.10} parent=11 // pred_check_branch
        %123 = sbr.rel (%p121) target = $region20
      $region19: #{liif_fpn_pred_forward.10} parent=11 // pred_region
        _
      $region20: #{liif_fpn_pred_forward.10} parent=11 // pred_fallthru
        _
    $region12: #{liif_fpn_pred_forward.10} parent=5 // pred_fallthru
      _
    %p124 = scmp.lt.s32.totalorder %s9, 2
    // Predicated region
    $region21: #{liif_fpn_pred_forward.10} parent=5 // pred_check
      %p125 = pneg %p124
    $region22: #{liif_fpn_pred_forward.10} parent=5 // pred_check_branch
      %127 = sbr.rel (%p125) target = $region24
    $region23: #{liif_fpn_pred_forward.10} parent=5 // pred_region
      // Predicated region
      $region25: #{liif_fpn_pred_forward.10} parent=23 // pred_check
        %p128 = pneg %p29
      $region26: #{liif_fpn_pred_forward.10} parent=23 // pred_check_branch
        %130 = sbr.rel (%p128) target = $region28
      $region27: #{liif_fpn_pred_forward.10} parent=23 // pred_region
        %s131 = smul.u32 128, %s9
        %p132 = scmp.lt.s32.totalorder %s131, 255
        %s133 = scalar_select %p132, %s131, 255
        %s134 = smul.addr %s133, 4
        %s135 = scalar_lea.vmem %s0, %s134
        %s136 = smul.u32 128, %s9
      $region28: #{liif_fpn_pred_forward.10} parent=23 // pred_fallthru
        _
    $region24: #{liif_fpn_pred_forward.10} parent=5 // pred_fallthru
      _
    %p137 = scmp.le.s32.totalorder 1, %s9
    %p138 = scmp.lt.s32.totalorder %s9, 3
    %p139 = pnand %p137, %p138
    %p140 = pneg %p139
    // Predicated region
    $region29: #{liif_fpn_pred_forward.10} parent=5 // pred_check
      _
    $region30: #{liif_fpn_pred_forward.10} parent=5 // pred_check_branch
      %142 = sbr.rel (%p139) target = $region32
    $region31: #{liif_fpn_pred_forward.10} parent=5 // pred_region
      %s143 = ssub.s32 %s9, 1
      %s144 = smul.u32 128, %s14
      %p145 = scmp.lt.s32.totalorder %s144, 255
      %s146 = scalar_select %p145, %s144, 255
      %s147 = smul.addr %s146, 4
      %s148 = scalar_lea.vmem %s0, %s147
      %p149 = pneg %p35
      %p150 = pneg %p32
      %p151 = pneg %p56
      %p152 = pneg %p53
      %p153 = pneg %p77
      %p154 = pneg %p74
      %p155 = pneg %p103
      %p156 = pneg %p100
      %s157 = smul.u32 128, %s14
      %p158 = scmp.lt.s32.totalorder %s157, 255
      %s159 = scalar_select %p158, %s157, 255
      %s160 = smul.addr %s159, 4
      %s161 = scalar_lea.vmem %s3, %s160
      %s162 = smul.u32 128, %s14
      %p163 = scmp.lt.s32.totalorder %s162, 255
      %s164 = scalar_select %p163, %s162, 255
      %s165 = smul.addr %s164, 4
      %s166 = scalar_lea.vmem %s0, %s165
      %s167 = smul.u32 128, %s14
      %s168 = smul.u32 128, %s14
      %p169 = scmp.lt.s32.totalorder %s168, 255
      %s170 = scalar_select %p169, %s168, 255
      %s171 = smul.addr %s170, 4
      %s172 = scalar_lea.vmem %s3, %s171
      %s173 = smul.u32 128, %s14
      %v175 = vld [vmem:[%s166] sm:$0xf]
      %v176 = vld [vmem:[%s166 + $0x4] sm:$0xf]
      %v177 = vld [vmem:[%s166 + $0x8] sm:$0xf]
      %v178 = vld [vmem:[%s166 + $0xc] sm:$0xf]
      %v179 = vld [vmem:[%s166 + $0x10] sm:$0xf]
      %v180 = vld [vmem:[%s166 + $0x14] sm:$0xf]
      %v181 = vld [vmem:[%s166 + $0x18] sm:$0xf]
      %v182 = vld [vmem:[%s166 + $0x1c] sm:$0xf]
      %v183 = vld [vmem:[%s166 + $0x20] sm:$0xf]
      %v184 = vld [vmem:[%s166 + $0x24] sm:$0xf]
      %v185 = vld [vmem:[%s166 + $0x28] sm:$0xf]
      %v186 = vld [vmem:[%s166 + $0x2c] sm:$0xf]
      %v187 = vld [vmem:[%s166 + $0x30] sm:$0xf]
      %v188 = vld [vmem:[%s166 + $0x34] sm:$0xf]
      %v189 = vld [vmem:[%s166 + $0x38] sm:$0xf]
      %v190 = vld [vmem:[%s166 + $0x3c] sm:$0xf]
      %v191 = vld [vmem:[%s166 + $0x40] sm:$0xf]
      %v192 = vld [vmem:[%s166 + $0x44] sm:$0xf]
      %v193 = vld [vmem:[%s166 + $0x48] sm:$0xf]
      %v194 = vld [vmem:[%s166 + $0x4c] sm:$0xf]
      %v195 = vld [vmem:[%s166 + $0x50] sm:$0xf]
      %v196 = vld [vmem:[%s166 + $0x54] sm:$0xf]
      %v197 = vld [vmem:[%s166 + $0x58] sm:$0xf]
      %v198 = vld [vmem:[%s166 + $0x5c] sm:$0xf]
      %v199 = vld [vmem:[%s166 + $0x60] sm:$0xf]
      %v200 = vld [vmem:[%s166 + $0x64] sm:$0xf]
      %v201 = vld [vmem:[%s166 + $0x68] sm:$0xf]
      %v202 = vld [vmem:[%s166 + $0x6c] sm:$0xf]
      %v203 = vld [vmem:[%s166 + $0x70] sm:$0xf]
      %v204 = vld [vmem:[%s166 + $0x74] sm:$0xf]
      %v205 = vld [vmem:[%s166 + $0x78] sm:$0xf]
      %v206 = vld [vmem:[%s166 + $0x7c] sm:$0xf]
      %v207 = vld [vmem:[%s166 + $0x80] sm:$0xf]
      %v208 = vld [vmem:[%s166 + $0x84] sm:$0xf]
      %v209 = vld [vmem:[%s166 + $0x88] sm:$0xf]
      %v210 = vld [vmem:[%s166 + $0x8c] sm:$0xf]
      %v211 = vld [vmem:[%s166 + $0x90] sm:$0xf]
      %v212 = vld [vmem:[%s166 + $0x94] sm:$0xf]
      %v213 = vld [vmem:[%s166 + $0x98] sm:$0xf]
      %v214 = vld [vmem:[%s166 + $0x9c] sm:$0xf]
      %v215 = vld [vmem:[%s166 + $0xa0] sm:$0xf]
      %v216 = vld [vmem:[%s166 + $0xa4] sm:$0xf]
      %v217 = vld [vmem:[%s166 + $0xa8] sm:$0xf]
      %v218 = vld [vmem:[%s166 + $0xac] sm:$0xf]
      %v219 = vld [vmem:[%s166 + $0xb0] sm:$0xf]
      %v220 = vld [vmem:[%s166 + $0xb4] sm:$0xf]
      %v221 = vld [vmem:[%s166 + $0xb8] sm:$0xf]
      %v222 = vld [vmem:[%s166 + $0xbc] sm:$0xf]
      %v223 = vld [vmem:[%s166 + $0xc0] sm:$0xf]
      %v224 = vld [vmem:[%s166 + $0xc4] sm:$0xf]
      %v225 = vld [vmem:[%s166 + $0xc8] sm:$0xf]
      %v226 = vld [vmem:[%s166 + $0xcc] sm:$0xf]
      %v227 = vld [vmem:[%s166 + $0xd0] sm:$0xf]
      %v228 = vld [vmem:[%s166 + $0xd4] sm:$0xf]
      %v229 = vld [vmem:[%s166 + $0xd8] sm:$0xf]
      %v230 = vld [vmem:[%s166 + $0xdc] sm:$0xf]
      %v231 = vld [vmem:[%s166 + $0xe0] sm:$0xf]
      %v232 = vld [vmem:[%s166 + $0xe4] sm:$0xf]
      %v233 = vld [vmem:[%s166 + $0xe8] sm:$0xf]
      %v234 = vld [vmem:[%s166 + $0xec] sm:$0xf]
      %v235 = vld [vmem:[%s166 + $0xf0] sm:$0xf]
      %v236 = vld [vmem:[%s166 + $0xf4] sm:$0xf]
      %v237 = vld [vmem:[%s166 + $0xf8] sm:$0xf]
      %v238 = vld [vmem:[%s166 + $0xfc] sm:$0xf]
      %v239 = vld [vmem:[%s166 + $0x100] sm:$0xf]
      %v240 = vld [vmem:[%s166 + $0x104] sm:$0xf]
      %v241 = vld [vmem:[%s166 + $0x108] sm:$0xf]
      %v242 = vld [vmem:[%s166 + $0x10c] sm:$0xf]
      %v243 = vld [vmem:[%s166 + $0x110] sm:$0xf]
      %v244 = vld [vmem:[%s166 + $0x114] sm:$0xf]
      %v245 = vld [vmem:[%s166 + $0x118] sm:$0xf]
      %v246 = vld [vmem:[%s166 + $0x11c] sm:$0xf]
      %v247 = vld [vmem:[%s166 + $0x120] sm:$0xf]
      %v248 = vld [vmem:[%s166 + $0x124] sm:$0xf]
      %v249 = vld [vmem:[%s166 + $0x128] sm:$0xf]
      %v250 = vld [vmem:[%s166 + $0x12c] sm:$0xf]
      %v251 = vld [vmem:[%s166 + $0x130] sm:$0xf]
      %v252 = vld [vmem:[%s166 + $0x134] sm:$0xf]
      %v253 = vld [vmem:[%s166 + $0x138] sm:$0xf]
      %v254 = vld [vmem:[%s166 + $0x13c] sm:$0xf]
      %v255 = vld [vmem:[%s166 + $0x140] sm:$0xf]
      %v256 = vld [vmem:[%s166 + $0x144] sm:$0xf]
      %v257 = vld [vmem:[%s166 + $0x148] sm:$0xf]
      %v258 = vld [vmem:[%s166 + $0x14c] sm:$0xf]
      %v259 = vld [vmem:[%s166 + $0x150] sm:$0xf]
      %v260 = vld [vmem:[%s166 + $0x154] sm:$0xf]
      %v261 = vld [vmem:[%s166 + $0x158] sm:$0xf]
      %v262 = vld [vmem:[%s166 + $0x15c] sm:$0xf]
      %v263 = vld [vmem:[%s166 + $0x160] sm:$0xf]
      %v264 = vld [vmem:[%s166 + $0x164] sm:$0xf]
      %v265 = vld [vmem:[%s166 + $0x168] sm:$0xf]
      %v266 = vld [vmem:[%s166 + $0x16c] sm:$0xf]
      %v267 = vld [vmem:[%s166 + $0x170] sm:$0xf]
      %v268 = vld [vmem:[%s166 + $0x174] sm:$0xf]
      %v269 = vld [vmem:[%s166 + $0x178] sm:$0xf]
      %v270 = vld [vmem:[%s166 + $0x17c] sm:$0xf]
      %v271 = vld [vmem:[%s166 + $0x180] sm:$0xf]
      %v272 = vld [vmem:[%s166 + $0x184] sm:$0xf]
      %v273 = vld [vmem:[%s166 + $0x188] sm:$0xf]
      %v274 = vld [vmem:[%s166 + $0x18c] sm:$0xf]
      %v275 = vld [vmem:[%s166 + $0x190] sm:$0xf]
      %v276 = vld [vmem:[%s166 + $0x194] sm:$0xf]
      %v277 = vld [vmem:[%s166 + $0x198] sm:$0xf]
      %v278 = vld [vmem:[%s166 + $0x19c] sm:$0xf]
      %v279 = vld [vmem:[%s166 + $0x1a0] sm:$0xf]
      %v280 = vld [vmem:[%s166 + $0x1a4] sm:$0xf]
      %v281 = vld [vmem:[%s166 + $0x1a8] sm:$0xf]
      %v282 = vld [vmem:[%s166 + $0x1ac] sm:$0xf]
      %v283 = vld [vmem:[%s166 + $0x1b0] sm:$0xf]
      %v284 = vld [vmem:[%s166 + $0x1b4] sm:$0xf]
      %v285 = vld [vmem:[%s166 + $0x1b8] sm:$0xf]
      %v286 = vld [vmem:[%s166 + $0x1bc] sm:$0xf]
      %v287 = vld [vmem:[%s166 + $0x1c0] sm:$0xf]
      %v288 = vld [vmem:[%s166 + $0x1c4] sm:$0xf]
      %v289 = vld [vmem:[%s166 + $0x1c8] sm:$0xf]
      %v290 = vld [vmem:[%s166 + $0x1cc] sm:$0xf]
      %v291 = vld [vmem:[%s166 + $0x1d0] sm:$0xf]
      %v292 = vld [vmem:[%s166 + $0x1d4] sm:$0xf]
      %v293 = vld [vmem:[%s166 + $0x1d8] sm:$0xf]
      %v294 = vld [vmem:[%s166 + $0x1dc] sm:$0xf]
      %v295 = vld [vmem:[%s166 + $0x1e0] sm:$0xf]
      %v296 = vld [vmem:[%s166 + $0x1e4] sm:$0xf]
      %v297 = vld [vmem:[%s166 + $0x1e8] sm:$0xf]
      %v298 = vld [vmem:[%s166 + $0x1ec] sm:$0xf]
      %v299 = vld [vmem:[%s166 + $0x1f0] sm:$0xf]
      %v300 = vld [vmem:[%s166 + $0x1f4] sm:$0xf]
      %v301 = vld [vmem:[%s166 + $0x1f8] sm:$0xf]
      %v302 = vld [vmem:[%s166 + $0x1fc] sm:$0xf]
      %v303 = vld [vmem:[%s1] sm:$0xf]
      %v304 = vld [vmem:[%s1 + $0x4] sm:$0xf]
      %v305 = vld [vmem:[%s1 + $0x8] sm:$0xf]
      %v306 = vld [vmem:[%s1 + $0xc] sm:$0xf]
      %v307 = vld [vmem:[%s1 + $0x10] sm:$0xf]
      %v308 = vld [vmem:[%s1 + $0x14] sm:$0xf]
      %v309 = vld [vmem:[%s1 + $0x18] sm:$0xf]
      %v310 = vld [vmem:[%s1 + $0x1c] sm:$0xf]
      %v311 = vld [vmem:[%s1 + $0x20] sm:$0xf]
      %v312 = vld [vmem:[%s2] sm:$0x1]
      %v314 = vlaneseq
      %v315 = vshrl.u32 %v314, 7
      %v316 = vsub.s32 0, %v315
      %v317 = vrot.slane %v312, %v316
      %v447 = vunpack.c.l.b16 %v175
      %v448 = vunpack.c.l.b16 %v176
      %v449 = vunpack.c.l.b16 %v177
      %v450 = vunpack.c.l.b16 %v178
      %v451 = vunpack.c.l.b16 %v179
      %v452 = vunpack.c.l.b16 %v180
      %v453 = vunpack.c.l.b16 %v181
      %v454 = vunpack.c.l.b16 %v182
      %v455 = vunpack.c.l.b16 %v183
      %v456 = vunpack.c.l.b16 %v184
      %v457 = vunpack.c.l.b16 %v185
      %v458 = vunpack.c.l.b16 %v186
      %v459 = vunpack.c.l.b16 %v187
      %v460 = vunpack.c.l.b16 %v188
      %v461 = vunpack.c.l.b16 %v189
      %v462 = vunpack.c.l.b16 %v190
      %v463 = vunpack.c.l.b16 %v191
      %v464 = vunpack.c.l.b16 %v192
      %v465 = vunpack.c.l.b16 %v193
      %v466 = vunpack.c.l.b16 %v194
      %v467 = vunpack.c.l.b16 %v195
      %v468 = vunpack.c.l.b16 %v196
      %v469 = vunpack.c.l.b16 %v197
      %v470 = vunpack.c.l.b16 %v198
      %v471 = vunpack.c.l.b16 %v199
      %v472 = vunpack.c.l.b16 %v200
      %v473 = vunpack.c.l.b16 %v201
      %v474 = vunpack.c.l.b16 %v202
      %v475 = vunpack.c.l.b16 %v203
      %v476 = vunpack.c.l.b16 %v204
      %v477 = vunpack.c.l.b16 %v205
      %v478 = vunpack.c.l.b16 %v206
      %v479 = vunpack.c.l.b16 %v207
      %v480 = vunpack.c.l.b16 %v208
      %v481 = vunpack.c.l.b16 %v209
      %v482 = vunpack.c.l.b16 %v210
      %v483 = vunpack.c.l.b16 %v211
      %v484 = vunpack.c.l.b16 %v212
      %v485 = vunpack.c.l.b16 %v213
      %v486 = vunpack.c.l.b16 %v214
      %v487 = vunpack.c.l.b16 %v215
      %v488 = vunpack.c.l.b16 %v216
      %v489 = vunpack.c.l.b16 %v217
      %v490 = vunpack.c.l.b16 %v218
      %v491 = vunpack.c.l.b16 %v219
      %v492 = vunpack.c.l.b16 %v220
      %v493 = vunpack.c.l.b16 %v221
      %v494 = vunpack.c.l.b16 %v222
      %v495 = vunpack.c.l.b16 %v223
      %v496 = vunpack.c.l.b16 %v224
      %v497 = vunpack.c.l.b16 %v225
      %v498 = vunpack.c.l.b16 %v226
      %v499 = vunpack.c.l.b16 %v227
      %v500 = vunpack.c.l.b16 %v228
      %v501 = vunpack.c.l.b16 %v229
      %v502 = vunpack.c.l.b16 %v230
      %v503 = vunpack.c.l.b16 %v231
      %v504 = vunpack.c.l.b16 %v232
      %v505 = vunpack.c.l.b16 %v233
      %v506 = vunpack.c.l.b16 %v234
      %v507 = vunpack.c.l.b16 %v235
      %v508 = vunpack.c.l.b16 %v236
      %v509 = vunpack.c.l.b16 %v237
      %v510 = vunpack.c.l.b16 %v238
      %v511 = vunpack.c.l.b16 %v239
      %v512 = vunpack.c.l.b16 %v240
      %v513 = vunpack.c.l.b16 %v241
      %v514 = vunpack.c.l.b16 %v242
      %v515 = vunpack.c.l.b16 %v243
      %v516 = vunpack.c.l.b16 %v244
      %v517 = vunpack.c.l.b16 %v245
      %v518 = vunpack.c.l.b16 %v246
      %v519 = vunpack.c.l.b16 %v247
      %v520 = vunpack.c.l.b16 %v248
      %v521 = vunpack.c.l.b16 %v249
      %v522 = vunpack.c.l.b16 %v250
      %v523 = vunpack.c.l.b16 %v251
      %v524 = vunpack.c.l.b16 %v252
      %v525 = vunpack.c.l.b16 %v253
      %v526 = vunpack.c.l.b16 %v254
      %v527 = vunpack.c.l.b16 %v255
      %v528 = vunpack.c.l.b16 %v256
      %v529 = vunpack.c.l.b16 %v257
      %v530 = vunpack.c.l.b16 %v258
      %v531 = vunpack.c.l.b16 %v259
      %v532 = vunpack.c.l.b16 %v260
      %v533 = vunpack.c.l.b16 %v261
      %v534 = vunpack.c.l.b16 %v262
      %v535 = vunpack.c.l.b16 %v263
      %v536 = vunpack.c.l.b16 %v264
      %v537 = vunpack.c.l.b16 %v265
      %v538 = vunpack.c.l.b16 %v266
      %v539 = vunpack.c.l.b16 %v267
      %v540 = vunpack.c.l.b16 %v268
      %v541 = vunpack.c.l.b16 %v269
      %v542 = vunpack.c.l.b16 %v270
      %v543 = vunpack.c.l.b16 %v271
      %v544 = vunpack.c.l.b16 %v272
      %v545 = vunpack.c.l.b16 %v273
      %v546 = vunpack.c.l.b16 %v274
      %v547 = vunpack.c.l.b16 %v275
      %v548 = vunpack.c.l.b16 %v276
      %v549 = vunpack.c.l.b16 %v277
      %v550 = vunpack.c.l.b16 %v278
      %v551 = vunpack.c.l.b16 %v279
      %v552 = vunpack.c.l.b16 %v280
      %v553 = vunpack.c.l.b16 %v281
      %v554 = vunpack.c.l.b16 %v282
      %v555 = vunpack.c.l.b16 %v283
      %v556 = vunpack.c.l.b16 %v284
      %v557 = vunpack.c.l.b16 %v285
      %v558 = vunpack.c.l.b16 %v286
      %v559 = vunpack.c.l.b16 %v287
      %v560 = vunpack.c.l.b16 %v288
      %v561 = vunpack.c.l.b16 %v289
      %v562 = vunpack.c.l.b16 %v290
      %v563 = vunpack.c.l.b16 %v291
      %v564 = vunpack.c.l.b16 %v292
      %v565 = vunpack.c.l.b16 %v293
      %v566 = vunpack.c.l.b16 %v294
      %v567 = vunpack.c.l.b16 %v295
      %v568 = vunpack.c.l.b16 %v296
      %v569 = vunpack.c.l.b16 %v297
      %v570 = vunpack.c.l.b16 %v298
      %v571 = vunpack.c.l.b16 %v299
      %v572 = vunpack.c.l.b16 %v300
      %v573 = vunpack.c.l.b16 %v301
      %v574 = vunpack.c.l.b16 %v302
      %v575 = vpack.c.b16 %v448, %v447
      %v576 = vpack.c.b16 %v450, %v449
      %v577 = vpack.c.b16 %v452, %v451
      %v578 = vpack.c.b16 %v454, %v453
      %v579 = vpack.c.b16 %v456, %v455
      %v580 = vpack.c.b16 %v458, %v457
      %v581 = vpack.c.b16 %v460, %v459
      %v582 = vpack.c.b16 %v462, %v461
      %v583 = vpack.c.b16 %v464, %v463
      %v584 = vpack.c.b16 %v466, %v465
      %v585 = vpack.c.b16 %v468, %v467
      %v586 = vpack.c.b16 %v470, %v469
      %v587 = vpack.c.b16 %v472, %v471
      %v588 = vpack.c.b16 %v474, %v473
      %v589 = vpack.c.b16 %v476, %v475
      %v590 = vpack.c.b16 %v478, %v477
      %v591 = vpack.c.b16 %v480, %v479
      %v592 = vpack.c.b16 %v482, %v481
      %v593 = vpack.c.b16 %v484, %v483
      %v594 = vpack.c.b16 %v486, %v485
      %v595 = vpack.c.b16 %v488, %v487
      %v596 = vpack.c.b16 %v490, %v489
      %v597 = vpack.c.b16 %v492, %v491
      %v598 = vpack.c.b16 %v494, %v493
      %v599 = vpack.c.b16 %v496, %v495
      %v600 = vpack.c.b16 %v498, %v497
      %v601 = vpack.c.b16 %v500, %v499
      %v602 = vpack.c.b16 %v502, %v501
      %v603 = vpack.c.b16 %v504, %v503
      %v604 = vpack.c.b16 %v506, %v505
      %v605 = vpack.c.b16 %v508, %v507
      %v606 = vpack.c.b16 %v510, %v509
      %v607 = vpack.c.b16 %v512, %v511
      %v608 = vpack.c.b16 %v514, %v513
      %v609 = vpack.c.b16 %v516, %v515
      %v610 = vpack.c.b16 %v518, %v517
      %v611 = vpack.c.b16 %v520, %v519
      %v612 = vpack.c.b16 %v522, %v521
      %v613 = vpack.c.b16 %v524, %v523
      %v614 = vpack.c.b16 %v526, %v525
      %v615 = vpack.c.b16 %v528, %v527
      %v616 = vpack.c.b16 %v530, %v529
      %v617 = vpack.c.b16 %v532, %v531
      %v618 = vpack.c.b16 %v534, %v533
      %v619 = vpack.c.b16 %v536, %v535
      %v620 = vpack.c.b16 %v538, %v537
      %v621 = vpack.c.b16 %v540, %v539
      %v622 = vpack.c.b16 %v542, %v541
      %v623 = vpack.c.b16 %v544, %v543
      %v624 = vpack.c.b16 %v546, %v545
      %v625 = vpack.c.b16 %v548, %v547
      %v626 = vpack.c.b16 %v550, %v549
      %v627 = vpack.c.b16 %v552, %v551
      %v628 = vpack.c.b16 %v554, %v553
      %v629 = vpack.c.b16 %v556, %v555
      %v630 = vpack.c.b16 %v558, %v557
      %v631 = vpack.c.b16 %v560, %v559
      %v632 = vpack.c.b16 %v562, %v561
      %v633 = vpack.c.b16 %v564, %v563
      %v634 = vpack.c.b16 %v566, %v565
      %v635 = vpack.c.b16 %v568, %v567
      %v636 = vpack.c.b16 %v570, %v569
      %v637 = vpack.c.b16 %v572, %v571
      %v638 = vpack.c.b16 %v574, %v573
      %v648 = vunpack.c.l.b16 %v303
      %v649 = vunpack.c.l.b16 %v304
      %v650 = vunpack.c.l.b16 %v305
      %v651 = vunpack.c.l.b16 %v306
      %v652 = vunpack.c.l.b16 %v307
      %v653 = vunpack.c.l.b16 %v308
      %v654 = vunpack.c.l.b16 %v309
      %v655 = vunpack.c.l.b16 %v310
      %v656 = vunpack.c.l.b16 %v311
      %v657 = vpack.c.b16 %v649, %v648
      %v658 = vpack.c.b16 %v651, %v650
      %v659 = vpack.c.b16 %v653, %v652
      %v660 = vpack.c.b16 %v655, %v654
      %v661 = vpack.c.b16 %v656, %v656
      %vm666 = vcmask 588800
      %v668 = vsel %vm666, %v575, 0
      %v671 = vsel %vm666, %v576, 0
      %v674 = vsel %vm666, %v577, 0
      %v677 = vsel %vm666, %v578, 0
      %v680 = vsel %vm666, %v579, 0
      %v683 = vsel %vm666, %v580, 0
      %v686 = vsel %vm666, %v581, 0
      %v689 = vsel %vm666, %v582, 0
      %v692 = vsel %vm666, %v583, 0
      %v695 = vsel %vm666, %v584, 0
      %v698 = vsel %vm666, %v585, 0
      %v701 = vsel %vm666, %v586, 0
      %v704 = vsel %vm666, %v587, 0
      %v707 = vsel %vm666, %v588, 0
      %v710 = vsel %vm666, %v589, 0
      %v713 = vsel %vm666, %v590, 0
      %v716 = vsel %vm666, %v591, 0
      %v719 = vsel %vm666, %v592, 0
      %v722 = vsel %vm666, %v593, 0
      %v725 = vsel %vm666, %v594, 0
      %v728 = vsel %vm666, %v595, 0
      %v731 = vsel %vm666, %v596, 0
      %v734 = vsel %vm666, %v597, 0
      %v737 = vsel %vm666, %v598, 0
      %v740 = vsel %vm666, %v599, 0
      %v743 = vsel %vm666, %v600, 0
      %v746 = vsel %vm666, %v601, 0
      %v749 = vsel %vm666, %v602, 0
      %v752 = vsel %vm666, %v603, 0
      %v755 = vsel %vm666, %v604, 0
      %v758 = vsel %vm666, %v605, 0
      %v761 = vsel %vm666, %v606, 0
      %v764 = vsel %vm666, %v607, 0
      %v767 = vsel %vm666, %v608, 0
      %v770 = vsel %vm666, %v609, 0
      %v773 = vsel %vm666, %v610, 0
      %v776 = vsel %vm666, %v611, 0
      %v779 = vsel %vm666, %v612, 0
      %v782 = vsel %vm666, %v613, 0
      %v785 = vsel %vm666, %v614, 0
      %v788 = vsel %vm666, %v615, 0
      %v791 = vsel %vm666, %v616, 0
      %v794 = vsel %vm666, %v617, 0
      %v797 = vsel %vm666, %v618, 0
      %v800 = vsel %vm666, %v619, 0
      %v803 = vsel %vm666, %v620, 0
      %v806 = vsel %vm666, %v621, 0
      %v809 = vsel %vm666, %v622, 0
      %v812 = vsel %vm666, %v623, 0
      %v815 = vsel %vm666, %v624, 0
      %v818 = vsel %vm666, %v625, 0
      %v821 = vsel %vm666, %v626, 0
      %v824 = vsel %vm666, %v627, 0
      %v827 = vsel %vm666, %v628, 0
      %v830 = vsel %vm666, %v629, 0
      %v833 = vsel %vm666, %v630, 0
      %v836 = vsel %vm666, %v631, 0
      %v839 = vsel %vm666, %v632, 0
      %v842 = vsel %vm666, %v633, 0
      %v845 = vsel %vm666, %v634, 0
      %v848 = vsel %vm666, %v635, 0
      %v851 = vsel %vm666, %v636, 0
      %v854 = vsel %vm666, %v637, 0
      %v857 = vsel %vm666, %v638, 0
      %vm859 = vcmask 1043456
      %v861 = vsel %vm859, %v661, 0
      %863 = vmatprep.subr.bf16.mxu0 0
      %864 = vmatpush1.bf16.msra.mxu0 %v657
      %865 = vmatprep.subr.bf16.mxu0 0
      %866 = vmatpush1.bf16.msra.mxu0 %v658
      %867 = vmatprep.subr.bf16.mxu0 0
      %868 = vmatpush1.bf16.msra.mxu0 %v659
      %869 = vmatprep.subr.bf16.mxu0 0
      %870 = vmatpush1.bf16.msra.mxu0 %v660
      %871 = vmatprep.subr.bf16.mxu0 0
      %872 = vmatpush1.bf16.msra.mxu0 %v861
      %873 = vmatprep.subr.bf16.mxu0 0
      %874 = vmatpush1.bf16.msra.mxu0 0
      %875 = vmatprep.subr.bf16.mxu0 0
      %876 = vmatpush1.bf16.msra.mxu0 0
      %877 = vmatprep.subr.bf16.mxu0 0
      %878 = vmatpush1.bf16.msra.mxu0 0
      %879 = vmatprep.subr.bf16.mxu0 0
      %880 = vmatpush1.bf16.msra.mxu0 0
      %881 = vmatprep.subr.bf16.mxu0 0
      %882 = vmatpush1.bf16.msra.mxu0 0
      %883 = vmatprep.subr.bf16.mxu0 0
      %884 = vmatpush1.bf16.msra.mxu0 0
      %885 = vmatprep.subr.bf16.mxu0 0
      %886 = vmatpush1.bf16.msra.mxu0 0
      %887 = vmatprep.subr.bf16.mxu0 0
      %888 = vmatpush1.bf16.msra.mxu0 0
      %889 = vmatprep.subr.bf16.mxu0 0
      %890 = vmatpush1.bf16.msra.mxu0 0
      %891 = vmatprep.subr.bf16.mxu0 0
      %892 = vmatpush1.bf16.msra.mxu0 0
      %893 = vmatprep.subr.bf16.mxu0 0
      %894 = vmatpush1.bf16.msra.mxu0 0
      %895 = vmatprep.mubr.bf16.mxu0 0
      %896 = vmatmul.mubr.bf16.gmra.mrb[0].mxu0 %v668
      %v897 = vpop.f32.mrb[0].mxu0
      %v898 = vadd.f32 %v317, %v897
      %v899 = vpop.f32.mrb[0].mxu0
      %v900 = vpop.f32.mrb[0].mxu0
      %v901 = vadd.f32 %v317, %v900
      %v902 = vpop.f32.mrb[0].mxu0
      %903 = vmatprep.mubr.bf16.mxu0 0
      %904 = vmatmul.mubr.bf16.gmra.mrb[0].mxu0 %v671
      %v905 = vpop.f32.mrb[0].mxu0
      %v906 = vadd.f32 %v317, %v905
      %v907 = vpop.f32.mrb[0].mxu0
      %v908 = vpop.f32.mrb[0].mxu0
      %v909 = vadd.f32 %v317, %v908
      %v910 = vpop.f32.mrb[0].mxu0
      %911 = vmatprep.mubr.bf16.mxu0 0
      %912 = vmatmul.mubr.bf16.gmra.mrb[0].mxu0 %v674
      %v913 = vpop.f32.mrb[0].mxu0
      %v914 = vadd.f32 %v317, %v913
      %v915 = vpop.f32.mrb[0].mxu0
      %v916 = vpop.f32.mrb[0].mxu0
      %v917 = vadd.f32 %v317, %v916
      %v918 = vpop.f32.mrb[0].mxu0
      %919 = vmatprep.mubr.bf16.mxu0 0
      %920 = vmatmul.mubr.bf16.gmra.mrb[0].mxu0 %v677
      %v921 = vpop.f32.mrb[0].mxu0
      %v922 = vadd.f32 %v317, %v921
      %v923 = vpop.f32.mrb[0].mxu0
      %v924 = vpop.f32.mrb[0].mxu0
      %v925 = vadd.f32 %v317, %v924
      %v926 = vpop.f32.mrb[0].mxu0
      %927 = vmatprep.mubr.bf16.mxu0 0
      %928 = vmatmul.mubr.bf16.gmra.mrb[0].mxu0 %v680
      %v929 = vpop.f32.mrb[0].mxu0
      %v930 = vadd.f32 %v317, %v929
      %v931 = vpop.f32.mrb[0].mxu0
      %v932 = vpop.f32.mrb[0].mxu0
      %v933 = vadd.f32 %v317, %v932
      %v934 = vpop.f32.mrb[0].mxu0
      %935 = vmatprep.mubr.bf16.mxu0 0
      %936 = vmatmul.mubr.bf16.gmra.mrb[0].mxu0 %v683
      %v937 = vpop.f32.mrb[0].mxu0
      %v938 = vadd.f32 %v317, %v937
      %v939 = vpop.f32.mrb[0].mxu0
      %v940 = vpop.f32.mrb[0].mxu0
      %v941 = vadd.f32 %v317, %v940
      %v942 = vpop.f32.mrb[0].mxu0
      %943 = vmatprep.mubr.bf16.mxu0 0
      %944 = vmatmul.mubr.bf16.gmra.mrb[0].mxu0 %v686
      %v945 = vpop.f32.mrb[0].mxu0
      %v946 = vadd.f32 %v317, %v945
      %v947 = vpop.f32.mrb[0].mxu0
      %v948 = vpop.f32.mrb[0].mxu0
      %v949 = vadd.f32 %v317, %v948
      %v950 = vpop.f32.mrb[0].mxu0
      %951 = vmatprep.mubr.bf16.mxu0 0
      %952 = vmatmul.mubr.bf16.gmra.mrb[0].mxu0 %v689
      %v953 = vpop.f32.mrb[0].mxu0
      %v954 = vadd.f32 %v317, %v953
      %v955 = vpop.f32.mrb[0].mxu0
      %v956 = vpop.f32.mrb[0].mxu0
      %v957 = vadd.f32 %v317, %v956
      %v958 = vpop.f32.mrb[0].mxu0
      %959 = vmatprep.mubr.bf16.mxu0 0
      %960 = vmatmul.mubr.bf16.gmra.mrb[0].mxu0 %v692
      %v961 = vpop.f32.mrb[0].mxu0
      %v962 = vadd.f32 %v317, %v961
      %v963 = vpop.f32.mrb[0].mxu0
      %v964 = vpop.f32.mrb[0].mxu0
      %v965 = vadd.f32 %v317, %v964
      %v966 = vpop.f32.mrb[0].mxu0
      %967 = vmatprep.mubr.bf16.mxu0 0
      %968 = vmatmul.mubr.bf16.gmra.mrb[0].mxu0 %v695
      %v969 = vpop.f32.mrb[0].mxu0
      %v970 = vadd.f32 %v317, %v969
      %v971 = vpop.f32.mrb[0].mxu0
      %v972 = vpop.f32.mrb[0].mxu0
      %v973 = vadd.f32 %v317, %v972
      %v974 = vpop.f32.mrb[0].mxu0
      %975 = vmatprep.mubr.bf16.mxu0 0
      %976 = vmatmul.mubr.bf16.gmra.mrb[0].mxu0 %v698
      %v977 = vpop.f32.mrb[0].mxu0
      %v978 = vadd.f32 %v317, %v977
      %v979 = vpop.f32.mrb[0].mxu0
      %v980 = vpop.f32.mrb[0].mxu0
      %v981 = vadd.f32 %v317, %v980
      %v982 = vpop.f32.mrb[0].mxu0
      %983 = vmatprep.mubr.bf16.mxu0 0
      %984 = vmatmul.mubr.bf16.gmra.mrb[0].mxu0 %v701
      %v985 = vpop.f32.mrb[0].mxu0
      %v986 = vadd.f32 %v317, %v985
      %v987 = vpop.f32.mrb[0].mxu0
      %v988 = vpop.f32.mrb[0].mxu0
      %v989 = vadd.f32 %v317, %v988
      %v990 = vpop.f32.mrb[0].mxu0
      %991 = vmatprep.mubr.bf16.mxu0 0
      %992 = vmatmul.mubr.bf16.gmra.mrb[0].mxu0 %v704
      %v993 = vpop.f32.mrb[0].mxu0
      %v994 = vadd.f32 %v317, %v993
      %v995 = vpop.f32.mrb[0].mxu0
      %v996 = vpop.f32.mrb[0].mxu0
      %v997 = vadd.f32 %v317, %v996
      %v998 = vpop.f32.mrb[0].mxu0
      %999 = vmatprep.mubr.bf16.mxu0 0
      %1000 = vmatmul.mubr.bf16.gmra.mrb[0].mxu0 %v707
      %v1001 = vpop.f32.mrb[0].mxu0
      %v1002 = vadd.f32 %v317, %v1001
      %v1003 = vpop.f32.mrb[0].mxu0
      %v1004 = vpop.f32.mrb[0].mxu0
      %v1005 = vadd.f32 %v317, %v1004
      %v1006 = vpop.f32.mrb[0].mxu0
      %1007 = vmatprep.mubr.bf16.mxu0 0
      %1008 = vmatmul.mubr.bf16.gmra.mrb[0].mxu0 %v710
      %v1009 = vpop.f32.mrb[0].mxu0
      %v1010 = vadd.f32 %v317, %v1009
      %v1011 = vpop.f32.mrb[0].mxu0
      %v1012 = vpop.f32.mrb[0].mxu0
      %v1013 = vadd.f32 %v317, %v1012
      %v1014 = vpop.f32.mrb[0].mxu0
      %1015 = vmatprep.mubr.bf16.mxu0 0
      %1016 = vmatmul.mubr.bf16.gmra.mrb[0].mxu0 %v713
      %v1017 = vpop.f32.mrb[0].mxu0
      %v1018 = vadd.f32 %v317, %v1017
      %v1019 = vpop.f32.mrb[0].mxu0
      %v1020 = vpop.f32.mrb[0].mxu0
      %v1021 = vadd.f32 %v317, %v1020
      %v1022 = vpop.f32.mrb[0].mxu0
      %1023 = vmatprep.mubr.bf16.mxu0 0
      %1024 = vmatmul.mubr.bf16.gmra.mrb[0].mxu0 %v716
      %v1025 = vpop.f32.mrb[0].mxu0
      %v1026 = vadd.f32 %v317, %v1025
      %v1027 = vpop.f32.mrb[0].mxu0
      %v1028 = vpop.f32.mrb[0].mxu0
      %v1029 = vadd.f32 %v317, %v1028
      %v1030 = vpop.f32.mrb[0].mxu0
      %1031 = vmatprep.mubr.bf16.mxu0 0
      %1032 = vmatmul.mubr.bf16.gmra.mrb[0].mxu0 %v719
      %v1033 = vpop.f32.mrb[0].mxu0
      %v1034 = vadd.f32 %v317, %v1033
      %v1035 = vpop.f32.mrb[0].mxu0
      %v1036 = vpop.f32.mrb[0].mxu0
      %v1037 = vadd.f32 %v317, %v1036
      %v1038 = vpop.f32.mrb[0].mxu0
      %1039 = vmatprep.mubr.bf16.mxu0 0
      %1040 = vmatmul.mubr.bf16.gmra.mrb[0].mxu0 %v722
      %v1041 = vpop.f32.mrb[0].mxu0
      %v1042 = vadd.f32 %v317, %v1041
      %v1043 = vpop.f32.mrb[0].mxu0
      %v1044 = vpop.f32.mrb[0].mxu0
      %v1045 = vadd.f32 %v317, %v1044
      %v1046 = vpop.f32.mrb[0].mxu0
      %1047 = vmatprep.mubr.bf16.mxu0 0
      %1048 = vmatmul.mubr.bf16.gmra.mrb[0].mxu0 %v725
      %v1049 = vpop.f32.mrb[0].mxu0
      %v1050 = vadd.f32 %v317, %v1049
      %v1051 = vpop.f32.mrb[0].mxu0
      %v1052 = vpop.f32.mrb[0].mxu0
      %v1053 = vadd.f32 %v317, %v1052
      %v1054 = vpop.f32.mrb[0].mxu0
      %1055 = vmatprep.mubr.bf16.mxu0 0
      %1056 = vmatmul.mubr.bf16.gmra.mrb[0].mxu0 %v728
      %v1057 = vpop.f32.mrb[0].mxu0
      %v1058 = vadd.f32 %v317, %v1057
      %v1059 = vpop.f32.mrb[0].mxu0
      %v1060 = vpop.f32.mrb[0].mxu0
      %v1061 = vadd.f32 %v317, %v1060
      %v1062 = vpop.f32.mrb[0].mxu0
      %1063 = vmatprep.mubr.bf16.mxu0 0
      %1064 = vmatmul.mubr.bf16.gmra.mrb[0].mxu0 %v731
      %v1065 = vpop.f32.mrb[0].mxu0
      %v1066 = vadd.f32 %v317, %v1065
      %v1067 = vpop.f32.mrb[0].mxu0
      %v1068 = vpop.f32.mrb[0].mxu0
      %v1069 = vadd.f32 %v317, %v1068
      %v1070 = vpop.f32.mrb[0].mxu0
      %1071 = vmatprep.mubr.bf16.mxu0 0
      %1072 = vmatmul.mubr.bf16.gmra.mrb[0].mxu0 %v734
      %v1073 = vpop.f32.mrb[0].mxu0
      %v1074 = vadd.f32 %v317, %v1073
      %v1075 = vpop.f32.mrb[0].mxu0
      %v1076 = vpop.f32.mrb[0].mxu0
      %v1077 = vadd.f32 %v317, %v1076
      %v1078 = vpop.f32.mrb[0].mxu0
      %1079 = vmatprep.mubr.bf16.mxu0 0
      %1080 = vmatmul.mubr.bf16.gmra.mrb[0].mxu0 %v737
      %v1081 = vpop.f32.mrb[0].mxu0
      %v1082 = vadd.f32 %v317, %v1081
      %v1083 = vpop.f32.mrb[0].mxu0
      %v1084 = vpop.f32.mrb[0].mxu0
      %v1085 = vadd.f32 %v317, %v1084
      %v1086 = vpop.f32.mrb[0].mxu0
      %1087 = vmatprep.mubr.bf16.mxu0 0
      %1088 = vmatmul.mubr.bf16.gmra.mrb[0].mxu0 %v740
      %v1089 = vpop.f32.mrb[0].mxu0
      %v1090 = vadd.f32 %v317, %v1089
      %v1091 = vpop.f32.mrb[0].mxu0
      %v1092 = vpop.f32.mrb[0].mxu0
      %v1093 = vadd.f32 %v317, %v1092
      %v1094 = vpop.f32.mrb[0].mxu0
      %1095 = vmatprep.mubr.bf16.mxu0 0
      %1096 = vmatmul.mubr.bf16.gmra.mrb[0].mxu0 %v743
      %v1097 = vpop.f32.mrb[0].mxu0
      %v1098 = vadd.f32 %v317, %v1097
      %v1099 = vpop.f32.mrb[0].mxu0
      %v1100 = vpop.f32.mrb[0].mxu0
      %v1101 = vadd.f32 %v317, %v1100
      %v1102 = vpop.f32.mrb[0].mxu0
      %1103 = vmatprep.mubr.bf16.mxu0 0
      %1104 = vmatmul.mubr.bf16.gmra.mrb[0].mxu0 %v746
      %v1105 = vpop.f32.mrb[0].mxu0
      %v1106 = vadd.f32 %v317, %v1105
      %v1107 = vpop.f32.mrb[0].mxu0
      %v1108 = vpop.f32.mrb[0].mxu0
      %v1109 = vadd.f32 %v317, %v1108
      %v1110 = vpop.f32.mrb[0].mxu0
      %1111 = vmatprep.mubr.bf16.mxu0 0
      %1112 = vmatmul.mubr.bf16.gmra.mrb[0].mxu0 %v749
      %v1113 = vpop.f32.mrb[0].mxu0
      %v1114 = vadd.f32 %v317, %v1113
      %v1115 = vpop.f32.mrb[0].mxu0
      %v1116 = vpop.f32.mrb[0].mxu0
      %v1117 = vadd.f32 %v317, %v1116
      %v1118 = vpop.f32.mrb[0].mxu0
      %1119 = vmatprep.mubr.bf16.mxu0 0
      %1120 = vmatmul.mubr.bf16.gmra.mrb[0].mxu0 %v752
      %v1121 = vpop.f32.mrb[0].mxu0
      %v1122 = vadd.f32 %v317, %v1121
      %v1123 = vpop.f32.mrb[0].mxu0
      %v1124 = vpop.f32.mrb[0].mxu0
      %v1125 = vadd.f32 %v317, %v1124
      %v1126 = vpop.f32.mrb[0].mxu0
      %1127 = vmatprep.mubr.bf16.mxu0 0
      %1128 = vmatmul.mubr.bf16.gmra.mrb[0].mxu0 %v755
      %v1129 = vpop.f32.mrb[0].mxu0
      %v1130 = vadd.f32 %v317, %v1129
      %v1131 = vpop.f32.mrb[0].mxu0
      %v1132 = vpop.f32.mrb[0].mxu0
      %v1133 = vadd.f32 %v317, %v1132
      %v1134 = vpop.f32.mrb[0].mxu0
      %1135 = vmatprep.mubr.bf16.mxu0 0
      %1136 = vmatmul.mubr.bf16.gmra.mrb[0].mxu0 %v758
      %v1137 = vpop.f32.mrb[0].mxu0
      %v1138 = vadd.f32 %v317, %v1137
      %v1139 = vpop.f32.mrb[0].mxu0
      %v1140 = vpop.f32.mrb[0].mxu0
      %v1141 = vadd.f32 %v317, %v1140
      %v1142 = vpop.f32.mrb[0].mxu0
      %1143 = vmatprep.mubr.bf16.mxu0 0
      %1144 = vmatmul.mubr.bf16.gmra.mrb[0].mxu0 %v761
      %v1145 = vpop.f32.mrb[0].mxu0
      %v1146 = vadd.f32 %v317, %v1145
      %v1147 = vpop.f32.mrb[0].mxu0
      %v1148 = vpop.f32.mrb[0].mxu0
      %v1149 = vadd.f32 %v317, %v1148
      %v1150 = vpop.f32.mrb[0].mxu0
      %1151 = vmatprep.mubr.bf16.mxu0 0
      %1152 = vmatmul.mubr.bf16.gmra.mrb[0].mxu0 %v764
      %v1153 = vpop.f32.mrb[0].mxu0
      %v1154 = vadd.f32 %v317, %v1153
      %v1155 = vpop.f32.mrb[0].mxu0
      %v1156 = vpop.f32.mrb[0].mxu0
      %v1157 = vadd.f32 %v317, %v1156
      %v1158 = vpop.f32.mrb[0].mxu0
      %1159 = vmatprep.mubr.bf16.mxu0 0
      %1160 = vmatmul.mubr.bf16.gmra.mrb[0].mxu0 %v767
      %v1161 = vpop.f32.mrb[0].mxu0
      %v1162 = vadd.f32 %v317, %v1161
      %v1163 = vpop.f32.mrb[0].mxu0
      %v1164 = vpop.f32.mrb[0].mxu0
      %v1165 = vadd.f32 %v317, %v1164
      %v1166 = vpop.f32.mrb[0].mxu0
      %1167 = vmatprep.mubr.bf16.mxu0 0
      %1168 = vmatmul.mubr.bf16.gmra.mrb[0].mxu0 %v770
      %v1169 = vpop.f32.mrb[0].mxu0
      %v1170 = vadd.f32 %v317, %v1169
      %v1171 = vpop.f32.mrb[0].mxu0
      %v1172 = vpop.f32.mrb[0].mxu0
      %v1173 = vadd.f32 %v317, %v1172
      %v1174 = vpop.f32.mrb[0].mxu0
      %1175 = vmatprep.mubr.bf16.mxu0 0
      %1176 = vmatmul.mubr.bf16.gmra.mrb[0].mxu0 %v773
      %v1177 = vpop.f32.mrb[0].mxu0
      %v1178 = vadd.f32 %v317, %v1177
      %v1179 = vpop.f32.mrb[0].mxu0
      %v1180 = vpop.f32.mrb[0].mxu0
      %v1181 = vadd.f32 %v317, %v1180
      %v1182 = vpop.f32.mrb[0].mxu0
      %1183 = vmatprep.mubr.bf16.mxu0 0
      %1184 = vmatmul.mubr.bf16.gmra.mrb[0].mxu0 %v776
      %v1185 = vpop.f32.mrb[0].mxu0
      %v1186 = vadd.f32 %v317, %v1185
      %v1187 = vpop.f32.mrb[0].mxu0
      %v1188 = vpop.f32.mrb[0].mxu0
      %v1189 = vadd.f32 %v317, %v1188
      %v1190 = vpop.f32.mrb[0].mxu0
      %1191 = vmatprep.mubr.bf16.mxu0 0
      %1192 = vmatmul.mubr.bf16.gmra.mrb[0].mxu0 %v779
      %v1193 = vpop.f32.mrb[0].mxu0
      %v1194 = vadd.f32 %v317, %v1193
      %v1195 = vpop.f32.mrb[0].mxu0
      %v1196 = vpop.f32.mrb[0].mxu0
      %v1197 = vadd.f32 %v317, %v1196
      %v1198 = vpop.f32.mrb[0].mxu0
      %1199 = vmatprep.mubr.bf16.mxu0 0
      %1200 = vmatmul.mubr.bf16.gmra.mrb[0].mxu0 %v782
      %v1201 = vpop.f32.mrb[0].mxu0
      %v1202 = vadd.f32 %v317, %v1201
      %v1203 = vpop.f32.mrb[0].mxu0
      %v1204 = vpop.f32.mrb[0].mxu0
      %v1205 = vadd.f32 %v317, %v1204
      %v1206 = vpop.f32.mrb[0].mxu0
      %1207 = vmatprep.mubr.bf16.mxu0 0
      %1208 = vmatmul.mubr.bf16.gmra.mrb[0].mxu0 %v785
      %v1209 = vpop.f32.mrb[0].mxu0
      %v1210 = vadd.f32 %v317, %v1209
      %v1211 = vpop.f32.mrb[0].mxu0
      %v1212 = vpop.f32.mrb[0].mxu0
      %v1213 = vadd.f32 %v317, %v1212
      %v1214 = vpop.f32.mrb[0].mxu0
      %1215 = vmatprep.mubr.bf16.mxu0 0
      %1216 = vmatmul.mubr.bf16.gmra.mrb[0].mxu0 %v788
      %v1217 = vpop.f32.mrb[0].mxu0
      %v1218 = vadd.f32 %v317, %v1217
      %v1219 = vpop.f32.mrb[0].mxu0
      %v1220 = vpop.f32.mrb[0].mxu0
      %v1221 = vadd.f32 %v317, %v1220
      %v1222 = vpop.f32.mrb[0].mxu0
      %1223 = vmatprep.mubr.bf16.mxu0 0
      %1224 = vmatmul.mubr.bf16.gmra.mrb[0].mxu0 %v791
      %v1225 = vpop.f32.mrb[0].mxu0
      %v1226 = vadd.f32 %v317, %v1225
      %v1227 = vpop.f32.mrb[0].mxu0
      %v1228 = vpop.f32.mrb[0].mxu0
      %v1229 = vadd.f32 %v317, %v1228
      %v1230 = vpop.f32.mrb[0].mxu0
      %1231 = vmatprep.mubr.bf16.mxu0 0
      %1232 = vmatmul.mubr.bf16.gmra.mrb[0].mxu0 %v794
      %v1233 = vpop.f32.mrb[0].mxu0
      %v1234 = vadd.f32 %v317, %v1233
      %v1235 = vpop.f32.mrb[0].mxu0
      %v1236 = vpop.f32.mrb[0].mxu0
      %v1237 = vadd.f32 %v317, %v1236
      %v1238 = vpop.f32.mrb[0].mxu0
      %1239 = vmatprep.mubr.bf16.mxu0 0
      %1240 = vmatmul.mubr.bf16.gmra.mrb[0].mxu0 %v797
      %v1241 = vpop.f32.mrb[0].mxu0
      %v1242 = vadd.f32 %v317, %v1241
      %v1243 = vpop.f32.mrb[0].mxu0
      %v1244 = vpop.f32.mrb[0].mxu0
      %v1245 = vadd.f32 %v317, %v1244
      %v1246 = vpop.f32.mrb[0].mxu0
      %1247 = vmatprep.mubr.bf16.mxu0 0
      %1248 = vmatmul.mubr.bf16.gmra.mrb[0].mxu0 %v800
      %v1249 = vpop.f32.mrb[0].mxu0
      %v1250 = vadd.f32 %v317, %v1249
      %v1251 = vpop.f32.mrb[0].mxu0
      %v1252 = vpop.f32.mrb[0].mxu0
      %v1253 = vadd.f32 %v317, %v1252
      %v1254 = vpop.f32.mrb[0].mxu0
      %1255 = vmatprep.mubr.bf16.mxu0 0
      %1256 = vmatmul.mubr.bf16.gmra.mrb[0].mxu0 %v803
      %v1257 = vpop.f32.mrb[0].mxu0
      %v1258 = vadd.f32 %v317, %v1257
      %v1259 = vpop.f32.mrb[0].mxu0
      %v1260 = vpop.f32.mrb[0].mxu0
      %v1261 = vadd.f32 %v317, %v1260
      %v1262 = vpop.f32.mrb[0].mxu0
      %1263 = vmatprep.mubr.bf16.mxu0 0
      %1264 = vmatmul.mubr.bf16.gmra.mrb[0].mxu0 %v806
      %v1265 = vpop.f32.mrb[0].mxu0
      %v1266 = vadd.f32 %v317, %v1265
      %v1267 = vpop.f32.mrb[0].mxu0
      %v1268 = vpop.f32.mrb[0].mxu0
      %v1269 = vadd.f32 %v317, %v1268
      %v1270 = vpop.f32.mrb[0].mxu0
      %1271 = vmatprep.mubr.bf16.mxu0 0
      %1272 = vmatmul.mubr.bf16.gmra.mrb[0].mxu0 %v809
      %v1273 = vpop.f32.mrb[0].mxu0
      %v1274 = vadd.f32 %v317, %v1273
      %v1275 = vpop.f32.mrb[0].mxu0
      %v1276 = vpop.f32.mrb[0].mxu0
      %v1277 = vadd.f32 %v317, %v1276
      %v1278 = vpop.f32.mrb[0].mxu0
      %1279 = vmatprep.mubr.bf16.mxu0 0
      %1280 = vmatmul.mubr.bf16.gmra.mrb[0].mxu0 %v812
      %v1281 = vpop.f32.mrb[0].mxu0
      %v1282 = vadd.f32 %v317, %v1281
      %v1283 = vpop.f32.mrb[0].mxu0
      %v1284 = vpop.f32.mrb[0].mxu0
      %v1285 = vadd.f32 %v317, %v1284
      %v1286 = vpop.f32.mrb[0].mxu0
      %1287 = vmatprep.mubr.bf16.mxu0 0
      %1288 = vmatmul.mubr.bf16.gmra.mrb[0].mxu0 %v815
      %v1289 = vpop.f32.mrb[0].mxu0
      %v1290 = vadd.f32 %v317, %v1289
      %v1291 = vpop.f32.mrb[0].mxu0
      %v1292 = vpop.f32.mrb[0].mxu0
      %v1293 = vadd.f32 %v317, %v1292
      %v1294 = vpop.f32.mrb[0].mxu0
      %1295 = vmatprep.mubr.bf16.mxu0 0
      %1296 = vmatmul.mubr.bf16.gmra.mrb[0].mxu0 %v818
      %v1297 = vpop.f32.mrb[0].mxu0
      %v1298 = vadd.f32 %v317, %v1297
      %v1299 = vpop.f32.mrb[0].mxu0
      %v1300 = vpop.f32.mrb[0].mxu0
      %v1301 = vadd.f32 %v317, %v1300
      %v1302 = vpop.f32.mrb[0].mxu0
      %1303 = vmatprep.mubr.bf16.mxu0 0
      %1304 = vmatmul.mubr.bf16.gmra.mrb[0].mxu0 %v821
      %v1305 = vpop.f32.mrb[0].mxu0
      %v1306 = vadd.f32 %v317, %v1305
      %v1307 = vpop.f32.mrb[0].mxu0
      %v1308 = vpop.f32.mrb[0].mxu0
      %v1309 = vadd.f32 %v317, %v1308
      %v1310 = vpop.f32.mrb[0].mxu0
      %1311 = vmatprep.mubr.bf16.mxu0 0
      %1312 = vmatmul.mubr.bf16.gmra.mrb[0].mxu0 %v824
      %v1313 = vpop.f32.mrb[0].mxu0
      %v1314 = vadd.f32 %v317, %v1313
      %v1315 = vpop.f32.mrb[0].mxu0
      %v1316 = vpop.f32.mrb[0].mxu0
      %v1317 = vadd.f32 %v317, %v1316
      %v1318 = vpop.f32.mrb[0].mxu0
      %1319 = vmatprep.mubr.bf16.mxu0 0
      %1320 = vmatmul.mubr.bf16.gmra.mrb[0].mxu0 %v827
      %v1321 = vpop.f32.mrb[0].mxu0
      %v1322 = vadd.f32 %v317, %v1321
      %v1323 = vpop.f32.mrb[0].mxu0
      %v1324 = vpop.f32.mrb[0].mxu0
      %v1325 = vadd.f32 %v317, %v1324
      %v1326 = vpop.f32.mrb[0].mxu0
      %1327 = vmatprep.mubr.bf16.mxu0 0
      %1328 = vmatmul.mubr.bf16.gmra.mrb[0].mxu0 %v830
      %v1329 = vpop.f32.mrb[0].mxu0
      %v1330 = vadd.f32 %v317, %v1329
      %v1331 = vpop.f32.mrb[0].mxu0
      %v1332 = vpop.f32.mrb[0].mxu0
      %v1333 = vadd.f32 %v317, %v1332
      %v1334 = vpop.f32.mrb[0].mxu0
      %1335 = vmatprep.mubr.bf16.mxu0 0
      %1336 = vmatmul.mubr.bf16.gmra.mrb[0].mxu0 %v833
      %v1337 = vpop.f32.mrb[0].mxu0
      %v1338 = vadd.f32 %v317, %v1337
      %v1339 = vpop.f32.mrb[0].mxu0
      %v1340 = vpop.f32.mrb[0].mxu0
      %v1341 = vadd.f32 %v317, %v1340
      %v1342 = vpop.f32.mrb[0].mxu0
      %1343 = vmatprep.mubr.bf16.mxu0 0
      %1344 = vmatmul.mubr.bf16.gmra.mrb[0].mxu0 %v836
      %v1345 = vpop.f32.mrb[0].mxu0
      %v1346 = vadd.f32 %v317, %v1345
      %v1347 = vpop.f32.mrb[0].mxu0
      %v1348 = vpop.f32.mrb[0].mxu0
      %v1349 = vadd.f32 %v317, %v1348
      %v1350 = vpop.f32.mrb[0].mxu0
      %1351 = vmatprep.mubr.bf16.mxu0 0
      %1352 = vmatmul.mubr.bf16.gmra.mrb[0].mxu0 %v839
      %v1353 = vpop.f32.mrb[0].mxu0
      %v1354 = vadd.f32 %v317, %v1353
      %v1355 = vpop.f32.mrb[0].mxu0
      %v1356 = vpop.f32.mrb[0].mxu0
      %v1357 = vadd.f32 %v317, %v1356
      %v1358 = vpop.f32.mrb[0].mxu0
      %1359 = vmatprep.mubr.bf16.mxu0 0
      %1360 = vmatmul.mubr.bf16.gmra.mrb[0].mxu0 %v842
      %v1361 = vpop.f32.mrb[0].mxu0
      %v1362 = vadd.f32 %v317, %v1361
      %v1363 = vpop.f32.mrb[0].mxu0
      %v1364 = vpop.f32.mrb[0].mxu0
      %v1365 = vadd.f32 %v317, %v1364
      %v1366 = vpop.f32.mrb[0].mxu0
      %1367 = vmatprep.mubr.bf16.mxu0 0
      %1368 = vmatmul.mubr.bf16.gmra.mrb[0].mxu0 %v845
      %v1369 = vpop.f32.mrb[0].mxu0
      %v1370 = vadd.f32 %v317, %v1369
      %v1371 = vpop.f32.mrb[0].mxu0
      %v1372 = vpop.f32.mrb[0].mxu0
      %v1373 = vadd.f32 %v317, %v1372
      %v1374 = vpop.f32.mrb[0].mxu0
      %1375 = vmatprep.mubr.bf16.mxu0 0
      %1376 = vmatmul.mubr.bf16.gmra.mrb[0].mxu0 %v848
      %v1377 = vpop.f32.mrb[0].mxu0
      %v1378 = vadd.f32 %v317, %v1377
      %v1379 = vpop.f32.mrb[0].mxu0
      %v1380 = vpop.f32.mrb[0].mxu0
      %v1381 = vadd.f32 %v317, %v1380
      %v1382 = vpop.f32.mrb[0].mxu0
      %1383 = vmatprep.mubr.bf16.mxu0 0
      %1384 = vmatmul.mubr.bf16.gmra.mrb[0].mxu0 %v851
      %v1385 = vpop.f32.mrb[0].mxu0
      %v1386 = vadd.f32 %v317, %v1385
      %v1387 = vpop.f32.mrb[0].mxu0
      %v1388 = vpop.f32.mrb[0].mxu0
      %v1389 = vadd.f32 %v317, %v1388
      %v1390 = vpop.f32.mrb[0].mxu0
      %1391 = vmatprep.mubr.bf16.mxu0 0
      %1392 = vmatmul.mubr.bf16.gmra.mrb[0].mxu0 %v854
      %v1393 = vpop.f32.mrb[0].mxu0
      %v1394 = vadd.f32 %v317, %v1393
      %v1395 = vpop.f32.mrb[0].mxu0
      %v1396 = vpop.f32.mrb[0].mxu0
      %v1397 = vadd.f32 %v317, %v1396
      %v1398 = vpop.f32.mrb[0].mxu0
      %1399 = vmatprep.mubr.bf16.mxu0 0
      %1400 = vmatmul.mubr.bf16.gmra.mrb[0].mxu0 %v857
      %v1401 = vpop.f32.mrb[0].mxu0
      %v1402 = vadd.f32 %v317, %v1401
      %v1403 = vpop.f32.mrb[0].mxu0
      %v1404 = vpop.f32.mrb[0].mxu0
      %v1405 = vadd.f32 %v317, %v1404
      %v1406 = vpop.f32.mrb[0].mxu0
      %1407 = vdwg.mxu0
      %v1408 = vpack.c.bf16 %v901, %v898
      %v1409 = vpack.c.bf16 %v909, %v906
      %v1410 = vpack.c.bf16 %v917, %v914
      %v1411 = vpack.c.bf16 %v925, %v922
      %v1412 = vpack.c.bf16 %v933, %v930
      %v1413 = vpack.c.bf16 %v941, %v938
      %v1414 = vpack.c.bf16 %v949, %v946
      %v1415 = vpack.c.bf16 %v957, %v954
      %v1416 = vpack.c.bf16 %v965, %v962
      %v1417 = vpack.c.bf16 %v973, %v970
      %v1418 = vpack.c.bf16 %v981, %v978
      %v1419 = vpack.c.bf16 %v989, %v986
      %v1420 = vpack.c.bf16 %v997, %v994
      %v1421 = vpack.c.bf16 %v1005, %v1002
      %v1422 = vpack.c.bf16 %v1013, %v1010
      %v1423 = vpack.c.bf16 %v1021, %v1018
      %v1424 = vpack.c.bf16 %v1029, %v1026
      %v1425 = vpack.c.bf16 %v1037, %v1034
      %v1426 = vpack.c.bf16 %v1045, %v1042
      %v1427 = vpack.c.bf16 %v1053, %v1050
      %v1428 = vpack.c.bf16 %v1061, %v1058
      %v1429 = vpack.c.bf16 %v1069, %v1066
      %v1430 = vpack.c.bf16 %v1077, %v1074
      %v1431 = vpack.c.bf16 %v1085, %v1082
      %v1432 = vpack.c.bf16 %v1093, %v1090
      %v1433 = vpack.c.bf16 %v1101, %v1098
      %v1434 = vpack.c.bf16 %v1109, %v1106
      %v1435 = vpack.c.bf16 %v1117, %v1114
      %v1436 = vpack.c.bf16 %v1125, %v1122
      %v1437 = vpack.c.bf16 %v1133, %v1130
      %v1438 = vpack.c.bf16 %v1141, %v1138
      %v1439 = vpack.c.bf16 %v1149, %v1146
      %v1440 = vpack.c.bf16 %v1157, %v1154
      %v1441 = vpack.c.bf16 %v1165, %v1162
      %v1442 = vpack.c.bf16 %v1173, %v1170
      %v1443 = vpack.c.bf16 %v1181, %v1178
      %v1444 = vpack.c.bf16 %v1189, %v1186
      %v1445 = vpack.c.bf16 %v1197, %v1194
      %v1446 = vpack.c.bf16 %v1205, %v1202
      %v1447 = vpack.c.bf16 %v1213, %v1210
      %v1448 = vpack.c.bf16 %v1221, %v1218
      %v1449 = vpack.c.bf16 %v1229, %v1226
      %v1450 = vpack.c.bf16 %v1237, %v1234
      %v1451 = vpack.c.bf16 %v1245, %v1242
      %v1452 = vpack.c.bf16 %v1253, %v1250
      %v1453 = vpack.c.bf16 %v1261, %v1258
      %v1454 = vpack.c.bf16 %v1269, %v1266
      %v1455 = vpack.c.bf16 %v1277, %v1274
      %v1456 = vpack.c.bf16 %v1285, %v1282
      %v1457 = vpack.c.bf16 %v1293, %v1290
      %v1458 = vpack.c.bf16 %v1301, %v1298
      %v1459 = vpack.c.bf16 %v1309, %v1306
      %v1460 = vpack.c.bf16 %v1317, %v1314
      %v1461 = vpack.c.bf16 %v1325, %v1322
      %v1462 = vpack.c.bf16 %v1333, %v1330
      %v1463 = vpack.c.bf16 %v1341, %v1338
      %v1464 = vpack.c.bf16 %v1349, %v1346
      %v1465 = vpack.c.bf16 %v1357, %v1354
      %v1466 = vpack.c.bf16 %v1365, %v1362
      %v1467 = vpack.c.bf16 %v1373, %v1370
      %v1468 = vpack.c.bf16 %v1381, %v1378
      %v1469 = vpack.c.bf16 %v1389, %v1386
      %v1470 = vpack.c.bf16 %v1397, %v1394
      %v1471 = vpack.c.bf16 %v1405, %v1402
      %v1536 = vunpack.c.l.b16 %v1408
      %v1537 = vunpack.c.h.b16 %v1408
      %v1538 = vunpack.c.l.b16 %v1409
      %v1539 = vunpack.c.h.b16 %v1409
      %v1540 = vunpack.c.l.b16 %v1410
      %v1541 = vunpack.c.h.b16 %v1410
      %v1542 = vunpack.c.l.b16 %v1411
      %v1543 = vunpack.c.h.b16 %v1411
      %v1544 = vunpack.c.l.b16 %v1412
      %v1545 = vunpack.c.h.b16 %v1412
      %v1546 = vunpack.c.l.b16 %v1413
      %v1547 = vunpack.c.h.b16 %v1413
      %v1548 = vunpack.c.l.b16 %v1414
      %v1549 = vunpack.c.h.b16 %v1414
      %v1550 = vunpack.c.l.b16 %v1415
      %v1551 = vunpack.c.h.b16 %v1415
      %v1552 = vunpack.c.l.b16 %v1416
      %v1553 = vunpack.c.h.b16 %v1416
      %v1554 = vunpack.c.l.b16 %v1417
      %v1555 = vunpack.c.h.b16 %v1417
      %v1556 = vunpack.c.l.b16 %v1418
      %v1557 = vunpack.c.h.b16 %v1418
      %v1558 = vunpack.c.l.b16 %v1419
      %v1559 = vunpack.c.h.b16 %v1419
      %v1560 = vunpack.c.l.b16 %v1420
      %v1561 = vunpack.c.h.b16 %v1420
      %v1562 = vunpack.c.l.b16 %v1421
      %v1563 = vunpack.c.h.b16 %v1421
      %v1564 = vunpack.c.l.b16 %v1422
      %v1565 = vunpack.c.h.b16 %v1422
      %v1566 = vunpack.c.l.b16 %v1423
      %v1567 = vunpack.c.h.b16 %v1423
      %v1568 = vunpack.c.l.b16 %v1424
      %v1569 = vunpack.c.h.b16 %v1424
      %v1570 = vunpack.c.l.b16 %v1425
      %v1571 = vunpack.c.h.b16 %v1425
      %v1572 = vunpack.c.l.b16 %v1426
      %v1573 = vunpack.c.h.b16 %v1426
      %v1574 = vunpack.c.l.b16 %v1427
      %v1575 = vunpack.c.h.b16 %v1427
      %v1576 = vunpack.c.l.b16 %v1428
      %v1577 = vunpack.c.h.b16 %v1428
      %v1578 = vunpack.c.l.b16 %v1429
      %v1579 = vunpack.c.h.b16 %v1429
      %v1580 = vunpack.c.l.b16 %v1430
      %v1581 = vunpack.c.h.b16 %v1430
      %v1582 = vunpack.c.l.b16 %v1431
      %v1583 = vunpack.c.h.b16 %v1431
      %v1584 = vunpack.c.l.b16 %v1432
      %v1585 = vunpack.c.h.b16 %v1432
      %v1586 = vunpack.c.l.b16 %v1433
      %v1587 = vunpack.c.h.b16 %v1433
      %v1588 = vunpack.c.l.b16 %v1434
      %v1589 = vunpack.c.h.b16 %v1434
      %v1590 = vunpack.c.l.b16 %v1435
      %v1591 = vunpack.c.h.b16 %v1435
      %v1592 = vunpack.c.l.b16 %v1436
      %v1593 = vunpack.c.h.b16 %v1436
      %v1594 = vunpack.c.l.b16 %v1437
      %v1595 = vunpack.c.h.b16 %v1437
      %v1596 = vunpack.c.l.b16 %v1438
      %v1597 = vunpack.c.h.b16 %v1438
      %v1598 = vunpack.c.l.b16 %v1439
      %v1599 = vunpack.c.h.b16 %v1439
      %v1600 = vunpack.c.l.b16 %v1440
      %v1601 = vunpack.c.h.b16 %v1440
      %v1602 = vunpack.c.l.b16 %v1441
      %v1603 = vunpack.c.h.b16 %v1441
      %v1604 = vunpack.c.l.b16 %v1442
      %v1605 = vunpack.c.h.b16 %v1442
      %v1606 = vunpack.c.l.b16 %v1443
      %v1607 = vunpack.c.h.b16 %v1443
      %v1608 = vunpack.c.l.b16 %v1444
      %v1609 = vunpack.c.h.b16 %v1444
      %v1610 = vunpack.c.l.b16 %v1445
      %v1611 = vunpack.c.h.b16 %v1445
      %v1612 = vunpack.c.l.b16 %v1446
      %v1613 = vunpack.c.h.b16 %v1446
      %v1614 = vunpack.c.l.b16 %v1447
      %v1615 = vunpack.c.h.b16 %v1447
      %v1616 = vunpack.c.l.b16 %v1448
      %v1617 = vunpack.c.h.b16 %v1448
      %v1618 = vunpack.c.l.b16 %v1449
      %v1619 = vunpack.c.h.b16 %v1449
      %v1620 = vunpack.c.l.b16 %v1450
      %v1621 = vunpack.c.h.b16 %v1450
      %v1622 = vunpack.c.l.b16 %v1451
      %v1623 = vunpack.c.h.b16 %v1451
      %v1624 = vunpack.c.l.b16 %v1452
      %v1625 = vunpack.c.h.b16 %v1452
      %v1626 = vunpack.c.l.b16 %v1453
      %v1627 = vunpack.c.h.b16 %v1453
      %v1628 = vunpack.c.l.b16 %v1454
      %v1629 = vunpack.c.h.b16 %v1454
      %v1630 = vunpack.c.l.b16 %v1455
      %v1631 = vunpack.c.h.b16 %v1455
      %v1632 = vunpack.c.l.b16 %v1456
      %v1633 = vunpack.c.h.b16 %v1456
      %v1634 = vunpack.c.l.b16 %v1457
      %v1635 = vunpack.c.h.b16 %v1457
      %v1636 = vunpack.c.l.b16 %v1458
      %v1637 = vunpack.c.h.b16 %v1458
      %v1638 = vunpack.c.l.b16 %v1459
      %v1639 = vunpack.c.h.b16 %v1459
      %v1640 = vunpack.c.l.b16 %v1460
      %v1641 = vunpack.c.h.b16 %v1460
      %v1642 = vunpack.c.l.b16 %v1461
      %v1643 = vunpack.c.h.b16 %v1461
      %v1644 = vunpack.c.l.b16 %v1462
      %v1645 = vunpack.c.h.b16 %v1462
      %v1646 = vunpack.c.l.b16 %v1463
      %v1647 = vunpack.c.h.b16 %v1463
      %v1648 = vunpack.c.l.b16 %v1464
      %v1649 = vunpack.c.h.b16 %v1464
      %v1650 = vunpack.c.l.b16 %v1465
      %v1651 = vunpack.c.h.b16 %v1465
      %v1652 = vunpack.c.l.b16 %v1466
      %v1653 = vunpack.c.h.b16 %v1466
      %v1654 = vunpack.c.l.b16 %v1467
      %v1655 = vunpack.c.h.b16 %v1467
      %v1656 = vunpack.c.l.b16 %v1468
      %v1657 = vunpack.c.h.b16 %v1468
      %v1658 = vunpack.c.l.b16 %v1469
      %v1659 = vunpack.c.h.b16 %v1469
      %v1660 = vunpack.c.l.b16 %v1470
      %v1661 = vunpack.c.h.b16 %v1470
      %v1662 = vunpack.c.l.b16 %v1471
      %v1663 = vunpack.c.h.b16 %v1471
      %v1664 = vpack.c.b16 %v1536, %v1536
      %v1665 = vpack.c.b16 %v1537, %v1537
      %v1666 = vpack.c.b16 %v1538, %v1538
      %v1667 = vpack.c.b16 %v1539, %v1539
      %v1668 = vpack.c.b16 %v1540, %v1540
      %v1669 = vpack.c.b16 %v1541, %v1541
      %v1670 = vpack.c.b16 %v1542, %v1542
      %v1671 = vpack.c.b16 %v1543, %v1543
      %v1672 = vpack.c.b16 %v1544, %v1544
      %v1673 = vpack.c.b16 %v1545, %v1545
      %v1674 = vpack.c.b16 %v1546, %v1546
      %v1675 = vpack.c.b16 %v1547, %v1547
      %v1676 = vpack.c.b16 %v1548, %v1548
      %v1677 = vpack.c.b16 %v1549, %v1549
      %v1678 = vpack.c.b16 %v1550, %v1550
      %v1679 = vpack.c.b16 %v1551, %v1551
      %v1680 = vpack.c.b16 %v1552, %v1552
      %v1681 = vpack.c.b16 %v1553, %v1553
      %v1682 = vpack.c.b16 %v1554, %v1554
      %v1683 = vpack.c.b16 %v1555, %v1555
      %v1684 = vpack.c.b16 %v1556, %v1556
      %v1685 = vpack.c.b16 %v1557, %v1557
      %v1686 = vpack.c.b16 %v1558, %v1558
      %v1687 = vpack.c.b16 %v1559, %v1559
      %v1688 = vpack.c.b16 %v1560, %v1560
      %v1689 = vpack.c.b16 %v1561, %v1561
      %v1690 = vpack.c.b16 %v1562, %v1562
      %v1691 = vpack.c.b16 %v1563, %v1563
      %v1692 = vpack.c.b16 %v1564, %v1564
      %v1693 = vpack.c.b16 %v1565, %v1565
      %v1694 = vpack.c.b16 %v1566, %v1566
      %v1695 = vpack.c.b16 %v1567, %v1567
      %v1696 = vpack.c.b16 %v1568, %v1568
      %v1697 = vpack.c.b16 %v1569, %v1569
      %v1698 = vpack.c.b16 %v1570, %v1570
      %v1699 = vpack.c.b16 %v1571, %v1571
      %v1700 = vpack.c.b16 %v1572, %v1572
      %v1701 = vpack.c.b16 %v1573, %v1573
      %v1702 = vpack.c.b16 %v1574, %v1574
      %v1703 = vpack.c.b16 %v1575, %v1575
      %v1704 = vpack.c.b16 %v1576, %v1576
      %v1705 = vpack.c.b16 %v1577, %v1577
      %v1706 = vpack.c.b16 %v1578, %v1578
      %v1707 = vpack.c.b16 %v1579, %v1579
      %v1708 = vpack.c.b16 %v1580, %v1580
      %v1709 = vpack.c.b16 %v1581, %v1581
      %v1710 = vpack.c.b16 %v1582, %v1582
      %v1711 = vpack.c.b16 %v1583, %v1583
      %v1712 = vpack.c.b16 %v1584, %v1584
      %v1713 = vpack.c.b16 %v1585, %v1585
      %v1714 = vpack.c.b16 %v1586, %v1586
      %v1715 = vpack.c.b16 %v1587, %v1587
      %v1716 = vpack.c.b16 %v1588, %v1588
      %v1717 = vpack.c.b16 %v1589, %v1589
      %v1718 = vpack.c.b16 %v1590, %v1590
      %v1719 = vpack.c.b16 %v1591, %v1591
      %v1720 = vpack.c.b16 %v1592, %v1592
      %v1721 = vpack.c.b16 %v1593, %v1593
      %v1722 = vpack.c.b16 %v1594, %v1594
      %v1723 = vpack.c.b16 %v1595, %v1595
      %v1724 = vpack.c.b16 %v1596, %v1596
      %v1725 = vpack.c.b16 %v1597, %v1597
      %v1726 = vpack.c.b16 %v1598, %v1598
      %v1727 = vpack.c.b16 %v1599, %v1599
      %v1728 = vpack.c.b16 %v1600, %v1600
      %v1729 = vpack.c.b16 %v1601, %v1601
      %v1730 = vpack.c.b16 %v1602, %v1602
      %v1731 = vpack.c.b16 %v1603, %v1603
      %v1732 = vpack.c.b16 %v1604, %v1604
      %v1733 = vpack.c.b16 %v1605, %v1605
      %v1734 = vpack.c.b16 %v1606, %v1606
      %v1735 = vpack.c.b16 %v1607, %v1607
      %v1736 = vpack.c.b16 %v1608, %v1608
      %v1737 = vpack.c.b16 %v1609, %v1609
      %v1738 = vpack.c.b16 %v1610, %v1610
      %v1739 = vpack.c.b16 %v1611, %v1611
      %v1740 = vpack.c.b16 %v1612, %v1612
      %v1741 = vpack.c.b16 %v1613, %v1613
      %v1742 = vpack.c.b16 %v1614, %v1614
      %v1743 = vpack.c.b16 %v1615, %v1615
      %v1744 = vpack.c.b16 %v1616, %v1616
      %v1745 = vpack.c.b16 %v1617, %v1617
      %v1746 = vpack.c.b16 %v1618, %v1618
      %v1747 = vpack.c.b16 %v1619, %v1619
      %v1748 = vpack.c.b16 %v1620, %v1620
      %v1749 = vpack.c.b16 %v1621, %v1621
      %v1750 = vpack.c.b16 %v1622, %v1622
      %v1751 = vpack.c.b16 %v1623, %v1623
      %v1752 = vpack.c.b16 %v1624, %v1624
      %v1753 = vpack.c.b16 %v1625, %v1625
      %v1754 = vpack.c.b16 %v1626, %v1626
      %v1755 = vpack.c.b16 %v1627, %v1627
      %v1756 = vpack.c.b16 %v1628, %v1628
      %v1757 = vpack.c.b16 %v1629, %v1629
      %v1758 = vpack.c.b16 %v1630, %v1630
      %v1759 = vpack.c.b16 %v1631, %v1631
      %v1760 = vpack.c.b16 %v1632, %v1632
      %v1761 = vpack.c.b16 %v1633, %v1633
      %v1762 = vpack.c.b16 %v1634, %v1634
      %v1763 = vpack.c.b16 %v1635, %v1635
      %v1764 = vpack.c.b16 %v1636, %v1636
      %v1765 = vpack.c.b16 %v1637, %v1637
      %v1766 = vpack.c.b16 %v1638, %v1638
      %v1767 = vpack.c.b16 %v1639, %v1639
      %v1768 = vpack.c.b16 %v1640, %v1640
      %v1769 = vpack.c.b16 %v1641, %v1641
      %v1770 = vpack.c.b16 %v1642, %v1642
      %v1771 = vpack.c.b16 %v1643, %v1643
      %v1772 = vpack.c.b16 %v1644, %v1644
      %v1773 = vpack.c.b16 %v1645, %v1645
      %v1774 = vpack.c.b16 %v1646, %v1646
      %v1775 = vpack.c.b16 %v1647, %v1647
      %v1776 = vpack.c.b16 %v1648, %v1648
      %v1777 = vpack.c.b16 %v1649, %v1649
      %v1778 = vpack.c.b16 %v1650, %v1650
      %v1779 = vpack.c.b16 %v1651, %v1651
      %v1780 = vpack.c.b16 %v1652, %v1652
      %v1781 = vpack.c.b16 %v1653, %v1653
      %v1782 = vpack.c.b16 %v1654, %v1654
      %v1783 = vpack.c.b16 %v1655, %v1655
      %v1784 = vpack.c.b16 %v1656, %v1656
      %v1785 = vpack.c.b16 %v1657, %v1657
      %v1786 = vpack.c.b16 %v1658, %v1658
      %v1787 = vpack.c.b16 %v1659, %v1659
      %v1788 = vpack.c.b16 %v1660, %v1660
      %v1789 = vpack.c.b16 %v1661, %v1661
      %v1790 = vpack.c.b16 %v1662, %v1662
      %v1791 = vpack.c.b16 %v1663, %v1663
      %1920 = vst [vmem:[%s172] sm:$0xf] %v1664
      %1921 = vst [vmem:[%s172 + $0x4] sm:$0xf] %v1665
      %1922 = vst [vmem:[%s172 + $0x8] sm:$0xf] %v1666
      %1923 = vst [vmem:[%s172 + $0xc] sm:$0xf] %v1667
      %1924 = vst [vmem:[%s172 + $0x10] sm:$0xf] %v1668
      %1925 = vst [vmem:[%s172 + $0x14] sm:$0xf] %v1669
      %1926 = vst [vmem:[%s172 + $0x18] sm:$0xf] %v1670
      %1927 = vst [vmem:[%s172 + $0x1c] sm:$0xf] %v1671
      %1928 = vst [vmem:[%s172 + $0x20] sm:$0xf] %v1672
      %1929 = vst [vmem:[%s172 + $0x24] sm:$0xf] %v1673
      %1930 = vst [vmem:[%s172 + $0x28] sm:$0xf] %v1674
      %1931 = vst [vmem:[%s172 + $0x2c] sm:$0xf] %v1675
      %1932 = vst [vmem:[%s172 + $0x30] sm:$0xf] %v1676
      %1933 = vst [vmem:[%s172 + $0x34] sm:$0xf] %v1677
      %1934 = vst [vmem:[%s172 + $0x38] sm:$0xf] %v1678
      %1935 = vst [vmem:[%s172 + $0x3c] sm:$0xf] %v1679
      %1936 = vst [vmem:[%s172 + $0x40] sm:$0xf] %v1680
      %1937 = vst [vmem:[%s172 + $0x44] sm:$0xf] %v1681
      %1938 = vst [vmem:[%s172 + $0x48] sm:$0xf] %v1682
      %1939 = vst [vmem:[%s172 + $0x4c] sm:$0xf] %v1683
      %1940 = vst [vmem:[%s172 + $0x50] sm:$0xf] %v1684
      %1941 = vst [vmem:[%s172 + $0x54] sm:$0xf] %v1685
      %1942 = vst [vmem:[%s172 + $0x58] sm:$0xf] %v1686
      %1943 = vst [vmem:[%s172 + $0x5c] sm:$0xf] %v1687
      %1944 = vst [vmem:[%s172 + $0x60] sm:$0xf] %v1688
      %1945 = vst [vmem:[%s172 + $0x64] sm:$0xf] %v1689
      %1946 = vst [vmem:[%s172 + $0x68] sm:$0xf] %v1690
      %1947 = vst [vmem:[%s172 + $0x6c] sm:$0xf] %v1691
      %1948 = vst [vmem:[%s172 + $0x70] sm:$0xf] %v1692
      %1949 = vst [vmem:[%s172 + $0x74] sm:$0xf] %v1693
      %1950 = vst [vmem:[%s172 + $0x78] sm:$0xf] %v1694
      %1951 = vst [vmem:[%s172 + $0x7c] sm:$0xf] %v1695
      %1952 = vst [vmem:[%s172 + $0x80] sm:$0xf] %v1696
      %1953 = vst [vmem:[%s172 + $0x84] sm:$0xf] %v1697
      %1954 = vst [vmem:[%s172 + $0x88] sm:$0xf] %v1698
      %1955 = vst [vmem:[%s172 + $0x8c] sm:$0xf] %v1699
      %1956 = vst [vmem:[%s172 + $0x90] sm:$0xf] %v1700
      %1957 = vst [vmem:[%s172 + $0x94] sm:$0xf] %v1701
      %1958 = vst [vmem:[%s172 + $0x98] sm:$0xf] %v1702
      %1959 = vst [vmem:[%s172 + $0x9c] sm:$0xf] %v1703
      %1960 = vst [vmem:[%s172 + $0xa0] sm:$0xf] %v1704
      %1961 = vst [vmem:[%s172 + $0xa4] sm:$0xf] %v1705
      %1962 = vst [vmem:[%s172 + $0xa8] sm:$0xf] %v1706
      %1963 = vst [vmem:[%s172 + $0xac] sm:$0xf] %v1707
      %1964 = vst [vmem:[%s172 + $0xb0] sm:$0xf] %v1708
      %1965 = vst [vmem:[%s172 + $0xb4] sm:$0xf] %v1709
      %1966 = vst [vmem:[%s172 + $0xb8] sm:$0xf] %v1710
      %1967 = vst [vmem:[%s172 + $0xbc] sm:$0xf] %v1711
      %1968 = vst [vmem:[%s172 + $0xc0] sm:$0xf] %v1712
      %1969 = vst [vmem:[%s172 + $0xc4] sm:$0xf] %v1713
      %1970 = vst [vmem:[%s172 + $0xc8] sm:$0xf] %v1714
      %1971 = vst [vmem:[%s172 + $0xcc] sm:$0xf] %v1715
      %1972 = vst [vmem:[%s172 + $0xd0] sm:$0xf] %v1716
      %1973 = vst [vmem:[%s172 + $0xd4] sm:$0xf] %v1717
      %1974 = vst [vmem:[%s172 + $0xd8] sm:$0xf] %v1718
      %1975 = vst [vmem:[%s172 + $0xdc] sm:$0xf] %v1719
      %1976 = vst [vmem:[%s172 + $0xe0] sm:$0xf] %v1720
      %1977 = vst [vmem:[%s172 + $0xe4] sm:$0xf] %v1721
      %1978 = vst [vmem:[%s172 + $0xe8] sm:$0xf] %v1722
      %1979 = vst [vmem:[%s172 + $0xec] sm:$0xf] %v1723
      %1980 = vst [vmem:[%s172 + $0xf0] sm:$0xf] %v1724
      %1981 = vst [vmem:[%s172 + $0xf4] sm:$0xf] %v1725
      %1982 = vst [vmem:[%s172 + $0xf8] sm:$0xf] %v1726
      %1983 = vst [vmem:[%s172 + $0xfc] sm:$0xf] %v1727
      %1984 = vst [vmem:[%s172 + $0x100] sm:$0xf] %v1728
      %1985 = vst [vmem:[%s172 + $0x104] sm:$0xf] %v1729
      %1986 = vst [vmem:[%s172 + $0x108] sm:$0xf] %v1730
      %1987 = vst [vmem:[%s172 + $0x10c] sm:$0xf] %v1731
      %1988 = vst [vmem:[%s172 + $0x110] sm:$0xf] %v1732
      %1989 = vst [vmem:[%s172 + $0x114] sm:$0xf] %v1733
      %1990 = vst [vmem:[%s172 + $0x118] sm:$0xf] %v1734
      %1991 = vst [vmem:[%s172 + $0x11c] sm:$0xf] %v1735
      %1992 = vst [vmem:[%s172 + $0x120] sm:$0xf] %v1736
      %1993 = vst [vmem:[%s172 + $0x124] sm:$0xf] %v1737
      %1994 = vst [vmem:[%s172 + $0x128] sm:$0xf] %v1738
      %1995 = vst [vmem:[%s172 + $0x12c] sm:$0xf] %v1739
      %1996 = vst [vmem:[%s172 + $0x130] sm:$0xf] %v1740
      %1997 = vst [vmem:[%s172 + $0x134] sm:$0xf] %v1741
      %1998 = vst [vmem:[%s172 + $0x138] sm:$0xf] %v1742
      %1999 = vst [vmem:[%s172 + $0x13c] sm:$0xf] %v1743
      %2000 = vst [vmem:[%s172 + $0x140] sm:$0xf] %v1744
      %2001 = vst [vmem:[%s172 + $0x144] sm:$0xf] %v1745
      %2002 = vst [vmem:[%s172 + $0x148] sm:$0xf] %v1746
      %2003 = vst [vmem:[%s172 + $0x14c] sm:$0xf] %v1747
      %2004 = vst [vmem:[%s172 + $0x150] sm:$0xf] %v1748
      %2005 = vst [vmem:[%s172 + $0x154] sm:$0xf] %v1749
      %2006 = vst [vmem:[%s172 + $0x158] sm:$0xf] %v1750
      %2007 = vst [vmem:[%s172 + $0x15c] sm:$0xf] %v1751
      %2008 = vst [vmem:[%s172 + $0x160] sm:$0xf] %v1752
      %2009 = vst [vmem:[%s172 + $0x164] sm:$0xf] %v1753
      %2010 = vst [vmem:[%s172 + $0x168] sm:$0xf] %v1754
      %2011 = vst [vmem:[%s172 + $0x16c] sm:$0xf] %v1755
      %2012 = vst [vmem:[%s172 + $0x170] sm:$0xf] %v1756
      %2013 = vst [vmem:[%s172 + $0x174] sm:$0xf] %v1757
      %2014 = vst [vmem:[%s172 + $0x178] sm:$0xf] %v1758
      %2015 = vst [vmem:[%s172 + $0x17c] sm:$0xf] %v1759
      %2016 = vst [vmem:[%s172 + $0x180] sm:$0xf] %v1760
      %2017 = vst [vmem:[%s172 + $0x184] sm:$0xf] %v1761
      %2018 = vst [vmem:[%s172 + $0x188] sm:$0xf] %v1762
      %2019 = vst [vmem:[%s172 + $0x18c] sm:$0xf] %v1763
      %2020 = vst [vmem:[%s172 + $0x190] sm:$0xf] %v1764
      %2021 = vst [vmem:[%s172 + $0x194] sm:$0xf] %v1765
      %2022 = vst [vmem:[%s172 + $0x198] sm:$0xf] %v1766
      %2023 = vst [vmem:[%s172 + $0x19c] sm:$0xf] %v1767
      %2024 = vst [vmem:[%s172 + $0x1a0] sm:$0xf] %v1768
      %2025 = vst [vmem:[%s172 + $0x1a4] sm:$0xf] %v1769
      %2026 = vst [vmem:[%s172 + $0x1a8] sm:$0xf] %v1770
      %2027 = vst [vmem:[%s172 + $0x1ac] sm:$0xf] %v1771
      %2028 = vst [vmem:[%s172 + $0x1b0] sm:$0xf] %v1772
      %2029 = vst [vmem:[%s172 + $0x1b4] sm:$0xf] %v1773
      %2030 = vst [vmem:[%s172 + $0x1b8] sm:$0xf] %v1774
      %2031 = vst [vmem:[%s172 + $0x1bc] sm:$0xf] %v1775
      %2032 = vst [vmem:[%s172 + $0x1c0] sm:$0xf] %v1776
      %2033 = vst [vmem:[%s172 + $0x1c4] sm:$0xf] %v1777
      %2034 = vst [vmem:[%s172 + $0x1c8] sm:$0xf] %v1778
      %2035 = vst [vmem:[%s172 + $0x1cc] sm:$0xf] %v1779
      %2036 = vst [vmem:[%s172 + $0x1d0] sm:$0xf] %v1780
      %2037 = vst [vmem:[%s172 + $0x1d4] sm:$0xf] %v1781
      %2038 = vst [vmem:[%s172 + $0x1d8] sm:$0xf] %v1782
      %2039 = vst [vmem:[%s172 + $0x1dc] sm:$0xf] %v1783
      %2040 = vst [vmem:[%s172 + $0x1e0] sm:$0xf] %v1784
      %2041 = vst [vmem:[%s172 + $0x1e4] sm:$0xf] %v1785
      %2042 = vst [vmem:[%s172 + $0x1e8] sm:$0xf] %v1786
      %2043 = vst [vmem:[%s172 + $0x1ec] sm:$0xf] %v1787
      %2044 = vst [vmem:[%s172 + $0x1f0] sm:$0xf] %v1788
      %2045 = vst [vmem:[%s172 + $0x1f4] sm:$0xf] %v1789
      %2046 = vst [vmem:[%s172 + $0x1f8] sm:$0xf] %v1790
      %2047 = vst [vmem:[%s172 + $0x1fc] sm:$0xf] %v1791
      %s2048 = smul.u32 128, %s14
      %p2049 = scmp.lt.s32.totalorder %s2048, 255
      %s2050 = scalar_select %p2049, %s2048, 255
      %s2051 = smul.addr %s2050, 4
      %s2052 = scalar_lea.vmem %s3, %s2051
      // Predicated region
      $region33: #{liif_fpn_pred_forward.10} parent=31 // pred_check
        %p2053 = pneg %p100
      $region34: #{liif_fpn_pred_forward.10} parent=31 // pred_check_branch
        %2055 = sbr.rel (%p2053) target = $region36
      $region35: #{liif_fpn_pred_forward.10} parent=31 // pred_region
        %s2056 = smul.u32 128, %s14
      $region36: #{liif_fpn_pred_forward.10} parent=31 // pred_fallthru
        _
    $region32: #{liif_fpn_pred_forward.10} parent=5 // pred_fallthru
      _
    %p2057 = scmp.le.s32.totalorder 2, %s9
    // Predicated region
    $region37: #{liif_fpn_pred_forward.10} parent=5 // pred_check
      %p2058 = pneg %p2057
    $region38: #{liif_fpn_pred_forward.10} parent=5 // pred_check_branch
      %2060 = sbr.rel (%p2058) target = $region40
    $region39: #{liif_fpn_pred_forward.10} parent=5 // pred_region
      %s2061 = ssub.s32 %s9, 2
      // Predicated region
      $region41: #{liif_fpn_pred_forward.10} parent=39 // pred_check
        %p2062 = pneg %p106
      $region42: #{liif_fpn_pred_forward.10} parent=39 // pred_check_branch
        %2064 = sbr.rel (%p2062) target = $region44
      $region43: #{liif_fpn_pred_forward.10} parent=39 // pred_region
        %s2065 = smul.u32 128, %s15
        %p2066 = scmp.lt.s32.totalorder %s2065, 255
        %s2067 = scalar_select %p2066, %s2065, 255
        %s2068 = smul.addr %s2067, 4
        %s2069 = scalar_lea.vmem %s3, %s2068
      $region44: #{liif_fpn_pred_forward.10} parent=39 // pred_fallthru
        _
    $region40: #{liif_fpn_pred_forward.10} parent=5 // pred_fallthru
      _
  $region6: #{liif_fpn_pred_forward.10} parent=0 // loop_footer
    %s13 = sadd.s32 1, %s9
  $region7: #{liif_fpn_pred_forward.10} parent=0 // loop_footer_branch
    %8 = sbr.rel target = $region3
  $region8: #{liif_fpn_pred_forward.10} parent=0 // loop_exit
    _

// kernel: liif_fpn_pred_forward.11
$region0: #{liif_fpn_pred_forward.11}
  #allocation0 [shape = 'u32[]', space=smem, size = 0x4, offset = 0x4, fixed_abs, tag = 'smem constant byte address 0x4 - core index']
  #allocation1 [shape = 'u32[144,128]{1,0:T(1,128)}', space=vmem, size = 0x12000, scoped, tag = 'internal scratch']
  %s0 = inlined_call_operand.vmem [shape: bf16[2048,72], index: 0, kind: input, shape index: {}]
  %s1 = inlined_call_operand.vmem [shape: bf16[72,128], index: 1, kind: input, shape index: {}]
  %s2 = inlined_call_operand.vmem [shape: bf16[2048,8], index: 2, kind: input, shape index: {}]
  %s3 = inlined_call_operand.vmem [shape: bf16[8,128], index: 3, kind: input, shape index: {}]
  %s4 = inlined_call_operand.vmem [shape: f32[1,128], index: 4, kind: input, shape index: {}]
  %s5 = inlined_call_operand.vmem [shape: bf16[2048,128], index: 5, kind: output, shape index: {}]
  %s6 = sld [smem:[#allocation0]]
  $region53: #{liif_fpn_pred_forward.11} parent=0
    _
  %s8 = ssub.s32 1, %s6
  %s9 = scalar_select 0, %s8, %s6
  loop: start=0, step=1, limit=4
  $region2: #{liif_fpn_pred_forward.11} parent=0 // loop_pre_header
    _
  $region3: #{liif_fpn_pred_forward.11} parent=0 // loop_header
    %s11 = sphi 0, %s15
    %p12 = scmp.ge.s32.totalorder %s11, 4
    %s21 = sphi 0, %s23
    %s24 = sphi 0, %s21
    %s25 = sphi 0, %s24
    %s41 = sphi 0, %s25
    %s45 = sphi 0, %s45
    %s47 = sphi 0, %s45
    %s48 = sphi 0, %s47
    %s62 = sphi 0, %s48
    %s68 = sphi 0, %s70
    %s71 = sphi 0, %s68
    %s72 = sphi 0, %s71
    %s88 = sphi 0, %s72
    %s92 = sphi 0, %s92
    %s94 = sphi 0, %s92
    %s95 = sphi 0, %s94
    %s109 = sphi 0, %s95
    %s113 = sphi 0, %s113
    %s115 = sphi 0, %s113
    %s116 = sphi 0, %s115
    %s130 = sphi 0, %s116
    %s136 = sphi 0, %s138
    %s139 = sphi 0, %s136
    %s140 = sphi 0, %s139
    %s156 = sphi 0, %s140
  $region4: #{liif_fpn_pred_forward.11} parent=0 // loop_header_branch
    %14 = sbr.rel (%p12) target = $region8
  $region5: #{liif_fpn_pred_forward.11} parent=0 // loop_body
    %s16 = ssub.s32 %s11, 1
    %s17 = ssub.s32 %s11, 2
    %s18 = sadd.s32 %s11, 1
    %s19 = ssub.s32 %s11, %s18
    %p20 = scmp.eq.s32.totalorder %s19, 0
    %s22 = sadd.s32 %s21, 1
    %s23 = scalar_select %p20, %s21, %s22
    %p26 = pneg %p20
    %p27 = scmp.eq.s32.totalorder %s11, 1
    %p28 = por %p26, %p27
    %p29 = scmp.ne.s32.totalorder %s21, %s24
    %p30 = scmp.eq.s32.totalorder %s11, 0
    %p31 = por %p29, %p30
    %p32 = scmp.ne.s32.totalorder %s21, %s24
    %p33 = scmp.eq.s32.totalorder %s16, 1
    %p34 = por %p32, %p33
    %p35 = scmp.ne.s32.totalorder %s24, %s25
    %p36 = scmp.eq.s32.totalorder %s16, 0
    %p37 = por %p35, %p36
    %p38 = scmp.ne.s32.totalorder %s24, %s25
    %p39 = scmp.eq.s32.totalorder %s17, 1
    %p40 = por %p38, %p39
    %p42 = scmp.ne.s32.totalorder %s25, %s41
    %p43 = scmp.eq.s32.totalorder %s17, 0
    %p44 = por %p42, %p43
    %s46 = sadd.s32 %s45, 1
    %p49 = scmp.eq.s32.totalorder %s11, 1
    %p50 = scmp.ne.s32.totalorder %s45, %s47
    %p51 = scmp.eq.s32.totalorder %s11, 0
    %p52 = por %p50, %p51
    %p53 = scmp.ne.s32.totalorder %s45, %s47
    %p54 = scmp.eq.s32.totalorder %s16, 1
    %p55 = por %p53, %p54
    %p56 = scmp.ne.s32.totalorder %s47, %s48
    %p57 = scmp.eq.s32.totalorder %s16, 0
    %p58 = por %p56, %p57
    %p59 = scmp.ne.s32.totalorder %s47, %s48
    %p60 = scmp.eq.s32.totalorder %s17, 1
    %p61 = por %p59, %p60
    %p63 = scmp.ne.s32.totalorder %s48, %s62
    %p64 = scmp.eq.s32.totalorder %s17, 0
    %p65 = por %p63, %p64
    %s66 = ssub.s32 %s11, %s18
    %p67 = scmp.eq.s32.totalorder %s66, 0
    %s69 = sadd.s32 %s68, 1
    %s70 = scalar_select %p67, %s68, %s69
    %p73 = pneg %p67
    %p74 = scmp.eq.s32.totalorder %s11, 1
    %p75 = por %p73, %p74
    %p76 = scmp.ne.s32.totalorder %s68, %s71
    %p77 = scmp.eq.s32.totalorder %s11, 0
    %p78 = por %p76, %p77
    %p79 = scmp.ne.s32.totalorder %s68, %s71
    %p80 = scmp.eq.s32.totalorder %s16, 1
    %p81 = por %p79, %p80
    %p82 = scmp.ne.s32.totalorder %s71, %s72
    %p83 = scmp.eq.s32.totalorder %s16, 0
    %p84 = por %p82, %p83
    %p85 = scmp.ne.s32.totalorder %s71, %s72
    %p86 = scmp.eq.s32.totalorder %s17, 1
    %p87 = por %p85, %p86
    %p89 = scmp.ne.s32.totalorder %s72, %s88
    %p90 = scmp.eq.s32.totalorder %s17, 0
    %p91 = por %p89, %p90
    %s93 = sadd.s32 %s92, 1
    %p96 = scmp.eq.s32.totalorder %s11, 1
    %p97 = scmp.ne.s32.totalorder %s92, %s94
    %p98 = scmp.eq.s32.totalorder %s11, 0
    %p99 = por %p97, %p98
    %p100 = scmp.ne.s32.totalorder %s92, %s94
    %p101 = scmp.eq.s32.totalorder %s16, 1
    %p102 = por %p100, %p101
    %p103 = scmp.ne.s32.totalorder %s94, %s95
    %p104 = scmp.eq.s32.totalorder %s16, 0
    %p105 = por %p103, %p104
    %p106 = scmp.ne.s32.totalorder %s94, %s95
    %p107 = scmp.eq.s32.totalorder %s17, 1
    %p108 = por %p106, %p107
    %p110 = scmp.ne.s32.totalorder %s95, %s109
    %p111 = scmp.eq.s32.totalorder %s17, 0
    %p112 = por %p110, %p111
    %s114 = sadd.s32 %s113, 1
    %p117 = scmp.eq.s32.totalorder %s11, 1
    %p118 = scmp.ne.s32.totalorder %s113, %s115
    %p119 = scmp.eq.s32.totalorder %s11, 0
    %p120 = por %p118, %p119
    %p121 = scmp.ne.s32.totalorder %s113, %s115
    %p122 = scmp.eq.s32.totalorder %s16, 1
    %p123 = por %p121, %p122
    %p124 = scmp.ne.s32.totalorder %s115, %s116
    %p125 = scmp.eq.s32.totalorder %s16, 0
    %p126 = por %p124, %p125
    %p127 = scmp.ne.s32.totalorder %s115, %s116
    %p128 = scmp.eq.s32.totalorder %s17, 1
    %p129 = por %p127, %p128
    %p131 = scmp.ne.s32.totalorder %s116, %s130
    %p132 = scmp.eq.s32.totalorder %s17, 0
    %p133 = por %p131, %p132
    %s134 = ssub.s32 %s11, %s18
    %p135 = scmp.eq.s32.totalorder %s134, 0
    %s137 = sadd.s32 %s136, 1
    %s138 = scalar_select %p135, %s136, %s137
    %p141 = pneg %p135
    %p142 = scmp.eq.s32.totalorder %s11, 1
    %p143 = por %p141, %p142
    %p144 = scmp.ne.s32.totalorder %s136, %s139
    %p145 = scmp.eq.s32.totalorder %s11, 0
    %p146 = por %p144, %p145
    %p147 = scmp.ne.s32.totalorder %s136, %s139
    %p148 = scmp.eq.s32.totalorder %s16, 1
    %p149 = por %p147, %p148
    %p150 = scmp.ne.s32.totalorder %s139, %s140
    %p151 = scmp.eq.s32.totalorder %s16, 0
    %p152 = por %p150, %p151
    %p153 = scmp.ne.s32.totalorder %s139, %s140
    %p154 = scmp.eq.s32.totalorder %s17, 1
    %p155 = por %p153, %p154
    %p157 = scmp.ne.s32.totalorder %s140, %s156
    %p158 = scmp.eq.s32.totalorder %s17, 0
    %p159 = por %p157, %p158
    %p160 = scmp.le.s32.totalorder 1, %s11
    %p161 = scmp.lt.s32.totalorder %s11, 3
    %p162 = pnand %p160, %p161
    %p163 = pneg %p162
    // Predicated region
    $region9: #{liif_fpn_pred_forward.11} parent=5 // pred_check
      _
    $region10: #{liif_fpn_pred_forward.11} parent=5 // pred_check_branch
      %165 = sbr.rel (%p162) target = $region12
    $region11: #{liif_fpn_pred_forward.11} parent=5 // pred_region
      %s166 = ssub.s32 %s11, 1
      // Predicated region
      $region13: #{liif_fpn_pred_forward.11} parent=11 // pred_check
        %p167 = pneg %p58
      $region14: #{liif_fpn_pred_forward.11} parent=11 // pred_check_branch
        %169 = sbr.rel (%p167) target = $region16
      $region15: #{liif_fpn_pred_forward.11} parent=11 // pred_region
        _
      $region16: #{liif_fpn_pred_forward.11} parent=11 // pred_fallthru
        _
      // Predicated region
      $region17: #{liif_fpn_pred_forward.11} parent=11 // pred_check
        %p170 = pneg %p105
      $region18: #{liif_fpn_pred_forward.11} parent=11 // pred_check_branch
        %172 = sbr.rel (%p170) target = $region20
      $region19: #{liif_fpn_pred_forward.11} parent=11 // pred_region
        _
      $region20: #{liif_fpn_pred_forward.11} parent=11 // pred_fallthru
        _
      // Predicated region
      $region21: #{liif_fpn_pred_forward.11} parent=11 // pred_check
        %p173 = pneg %p126
      $region22: #{liif_fpn_pred_forward.11} parent=11 // pred_check_branch
        %175 = sbr.rel (%p173) target = $region24
      $region23: #{liif_fpn_pred_forward.11} parent=11 // pred_region
        _
      $region24: #{liif_fpn_pred_forward.11} parent=11 // pred_fallthru
        _
    $region12: #{liif_fpn_pred_forward.11} parent=5 // pred_fallthru
      _
    %p176 = scmp.lt.s32.totalorder %s11, 2
    // Predicated region
    $region25: #{liif_fpn_pred_forward.11} parent=5 // pred_check
      %p177 = pneg %p176
    $region26: #{liif_fpn_pred_forward.11} parent=5 // pred_check_branch
      %179 = sbr.rel (%p177) target = $region28
    $region27: #{liif_fpn_pred_forward.11} parent=5 // pred_region
      // Predicated region
      $region29: #{liif_fpn_pred_forward.11} parent=27 // pred_check
        %p180 = pneg %p31
      $region30: #{liif_fpn_pred_forward.11} parent=27 // pred_check_branch
        %182 = sbr.rel (%p180) target = $region32
      $region31: #{liif_fpn_pred_forward.11} parent=27 // pred_region
        %s183 = smul.u32 128, %s11
        %p184 = scmp.lt.s32.totalorder %s183, 255
        %s185 = scalar_select %p184, %s183, 255
        %s186 = smul.addr %s185, 4
        %s187 = scalar_lea.vmem %s0, %s186
        %s188 = smul.u32 128, %s11
      $region32: #{liif_fpn_pred_forward.11} parent=27 // pred_fallthru
        _
      // Predicated region
      $region33: #{liif_fpn_pred_forward.11} parent=27 // pred_check
        %p189 = pneg %p78
      $region34: #{liif_fpn_pred_forward.11} parent=27 // pred_check_branch
        %191 = sbr.rel (%p189) target = $region36
      $region35: #{liif_fpn_pred_forward.11} parent=27 // pred_region
        %s192 = smul.u32 128, %s11
        %p193 = scmp.lt.s32.totalorder %s192, 255
        %s194 = scalar_select %p193, %s192, 255
        %s195 = smul.addr %s194, 4
        %s196 = scalar_lea.vmem %s2, %s195
        %s197 = smul.u32 128, %s11
      $region36: #{liif_fpn_pred_forward.11} parent=27 // pred_fallthru
        _
    $region28: #{liif_fpn_pred_forward.11} parent=5 // pred_fallthru
      _
    %p198 = scmp.le.s32.totalorder 1, %s11
    %p199 = scmp.lt.s32.totalorder %s11, 3
    %p200 = pnand %p198, %p199
    %p201 = pneg %p200
    // Predicated region
    $region37: #{liif_fpn_pred_forward.11} parent=5 // pred_check
      _
    $region38: #{liif_fpn_pred_forward.11} parent=5 // pred_check_branch
      %203 = sbr.rel (%p200) target = $region40
    $region39: #{liif_fpn_pred_forward.11} parent=5 // pred_region
      %s204 = ssub.s32 %s11, 1
      %s205 = smul.u32 128, %s16
      %p206 = scmp.lt.s32.totalorder %s205, 255
      %s207 = scalar_select %p206, %s205, 255
      %s208 = smul.addr %s207, 4
      %s209 = scalar_lea.vmem %s0, %s208
      %p210 = pneg %p37
      %p211 = pneg %p34
      %p212 = pneg %p58
      %p213 = pneg %p55
      %s214 = smul.u32 128, %s16
      %p215 = scmp.lt.s32.totalorder %s214, 255
      %s216 = scalar_select %p215, %s214, 255
      %s217 = smul.addr %s216, 4
      %s218 = scalar_lea.vmem %s2, %s217
      %p219 = pneg %p84
      %p220 = pneg %p81
      %p221 = pneg %p105
      %p222 = pneg %p102
      %p223 = pneg %p126
      %p224 = pneg %p123
      %p225 = pneg %p152
      %p226 = pneg %p149
      %s227 = smul.u32 128, %s16
      %p228 = scmp.lt.s32.totalorder %s227, 255
      %s229 = scalar_select %p228, %s227, 255
      %s230 = smul.addr %s229, 4
      %s231 = scalar_lea.vmem %s5, %s230
      %s232 = smul.u32 128, %s16
      %p233 = scmp.lt.s32.totalorder %s232, 255
      %s234 = scalar_select %p233, %s232, 255
      %s235 = smul.addr %s234, 4
      %s236 = scalar_lea.vmem %s0, %s235
      %s237 = smul.u32 128, %s16
      %s238 = smul.u32 128, %s16
      %p239 = scmp.lt.s32.totalorder %s238, 255
      %s240 = scalar_select %p239, %s238, 255
      %s241 = smul.addr %s240, 4
      %s242 = scalar_lea.vmem %s2, %s241
      %s243 = smul.u32 128, %s16
      %s244 = smul.u32 128, %s16
      %p245 = scmp.lt.s32.totalorder %s244, 255
      %s246 = scalar_select %p245, %s244, 255
      %s247 = smul.addr %s246, 4
      %s248 = scalar_lea.vmem %s5, %s247
      %s249 = smul.u32 128, %s16
      %v251 = vld [vmem:[%s236] sm:$0xf]
      %v252 = vld [vmem:[%s236 + $0x4] sm:$0xf]
      %v253 = vld [vmem:[%s236 + $0x8] sm:$0xf]
      %v254 = vld [vmem:[%s236 + $0xc] sm:$0xf]
      %v255 = vld [vmem:[%s236 + $0x10] sm:$0xf]
      %v256 = vld [vmem:[%s236 + $0x14] sm:$0xf]
      %v257 = vld [vmem:[%s236 + $0x18] sm:$0xf]
      %v258 = vld [vmem:[%s236 + $0x1c] sm:$0xf]
      %v259 = vld [vmem:[%s236 + $0x20] sm:$0xf]
      %v260 = vld [vmem:[%s236 + $0x24] sm:$0xf]
      %v261 = vld [vmem:[%s236 + $0x28] sm:$0xf]
      %v262 = vld [vmem:[%s236 + $0x2c] sm:$0xf]
      %v263 = vld [vmem:[%s236 + $0x30] sm:$0xf]
      %v264 = vld [vmem:[%s236 + $0x34] sm:$0xf]
      %v265 = vld [vmem:[%s236 + $0x38] sm:$0xf]
      %v266 = vld [vmem:[%s236 + $0x3c] sm:$0xf]
      %v267 = vld [vmem:[%s236 + $0x40] sm:$0xf]
      %v268 = vld [vmem:[%s236 + $0x44] sm:$0xf]
      %v269 = vld [vmem:[%s236 + $0x48] sm:$0xf]
      %v270 = vld [vmem:[%s236 + $0x4c] sm:$0xf]
      %v271 = vld [vmem:[%s236 + $0x50] sm:$0xf]
      %v272 = vld [vmem:[%s236 + $0x54] sm:$0xf]
      %v273 = vld [vmem:[%s236 + $0x58] sm:$0xf]
      %v274 = vld [vmem:[%s236 + $0x5c] sm:$0xf]
      %v275 = vld [vmem:[%s236 + $0x60] sm:$0xf]
      %v276 = vld [vmem:[%s236 + $0x64] sm:$0xf]
      %v277 = vld [vmem:[%s236 + $0x68] sm:$0xf]
      %v278 = vld [vmem:[%s236 + $0x6c] sm:$0xf]
      %v279 = vld [vmem:[%s236 + $0x70] sm:$0xf]
      %v280 = vld [vmem:[%s236 + $0x74] sm:$0xf]
      %v281 = vld [vmem:[%s236 + $0x78] sm:$0xf]
      %v282 = vld [vmem:[%s236 + $0x7c] sm:$0xf]
      %v283 = vld [vmem:[%s236 + $0x80] sm:$0xf]
      %v284 = vld [vmem:[%s236 + $0x84] sm:$0xf]
      %v285 = vld [vmem:[%s236 + $0x88] sm:$0xf]
      %v286 = vld [vmem:[%s236 + $0x8c] sm:$0xf]
      %v287 = vld [vmem:[%s236 + $0x90] sm:$0xf]
      %v288 = vld [vmem:[%s236 + $0x94] sm:$0xf]
      %v289 = vld [vmem:[%s236 + $0x98] sm:$0xf]
      %v290 = vld [vmem:[%s236 + $0x9c] sm:$0xf]
      %v291 = vld [vmem:[%s236 + $0xa0] sm:$0xf]
      %v292 = vld [vmem:[%s236 + $0xa4] sm:$0xf]
      %v293 = vld [vmem:[%s236 + $0xa8] sm:$0xf]
      %v294 = vld [vmem:[%s236 + $0xac] sm:$0xf]
      %v295 = vld [vmem:[%s236 + $0xb0] sm:$0xf]
      %v296 = vld [vmem:[%s236 + $0xb4] sm:$0xf]
      %v297 = vld [vmem:[%s236 + $0xb8] sm:$0xf]
      %v298 = vld [vmem:[%s236 + $0xbc] sm:$0xf]
      %v299 = vld [vmem:[%s236 + $0xc0] sm:$0xf]
      %v300 = vld [vmem:[%s236 + $0xc4] sm:$0xf]
      %v301 = vld [vmem:[%s236 + $0xc8] sm:$0xf]
      %v302 = vld [vmem:[%s236 + $0xcc] sm:$0xf]
      %v303 = vld [vmem:[%s236 + $0xd0] sm:$0xf]
      %v304 = vld [vmem:[%s236 + $0xd4] sm:$0xf]
      %v305 = vld [vmem:[%s236 + $0xd8] sm:$0xf]
      %v306 = vld [vmem:[%s236 + $0xdc] sm:$0xf]
      %v307 = vld [vmem:[%s236 + $0xe0] sm:$0xf]
      %v308 = vld [vmem:[%s236 + $0xe4] sm:$0xf]
      %v309 = vld [vmem:[%s236 + $0xe8] sm:$0xf]
      %v310 = vld [vmem:[%s236 + $0xec] sm:$0xf]
      %v311 = vld [vmem:[%s236 + $0xf0] sm:$0xf]
      %v312 = vld [vmem:[%s236 + $0xf4] sm:$0xf]
      %v313 = vld [vmem:[%s236 + $0xf8] sm:$0xf]
      %v314 = vld [vmem:[%s236 + $0xfc] sm:$0xf]
      %v315 = vld [vmem:[%s236 + $0x100] sm:$0xf]
      %v316 = vld [vmem:[%s236 + $0x104] sm:$0xf]
      %v317 = vld [vmem:[%s236 + $0x108] sm:$0xf]
      %v318 = vld [vmem:[%s236 + $0x10c] sm:$0xf]
      %v319 = vld [vmem:[%s236 + $0x110] sm:$0xf]
      %v320 = vld [vmem:[%s236 + $0x114] sm:$0xf]
      %v321 = vld [vmem:[%s236 + $0x118] sm:$0xf]
      %v322 = vld [vmem:[%s236 + $0x11c] sm:$0xf]
      %v323 = vld [vmem:[%s236 + $0x120] sm:$0xf]
      %v324 = vld [vmem:[%s236 + $0x124] sm:$0xf]
      %v325 = vld [vmem:[%s236 + $0x128] sm:$0xf]
      %v326 = vld [vmem:[%s236 + $0x12c] sm:$0xf]
      %v327 = vld [vmem:[%s236 + $0x130] sm:$0xf]
      %v328 = vld [vmem:[%s236 + $0x134] sm:$0xf]
      %v329 = vld [vmem:[%s236 + $0x138] sm:$0xf]
      %v330 = vld [vmem:[%s236 + $0x13c] sm:$0xf]
      %v331 = vld [vmem:[%s236 + $0x140] sm:$0xf]
      %v332 = vld [vmem:[%s236 + $0x144] sm:$0xf]
      %v333 = vld [vmem:[%s236 + $0x148] sm:$0xf]
      %v334 = vld [vmem:[%s236 + $0x14c] sm:$0xf]
      %v335 = vld [vmem:[%s236 + $0x150] sm:$0xf]
      %v336 = vld [vmem:[%s236 + $0x154] sm:$0xf]
      %v337 = vld [vmem:[%s236 + $0x158] sm:$0xf]
      %v338 = vld [vmem:[%s236 + $0x15c] sm:$0xf]
      %v339 = vld [vmem:[%s236 + $0x160] sm:$0xf]
      %v340 = vld [vmem:[%s236 + $0x164] sm:$0xf]
      %v341 = vld [vmem:[%s236 + $0x168] sm:$0xf]
      %v342 = vld [vmem:[%s236 + $0x16c] sm:$0xf]
      %v343 = vld [vmem:[%s236 + $0x170] sm:$0xf]
      %v344 = vld [vmem:[%s236 + $0x174] sm:$0xf]
      %v345 = vld [vmem:[%s236 + $0x178] sm:$0xf]
      %v346 = vld [vmem:[%s236 + $0x17c] sm:$0xf]
      %v347 = vld [vmem:[%s236 + $0x180] sm:$0xf]
      %v348 = vld [vmem:[%s236 + $0x184] sm:$0xf]
      %v349 = vld [vmem:[%s236 + $0x188] sm:$0xf]
      %v350 = vld [vmem:[%s236 + $0x18c] sm:$0xf]
      %v351 = vld [vmem:[%s236 + $0x190] sm:$0xf]
      %v352 = vld [vmem:[%s236 + $0x194] sm:$0xf]
      %v353 = vld [vmem:[%s236 + $0x198] sm:$0xf]
      %v354 = vld [vmem:[%s236 + $0x19c] sm:$0xf]
      %v355 = vld [vmem:[%s236 + $0x1a0] sm:$0xf]
      %v356 = vld [vmem:[%s236 + $0x1a4] sm:$0xf]
      %v357 = vld [vmem:[%s236 + $0x1a8] sm:$0xf]
      %v358 = vld [vmem:[%s236 + $0x1ac] sm:$0xf]
      %v359 = vld [vmem:[%s236 + $0x1b0] sm:$0xf]
      %v360 = vld [vmem:[%s236 + $0x1b4] sm:$0xf]
      %v361 = vld [vmem:[%s236 + $0x1b8] sm:$0xf]
      %v362 = vld [vmem:[%s236 + $0x1bc] sm:$0xf]
      %v363 = vld [vmem:[%s236 + $0x1c0] sm:$0xf]
      %v364 = vld [vmem:[%s236 + $0x1c4] sm:$0xf]
      %v365 = vld [vmem:[%s236 + $0x1c8] sm:$0xf]
      %v366 = vld [vmem:[%s236 + $0x1cc] sm:$0xf]
      %v367 = vld [vmem:[%s236 + $0x1d0] sm:$0xf]
      %v368 = vld [vmem:[%s236 + $0x1d4] sm:$0xf]
      %v369 = vld [vmem:[%s236 + $0x1d8] sm:$0xf]
      %v370 = vld [vmem:[%s236 + $0x1dc] sm:$0xf]
      %v371 = vld [vmem:[%s236 + $0x1e0] sm:$0xf]
      %v372 = vld [vmem:[%s236 + $0x1e4] sm:$0xf]
      %v373 = vld [vmem:[%s236 + $0x1e8] sm:$0xf]
      %v374 = vld [vmem:[%s236 + $0x1ec] sm:$0xf]
      %v375 = vld [vmem:[%s236 + $0x1f0] sm:$0xf]
      %v376 = vld [vmem:[%s236 + $0x1f4] sm:$0xf]
      %v377 = vld [vmem:[%s236 + $0x1f8] sm:$0xf]
      %v378 = vld [vmem:[%s236 + $0x1fc] sm:$0xf]
      %v379 = vld [vmem:[%s1] sm:$0xf]
      %v380 = vld [vmem:[%s1 + $0x4] sm:$0xf]
      %v381 = vld [vmem:[%s1 + $0x8] sm:$0xf]
      %v382 = vld [vmem:[%s1 + $0xc] sm:$0xf]
      %v383 = vld [vmem:[%s1 + $0x10] sm:$0xf]
      %v384 = vld [vmem:[%s1 + $0x14] sm:$0xf]
      %v385 = vld [vmem:[%s1 + $0x18] sm:$0xf]
      %v386 = vld [vmem:[%s1 + $0x1c] sm:$0xf]
      %v387 = vld [vmem:[%s1 + $0x20] sm:$0xf]
      %v388 = vld [vmem:[%s242] sm:$0xf]
      %v389 = vld [vmem:[%s242 + $0x4] sm:$0xf]
      %v390 = vld [vmem:[%s242 + $0x8] sm:$0xf]
      %v391 = vld [vmem:[%s242 + $0xc] sm:$0xf]
      %v392 = vld [vmem:[%s242 + $0x10] sm:$0xf]
      %v393 = vld [vmem:[%s242 + $0x14] sm:$0xf]
      %v394 = vld [vmem:[%s242 + $0x18] sm:$0xf]
      %v395 = vld [vmem:[%s242 + $0x1c] sm:$0xf]
      %v396 = vld [vmem:[%s242 + $0x20] sm:$0xf]
      %v397 = vld [vmem:[%s242 + $0x24] sm:$0xf]
      %v398 = vld [vmem:[%s242 + $0x28] sm:$0xf]
      %v399 = vld [vmem:[%s242 + $0x2c] sm:$0xf]
      %v400 = vld [vmem:[%s242 + $0x30] sm:$0xf]
      %v401 = vld [vmem:[%s242 + $0x34] sm:$0xf]
      %v402 = vld [vmem:[%s242 + $0x38] sm:$0xf]
      %v403 = vld [vmem:[%s242 + $0x3c] sm:$0xf]
      %v404 = vld [vmem:[%s242 + $0x40] sm:$0xf]
      %v405 = vld [vmem:[%s242 + $0x44] sm:$0xf]
      %v406 = vld [vmem:[%s242 + $0x48] sm:$0xf]
      %v407 = vld [vmem:[%s242 + $0x4c] sm:$0xf]
      %v408 = vld [vmem:[%s242 + $0x50] sm:$0xf]
      %v409 = vld [vmem:[%s242 + $0x54] sm:$0xf]
      %v410 = vld [vmem:[%s242 + $0x58] sm:$0xf]
      %v411 = vld [vmem:[%s242 + $0x5c] sm:$0xf]
      %v412 = vld [vmem:[%s242 + $0x60] sm:$0xf]
      %v413 = vld [vmem:[%s242 + $0x64] sm:$0xf]
      %v414 = vld [vmem:[%s242 + $0x68] sm:$0xf]
      %v415 = vld [vmem:[%s242 + $0x6c] sm:$0xf]
      %v416 = vld [vmem:[%s242 + $0x70] sm:$0xf]
      %v417 = vld [vmem:[%s242 + $0x74] sm:$0xf]
      %v418 = vld [vmem:[%s242 + $0x78] sm:$0xf]
      %v419 = vld [vmem:[%s242 + $0x7c] sm:$0xf]
      %v420 = vld [vmem:[%s242 + $0x80] sm:$0xf]
      %v421 = vld [vmem:[%s242 + $0x84] sm:$0xf]
      %v422 = vld [vmem:[%s242 + $0x88] sm:$0xf]
      %v423 = vld [vmem:[%s242 + $0x8c] sm:$0xf]
      %v424 = vld [vmem:[%s242 + $0x90] sm:$0xf]
      %v425 = vld [vmem:[%s242 + $0x94] sm:$0xf]
      %v426 = vld [vmem:[%s242 + $0x98] sm:$0xf]
      %v427 = vld [vmem:[%s242 + $0x9c] sm:$0xf]
      %v428 = vld [vmem:[%s242 + $0xa0] sm:$0xf]
      %v429 = vld [vmem:[%s242 + $0xa4] sm:$0xf]
      %v430 = vld [vmem:[%s242 + $0xa8] sm:$0xf]
      %v431 = vld [vmem:[%s242 + $0xac] sm:$0xf]
      %v432 = vld [vmem:[%s242 + $0xb0] sm:$0xf]
      %v433 = vld [vmem:[%s242 + $0xb4] sm:$0xf]
      %v434 = vld [vmem:[%s242 + $0xb8] sm:$0xf]
      %v435 = vld [vmem:[%s242 + $0xbc] sm:$0xf]
      %v436 = vld [vmem:[%s242 + $0xc0] sm:$0xf]
      %v437 = vld [vmem:[%s242 + $0xc4] sm:$0xf]
      %v438 = vld [vmem:[%s242 + $0xc8] sm:$0xf]
      %v439 = vld [vmem:[%s242 + $0xcc] sm:$0xf]
      %v440 = vld [vmem:[%s242 + $0xd0] sm:$0xf]
      %v441 = vld [vmem:[%s242 + $0xd4] sm:$0xf]
      %v442 = vld [vmem:[%s242 + $0xd8] sm:$0xf]
      %v443 = vld [vmem:[%s242 + $0xdc] sm:$0xf]
      %v444 = vld [vmem:[%s242 + $0xe0] sm:$0xf]
      %v445 = vld [vmem:[%s242 + $0xe4] sm:$0xf]
      %v446 = vld [vmem:[%s242 + $0xe8] sm:$0xf]
      %v447 = vld [vmem:[%s242 + $0xec] sm:$0xf]
      %v448 = vld [vmem:[%s242 + $0xf0] sm:$0xf]
      %v449 = vld [vmem:[%s242 + $0xf4] sm:$0xf]
      %v450 = vld [vmem:[%s242 + $0xf8] sm:$0xf]
      %v451 = vld [vmem:[%s242 + $0xfc] sm:$0xf]
      %v452 = vld [vmem:[%s242 + $0x100] sm:$0xf]
      %v453 = vld [vmem:[%s242 + $0x104] sm:$0xf]
      %v454 = vld [vmem:[%s242 + $0x108] sm:$0xf]
      %v455 = vld [vmem:[%s242 + $0x10c] sm:$0xf]
      %v456 = vld [vmem:[%s242 + $0x110] sm:$0xf]
      %v457 = vld [vmem:[%s242 + $0x114] sm:$0xf]
      %v458 = vld [vmem:[%s242 + $0x118] sm:$0xf]
      %v459 = vld [vmem:[%s242 + $0x11c] sm:$0xf]
      %v460 = vld [vmem:[%s242 + $0x120] sm:$0xf]
      %v461 = vld [vmem:[%s242 + $0x124] sm:$0xf]
      %v462 = vld [vmem:[%s242 + $0x128] sm:$0xf]
      %v463 = vld [vmem:[%s242 + $0x12c] sm:$0xf]
      %v464 = vld [vmem:[%s242 + $0x130] sm:$0xf]
      %v465 = vld [vmem:[%s242 + $0x134] sm:$0xf]
      %v466 = vld [vmem:[%s242 + $0x138] sm:$0xf]
      %v467 = vld [vmem:[%s242 + $0x13c] sm:$0xf]
      %v468 = vld [vmem:[%s242 + $0x140] sm:$0xf]
      %v469 = vld [vmem:[%s242 + $0x144] sm:$0xf]
      %v470 = vld [vmem:[%s242 + $0x148] sm:$0xf]
      %v471 = vld [vmem:[%s242 + $0x14c] sm:$0xf]
      %v472 = vld [vmem:[%s242 + $0x150] sm:$0xf]
      %v473 = vld [vmem:[%s242 + $0x154] sm:$0xf]
      %v474 = vld [vmem:[%s242 + $0x158] sm:$0xf]
      %v475 = vld [vmem:[%s242 + $0x15c] sm:$0xf]
      %v476 = vld [vmem:[%s242 + $0x160] sm:$0xf]
      %v477 = vld [vmem:[%s242 + $0x164] sm:$0xf]
      %v478 = vld [vmem:[%s242 + $0x168] sm:$0xf]
      %v479 = vld [vmem:[%s242 + $0x16c] sm:$0xf]
      %v480 = vld [vmem:[%s242 + $0x170] sm:$0xf]
      %v481 = vld [vmem:[%s242 + $0x174] sm:$0xf]
      %v482 = vld [vmem:[%s242 + $0x178] sm:$0xf]
      %v483 = vld [vmem:[%s242 + $0x17c] sm:$0xf]
      %v484 = vld [vmem:[%s242 + $0x180] sm:$0xf]
      %v485 = vld [vmem:[%s242 + $0x184] sm:$0xf]
      %v486 = vld [vmem:[%s242 + $0x188] sm:$0xf]
      %v487 = vld [vmem:[%s242 + $0x18c] sm:$0xf]
      %v488 = vld [vmem:[%s242 + $0x190] sm:$0xf]
      %v489 = vld [vmem:[%s242 + $0x194] sm:$0xf]
      %v490 = vld [vmem:[%s242 + $0x198] sm:$0xf]
      %v491 = vld [vmem:[%s242 + $0x19c] sm:$0xf]
      %v492 = vld [vmem:[%s242 + $0x1a0] sm:$0xf]
      %v493 = vld [vmem:[%s242 + $0x1a4] sm:$0xf]
      %v494 = vld [vmem:[%s242 + $0x1a8] sm:$0xf]
      %v495 = vld [vmem:[%s242 + $0x1ac] sm:$0xf]
      %v496 = vld [vmem:[%s242 + $0x1b0] sm:$0xf]
      %v497 = vld [vmem:[%s242 + $0x1b4] sm:$0xf]
      %v498 = vld [vmem:[%s242 + $0x1b8] sm:$0xf]
      %v499 = vld [vmem:[%s242 + $0x1bc] sm:$0xf]
      %v500 = vld [vmem:[%s242 + $0x1c0] sm:$0xf]
      %v501 = vld [vmem:[%s242 + $0x1c4] sm:$0xf]
      %v502 = vld [vmem:[%s242 + $0x1c8] sm:$0xf]
      %v503 = vld [vmem:[%s242 + $0x1cc] sm:$0xf]
      %v504 = vld [vmem:[%s242 + $0x1d0] sm:$0xf]
      %v505 = vld [vmem:[%s242 + $0x1d4] sm:$0xf]
      %v506 = vld [vmem:[%s242 + $0x1d8] sm:$0xf]
      %v507 = vld [vmem:[%s242 + $0x1dc] sm:$0xf]
      %v508 = vld [vmem:[%s242 + $0x1e0] sm:$0xf]
      %v509 = vld [vmem:[%s242 + $0x1e4] sm:$0xf]
      %v510 = vld [vmem:[%s242 + $0x1e8] sm:$0xf]
      %v511 = vld [vmem:[%s242 + $0x1ec] sm:$0xf]
      %v512 = vld [vmem:[%s242 + $0x1f0] sm:$0xf]
      %v513 = vld [vmem:[%s242 + $0x1f4] sm:$0xf]
      %v514 = vld [vmem:[%s242 + $0x1f8] sm:$0xf]
      %v515 = vld [vmem:[%s242 + $0x1fc] sm:$0xf]
      %v516 = vld [vmem:[%s3] sm:$0xf]
      %v645 = vunpack.c.l.b16 %v388
      %v646 = vunpack.c.l.b16 %v389
      %v647 = vunpack.c.l.b16 %v390
      %v648 = vunpack.c.l.b16 %v391
      %v649 = vunpack.c.l.b16 %v392
      %v650 = vunpack.c.l.b16 %v393
      %v651 = vunpack.c.l.b16 %v394
      %v652 = vunpack.c.l.b16 %v395
      %v653 = vunpack.c.l.b16 %v396
      %v654 = vunpack.c.l.b16 %v397
      %v655 = vunpack.c.l.b16 %v398
      %v656 = vunpack.c.l.b16 %v399
      %v657 = vunpack.c.l.b16 %v400
      %v658 = vunpack.c.l.b16 %v401
      %v659 = vunpack.c.l.b16 %v402
      %v660 = vunpack.c.l.b16 %v403
      %v661 = vunpack.c.l.b16 %v404
      %v662 = vunpack.c.l.b16 %v405
      %v663 = vunpack.c.l.b16 %v406
      %v664 = vunpack.c.l.b16 %v407
      %v665 = vunpack.c.l.b16 %v408
      %v666 = vunpack.c.l.b16 %v409
      %v667 = vunpack.c.l.b16 %v410
      %v668 = vunpack.c.l.b16 %v411
      %v669 = vunpack.c.l.b16 %v412
      %v670 = vunpack.c.l.b16 %v413
      %v671 = vunpack.c.l.b16 %v414
      %v672 = vunpack.c.l.b16 %v415
      %v673 = vunpack.c.l.b16 %v416
      %v674 = vunpack.c.l.b16 %v417
      %v675 = vunpack.c.l.b16 %v418
      %v676 = vunpack.c.l.b16 %v419
      %v677 = vunpack.c.l.b16 %v420
      %v678 = vunpack.c.l.b16 %v421
      %v679 = vunpack.c.l.b16 %v422
      %v680 = vunpack.c.l.b16 %v423
      %v681 = vunpack.c.l.b16 %v424
      %v682 = vunpack.c.l.b16 %v425
      %v683 = vunpack.c.l.b16 %v426
      %v684 = vunpack.c.l.b16 %v427
      %v685 = vunpack.c.l.b16 %v428
      %v686 = vunpack.c.l.b16 %v429
      %v687 = vunpack.c.l.b16 %v430
      %v688 = vunpack.c.l.b16 %v431
      %v689 = vunpack.c.l.b16 %v432
      %v690 = vunpack.c.l.b16 %v433
      %v691 = vunpack.c.l.b16 %v434
      %v692 = vunpack.c.l.b16 %v435
      %v693 = vunpack.c.l.b16 %v436
      %v694 = vunpack.c.l.b16 %v437
      %v695 = vunpack.c.l.b16 %v438
      %v696 = vunpack.c.l.b16 %v439
      %v697 = vunpack.c.l.b16 %v440
      %v698 = vunpack.c.l.b16 %v441
      %v699 = vunpack.c.l.b16 %v442
      %v700 = vunpack.c.l.b16 %v443
      %v701 = vunpack.c.l.b16 %v444
      %v702 = vunpack.c.l.b16 %v445
      %v703 = vunpack.c.l.b16 %v446
      %v704 = vunpack.c.l.b16 %v447
      %v705 = vunpack.c.l.b16 %v448
      %v706 = vunpack.c.l.b16 %v449
      %v707 = vunpack.c.l.b16 %v450
      %v708 = vunpack.c.l.b16 %v451
      %v709 = vunpack.c.l.b16 %v452
      %v710 = vunpack.c.l.b16 %v453
      %v711 = vunpack.c.l.b16 %v454
      %v712 = vunpack.c.l.b16 %v455
      %v713 = vunpack.c.l.b16 %v456
      %v714 = vunpack.c.l.b16 %v457
      %v715 = vunpack.c.l.b16 %v458
      %v716 = vunpack.c.l.b16 %v459
      %v717 = vunpack.c.l.b16 %v460
      %v718 = vunpack.c.l.b16 %v461
      %v719 = vunpack.c.l.b16 %v462
      %v720 = vunpack.c.l.b16 %v463
      %v721 = vunpack.c.l.b16 %v464
      %v722 = vunpack.c.l.b16 %v465
      %v723 = vunpack.c.l.b16 %v466
      %v724 = vunpack.c.l.b16 %v467
      %v725 = vunpack.c.l.b16 %v468
      %v726 = vunpack.c.l.b16 %v469
      %v727 = vunpack.c.l.b16 %v470
      %v728 = vunpack.c.l.b16 %v471
      %v729 = vunpack.c.l.b16 %v472
      %v730 = vunpack.c.l.b16 %v473
      %v731 = vunpack.c.l.b16 %v474
      %v732 = vunpack.c.l.b16 %v475
      %v733 = vunpack.c.l.b16 %v476
      %v734 = vunpack.c.l.b16 %v477
      %v735 = vunpack.c.l.b16 %v478
      %v736 = vunpack.c.l.b16 %v479
      %v737 = vunpack.c.l.b16 %v480
      %v738 = vunpack.c.l.b16 %v481
      %v739 = vunpack.c.l.b16 %v482
      %v740 = vunpack.c.l.b16 %v483
      %v741 = vunpack.c.l.b16 %v484
      %v742 = vunpack.c.l.b16 %v485
      %v743 = vunpack.c.l.b16 %v486
      %v744 = vunpack.c.l.b16 %v487
      %v745 = vunpack.c.l.b16 %v488
      %v746 = vunpack.c.l.b16 %v489
      %v747 = vunpack.c.l.b16 %v490
      %v748 = vunpack.c.l.b16 %v491
      %v749 = vunpack.c.l.b16 %v492
      %v750 = vunpack.c.l.b16 %v493
      %v751 = vunpack.c.l.b16 %v494
      %v752 = vunpack.c.l.b16 %v495
      %v753 = vunpack.c.l.b16 %v496
      %v754 = vunpack.c.l.b16 %v497
      %v755 = vunpack.c.l.b16 %v498
      %v756 = vunpack.c.l.b16 %v499
      %v757 = vunpack.c.l.b16 %v500
      %v758 = vunpack.c.l.b16 %v501
      %v759 = vunpack.c.l.b16 %v502
      %v760 = vunpack.c.l.b16 %v503
      %v761 = vunpack.c.l.b16 %v504
      %v762 = vunpack.c.l.b16 %v505
      %v763 = vunpack.c.l.b16 %v506
      %v764 = vunpack.c.l.b16 %v507
      %v765 = vunpack.c.l.b16 %v508
      %v766 = vunpack.c.l.b16 %v509
      %v767 = vunpack.c.l.b16 %v510
      %v768 = vunpack.c.l.b16 %v511
      %v769 = vunpack.c.l.b16 %v512
      %v770 = vunpack.c.l.b16 %v513
      %v771 = vunpack.c.l.b16 %v514
      %v772 = vunpack.c.l.b16 %v515
      %v773 = vpack.c.b16 %v646, %v645
      %v774 = vpack.c.b16 %v648, %v647
      %v775 = vpack.c.b16 %v650, %v649
      %v776 = vpack.c.b16 %v652, %v651
      %v777 = vpack.c.b16 %v654, %v653
      %v778 = vpack.c.b16 %v656, %v655
      %v779 = vpack.c.b16 %v658, %v657
      %v780 = vpack.c.b16 %v660, %v659
      %v781 = vpack.c.b16 %v662, %v661
      %v782 = vpack.c.b16 %v664, %v663
      %v783 = vpack.c.b16 %v666, %v665
      %v784 = vpack.c.b16 %v668, %v667
      %v785 = vpack.c.b16 %v670, %v669
      %v786 = vpack.c.b16 %v672, %v671
      %v787 = vpack.c.b16 %v674, %v673
      %v788 = vpack.c.b16 %v676, %v675
      %v789 = vpack.c.b16 %v678, %v677
      %v790 = vpack.c.b16 %v680, %v679
      %v791 = vpack.c.b16 %v682, %v681
      %v792 = vpack.c.b16 %v684, %v683
      %v793 = vpack.c.b16 %v686, %v685
      %v794 = vpack.c.b16 %v688, %v687
      %v795 = vpack.c.b16 %v690, %v689
      %v796 = vpack.c.b16 %v692, %v691
      %v797 = vpack.c.b16 %v694, %v693
      %v798 = vpack.c.b16 %v696, %v695
      %v799 = vpack.c.b16 %v698, %v697
      %v800 = vpack.c.b16 %v700, %v699
      %v801 = vpack.c.b16 %v702, %v701
      %v802 = vpack.c.b16 %v704, %v703
      %v803 = vpack.c.b16 %v706, %v705
      %v804 = vpack.c.b16 %v708, %v707
      %v805 = vpack.c.b16 %v710, %v709
      %v806 = vpack.c.b16 %v712, %v711
      %v807 = vpack.c.b16 %v714, %v713
      %v808 = vpack.c.b16 %v716, %v715
      %v809 = vpack.c.b16 %v718, %v717
      %v810 = vpack.c.b16 %v720, %v719
      %v811 = vpack.c.b16 %v722, %v721
      %v812 = vpack.c.b16 %v724, %v723
      %v813 = vpack.c.b16 %v726, %v725
      %v814 = vpack.c.b16 %v728, %v727
      %v815 = vpack.c.b16 %v730, %v729
      %v816 = vpack.c.b16 %v732, %v731
      %v817 = vpack.c.b16 %v734, %v733
      %v818 = vpack.c.b16 %v736, %v735
      %v819 = vpack.c.b16 %v738, %v737
      %v820 = vpack.c.b16 %v740, %v739
      %v821 = vpack.c.b16 %v742, %v741
      %v822 = vpack.c.b16 %v744, %v743
      %v823 = vpack.c.b16 %v746, %v745
      %v824 = vpack.c.b16 %v748, %v747
      %v825 = vpack.c.b16 %v750, %v749
      %v826 = vpack.c.b16 %v752, %v751
      %v827 = vpack.c.b16 %v754, %v753
      %v828 = vpack.c.b16 %v756, %v755
      %v829 = vpack.c.b16 %v758, %v757
      %v830 = vpack.c.b16 %v760, %v759
      %v831 = vpack.c.b16 %v762, %v761
      %v832 = vpack.c.b16 %v764, %v763
      %v833 = vpack.c.b16 %v766, %v765
      %v834 = vpack.c.b16 %v768, %v767
      %v835 = vpack.c.b16 %v770, %v769
      %v836 = vpack.c.b16 %v772, %v771
      %vm837 = vcmask 64512
      %v839 = vsel %vm837, %v773, 0
      %v842 = vsel %vm837, %v774, 0
      %v845 = vsel %vm837, %v775, 0
      %v848 = vsel %vm837, %v776, 0
      %v851 = vsel %vm837, %v777, 0
      %v854 = vsel %vm837, %v778, 0
      %v857 = vsel %vm837, %v779, 0
      %v860 = vsel %vm837, %v780, 0
      %v863 = vsel %vm837, %v781, 0
      %v866 = vsel %vm837, %v782, 0
      %v869 = vsel %vm837, %v783, 0
      %v872 = vsel %vm837, %v784, 0
      %v875 = vsel %vm837, %v785, 0
      %v878 = vsel %vm837, %v786, 0
      %v881 = vsel %vm837, %v787, 0
      %v884 = vsel %vm837, %v788, 0
      %v887 = vsel %vm837, %v789, 0
      %v890 = vsel %vm837, %v790, 0
      %v893 = vsel %vm837, %v791, 0
      %v896 = vsel %vm837, %v792, 0
      %v899 = vsel %vm837, %v793, 0
      %v902 = vsel %vm837, %v794, 0
      %v905 = vsel %vm837, %v795, 0
      %v908 = vsel %vm837, %v796, 0
      %v911 = vsel %vm837, %v797, 0
      %v914 = vsel %vm837, %v798, 0
      %v917 = vsel %vm837, %v799, 0
      %v920 = vsel %vm837, %v800, 0
      %v923 = vsel %vm837, %v801, 0
      %v926 = vsel %vm837, %v802, 0
      %v929 = vsel %vm837, %v803, 0
      %v932 = vsel %vm837, %v804, 0
      %v935 = vsel %vm837, %v805, 0
      %v938 = vsel %vm837, %v806, 0
      %v941 = vsel %vm837, %v807, 0
      %v944 = vsel %vm837, %v808, 0
      %v947 = vsel %vm837, %v809, 0
      %v950 = vsel %vm837, %v810, 0
      %v953 = vsel %vm837, %v811, 0
      %v956 = vsel %vm837, %v812, 0
      %v959 = vsel %vm837, %v813, 0
      %v962 = vsel %vm837, %v814, 0
      %v965 = vsel %vm837, %v815, 0
      %v968 = vsel %vm837, %v816, 0
      %v971 = vsel %vm837, %v817, 0
      %v974 = vsel %vm837, %v818, 0
      %v977 = vsel %vm837, %v819, 0
      %v980 = vsel %vm837, %v820, 0
      %v983 = vsel %vm837, %v821, 0
      %v986 = vsel %vm837, %v822, 0
      %v989 = vsel %vm837, %v823, 0
      %v992 = vsel %vm837, %v824, 0
      %v995 = vsel %vm837, %v825, 0
      %v998 = vsel %vm837, %v826, 0
      %v1001 = vsel %vm837, %v827, 0
      %v1004 = vsel %vm837, %v828, 0
      %v1007 = vsel %vm837, %v829, 0
      %v1010 = vsel %vm837, %v830, 0
      %v1013 = vsel %vm837, %v831, 0
      %v1016 = vsel %vm837, %v832, 0
      %v1019 = vsel %vm837, %v833, 0
      %v1022 = vsel %vm837, %v834, 0
      %v1025 = vsel %vm837, %v835, 0
      %v1028 = vsel %vm837, %v836, 0
      %vm1030 = vcmask 1043456
      %v1032 = vsel %vm1030, %v516, 0
      %1034 = vmatprep.subr.bf16.mxu0 0
      %1035 = vmatpush1.bf16.msra.mxu0 %v1032
      %1036 = vmatprep.subr.bf16.mxu0 0
      %1037 = vmatpush1.bf16.msra.mxu0 0
      %1038 = vmatprep.subr.bf16.mxu0 0
      %1039 = vmatpush1.bf16.msra.mxu0 0
      %1040 = vmatprep.subr.bf16.mxu0 0
      %1041 = vmatpush1.bf16.msra.mxu0 0
      %1042 = vmatprep.subr.bf16.mxu0 0
      %1043 = vmatpush1.bf16.msra.mxu0 0
      %1044 = vmatprep.subr.bf16.mxu0 0
      %1045 = vmatpush1.bf16.msra.mxu0 0
      %1046 = vmatprep.subr.bf16.mxu0 0
      %1047 = vmatpush1.bf16.msra.mxu0 0
      %1048 = vmatprep.subr.bf16.mxu0 0
      %1049 = vmatpush1.bf16.msra.mxu0 0
      %1050 = vmatprep.subr.bf16.mxu0 0
      %1051 = vmatpush1.bf16.msra.mxu0 0
      %1052 = vmatprep.subr.bf16.mxu0 0
      %1053 = vmatpush1.bf16.msra.mxu0 0
      %1054 = vmatprep.subr.bf16.mxu0 0
      %1055 = vmatpush1.bf16.msra.mxu0 0
      %1056 = vmatprep.subr.bf16.mxu0 0
      %1057 = vmatpush1.bf16.msra.mxu0 0
      %1058 = vmatprep.subr.bf16.mxu0 0
      %1059 = vmatpush1.bf16.msra.mxu0 0
      %1060 = vmatprep.subr.bf16.mxu0 0
      %1061 = vmatpush1.bf16.msra.mxu0 0
      %1062 = vmatprep.subr.bf16.mxu0 0
      %1063 = vmatpush1.bf16.msra.mxu0 0
      %1064 = vmatprep.subr.bf16.mxu0 0
      %1065 = vmatpush1.bf16.msra.mxu0 0
      %1066 = vmatprep.mubr.bf16.mxu0 0
      %1067 = vmatmul.mubr.bf16.gmra.mrb[0].mxu0 %v839
      %v1068 = vpop.f32.mrb[0].mxu0
      %v1069 = vadd.f32 0.0, %v1068
      %v1070 = vpop.f32.mrb[0].mxu0
      %v1071 = vpop.f32.mrb[0].mxu0
      %v1072 = vadd.f32 0.0, %v1071
      %v1073 = vpop.f32.mrb[0].mxu0
      %1074 = vmatprep.mubr.bf16.mxu0 0
      %1075 = vmatmul.mubr.bf16.gmra.mrb[0].mxu0 %v842
      %v1076 = vpop.f32.mrb[0].mxu0
      %v1077 = vadd.f32 0.0, %v1076
      %v1078 = vpop.f32.mrb[0].mxu0
      %v1079 = vpop.f32.mrb[0].mxu0
      %v1080 = vadd.f32 0.0, %v1079
      %v1081 = vpop.f32.mrb[0].mxu0
      %1082 = vmatprep.mubr.bf16.mxu0 0
      %1083 = vmatmul.mubr.bf16.gmra.mrb[0].mxu0 %v845
      %v1084 = vpop.f32.mrb[0].mxu0
      %v1085 = vadd.f32 0.0, %v1084
      %v1086 = vpop.f32.mrb[0].mxu0
      %v1087 = vpop.f32.mrb[0].mxu0
      %v1088 = vadd.f32 0.0, %v1087
      %v1089 = vpop.f32.mrb[0].mxu0
      %1090 = vmatprep.mubr.bf16.mxu0 0
      %1091 = vmatmul.mubr.bf16.gmra.mrb[0].mxu0 %v848
      %v1092 = vpop.f32.mrb[0].mxu0
      %v1093 = vadd.f32 0.0, %v1092
      %v1094 = vpop.f32.mrb[0].mxu0
      %v1095 = vpop.f32.mrb[0].mxu0
      %v1096 = vadd.f32 0.0, %v1095
      %v1097 = vpop.f32.mrb[0].mxu0
      %1098 = vmatprep.mubr.bf16.mxu0 0
      %1099 = vmatmul.mubr.bf16.gmra.mrb[0].mxu0 %v851
      %v1100 = vpop.f32.mrb[0].mxu0
      %v1101 = vadd.f32 0.0, %v1100
      %v1102 = vpop.f32.mrb[0].mxu0
      %v1103 = vpop.f32.mrb[0].mxu0
      %v1104 = vadd.f32 0.0, %v1103
      %v1105 = vpop.f32.mrb[0].mxu0
      %1106 = vmatprep.mubr.bf16.mxu0 0
      %1107 = vmatmul.mubr.bf16.gmra.mrb[0].mxu0 %v854
      %v1108 = vpop.f32.mrb[0].mxu0
      %v1109 = vadd.f32 0.0, %v1108
      %v1110 = vpop.f32.mrb[0].mxu0
      %v1111 = vpop.f32.mrb[0].mxu0
      %v1112 = vadd.f32 0.0, %v1111
      %v1113 = vpop.f32.mrb[0].mxu0
      %1114 = vmatprep.mubr.bf16.mxu0 0
      %1115 = vmatmul.mubr.bf16.gmra.mrb[0].mxu0 %v857
      %v1116 = vpop.f32.mrb[0].mxu0
      %v1117 = vadd.f32 0.0, %v1116
      %v1118 = vpop.f32.mrb[0].mxu0
      %v1119 = vpop.f32.mrb[0].mxu0
      %v1120 = vadd.f32 0.0, %v1119
      %v1121 = vpop.f32.mrb[0].mxu0
      %1122 = vmatprep.mubr.bf16.mxu0 0
      %1123 = vmatmul.mubr.bf16.gmra.mrb[0].mxu0 %v860
      %v1124 = vpop.f32.mrb[0].mxu0
      %v1125 = vadd.f32 0.0, %v1124
      %v1126 = vpop.f32.mrb[0].mxu0
      %v1127 = vpop.f32.mrb[0].mxu0
      %v1128 = vadd.f32 0.0, %v1127
      %v1129 = vpop.f32.mrb[0].mxu0
      %1130 = vmatprep.mubr.bf16.mxu0 0
      %1131 = vmatmul.mubr.bf16.gmra.mrb[0].mxu0 %v863
      %v1132 = vpop.f32.mrb[0].mxu0
      %v1133 = vadd.f32 0.0, %v1132
      %v1134 = vpop.f32.mrb[0].mxu0
      %v1135 = vpop.f32.mrb[0].mxu0
      %v1136 = vadd.f32 0.0, %v1135
      %v1137 = vpop.f32.mrb[0].mxu0
      %1138 = vmatprep.mubr.bf16.mxu0 0
      %1139 = vmatmul.mubr.bf16.gmra.mrb[0].mxu0 %v866
      %v1140 = vpop.f32.mrb[0].mxu0
      %v1141 = vadd.f32 0.0, %v1140
      %v1142 = vpop.f32.mrb[0].mxu0
      %v1143 = vpop.f32.mrb[0].mxu0
      %v1144 = vadd.f32 0.0, %v1143
      %v1145 = vpop.f32.mrb[0].mxu0
      %1146 = vmatprep.mubr.bf16.mxu0 0
      %1147 = vmatmul.mubr.bf16.gmra.mrb[0].mxu0 %v869
      %v1148 = vpop.f32.mrb[0].mxu0
      %v1149 = vadd.f32 0.0, %v1148
      %v1150 = vpop.f32.mrb[0].mxu0
      %v1151 = vpop.f32.mrb[0].mxu0
      %v1152 = vadd.f32 0.0, %v1151
      %v1153 = vpop.f32.mrb[0].mxu0
      %1154 = vmatprep.mubr.bf16.mxu0 0
      %1155 = vmatmul.mubr.bf16.gmra.mrb[0].mxu0 %v872
      %v1156 = vpop.f32.mrb[0].mxu0
      %v1157 = vadd.f32 0.0, %v1156
      %v1158 = vpop.f32.mrb[0].mxu0
      %v1159 = vpop.f32.mrb[0].mxu0
      %v1160 = vadd.f32 0.0, %v1159
      %v1161 = vpop.f32.mrb[0].mxu0
      %1162 = vmatprep.mubr.bf16.mxu0 0
      %1163 = vmatmul.mubr.bf16.gmra.mrb[0].mxu0 %v875
      %v1164 = vpop.f32.mrb[0].mxu0
      %v1165 = vadd.f32 0.0, %v1164
      %v1166 = vpop.f32.mrb[0].mxu0
      %v1167 = vpop.f32.mrb[0].mxu0
      %v1168 = vadd.f32 0.0, %v1167
      %v1169 = vpop.f32.mrb[0].mxu0
      %1170 = vmatprep.mubr.bf16.mxu0 0
      %1171 = vmatmul.mubr.bf16.gmra.mrb[0].mxu0 %v878
      %v1172 = vpop.f32.mrb[0].mxu0
      %v1173 = vadd.f32 0.0, %v1172
      %v1174 = vpop.f32.mrb[0].mxu0
      %v1175 = vpop.f32.mrb[0].mxu0
      %v1176 = vadd.f32 0.0, %v1175
      %v1177 = vpop.f32.mrb[0].mxu0
      %1178 = vmatprep.mubr.bf16.mxu0 0
      %1179 = vmatmul.mubr.bf16.gmra.mrb[0].mxu0 %v881
      %v1180 = vpop.f32.mrb[0].mxu0
      %v1181 = vadd.f32 0.0, %v1180
      %v1182 = vpop.f32.mrb[0].mxu0
      %v1183 = vpop.f32.mrb[0].mxu0
      %v1184 = vadd.f32 0.0, %v1183
      %v1185 = vpop.f32.mrb[0].mxu0
      %1186 = vmatprep.mubr.bf16.mxu0 0
      %1187 = vmatmul.mubr.bf16.gmra.mrb[0].mxu0 %v884
      %v1188 = vpop.f32.mrb[0].mxu0
      %v1189 = vadd.f32 0.0, %v1188
      %v1190 = vpop.f32.mrb[0].mxu0
      %v1191 = vpop.f32.mrb[0].mxu0
      %v1192 = vadd.f32 0.0, %v1191
      %v1193 = vpop.f32.mrb[0].mxu0
      %1194 = vmatprep.mubr.bf16.mxu0 0
      %1195 = vmatmul.mubr.bf16.gmra.mrb[0].mxu0 %v887
      %v1196 = vpop.f32.mrb[0].mxu0
      %v1197 = vadd.f32 0.0, %v1196
      %v1198 = vpop.f32.mrb[0].mxu0
      %v1199 = vpop.f32.mrb[0].mxu0
      %v1200 = vadd.f32 0.0, %v1199
      %v1201 = vpop.f32.mrb[0].mxu0
      %1202 = vmatprep.mubr.bf16.mxu0 0
      %1203 = vmatmul.mubr.bf16.gmra.mrb[0].mxu0 %v890
      %v1204 = vpop.f32.mrb[0].mxu0
      %v1205 = vadd.f32 0.0, %v1204
      %v1206 = vpop.f32.mrb[0].mxu0
      %v1207 = vpop.f32.mrb[0].mxu0
      %v1208 = vadd.f32 0.0, %v1207
      %v1209 = vpop.f32.mrb[0].mxu0
      %1210 = vmatprep.mubr.bf16.mxu0 0
      %1211 = vmatmul.mubr.bf16.gmra.mrb[0].mxu0 %v893
      %v1212 = vpop.f32.mrb[0].mxu0
      %v1213 = vadd.f32 0.0, %v1212
      %v1214 = vpop.f32.mrb[0].mxu0
      %v1215 = vpop.f32.mrb[0].mxu0
      %v1216 = vadd.f32 0.0, %v1215
      %v1217 = vpop.f32.mrb[0].mxu0
      %1218 = vmatprep.mubr.bf16.mxu0 0
      %1219 = vmatmul.mubr.bf16.gmra.mrb[0].mxu0 %v896
      %v1220 = vpop.f32.mrb[0].mxu0
      %v1221 = vadd.f32 0.0, %v1220
      %v1222 = vpop.f32.mrb[0].mxu0
      %v1223 = vpop.f32.mrb[0].mxu0
      %v1224 = vadd.f32 0.0, %v1223
      %v1225 = vpop.f32.mrb[0].mxu0
      %1226 = vmatprep.mubr.bf16.mxu0 0
      %1227 = vmatmul.mubr.bf16.gmra.mrb[0].mxu0 %v899
      %v1228 = vpop.f32.mrb[0].mxu0
      %v1229 = vadd.f32 0.0, %v1228
      %v1230 = vpop.f32.mrb[0].mxu0
      %v1231 = vpop.f32.mrb[0].mxu0
      %v1232 = vadd.f32 0.0, %v1231
      %v1233 = vpop.f32.mrb[0].mxu0
      %1234 = vmatprep.mubr.bf16.mxu0 0
      %1235 = vmatmul.mubr.bf16.gmra.mrb[0].mxu0 %v902
      %v1236 = vpop.f32.mrb[0].mxu0
      %v1237 = vadd.f32 0.0, %v1236
      %v1238 = vpop.f32.mrb[0].mxu0
      %v1239 = vpop.f32.mrb[0].mxu0
      %v1240 = vadd.f32 0.0, %v1239
      %v1241 = vpop.f32.mrb[0].mxu0
      %1242 = vmatprep.mubr.bf16.mxu0 0
      %1243 = vmatmul.mubr.bf16.gmra.mrb[0].mxu0 %v905
      %v1244 = vpop.f32.mrb[0].mxu0
      %v1245 = vadd.f32 0.0, %v1244
      %v1246 = vpop.f32.mrb[0].mxu0
      %v1247 = vpop.f32.mrb[0].mxu0
      %v1248 = vadd.f32 0.0, %v1247
      %v1249 = vpop.f32.mrb[0].mxu0
      %1250 = vmatprep.mubr.bf16.mxu0 0
      %1251 = vmatmul.mubr.bf16.gmra.mrb[0].mxu0 %v908
      %v1252 = vpop.f32.mrb[0].mxu0
      %v1253 = vadd.f32 0.0, %v1252
      %v1254 = vpop.f32.mrb[0].mxu0
      %v1255 = vpop.f32.mrb[0].mxu0
      %v1256 = vadd.f32 0.0, %v1255
      %v1257 = vpop.f32.mrb[0].mxu0
      %1258 = vmatprep.mubr.bf16.mxu0 0
      %1259 = vmatmul.mubr.bf16.gmra.mrb[0].mxu0 %v911
      %v1260 = vpop.f32.mrb[0].mxu0
      %v1261 = vadd.f32 0.0, %v1260
      %v1262 = vpop.f32.mrb[0].mxu0
      %v1263 = vpop.f32.mrb[0].mxu0
      %v1264 = vadd.f32 0.0, %v1263
      %v1265 = vpop.f32.mrb[0].mxu0
      %1266 = vmatprep.mubr.bf16.mxu0 0
      %1267 = vmatmul.mubr.bf16.gmra.mrb[0].mxu0 %v914
      %v1268 = vpop.f32.mrb[0].mxu0
      %v1269 = vadd.f32 0.0, %v1268
      %v1270 = vpop.f32.mrb[0].mxu0
      %v1271 = vpop.f32.mrb[0].mxu0
      %v1272 = vadd.f32 0.0, %v1271
      %v1273 = vpop.f32.mrb[0].mxu0
      %1274 = vmatprep.mubr.bf16.mxu0 0
      %1275 = vmatmul.mubr.bf16.gmra.mrb[0].mxu0 %v917
      %v1276 = vpop.f32.mrb[0].mxu0
      %v1277 = vadd.f32 0.0, %v1276
      %v1278 = vpop.f32.mrb[0].mxu0
      %v1279 = vpop.f32.mrb[0].mxu0
      %v1280 = vadd.f32 0.0, %v1279
      %v1281 = vpop.f32.mrb[0].mxu0
      %1282 = vmatprep.mubr.bf16.mxu0 0
      %1283 = vmatmul.mubr.bf16.gmra.mrb[0].mxu0 %v920
      %v1284 = vpop.f32.mrb[0].mxu0
      %v1285 = vadd.f32 0.0, %v1284
      %v1286 = vpop.f32.mrb[0].mxu0
      %v1287 = vpop.f32.mrb[0].mxu0
      %v1288 = vadd.f32 0.0, %v1287
      %v1289 = vpop.f32.mrb[0].mxu0
      %1290 = vmatprep.mubr.bf16.mxu0 0
      %1291 = vmatmul.mubr.bf16.gmra.mrb[0].mxu0 %v923
      %v1292 = vpop.f32.mrb[0].mxu0
      %v1293 = vadd.f32 0.0, %v1292
      %v1294 = vpop.f32.mrb[0].mxu0
      %v1295 = vpop.f32.mrb[0].mxu0
      %v1296 = vadd.f32 0.0, %v1295
      %v1297 = vpop.f32.mrb[0].mxu0
      %1298 = vmatprep.mubr.bf16.mxu0 0
      %1299 = vmatmul.mubr.bf16.gmra.mrb[0].mxu0 %v926
      %v1300 = vpop.f32.mrb[0].mxu0
      %v1301 = vadd.f32 0.0, %v1300
      %v1302 = vpop.f32.mrb[0].mxu0
      %v1303 = vpop.f32.mrb[0].mxu0
      %v1304 = vadd.f32 0.0, %v1303
      %v1305 = vpop.f32.mrb[0].mxu0
      %1306 = vmatprep.mubr.bf16.mxu0 0
      %1307 = vmatmul.mubr.bf16.gmra.mrb[0].mxu0 %v929
      %v1308 = vpop.f32.mrb[0].mxu0
      %v1309 = vadd.f32 0.0, %v1308
      %v1310 = vpop.f32.mrb[0].mxu0
      %v1311 = vpop.f32.mrb[0].mxu0
      %v1312 = vadd.f32 0.0, %v1311
      %v1313 = vpop.f32.mrb[0].mxu0
      %1314 = vmatprep.mubr.bf16.mxu0 0
      %1315 = vmatmul.mubr.bf16.gmra.mrb[0].mxu0 %v932
      %v1316 = vpop.f32.mrb[0].mxu0
      %v1317 = vadd.f32 0.0, %v1316
      %v1318 = vpop.f32.mrb[0].mxu0
      %v1319 = vpop.f32.mrb[0].mxu0
      %v1320 = vadd.f32 0.0, %v1319
      %v1321 = vpop.f32.mrb[0].mxu0
      %1322 = vmatprep.mubr.bf16.mxu0 0
      %1323 = vmatmul.mubr.bf16.gmra.mrb[0].mxu0 %v935
      %v1324 = vpop.f32.mrb[0].mxu0
      %v1325 = vadd.f32 0.0, %v1324
      %v1326 = vpop.f32.mrb[0].mxu0
      %v1327 = vpop.f32.mrb[0].mxu0
      %v1328 = vadd.f32 0.0, %v1327
      %v1329 = vpop.f32.mrb[0].mxu0
      %1330 = vmatprep.mubr.bf16.mxu0 0
      %1331 = vmatmul.mubr.bf16.gmra.mrb[0].mxu0 %v938
      %v1332 = vpop.f32.mrb[0].mxu0
      %v1333 = vadd.f32 0.0, %v1332
      %v1334 = vpop.f32.mrb[0].mxu0
      %v1335 = vpop.f32.mrb[0].mxu0
      %v1336 = vadd.f32 0.0, %v1335
      %v1337 = vpop.f32.mrb[0].mxu0
      %1338 = vmatprep.mubr.bf16.mxu0 0
      %1339 = vmatmul.mubr.bf16.gmra.mrb[0].mxu0 %v941
      %v1340 = vpop.f32.mrb[0].mxu0
      %v1341 = vadd.f32 0.0, %v1340
      %v1342 = vpop.f32.mrb[0].mxu0
      %v1343 = vpop.f32.mrb[0].mxu0
      %v1344 = vadd.f32 0.0, %v1343
      %v1345 = vpop.f32.mrb[0].mxu0
      %1346 = vmatprep.mubr.bf16.mxu0 0
      %1347 = vmatmul.mubr.bf16.gmra.mrb[0].mxu0 %v944
      %v1348 = vpop.f32.mrb[0].mxu0
      %v1349 = vadd.f32 0.0, %v1348
      %v1350 = vpop.f32.mrb[0].mxu0
      %v1351 = vpop.f32.mrb[0].mxu0
      %v1352 = vadd.f32 0.0, %v1351
      %v1353 = vpop.f32.mrb[0].mxu0
      %1354 = vmatprep.mubr.bf16.mxu0 0
      %1355 = vmatmul.mubr.bf16.gmra.mrb[0].mxu0 %v947
      %v1356 = vpop.f32.mrb[0].mxu0
      %v1357 = vadd.f32 0.0, %v1356
      %v1358 = vpop.f32.mrb[0].mxu0
      %v1359 = vpop.f32.mrb[0].mxu0
      %v1360 = vadd.f32 0.0, %v1359
      %v1361 = vpop.f32.mrb[0].mxu0
      %1362 = vmatprep.mubr.bf16.mxu0 0
      %1363 = vmatmul.mubr.bf16.gmra.mrb[0].mxu0 %v950
      %v1364 = vpop.f32.mrb[0].mxu0
      %v1365 = vadd.f32 0.0, %v1364
      %v1366 = vpop.f32.mrb[0].mxu0
      %v1367 = vpop.f32.mrb[0].mxu0
      %v1368 = vadd.f32 0.0, %v1367
      %v1369 = vpop.f32.mrb[0].mxu0
      %1370 = vmatprep.mubr.bf16.mxu0 0
      %1371 = vmatmul.mubr.bf16.gmra.mrb[0].mxu0 %v953
      %v1372 = vpop.f32.mrb[0].mxu0
      %v1373 = vadd.f32 0.0, %v1372
      %v1374 = vpop.f32.mrb[0].mxu0
      %v1375 = vpop.f32.mrb[0].mxu0
      %v1376 = vadd.f32 0.0, %v1375
      %v1377 = vpop.f32.mrb[0].mxu0
      %1378 = vmatprep.mubr.bf16.mxu0 0
      %1379 = vmatmul.mubr.bf16.gmra.mrb[0].mxu0 %v956
      %v1380 = vpop.f32.mrb[0].mxu0
      %v1381 = vadd.f32 0.0, %v1380
      %v1382 = vpop.f32.mrb[0].mxu0
      %v1383 = vpop.f32.mrb[0].mxu0
      %v1384 = vadd.f32 0.0, %v1383
      %v1385 = vpop.f32.mrb[0].mxu0
      %1386 = vmatprep.mubr.bf16.mxu0 0
      %1387 = vmatmul.mubr.bf16.gmra.mrb[0].mxu0 %v959
      %v1388 = vpop.f32.mrb[0].mxu0
      %v1389 = vadd.f32 0.0, %v1388
      %v1390 = vpop.f32.mrb[0].mxu0
      %v1391 = vpop.f32.mrb[0].mxu0
      %v1392 = vadd.f32 0.0, %v1391
      %v1393 = vpop.f32.mrb[0].mxu0
      %1394 = vmatprep.mubr.bf16.mxu0 0
      %1395 = vmatmul.mubr.bf16.gmra.mrb[0].mxu0 %v962
      %v1396 = vpop.f32.mrb[0].mxu0
      %v1397 = vadd.f32 0.0, %v1396
      %v1398 = vpop.f32.mrb[0].mxu0
      %v1399 = vpop.f32.mrb[0].mxu0
      %v1400 = vadd.f32 0.0, %v1399
      %v1401 = vpop.f32.mrb[0].mxu0
      %1402 = vmatprep.mubr.bf16.mxu0 0
      %1403 = vmatmul.mubr.bf16.gmra.mrb[0].mxu0 %v965
      %v1404 = vpop.f32.mrb[0].mxu0
      %v1405 = vadd.f32 0.0, %v1404
      %v1406 = vpop.f32.mrb[0].mxu0
      %v1407 = vpop.f32.mrb[0].mxu0
      %v1408 = vadd.f32 0.0, %v1407
      %v1409 = vpop.f32.mrb[0].mxu0
      %1410 = vmatprep.mubr.bf16.mxu0 0
      %1411 = vmatmul.mubr.bf16.gmra.mrb[0].mxu0 %v968
      %v1412 = vpop.f32.mrb[0].mxu0
      %v1413 = vadd.f32 0.0, %v1412
      %v1414 = vpop.f32.mrb[0].mxu0
      %v1415 = vpop.f32.mrb[0].mxu0
      %v1416 = vadd.f32 0.0, %v1415
      %v1417 = vpop.f32.mrb[0].mxu0
      %1418 = vmatprep.mubr.bf16.mxu0 0
      %1419 = vmatmul.mubr.bf16.gmra.mrb[0].mxu0 %v971
      %v1420 = vpop.f32.mrb[0].mxu0
      %v1421 = vadd.f32 0.0, %v1420
      %v1422 = vpop.f32.mrb[0].mxu0
      %v1423 = vpop.f32.mrb[0].mxu0
      %v1424 = vadd.f32 0.0, %v1423
      %v1425 = vpop.f32.mrb[0].mxu0
      %1426 = vmatprep.mubr.bf16.mxu0 0
      %1427 = vmatmul.mubr.bf16.gmra.mrb[0].mxu0 %v974
      %v1428 = vpop.f32.mrb[0].mxu0
      %v1429 = vadd.f32 0.0, %v1428
      %v1430 = vpop.f32.mrb[0].mxu0
      %v1431 = vpop.f32.mrb[0].mxu0
      %v1432 = vadd.f32 0.0, %v1431
      %v1433 = vpop.f32.mrb[0].mxu0
      %1434 = vmatprep.mubr.bf16.mxu0 0
      %1435 = vmatmul.mubr.bf16.gmra.mrb[0].mxu0 %v977
      %v1436 = vpop.f32.mrb[0].mxu0
      %v1437 = vadd.f32 0.0, %v1436
      %v1438 = vpop.f32.mrb[0].mxu0
      %v1439 = vpop.f32.mrb[0].mxu0
      %v1440 = vadd.f32 0.0, %v1439
      %v1441 = vpop.f32.mrb[0].mxu0
      %1442 = vmatprep.mubr.bf16.mxu0 0
      %1443 = vmatmul.mubr.bf16.gmra.mrb[0].mxu0 %v980
      %v1444 = vpop.f32.mrb[0].mxu0
      %v1445 = vadd.f32 0.0, %v1444
      %v1446 = vpop.f32.mrb[0].mxu0
      %v1447 = vpop.f32.mrb[0].mxu0
      %v1448 = vadd.f32 0.0, %v1447
      %v1449 = vpop.f32.mrb[0].mxu0
      %1450 = vmatprep.mubr.bf16.mxu0 0
      %1451 = vmatmul.mubr.bf16.gmra.mrb[0].mxu0 %v983
      %v1452 = vpop.f32.mrb[0].mxu0
      %v1453 = vadd.f32 0.0, %v1452
      %v1454 = vpop.f32.mrb[0].mxu0
      %v1455 = vpop.f32.mrb[0].mxu0
      %v1456 = vadd.f32 0.0, %v1455
      %v1457 = vpop.f32.mrb[0].mxu0
      %1458 = vmatprep.mubr.bf16.mxu0 0
      %1459 = vmatmul.mubr.bf16.gmra.mrb[0].mxu0 %v986
      %v1460 = vpop.f32.mrb[0].mxu0
      %v1461 = vadd.f32 0.0, %v1460
      %v1462 = vpop.f32.mrb[0].mxu0
      %v1463 = vpop.f32.mrb[0].mxu0
      %v1464 = vadd.f32 0.0, %v1463
      %v1465 = vpop.f32.mrb[0].mxu0
      %1466 = vmatprep.mubr.bf16.mxu0 0
      %1467 = vmatmul.mubr.bf16.gmra.mrb[0].mxu0 %v989
      %v1468 = vpop.f32.mrb[0].mxu0
      %v1469 = vadd.f32 0.0, %v1468
      %v1470 = vpop.f32.mrb[0].mxu0
      %v1471 = vpop.f32.mrb[0].mxu0
      %v1472 = vadd.f32 0.0, %v1471
      %v1473 = vpop.f32.mrb[0].mxu0
      %1474 = vmatprep.mubr.bf16.mxu0 0
      %1475 = vmatmul.mubr.bf16.gmra.mrb[0].mxu0 %v992
      %v1476 = vpop.f32.mrb[0].mxu0
      %v1477 = vadd.f32 0.0, %v1476
      %v1478 = vpop.f32.mrb[0].mxu0
      %v1479 = vpop.f32.mrb[0].mxu0
      %v1480 = vadd.f32 0.0, %v1479
      %v1481 = vpop.f32.mrb[0].mxu0
      %1482 = vmatprep.mubr.bf16.mxu0 0
      %1483 = vmatmul.mubr.bf16.gmra.mrb[0].mxu0 %v995
      %v1484 = vpop.f32.mrb[0].mxu0
      %v1485 = vadd.f32 0.0, %v1484
      %v1486 = vpop.f32.mrb[0].mxu0
      %v1487 = vpop.f32.mrb[0].mxu0
      %v1488 = vadd.f32 0.0, %v1487
      %v1489 = vpop.f32.mrb[0].mxu0
      %1490 = vmatprep.mubr.bf16.mxu0 0
      %1491 = vmatmul.mubr.bf16.gmra.mrb[0].mxu0 %v998
      %v1492 = vpop.f32.mrb[0].mxu0
      %v1493 = vadd.f32 0.0, %v1492
      %v1494 = vpop.f32.mrb[0].mxu0
      %v1495 = vpop.f32.mrb[0].mxu0
      %v1496 = vadd.f32 0.0, %v1495
      %v1497 = vpop.f32.mrb[0].mxu0
      %1498 = vmatprep.mubr.bf16.mxu0 0
      %1499 = vmatmul.mubr.bf16.gmra.mrb[0].mxu0 %v1001
      %v1500 = vpop.f32.mrb[0].mxu0
      %v1501 = vadd.f32 0.0, %v1500
      %v1502 = vpop.f32.mrb[0].mxu0
      %v1503 = vpop.f32.mrb[0].mxu0
      %v1504 = vadd.f32 0.0, %v1503
      %v1505 = vpop.f32.mrb[0].mxu0
      %1506 = vmatprep.mubr.bf16.mxu0 0
      %1507 = vmatmul.mubr.bf16.gmra.mrb[0].mxu0 %v1004
      %v1508 = vpop.f32.mrb[0].mxu0
      %v1509 = vadd.f32 0.0, %v1508
      %v1510 = vpop.f32.mrb[0].mxu0
      %v1511 = vpop.f32.mrb[0].mxu0
      %v1512 = vadd.f32 0.0, %v1511
      %v1513 = vpop.f32.mrb[0].mxu0
      %1514 = vmatprep.mubr.bf16.mxu0 0
      %1515 = vmatmul.mubr.bf16.gmra.mrb[0].mxu0 %v1007
      %v1516 = vpop.f32.mrb[0].mxu0
      %v1517 = vadd.f32 0.0, %v1516
      %v1518 = vpop.f32.mrb[0].mxu0
      %v1519 = vpop.f32.mrb[0].mxu0
      %v1520 = vadd.f32 0.0, %v1519
      %v1521 = vpop.f32.mrb[0].mxu0
      %1522 = vmatprep.mubr.bf16.mxu0 0
      %1523 = vmatmul.mubr.bf16.gmra.mrb[0].mxu0 %v1010
      %v1524 = vpop.f32.mrb[0].mxu0
      %v1525 = vadd.f32 0.0, %v1524
      %v1526 = vpop.f32.mrb[0].mxu0
      %v1527 = vpop.f32.mrb[0].mxu0
      %v1528 = vadd.f32 0.0, %v1527
      %v1529 = vpop.f32.mrb[0].mxu0
      %1530 = vmatprep.mubr.bf16.mxu0 0
      %1531 = vmatmul.mubr.bf16.gmra.mrb[0].mxu0 %v1013
      %v1532 = vpop.f32.mrb[0].mxu0
      %v1533 = vadd.f32 0.0, %v1532
      %v1534 = vpop.f32.mrb[0].mxu0
      %v1535 = vpop.f32.mrb[0].mxu0
      %v1536 = vadd.f32 0.0, %v1535
      %v1537 = vpop.f32.mrb[0].mxu0
      %1538 = vmatprep.mubr.bf16.mxu0 0
      %1539 = vmatmul.mubr.bf16.gmra.mrb[0].mxu0 %v1016
      %v1540 = vpop.f32.mrb[0].mxu0
      %v1541 = vadd.f32 0.0, %v1540
      %v1542 = vpop.f32.mrb[0].mxu0
      %v1543 = vpop.f32.mrb[0].mxu0
      %v1544 = vadd.f32 0.0, %v1543
      %v1545 = vpop.f32.mrb[0].mxu0
      %1546 = vmatprep.mubr.bf16.mxu0 0
      %1547 = vmatmul.mubr.bf16.gmra.mrb[0].mxu0 %v1019
      %v1548 = vpop.f32.mrb[0].mxu0
      %v1549 = vadd.f32 0.0, %v1548
      %v1550 = vpop.f32.mrb[0].mxu0
      %v1551 = vpop.f32.mrb[0].mxu0
      %v1552 = vadd.f32 0.0, %v1551
      %v1553 = vpop.f32.mrb[0].mxu0
      %1554 = vmatprep.mubr.bf16.mxu0 0
      %1555 = vmatmul.mubr.bf16.gmra.mrb[0].mxu0 %v1022
      %v1556 = vpop.f32.mrb[0].mxu0
      %v1557 = vadd.f32 0.0, %v1556
      %v1558 = vpop.f32.mrb[0].mxu0
      %v1559 = vpop.f32.mrb[0].mxu0
      %v1560 = vadd.f32 0.0, %v1559
      %v1561 = vpop.f32.mrb[0].mxu0
      %1562 = vmatprep.mubr.bf16.mxu0 0
      %1563 = vmatmul.mubr.bf16.gmra.mrb[0].mxu0 %v1025
      %v1564 = vpop.f32.mrb[0].mxu0
      %v1565 = vadd.f32 0.0, %v1564
      %v1566 = vpop.f32.mrb[0].mxu0
      %v1567 = vpop.f32.mrb[0].mxu0
      %v1568 = vadd.f32 0.0, %v1567
      %v1569 = vpop.f32.mrb[0].mxu0
      %1570 = vmatprep.mubr.bf16.mxu0 0
      %1571 = vmatmul.mubr.bf16.gmra.mrb[0].mxu0 %v1028
      %v1572 = vpop.f32.mrb[0].mxu0
      %v1573 = vadd.f32 0.0, %v1572
      %v1574 = vpop.f32.mrb[0].mxu0
      %v1575 = vpop.f32.mrb[0].mxu0
      %v1576 = vadd.f32 0.0, %v1575
      %v1577 = vpop.f32.mrb[0].mxu0
      %1578 = vdwg.mxu0
      %v1707 = vunpack.c.l.b16 %v251
      %v1708 = vunpack.c.l.b16 %v252
      %v1709 = vunpack.c.l.b16 %v253
      %v1710 = vunpack.c.l.b16 %v254
      %v1711 = vunpack.c.l.b16 %v255
      %v1712 = vunpack.c.l.b16 %v256
      %v1713 = vunpack.c.l.b16 %v257
      %v1714 = vunpack.c.l.b16 %v258
      %v1715 = vunpack.c.l.b16 %v259
      %v1716 = vunpack.c.l.b16 %v260
      %v1717 = vunpack.c.l.b16 %v261
      %v1718 = vunpack.c.l.b16 %v262
      %v1719 = vunpack.c.l.b16 %v263
      %v1720 = vunpack.c.l.b16 %v264
      %v1721 = vunpack.c.l.b16 %v265
      %v1722 = vunpack.c.l.b16 %v266
      %v1723 = vunpack.c.l.b16 %v267
      %v1724 = vunpack.c.l.b16 %v268
      %v1725 = vunpack.c.l.b16 %v269
      %v1726 = vunpack.c.l.b16 %v270
      %v1727 = vunpack.c.l.b16 %v271
      %v1728 = vunpack.c.l.b16 %v272
      %v1729 = vunpack.c.l.b16 %v273
      %v1730 = vunpack.c.l.b16 %v274
      %v1731 = vunpack.c.l.b16 %v275
      %v1732 = vunpack.c.l.b16 %v276
      %v1733 = vunpack.c.l.b16 %v277
      %v1734 = vunpack.c.l.b16 %v278
      %v1735 = vunpack.c.l.b16 %v279
      %v1736 = vunpack.c.l.b16 %v280
      %v1737 = vunpack.c.l.b16 %v281
      %v1738 = vunpack.c.l.b16 %v282
      %v1739 = vunpack.c.l.b16 %v283
      %v1740 = vunpack.c.l.b16 %v284
      %v1741 = vunpack.c.l.b16 %v285
      %v1742 = vunpack.c.l.b16 %v286
      %v1743 = vunpack.c.l.b16 %v287
      %v1744 = vunpack.c.l.b16 %v288
      %v1745 = vunpack.c.l.b16 %v289
      %v1746 = vunpack.c.l.b16 %v290
      %v1747 = vunpack.c.l.b16 %v291
      %v1748 = vunpack.c.l.b16 %v292
      %v1749 = vunpack.c.l.b16 %v293
      %v1750 = vunpack.c.l.b16 %v294
      %v1751 = vunpack.c.l.b16 %v295
      %v1752 = vunpack.c.l.b16 %v296
      %v1753 = vunpack.c.l.b16 %v297
      %v1754 = vunpack.c.l.b16 %v298
      %v1755 = vunpack.c.l.b16 %v299
      %v1756 = vunpack.c.l.b16 %v300
      %v1757 = vunpack.c.l.b16 %v301
      %v1758 = vunpack.c.l.b16 %v302
      %v1759 = vunpack.c.l.b16 %v303
      %v1760 = vunpack.c.l.b16 %v304
      %v1761 = vunpack.c.l.b16 %v305
      %v1762 = vunpack.c.l.b16 %v306
      %v1763 = vunpack.c.l.b16 %v307
      %v1764 = vunpack.c.l.b16 %v308
      %v1765 = vunpack.c.l.b16 %v309
      %v1766 = vunpack.c.l.b16 %v310
      %v1767 = vunpack.c.l.b16 %v311
      %v1768 = vunpack.c.l.b16 %v312
      %v1769 = vunpack.c.l.b16 %v313
      %v1770 = vunpack.c.l.b16 %v314
      %v1771 = vunpack.c.l.b16 %v315
      %v1772 = vunpack.c.l.b16 %v316
      %v1773 = vunpack.c.l.b16 %v317
      %v1774 = vunpack.c.l.b16 %v318
      %v1775 = vunpack.c.l.b16 %v319
      %v1776 = vunpack.c.l.b16 %v320
      %v1777 = vunpack.c.l.b16 %v321
      %v1778 = vunpack.c.l.b16 %v322
      %v1779 = vunpack.c.l.b16 %v323
      %v1780 = vunpack.c.l.b16 %v324
      %v1781 = vunpack.c.l.b16 %v325
      %v1782 = vunpack.c.l.b16 %v326
      %v1783 = vunpack.c.l.b16 %v327
      %v1784 = vunpack.c.l.b16 %v328
      %v1785 = vunpack.c.l.b16 %v329
      %v1786 = vunpack.c.l.b16 %v330
      %v1787 = vunpack.c.l.b16 %v331
      %v1788 = vunpack.c.l.b16 %v332
      %v1789 = vunpack.c.l.b16 %v333
      %v1790 = vunpack.c.l.b16 %v334
      %v1791 = vunpack.c.l.b16 %v335
      %v1792 = vunpack.c.l.b16 %v336
      %v1793 = vunpack.c.l.b16 %v337
      %v1794 = vunpack.c.l.b16 %v338
      %v1795 = vunpack.c.l.b16 %v339
      %v1796 = vunpack.c.l.b16 %v340
      %v1797 = vunpack.c.l.b16 %v341
      %v1798 = vunpack.c.l.b16 %v342
      %v1799 = vunpack.c.l.b16 %v343
      %v1800 = vunpack.c.l.b16 %v344
      %v1801 = vunpack.c.l.b16 %v345
      %v1802 = vunpack.c.l.b16 %v346
      %v1803 = vunpack.c.l.b16 %v347
      %v1804 = vunpack.c.l.b16 %v348
      %v1805 = vunpack.c.l.b16 %v349
      %v1806 = vunpack.c.l.b16 %v350
      %v1807 = vunpack.c.l.b16 %v351
      %v1808 = vunpack.c.l.b16 %v352
      %v1809 = vunpack.c.l.b16 %v353
      %v1810 = vunpack.c.l.b16 %v354
      %v1811 = vunpack.c.l.b16 %v355
      %v1812 = vunpack.c.l.b16 %v356
      %v1813 = vunpack.c.l.b16 %v357
      %v1814 = vunpack.c.l.b16 %v358
      %v1815 = vunpack.c.l.b16 %v359
      %v1816 = vunpack.c.l.b16 %v360
      %v1817 = vunpack.c.l.b16 %v361
      %v1818 = vunpack.c.l.b16 %v362
      %v1819 = vunpack.c.l.b16 %v363
      %v1820 = vunpack.c.l.b16 %v364
      %v1821 = vunpack.c.l.b16 %v365
      %v1822 = vunpack.c.l.b16 %v366
      %v1823 = vunpack.c.l.b16 %v367
      %v1824 = vunpack.c.l.b16 %v368
      %v1825 = vunpack.c.l.b16 %v369
      %v1826 = vunpack.c.l.b16 %v370
      %v1827 = vunpack.c.l.b16 %v371
      %v1828 = vunpack.c.l.b16 %v372
      %v1829 = vunpack.c.l.b16 %v373
      %v1830 = vunpack.c.l.b16 %v374
      %v1831 = vunpack.c.l.b16 %v375
      %v1832 = vunpack.c.l.b16 %v376
      %v1833 = vunpack.c.l.b16 %v377
      %v1834 = vunpack.c.l.b16 %v378
      %v1835 = vpack.c.b16 %v1708, %v1707
      %v1836 = vpack.c.b16 %v1710, %v1709
      %v1837 = vpack.c.b16 %v1712, %v1711
      %v1838 = vpack.c.b16 %v1714, %v1713
      %v1839 = vpack.c.b16 %v1716, %v1715
      %v1840 = vpack.c.b16 %v1718, %v1717
      %v1841 = vpack.c.b16 %v1720, %v1719
      %v1842 = vpack.c.b16 %v1722, %v1721
      %v1843 = vpack.c.b16 %v1724, %v1723
      %v1844 = vpack.c.b16 %v1726, %v1725
      %v1845 = vpack.c.b16 %v1728, %v1727
      %v1846 = vpack.c.b16 %v1730, %v1729
      %v1847 = vpack.c.b16 %v1732, %v1731
      %v1848 = vpack.c.b16 %v1734, %v1733
      %v1849 = vpack.c.b16 %v1736, %v1735
      %v1850 = vpack.c.b16 %v1738, %v1737
      %v1851 = vpack.c.b16 %v1740, %v1739
      %v1852 = vpack.c.b16 %v1742, %v1741
      %v1853 = vpack.c.b16 %v1744, %v1743
      %v1854 = vpack.c.b16 %v1746, %v1745
      %v1855 = vpack.c.b16 %v1748, %v1747
      %v1856 = vpack.c.b16 %v1750, %v1749
      %v1857 = vpack.c.b16 %v1752, %v1751
      %v1858 = vpack.c.b16 %v1754, %v1753
      %v1859 = vpack.c.b16 %v1756, %v1755
      %v1860 = vpack.c.b16 %v1758, %v1757
      %v1861 = vpack.c.b16 %v1760, %v1759
      %v1862 = vpack.c.b16 %v1762, %v1761
      %v1863 = vpack.c.b16 %v1764, %v1763
      %v1864 = vpack.c.b16 %v1766, %v1765
      %v1865 = vpack.c.b16 %v1768, %v1767
      %v1866 = vpack.c.b16 %v1770, %v1769
      %v1867 = vpack.c.b16 %v1772, %v1771
      %v1868 = vpack.c.b16 %v1774, %v1773
      %v1869 = vpack.c.b16 %v1776, %v1775
      %v1870 = vpack.c.b16 %v1778, %v1777
      %v1871 = vpack.c.b16 %v1780, %v1779
      %v1872 = vpack.c.b16 %v1782, %v1781
      %v1873 = vpack.c.b16 %v1784, %v1783
      %v1874 = vpack.c.b16 %v1786, %v1785
      %v1875 = vpack.c.b16 %v1788, %v1787
      %v1876 = vpack.c.b16 %v1790, %v1789
      %v1877 = vpack.c.b16 %v1792, %v1791
      %v1878 = vpack.c.b16 %v1794, %v1793
      %v1879 = vpack.c.b16 %v1796, %v1795
      %v1880 = vpack.c.b16 %v1798, %v1797
      %v1881 = vpack.c.b16 %v1800, %v1799
      %v1882 = vpack.c.b16 %v1802, %v1801
      %v1883 = vpack.c.b16 %v1804, %v1803
      %v1884 = vpack.c.b16 %v1806, %v1805
      %v1885 = vpack.c.b16 %v1808, %v1807
      %v1886 = vpack.c.b16 %v1810, %v1809
      %v1887 = vpack.c.b16 %v1812, %v1811
      %v1888 = vpack.c.b16 %v1814, %v1813
      %v1889 = vpack.c.b16 %v1816, %v1815
      %v1890 = vpack.c.b16 %v1818, %v1817
      %v1891 = vpack.c.b16 %v1820, %v1819
      %v1892 = vpack.c.b16 %v1822, %v1821
      %v1893 = vpack.c.b16 %v1824, %v1823
      %v1894 = vpack.c.b16 %v1826, %v1825
      %v1895 = vpack.c.b16 %v1828, %v1827
      %v1896 = vpack.c.b16 %v1830, %v1829
      %v1897 = vpack.c.b16 %v1832, %v1831
      %v1898 = vpack.c.b16 %v1834, %v1833
      %v1908 = vunpack.c.l.b16 %v379
      %v1909 = vunpack.c.l.b16 %v380
      %v1910 = vunpack.c.l.b16 %v381
      %v1911 = vunpack.c.l.b16 %v382
      %v1912 = vunpack.c.l.b16 %v383
      %v1913 = vunpack.c.l.b16 %v384
      %v1914 = vunpack.c.l.b16 %v385
      %v1915 = vunpack.c.l.b16 %v386
      %v1916 = vunpack.c.l.b16 %v387
      %v1917 = vpack.c.b16 %v1909, %v1908
      %v1918 = vpack.c.b16 %v1911, %v1910
      %v1919 = vpack.c.b16 %v1913, %v1912
      %v1920 = vpack.c.b16 %v1915, %v1914
      %v1921 = vpack.c.b16 %v1916, %v1916
      %vm1926 = vcmask 588800
      %v1928 = vsel %vm1926, %v1835, 0
      %v1931 = vsel %vm1926, %v1836, 0
      %v1934 = vsel %vm1926, %v1837, 0
      %v1937 = vsel %vm1926, %v1838, 0
      %v1940 = vsel %vm1926, %v1839, 0
      %v1943 = vsel %vm1926, %v1840, 0
      %v1946 = vsel %vm1926, %v1841, 0
      %v1949 = vsel %vm1926, %v1842, 0
      %v1952 = vsel %vm1926, %v1843, 0
      %v1955 = vsel %vm1926, %v1844, 0
      %v1958 = vsel %vm1926, %v1845, 0
      %v1961 = vsel %vm1926, %v1846, 0
      %v1964 = vsel %vm1926, %v1847, 0
      %v1967 = vsel %vm1926, %v1848, 0
      %v1970 = vsel %vm1926, %v1849, 0
      %v1973 = vsel %vm1926, %v1850, 0
      %v1976 = vsel %vm1926, %v1851, 0
      %v1979 = vsel %vm1926, %v1852, 0
      %v1982 = vsel %vm1926, %v1853, 0
      %v1985 = vsel %vm1926, %v1854, 0
      %v1988 = vsel %vm1926, %v1855, 0
      %v1991 = vsel %vm1926, %v1856, 0
      %v1994 = vsel %vm1926, %v1857, 0
      %v1997 = vsel %vm1926, %v1858, 0
      %v2000 = vsel %vm1926, %v1859, 0
      %v2003 = vsel %vm1926, %v1860, 0
      %v2006 = vsel %vm1926, %v1861, 0
      %v2009 = vsel %vm1926, %v1862, 0
      %v2012 = vsel %vm1926, %v1863, 0
      %v2015 = vsel %vm1926, %v1864, 0
      %v2018 = vsel %vm1926, %v1865, 0
      %v2021 = vsel %vm1926, %v1866, 0
      %v2024 = vsel %vm1926, %v1867, 0
      %v2027 = vsel %vm1926, %v1868, 0
      %v2030 = vsel %vm1926, %v1869, 0
      %v2033 = vsel %vm1926, %v1870, 0
      %v2036 = vsel %vm1926, %v1871, 0
      %v2039 = vsel %vm1926, %v1872, 0
      %v2042 = vsel %vm1926, %v1873, 0
      %v2045 = vsel %vm1926, %v1874, 0
      %v2048 = vsel %vm1926, %v1875, 0
      %v2051 = vsel %vm1926, %v1876, 0
      %v2054 = vsel %vm1926, %v1877, 0
      %v2057 = vsel %vm1926, %v1878, 0
      %v2060 = vsel %vm1926, %v1879, 0
      %v2063 = vsel %vm1926, %v1880, 0
      %v2066 = vsel %vm1926, %v1881, 0
      %v2069 = vsel %vm1926, %v1882, 0
      %v2072 = vsel %vm1926, %v1883, 0
      %v2075 = vsel %vm1926, %v1884, 0
      %v2078 = vsel %vm1926, %v1885, 0
      %v2081 = vsel %vm1926, %v1886, 0
      %v2084 = vsel %vm1926, %v1887, 0
      %v2087 = vsel %vm1926, %v1888, 0
      %v2090 = vsel %vm1926, %v1889, 0
      %v2093 = vsel %vm1926, %v1890, 0
      %v2096 = vsel %vm1926, %v1891, 0
      %v2099 = vsel %vm1926, %v1892, 0
      %v2102 = vsel %vm1926, %v1893, 0
      %v2105 = vsel %vm1926, %v1894, 0
      %v2108 = vsel %vm1926, %v1895, 0
      %v2111 = vsel %vm1926, %v1896, 0
      %v2114 = vsel %vm1926, %v1897, 0
      %v2117 = vsel %vm1926, %v1898, 0
      %v2120 = vsel %vm1030, %v1921, 0
      %2122 = vmatprep.subr.bf16.mxu0 0
      %2123 = vmatpush1.bf16.msra.mxu0 %v1917
      %2124 = vmatprep.subr.bf16.mxu0 0
      %2125 = vmatpush1.bf16.msra.mxu0 %v1918
      %2126 = vmatprep.subr.bf16.mxu0 0
      %2127 = vmatpush1.bf16.msra.mxu0 %v1919
      %2128 = vmatprep.subr.bf16.mxu0 0
      %2129 = vmatpush1.bf16.msra.mxu0 %v1920
      %2130 = vmatprep.subr.bf16.mxu0 0
      %2131 = vmatpush1.bf16.msra.mxu0 %v2120
      %2132 = vmatprep.subr.bf16.mxu0 0
      %2133 = vmatpush1.bf16.msra.mxu0 0
      %2134 = vmatprep.subr.bf16.mxu0 0
      %2135 = vmatpush1.bf16.msra.mxu0 0
      %2136 = vmatprep.subr.bf16.mxu0 0
      %2137 = vmatpush1.bf16.msra.mxu0 0
      %2138 = vmatprep.subr.bf16.mxu0 0
      %2139 = vmatpush1.bf16.msra.mxu0 0
      %2140 = vmatprep.subr.bf16.mxu0 0
      %2141 = vmatpush1.bf16.msra.mxu0 0
      %2142 = vmatprep.subr.bf16.mxu0 0
      %2143 = vmatpush1.bf16.msra.mxu0 0
      %2144 = vmatprep.subr.bf16.mxu0 0
      %2145 = vmatpush1.bf16.msra.mxu0 0
      %2146 = vmatprep.subr.bf16.mxu0 0
      %2147 = vmatpush1.bf16.msra.mxu0 0
      %2148 = vmatprep.subr.bf16.mxu0 0
      %2149 = vmatpush1.bf16.msra.mxu0 0
      %2150 = vmatprep.subr.bf16.mxu0 0
      %2151 = vmatpush1.bf16.msra.mxu0 0
      %2152 = vmatprep.subr.bf16.mxu0 0
      %2153 = vmatpush1.bf16.msra.mxu0 0
      %2154 = vmatprep.mubr.bf16.mxu0 0
      %2155 = vmatmul.mubr.bf16.gmra.mrb[0].mxu0 %v1928
      %v2156 = vpop.f32.mrb[0].mxu0
      %v2157 = vadd.f32 %v1069, %v2156
      %v2158 = vpop.f32.mrb[0].mxu0
      %v2159 = vpop.f32.mrb[0].mxu0
      %v2160 = vadd.f32 %v1072, %v2159
      %v2161 = vpop.f32.mrb[0].mxu0
      %2162 = vmatprep.mubr.bf16.mxu0 0
      %2163 = vmatmul.mubr.bf16.gmra.mrb[0].mxu0 %v1931
      %v2164 = vpop.f32.mrb[0].mxu0
      %v2165 = vadd.f32 %v1077, %v2164
      %v2166 = vpop.f32.mrb[0].mxu0
      %v2167 = vpop.f32.mrb[0].mxu0
      %v2168 = vadd.f32 %v1080, %v2167
      %v2169 = vpop.f32.mrb[0].mxu0
      %2170 = vmatprep.mubr.bf16.mxu0 0
      %2171 = vmatmul.mubr.bf16.gmra.mrb[0].mxu0 %v1934
      %v2172 = vpop.f32.mrb[0].mxu0
      %v2173 = vadd.f32 %v1085, %v2172
      %v2174 = vpop.f32.mrb[0].mxu0
      %v2175 = vpop.f32.mrb[0].mxu0
      %v2176 = vadd.f32 %v1088, %v2175
      %v2177 = vpop.f32.mrb[0].mxu0
      %2178 = vmatprep.mubr.bf16.mxu0 0
      %2179 = vmatmul.mubr.bf16.gmra.mrb[0].mxu0 %v1937
      %v2180 = vpop.f32.mrb[0].mxu0
      %v2181 = vadd.f32 %v1093, %v2180
      %v2182 = vpop.f32.mrb[0].mxu0
      %v2183 = vpop.f32.mrb[0].mxu0
      %v2184 = vadd.f32 %v1096, %v2183
      %v2185 = vpop.f32.mrb[0].mxu0
      %2186 = vmatprep.mubr.bf16.mxu0 0
      %2187 = vmatmul.mubr.bf16.gmra.mrb[0].mxu0 %v1940
      %v2188 = vpop.f32.mrb[0].mxu0
      %v2189 = vadd.f32 %v1101, %v2188
      %v2190 = vpop.f32.mrb[0].mxu0
      %v2191 = vpop.f32.mrb[0].mxu0
      %v2192 = vadd.f32 %v1104, %v2191
      %v2193 = vpop.f32.mrb[0].mxu0
      %2194 = vmatprep.mubr.bf16.mxu0 0
      %2195 = vmatmul.mubr.bf16.gmra.mrb[0].mxu0 %v1943
      %v2196 = vpop.f32.mrb[0].mxu0
      %v2197 = vadd.f32 %v1109, %v2196
      %v2198 = vpop.f32.mrb[0].mxu0
      %v2199 = vpop.f32.mrb[0].mxu0
      %v2200 = vadd.f32 %v1112, %v2199
      %v2201 = vpop.f32.mrb[0].mxu0
      %2202 = vmatprep.mubr.bf16.mxu0 0
      %2203 = vmatmul.mubr.bf16.gmra.mrb[0].mxu0 %v1946
      %v2204 = vpop.f32.mrb[0].mxu0
      %v2205 = vadd.f32 %v1117, %v2204
      %v2206 = vpop.f32.mrb[0].mxu0
      %v2207 = vpop.f32.mrb[0].mxu0
      %v2208 = vadd.f32 %v1120, %v2207
      %v2209 = vpop.f32.mrb[0].mxu0
      %2210 = vmatprep.mubr.bf16.mxu0 0
      %2211 = vmatmul.mubr.bf16.gmra.mrb[0].mxu0 %v1949
      %v2212 = vpop.f32.mrb[0].mxu0
      %v2213 = vadd.f32 %v1125, %v2212
      %v2214 = vpop.f32.mrb[0].mxu0
      %v2215 = vpop.f32.mrb[0].mxu0
      %v2216 = vadd.f32 %v1128, %v2215
      %v2217 = vpop.f32.mrb[0].mxu0
      %2218 = vmatprep.mubr.bf16.mxu0 0
      %2219 = vmatmul.mubr.bf16.gmra.mrb[0].mxu0 %v1952
      %v2220 = vpop.f32.mrb[0].mxu0
      %v2221 = vadd.f32 %v1133, %v2220
      %v2222 = vpop.f32.mrb[0].mxu0
      %v2223 = vpop.f32.mrb[0].mxu0
      %v2224 = vadd.f32 %v1136, %v2223
      %v2225 = vpop.f32.mrb[0].mxu0
      %2226 = vmatprep.mubr.bf16.mxu0 0
      %2227 = vmatmul.mubr.bf16.gmra.mrb[0].mxu0 %v1955
      %v2228 = vpop.f32.mrb[0].mxu0
      %v2229 = vadd.f32 %v1141, %v2228
      %v2230 = vpop.f32.mrb[0].mxu0
      %v2231 = vpop.f32.mrb[0].mxu0
      %v2232 = vadd.f32 %v1144, %v2231
      %v2233 = vpop.f32.mrb[0].mxu0
      %2234 = vmatprep.mubr.bf16.mxu0 0
      %2235 = vmatmul.mubr.bf16.gmra.mrb[0].mxu0 %v1958
      %v2236 = vpop.f32.mrb[0].mxu0
      %v2237 = vadd.f32 %v1149, %v2236
      %v2238 = vpop.f32.mrb[0].mxu0
      %v2239 = vpop.f32.mrb[0].mxu0
      %v2240 = vadd.f32 %v1152, %v2239
      %v2241 = vpop.f32.mrb[0].mxu0
      %2242 = vmatprep.mubr.bf16.mxu0 0
      %2243 = vmatmul.mubr.bf16.gmra.mrb[0].mxu0 %v1961
      %v2244 = vpop.f32.mrb[0].mxu0
      %v2245 = vadd.f32 %v1157, %v2244
      %v2246 = vpop.f32.mrb[0].mxu0
      %v2247 = vpop.f32.mrb[0].mxu0
      %v2248 = vadd.f32 %v1160, %v2247
      %v2249 = vpop.f32.mrb[0].mxu0
      %2250 = vmatprep.mubr.bf16.mxu0 0
      %2251 = vmatmul.mubr.bf16.gmra.mrb[0].mxu0 %v1964
      %v2252 = vpop.f32.mrb[0].mxu0
      %v2253 = vadd.f32 %v1165, %v2252
      %v2254 = vpop.f32.mrb[0].mxu0
      %v2255 = vpop.f32.mrb[0].mxu0
      %v2256 = vadd.f32 %v1168, %v2255
      %v2257 = vpop.f32.mrb[0].mxu0
      %2258 = vmatprep.mubr.bf16.mxu0 0
      %2259 = vmatmul.mubr.bf16.gmra.mrb[0].mxu0 %v1967
      %v2260 = vpop.f32.mrb[0].mxu0
      %v2261 = vadd.f32 %v1173, %v2260
      %v2262 = vpop.f32.mrb[0].mxu0
      %v2263 = vpop.f32.mrb[0].mxu0
      %v2264 = vadd.f32 %v1176, %v2263
      %v2265 = vpop.f32.mrb[0].mxu0
      %2266 = vmatprep.mubr.bf16.mxu0 0
      %2267 = vmatmul.mubr.bf16.gmra.mrb[0].mxu0 %v1970
      %v2268 = vpop.f32.mrb[0].mxu0
      %v2269 = vadd.f32 %v1181, %v2268
      %v2270 = vpop.f32.mrb[0].mxu0
      %v2271 = vpop.f32.mrb[0].mxu0
      %v2272 = vadd.f32 %v1184, %v2271
      %v2273 = vpop.f32.mrb[0].mxu0
      %2274 = vmatprep.mubr.bf16.mxu0 0
      %2275 = vmatmul.mubr.bf16.gmra.mrb[0].mxu0 %v1973
      %v2276 = vpop.f32.mrb[0].mxu0
      %v2277 = vadd.f32 %v1189, %v2276
      %v2278 = vpop.f32.mrb[0].mxu0
      %v2279 = vpop.f32.mrb[0].mxu0
      %v2280 = vadd.f32 %v1192, %v2279
      %v2281 = vpop.f32.mrb[0].mxu0
      %2282 = vmatprep.mubr.bf16.mxu0 0
      %2283 = vmatmul.mubr.bf16.gmra.mrb[0].mxu0 %v1976
      %v2284 = vpop.f32.mrb[0].mxu0
      %v2285 = vadd.f32 %v1197, %v2284
      %v2286 = vpop.f32.mrb[0].mxu0
      %v2287 = vpop.f32.mrb[0].mxu0
      %v2288 = vadd.f32 %v1200, %v2287
      %v2289 = vpop.f32.mrb[0].mxu0
      %2290 = vmatprep.mubr.bf16.mxu0 0
      %2291 = vmatmul.mubr.bf16.gmra.mrb[0].mxu0 %v1979
      %v2292 = vpop.f32.mrb[0].mxu0
      %v2293 = vadd.f32 %v1205, %v2292
      %v2294 = vpop.f32.mrb[0].mxu0
      %v2295 = vpop.f32.mrb[0].mxu0
      %v2296 = vadd.f32 %v1208, %v2295
      %v2297 = vpop.f32.mrb[0].mxu0
      %2298 = vmatprep.mubr.bf16.mxu0 0
      %2299 = vmatmul.mubr.bf16.gmra.mrb[0].mxu0 %v1982
      %v2300 = vpop.f32.mrb[0].mxu0
      %v2301 = vadd.f32 %v1213, %v2300
      %v2302 = vpop.f32.mrb[0].mxu0
      %v2303 = vpop.f32.mrb[0].mxu0
      %v2304 = vadd.f32 %v1216, %v2303
      %v2305 = vpop.f32.mrb[0].mxu0
      %2306 = vmatprep.mubr.bf16.mxu0 0
      %2307 = vmatmul.mubr.bf16.gmra.mrb[0].mxu0 %v1985
      %v2308 = vpop.f32.mrb[0].mxu0
      %v2309 = vadd.f32 %v1221, %v2308
      %v2310 = vpop.f32.mrb[0].mxu0
      %v2311 = vpop.f32.mrb[0].mxu0
      %v2312 = vadd.f32 %v1224, %v2311
      %v2313 = vpop.f32.mrb[0].mxu0
      %2314 = vmatprep.mubr.bf16.mxu0 0
      %2315 = vmatmul.mubr.bf16.gmra.mrb[0].mxu0 %v1988
      %v2316 = vpop.f32.mrb[0].mxu0
      %v2317 = vadd.f32 %v1229, %v2316
      %v2318 = vpop.f32.mrb[0].mxu0
      %v2319 = vpop.f32.mrb[0].mxu0
      %v2320 = vadd.f32 %v1232, %v2319
      %v2321 = vpop.f32.mrb[0].mxu0
      %2322 = vmatprep.mubr.bf16.mxu0 0
      %2323 = vmatmul.mubr.bf16.gmra.mrb[0].mxu0 %v1991
      %v2324 = vpop.f32.mrb[0].mxu0
      %v2325 = vadd.f32 %v1237, %v2324
      %v2326 = vpop.f32.mrb[0].mxu0
      %v2327 = vpop.f32.mrb[0].mxu0
      %v2328 = vadd.f32 %v1240, %v2327
      %v2329 = vpop.f32.mrb[0].mxu0
      %2330 = vmatprep.mubr.bf16.mxu0 0
      %2331 = vmatmul.mubr.bf16.gmra.mrb[0].mxu0 %v1994
      %v2332 = vpop.f32.mrb[0].mxu0
      %v2333 = vadd.f32 %v1245, %v2332
      %v2334 = vpop.f32.mrb[0].mxu0
      %v2335 = vpop.f32.mrb[0].mxu0
      %v2336 = vadd.f32 %v1248, %v2335
      %v2337 = vpop.f32.mrb[0].mxu0
      %2338 = vmatprep.mubr.bf16.mxu0 0
      %2339 = vmatmul.mubr.bf16.gmra.mrb[0].mxu0 %v1997
      %v2340 = vpop.f32.mrb[0].mxu0
      %v2341 = vadd.f32 %v1253, %v2340
      %v2342 = vpop.f32.mrb[0].mxu0
      %v2343 = vpop.f32.mrb[0].mxu0
      %v2344 = vadd.f32 %v1256, %v2343
      %v2345 = vpop.f32.mrb[0].mxu0
      %2346 = vmatprep.mubr.bf16.mxu0 0
      %2347 = vmatmul.mubr.bf16.gmra.mrb[0].mxu0 %v2000
      %v2348 = vpop.f32.mrb[0].mxu0
      %v2349 = vadd.f32 %v1261, %v2348
      %v2350 = vpop.f32.mrb[0].mxu0
      %v2351 = vpop.f32.mrb[0].mxu0
      %v2352 = vadd.f32 %v1264, %v2351
      %v2353 = vpop.f32.mrb[0].mxu0
      %2354 = vmatprep.mubr.bf16.mxu0 0
      %2355 = vmatmul.mubr.bf16.gmra.mrb[0].mxu0 %v2003
      %v2356 = vpop.f32.mrb[0].mxu0
      %v2357 = vadd.f32 %v1269, %v2356
      %v2358 = vpop.f32.mrb[0].mxu0
      %v2359 = vpop.f32.mrb[0].mxu0
      %v2360 = vadd.f32 %v1272, %v2359
      %v2361 = vpop.f32.mrb[0].mxu0
      %2362 = vmatprep.mubr.bf16.mxu0 0
      %2363 = vmatmul.mubr.bf16.gmra.mrb[0].mxu0 %v2006
      %v2364 = vpop.f32.mrb[0].mxu0
      %v2365 = vadd.f32 %v1277, %v2364
      %v2366 = vpop.f32.mrb[0].mxu0
      %v2367 = vpop.f32.mrb[0].mxu0
      %v2368 = vadd.f32 %v1280, %v2367
      %v2369 = vpop.f32.mrb[0].mxu0
      %2370 = vmatprep.mubr.bf16.mxu0 0
      %2371 = vmatmul.mubr.bf16.gmra.mrb[0].mxu0 %v2009
      %v2372 = vpop.f32.mrb[0].mxu0
      %v2373 = vadd.f32 %v1285, %v2372
      %v2374 = vpop.f32.mrb[0].mxu0
      %v2375 = vpop.f32.mrb[0].mxu0
      %v2376 = vadd.f32 %v1288, %v2375
      %v2377 = vpop.f32.mrb[0].mxu0
      %2378 = vmatprep.mubr.bf16.mxu0 0
      %2379 = vmatmul.mubr.bf16.gmra.mrb[0].mxu0 %v2012
      %v2380 = vpop.f32.mrb[0].mxu0
      %v2381 = vadd.f32 %v1293, %v2380
      %v2382 = vpop.f32.mrb[0].mxu0
      %v2383 = vpop.f32.mrb[0].mxu0
      %v2384 = vadd.f32 %v1296, %v2383
      %v2385 = vpop.f32.mrb[0].mxu0
      %2386 = vmatprep.mubr.bf16.mxu0 0
      %2387 = vmatmul.mubr.bf16.gmra.mrb[0].mxu0 %v2015
      %v2388 = vpop.f32.mrb[0].mxu0
      %v2389 = vadd.f32 %v1301, %v2388
      %v2390 = vpop.f32.mrb[0].mxu0
      %v2391 = vpop.f32.mrb[0].mxu0
      %v2392 = vadd.f32 %v1304, %v2391
      %v2393 = vpop.f32.mrb[0].mxu0
      %2394 = vmatprep.mubr.bf16.mxu0 0
      %2395 = vmatmul.mubr.bf16.gmra.mrb[0].mxu0 %v2018
      %v2396 = vpop.f32.mrb[0].mxu0
      %v2397 = vadd.f32 %v1309, %v2396
      %v2398 = vpop.f32.mrb[0].mxu0
      %v2399 = vpop.f32.mrb[0].mxu0
      %v2400 = vadd.f32 %v1312, %v2399
      %v2401 = vpop.f32.mrb[0].mxu0
      %2402 = vmatprep.mubr.bf16.mxu0 0
      %2403 = vmatmul.mubr.bf16.gmra.mrb[0].mxu0 %v2021
      %v2404 = vpop.f32.mrb[0].mxu0
      %v2405 = vadd.f32 %v1317, %v2404
      %v2406 = vpop.f32.mrb[0].mxu0
      %v2407 = vpop.f32.mrb[0].mxu0
      %v2408 = vadd.f32 %v1320, %v2407
      %v2409 = vpop.f32.mrb[0].mxu0
      %2410 = vmatprep.mubr.bf16.mxu0 0
      %2411 = vmatmul.mubr.bf16.gmra.mrb[0].mxu0 %v2024
      %v2412 = vpop.f32.mrb[0].mxu0
      %v2413 = vadd.f32 %v1325, %v2412
      %v2414 = vpop.f32.mrb[0].mxu0
      %v2415 = vpop.f32.mrb[0].mxu0
      %v2416 = vadd.f32 %v1328, %v2415
      %v2417 = vpop.f32.mrb[0].mxu0
      %2418 = vmatprep.mubr.bf16.mxu0 0
      %2419 = vmatmul.mubr.bf16.gmra.mrb[0].mxu0 %v2027
      %v2420 = vpop.f32.mrb[0].mxu0
      %v2421 = vadd.f32 %v1333, %v2420
      %v2422 = vpop.f32.mrb[0].mxu0
      %v2423 = vpop.f32.mrb[0].mxu0
      %v2424 = vadd.f32 %v1336, %v2423
      %v2425 = vpop.f32.mrb[0].mxu0
      %2426 = vmatprep.mubr.bf16.mxu0 0
      %2427 = vmatmul.mubr.bf16.gmra.mrb[0].mxu0 %v2030
      %v2428 = vpop.f32.mrb[0].mxu0
      %v2429 = vadd.f32 %v1341, %v2428
      %v2430 = vpop.f32.mrb[0].mxu0
      %v2431 = vpop.f32.mrb[0].mxu0
      %v2432 = vadd.f32 %v1344, %v2431
      %v2433 = vpop.f32.mrb[0].mxu0
      %2434 = vmatprep.mubr.bf16.mxu0 0
      %2435 = vmatmul.mubr.bf16.gmra.mrb[0].mxu0 %v2033
      %v2436 = vpop.f32.mrb[0].mxu0
      %v2437 = vadd.f32 %v1349, %v2436
      %v2438 = vpop.f32.mrb[0].mxu0
      %v2439 = vpop.f32.mrb[0].mxu0
      %v2440 = vadd.f32 %v1352, %v2439
      %v2441 = vpop.f32.mrb[0].mxu0
      %2442 = vmatprep.mubr.bf16.mxu0 0
      %2443 = vmatmul.mubr.bf16.gmra.mrb[0].mxu0 %v2036
      %v2444 = vpop.f32.mrb[0].mxu0
      %v2445 = vadd.f32 %v1357, %v2444
      %v2446 = vpop.f32.mrb[0].mxu0
      %v2447 = vpop.f32.mrb[0].mxu0
      %v2448 = vadd.f32 %v1360, %v2447
      %v2449 = vpop.f32.mrb[0].mxu0
      %2450 = vmatprep.mubr.bf16.mxu0 0
      %2451 = vmatmul.mubr.bf16.gmra.mrb[0].mxu0 %v2039
      %v2452 = vpop.f32.mrb[0].mxu0
      %v2453 = vadd.f32 %v1365, %v2452
      %v2454 = vpop.f32.mrb[0].mxu0
      %v2455 = vpop.f32.mrb[0].mxu0
      %v2456 = vadd.f32 %v1368, %v2455
      %v2457 = vpop.f32.mrb[0].mxu0
      %2458 = vmatprep.mubr.bf16.mxu0 0
      %2459 = vmatmul.mubr.bf16.gmra.mrb[0].mxu0 %v2042
      %v2460 = vpop.f32.mrb[0].mxu0
      %v2461 = vadd.f32 %v1373, %v2460
      %v2462 = vpop.f32.mrb[0].mxu0
      %v2463 = vpop.f32.mrb[0].mxu0
      %v2464 = vadd.f32 %v1376, %v2463
      %v2465 = vpop.f32.mrb[0].mxu0
      %2466 = vmatprep.mubr.bf16.mxu0 0
      %2467 = vmatmul.mubr.bf16.gmra.mrb[0].mxu0 %v2045
      %v2468 = vpop.f32.mrb[0].mxu0
      %v2469 = vadd.f32 %v1381, %v2468
      %v2470 = vpop.f32.mrb[0].mxu0
      %v2471 = vpop.f32.mrb[0].mxu0
      %v2472 = vadd.f32 %v1384, %v2471
      %v2473 = vpop.f32.mrb[0].mxu0
      %2474 = vmatprep.mubr.bf16.mxu0 0
      %2475 = vmatmul.mubr.bf16.gmra.mrb[0].mxu0 %v2048
      %v2476 = vpop.f32.mrb[0].mxu0
      %v2477 = vadd.f32 %v1389, %v2476
      %v2478 = vpop.f32.mrb[0].mxu0
      %v2479 = vpop.f32.mrb[0].mxu0
      %v2480 = vadd.f32 %v1392, %v2479
      %v2481 = vpop.f32.mrb[0].mxu0
      %2482 = vmatprep.mubr.bf16.mxu0 0
      %2483 = vmatmul.mubr.bf16.gmra.mrb[0].mxu0 %v2051
      %v2484 = vpop.f32.mrb[0].mxu0
      %v2485 = vadd.f32 %v1397, %v2484
      %v2486 = vpop.f32.mrb[0].mxu0
      %v2487 = vpop.f32.mrb[0].mxu0
      %v2488 = vadd.f32 %v1400, %v2487
      %v2489 = vpop.f32.mrb[0].mxu0
      %2490 = vmatprep.mubr.bf16.mxu0 0
      %2491 = vmatmul.mubr.bf16.gmra.mrb[0].mxu0 %v2054
      %v2492 = vpop.f32.mrb[0].mxu0
      %v2493 = vadd.f32 %v1405, %v2492
      %v2494 = vpop.f32.mrb[0].mxu0
      %v2495 = vpop.f32.mrb[0].mxu0
      %v2496 = vadd.f32 %v1408, %v2495
      %v2497 = vpop.f32.mrb[0].mxu0
      %2498 = vmatprep.mubr.bf16.mxu0 0
      %2499 = vmatmul.mubr.bf16.gmra.mrb[0].mxu0 %v2057
      %v2500 = vpop.f32.mrb[0].mxu0
      %v2501 = vadd.f32 %v1413, %v2500
      %v2502 = vpop.f32.mrb[0].mxu0
      %v2503 = vpop.f32.mrb[0].mxu0
      %v2504 = vadd.f32 %v1416, %v2503
      %v2505 = vpop.f32.mrb[0].mxu0
      %2506 = vmatprep.mubr.bf16.mxu0 0
      %2507 = vmatmul.mubr.bf16.gmra.mrb[0].mxu0 %v2060
      %v2508 = vpop.f32.mrb[0].mxu0
      %v2509 = vadd.f32 %v1421, %v2508
      %v2510 = vpop.f32.mrb[0].mxu0
      %v2511 = vpop.f32.mrb[0].mxu0
      %v2512 = vadd.f32 %v1424, %v2511
      %v2513 = vpop.f32.mrb[0].mxu0
      %2514 = vmatprep.mubr.bf16.mxu0 0
      %2515 = vmatmul.mubr.bf16.gmra.mrb[0].mxu0 %v2063
      %v2516 = vpop.f32.mrb[0].mxu0
      %v2517 = vadd.f32 %v1429, %v2516
      %v2518 = vpop.f32.mrb[0].mxu0
      %v2519 = vpop.f32.mrb[0].mxu0
      %v2520 = vadd.f32 %v1432, %v2519
      %v2521 = vpop.f32.mrb[0].mxu0
      %2522 = vmatprep.mubr.bf16.mxu0 0
      %2523 = vmatmul.mubr.bf16.gmra.mrb[0].mxu0 %v2066
      %v2524 = vpop.f32.mrb[0].mxu0
      %v2525 = vadd.f32 %v1437, %v2524
      %v2526 = vpop.f32.mrb[0].mxu0
      %v2527 = vpop.f32.mrb[0].mxu0
      %v2528 = vadd.f32 %v1440, %v2527
      %v2529 = vpop.f32.mrb[0].mxu0
      %2530 = vmatprep.mubr.bf16.mxu0 0
      %2531 = vmatmul.mubr.bf16.gmra.mrb[0].mxu0 %v2069
      %v2532 = vpop.f32.mrb[0].mxu0
      %v2533 = vadd.f32 %v1445, %v2532
      %v2534 = vpop.f32.mrb[0].mxu0
      %v2535 = vpop.f32.mrb[0].mxu0
      %v2536 = vadd.f32 %v1448, %v2535
      %v2537 = vpop.f32.mrb[0].mxu0
      %2538 = vmatprep.mubr.bf16.mxu0 0
      %2539 = vmatmul.mubr.bf16.gmra.mrb[0].mxu0 %v2072
      %v2540 = vpop.f32.mrb[0].mxu0
      %v2541 = vadd.f32 %v1453, %v2540
      %v2542 = vpop.f32.mrb[0].mxu0
      %v2543 = vpop.f32.mrb[0].mxu0
      %v2544 = vadd.f32 %v1456, %v2543
      %v2545 = vpop.f32.mrb[0].mxu0
      %2546 = vmatprep.mubr.bf16.mxu0 0
      %2547 = vmatmul.mubr.bf16.gmra.mrb[0].mxu0 %v2075
      %v2548 = vpop.f32.mrb[0].mxu0
      %v2549 = vadd.f32 %v1461, %v2548
      %v2550 = vpop.f32.mrb[0].mxu0
      %v2551 = vpop.f32.mrb[0].mxu0
      %v2552 = vadd.f32 %v1464, %v2551
      %v2553 = vpop.f32.mrb[0].mxu0
      %2554 = vmatprep.mubr.bf16.mxu0 0
      %2555 = vmatmul.mubr.bf16.gmra.mrb[0].mxu0 %v2078
      %v2556 = vpop.f32.mrb[0].mxu0
      %v2557 = vadd.f32 %v1469, %v2556
      %v2558 = vpop.f32.mrb[0].mxu0
      %v2559 = vpop.f32.mrb[0].mxu0
      %v2560 = vadd.f32 %v1472, %v2559
      %v2561 = vpop.f32.mrb[0].mxu0
      %2562 = vmatprep.mubr.bf16.mxu0 0
      %2563 = vmatmul.mubr.bf16.gmra.mrb[0].mxu0 %v2081
      %v2564 = vpop.f32.mrb[0].mxu0
      %v2565 = vadd.f32 %v1477, %v2564
      %v2566 = vpop.f32.mrb[0].mxu0
      %v2567 = vpop.f32.mrb[0].mxu0
      %v2568 = vadd.f32 %v1480, %v2567
      %v2569 = vpop.f32.mrb[0].mxu0
      %2570 = vmatprep.mubr.bf16.mxu0 0
      %2571 = vmatmul.mubr.bf16.gmra.mrb[0].mxu0 %v2084
      %v2572 = vpop.f32.mrb[0].mxu0
      %v2573 = vadd.f32 %v1485, %v2572
      %v2574 = vpop.f32.mrb[0].mxu0
      %v2575 = vpop.f32.mrb[0].mxu0
      %v2576 = vadd.f32 %v1488, %v2575
      %v2577 = vpop.f32.mrb[0].mxu0
      %2578 = vmatprep.mubr.bf16.mxu0 0
      %2579 = vmatmul.mubr.bf16.gmra.mrb[0].mxu0 %v2087
      %v2580 = vpop.f32.mrb[0].mxu0
      %v2581 = vadd.f32 %v1493, %v2580
      %v2582 = vpop.f32.mrb[0].mxu0
      %v2583 = vpop.f32.mrb[0].mxu0
      %v2584 = vadd.f32 %v1496, %v2583
      %v2585 = vpop.f32.mrb[0].mxu0
      %2586 = vmatprep.mubr.bf16.mxu0 0
      %2587 = vmatmul.mubr.bf16.gmra.mrb[0].mxu0 %v2090
      %v2588 = vpop.f32.mrb[0].mxu0
      %v2589 = vadd.f32 %v1501, %v2588
      %v2590 = vpop.f32.mrb[0].mxu0
      %v2591 = vpop.f32.mrb[0].mxu0
      %v2592 = vadd.f32 %v1504, %v2591
      %v2593 = vpop.f32.mrb[0].mxu0
      %2594 = vmatprep.mubr.bf16.mxu0 0
      %2595 = vmatmul.mubr.bf16.gmra.mrb[0].mxu0 %v2093
      %v2596 = vpop.f32.mrb[0].mxu0
      %v2597 = vadd.f32 %v1509, %v2596
      %v2598 = vpop.f32.mrb[0].mxu0
      %v2599 = vpop.f32.mrb[0].mxu0
      %v2600 = vadd.f32 %v1512, %v2599
      %v2601 = vpop.f32.mrb[0].mxu0
      %2602 = vmatprep.mubr.bf16.mxu0 0
      %2603 = vmatmul.mubr.bf16.gmra.mrb[0].mxu0 %v2096
      %v2604 = vpop.f32.mrb[0].mxu0
      %v2605 = vadd.f32 %v1517, %v2604
      %v2606 = vpop.f32.mrb[0].mxu0
      %v2607 = vpop.f32.mrb[0].mxu0
      %v2608 = vadd.f32 %v1520, %v2607
      %v2609 = vpop.f32.mrb[0].mxu0
      %2610 = vmatprep.mubr.bf16.mxu0 0
      %2611 = vmatmul.mubr.bf16.gmra.mrb[0].mxu0 %v2099
      %v2612 = vpop.f32.mrb[0].mxu0
      %v2613 = vadd.f32 %v1525, %v2612
      %v2614 = vpop.f32.mrb[0].mxu0
      %v2615 = vpop.f32.mrb[0].mxu0
      %v2616 = vadd.f32 %v1528, %v2615
      %v2617 = vpop.f32.mrb[0].mxu0
      %2618 = vmatprep.mubr.bf16.mxu0 0
      %2619 = vmatmul.mubr.bf16.gmra.mrb[0].mxu0 %v2102
      %v2620 = vpop.f32.mrb[0].mxu0
      %v2621 = vadd.f32 %v1533, %v2620
      %v2622 = vpop.f32.mrb[0].mxu0
      %v2623 = vpop.f32.mrb[0].mxu0
      %v2624 = vadd.f32 %v1536, %v2623
      %v2625 = vpop.f32.mrb[0].mxu0
      %2626 = vmatprep.mubr.bf16.mxu0 0
      %2627 = vmatmul.mubr.bf16.gmra.mrb[0].mxu0 %v2105
      %v2628 = vpop.f32.mrb[0].mxu0
      %v2629 = vadd.f32 %v1541, %v2628
      %v2630 = vpop.f32.mrb[0].mxu0
      %v2631 = vpop.f32.mrb[0].mxu0
      %v2632 = vadd.f32 %v1544, %v2631
      %v2633 = vpop.f32.mrb[0].mxu0
      %2634 = vmatprep.mubr.bf16.mxu0 0
      %2635 = vmatmul.mubr.bf16.gmra.mrb[0].mxu0 %v2108
      %v2636 = vpop.f32.mrb[0].mxu0
      %v2637 = vadd.f32 %v1549, %v2636
      %v2638 = vpop.f32.mrb[0].mxu0
      %v2639 = vpop.f32.mrb[0].mxu0
      %v2640 = vadd.f32 %v1552, %v2639
      %v2641 = vpop.f32.mrb[0].mxu0
      %2642 = vmatprep.mubr.bf16.mxu0 0
      %2643 = vmatmul.mubr.bf16.gmra.mrb[0].mxu0 %v2111
      %v2644 = vpop.f32.mrb[0].mxu0
      %v2645 = vadd.f32 %v1557, %v2644
      %v2646 = vpop.f32.mrb[0].mxu0
      %v2647 = vpop.f32.mrb[0].mxu0
      %v2648 = vadd.f32 %v1560, %v2647
      %v2649 = vpop.f32.mrb[0].mxu0
      %2650 = vmatprep.mubr.bf16.mxu0 0
      %2651 = vmatmul.mubr.bf16.gmra.mrb[0].mxu0 %v2114
      %v2652 = vpop.f32.mrb[0].mxu0
      %v2653 = vadd.f32 %v1565, %v2652
      %v2654 = vpop.f32.mrb[0].mxu0
      %v2655 = vpop.f32.mrb[0].mxu0
      %v2656 = vadd.f32 %v1568, %v2655
      %v2657 = vpop.f32.mrb[0].mxu0
      %2658 = vmatprep.mubr.bf16.mxu0 0
      %2659 = vmatmul.mubr.bf16.gmra.mrb[0].mxu0 %v2117
      %v2660 = vpop.f32.mrb[0].mxu0
      %v2661 = vadd.f32 %v1573, %v2660
      %v2662 = vpop.f32.mrb[0].mxu0
      %v2663 = vpop.f32.mrb[0].mxu0
      %v2664 = vadd.f32 %v1576, %v2663
      %v2665 = vpop.f32.mrb[0].mxu0
      %2666 = vdwg.mxu0
      %v2667 = vld [vmem:[%s4] sm:$0x1]
      %v2669 = vlaneseq
      %v2670 = vshrl.u32 %v2669, 7
      %v2671 = vsub.s32 0, %v2670
      %v2672 = vrot.slane %v2667, %v2671
      %v2674 = vadd.f32 %v2157, %v2672
      %v2675 = vadd.f32 %v2160, %v2672
      %v2676 = vadd.f32 %v2165, %v2672
      %v2677 = vadd.f32 %v2168, %v2672
      %v2678 = vadd.f32 %v2173, %v2672
      %v2679 = vadd.f32 %v2176, %v2672
      %v2680 = vadd.f32 %v2181, %v2672
      %v2681 = vadd.f32 %v2184, %v2672
      %v2682 = vadd.f32 %v2189, %v2672
      %v2683 = vadd.f32 %v2192, %v2672
      %v2684 = vadd.f32 %v2197, %v2672
      %v2685 = vadd.f32 %v2200, %v2672
      %v2686 = vadd.f32 %v2205, %v2672
      %v2687 = vadd.f32 %v2208, %v2672
      %v2688 = vadd.f32 %v2213, %v2672
      %v2689 = vadd.f32 %v2216, %v2672
      %v2690 = vadd.f32 %v2221, %v2672
      %v2691 = vadd.f32 %v2224, %v2672
      %v2692 = vadd.f32 %v2229, %v2672
      %v2693 = vadd.f32 %v2232, %v2672
      %v2694 = vadd.f32 %v2237, %v2672
      %v2695 = vadd.f32 %v2240, %v2672
      %v2696 = vadd.f32 %v2245, %v2672
      %v2697 = vadd.f32 %v2248, %v2672
      %v2698 = vadd.f32 %v2253, %v2672
      %v2699 = vadd.f32 %v2256, %v2672
      %v2700 = vadd.f32 %v2261, %v2672
      %v2701 = vadd.f32 %v2264, %v2672
      %v2702 = vadd.f32 %v2269, %v2672
      %v2703 = vadd.f32 %v2272, %v2672
      %v2704 = vadd.f32 %v2277, %v2672
      %v2705 = vadd.f32 %v2280, %v2672
      %v2706 = vadd.f32 %v2285, %v2672
      %v2707 = vadd.f32 %v2288, %v2672
      %v2708 = vadd.f32 %v2293, %v2672
      %v2709 = vadd.f32 %v2296, %v2672
      %v2710 = vadd.f32 %v2301, %v2672
      %v2711 = vadd.f32 %v2304, %v2672
      %v2712 = vadd.f32 %v2309, %v2672
      %v2713 = vadd.f32 %v2312, %v2672
      %v2714 = vadd.f32 %v2317, %v2672
      %v2715 = vadd.f32 %v2320, %v2672
      %v2716 = vadd.f32 %v2325, %v2672
      %v2717 = vadd.f32 %v2328, %v2672
      %v2718 = vadd.f32 %v2333, %v2672
      %v2719 = vadd.f32 %v2336, %v2672
      %v2720 = vadd.f32 %v2341, %v2672
      %v2721 = vadd.f32 %v2344, %v2672
      %v2722 = vadd.f32 %v2349, %v2672
      %v2723 = vadd.f32 %v2352, %v2672
      %v2724 = vadd.f32 %v2357, %v2672
      %v2725 = vadd.f32 %v2360, %v2672
      %v2726 = vadd.f32 %v2365, %v2672
      %v2727 = vadd.f32 %v2368, %v2672
      %v2728 = vadd.f32 %v2373, %v2672
      %v2729 = vadd.f32 %v2376, %v2672
      %v2730 = vadd.f32 %v2381, %v2672
      %v2731 = vadd.f32 %v2384, %v2672
      %v2732 = vadd.f32 %v2389, %v2672
      %v2733 = vadd.f32 %v2392, %v2672
      %v2734 = vadd.f32 %v2397, %v2672
      %v2735 = vadd.f32 %v2400, %v2672
      %v2736 = vadd.f32 %v2405, %v2672
      %v2737 = vadd.f32 %v2408, %v2672
      %v2738 = vadd.f32 %v2413, %v2672
      %v2739 = vadd.f32 %v2416, %v2672
      %v2740 = vadd.f32 %v2421, %v2672
      %v2741 = vadd.f32 %v2424, %v2672
      %v2742 = vadd.f32 %v2429, %v2672
      %v2743 = vadd.f32 %v2432, %v2672
      %v2744 = vadd.f32 %v2437, %v2672
      %v2745 = vadd.f32 %v2440, %v2672
      %v2746 = vadd.f32 %v2445, %v2672
      %v2747 = vadd.f32 %v2448, %v2672
      %v2748 = vadd.f32 %v2453, %v2672
      %v2749 = vadd.f32 %v2456, %v2672
      %v2750 = vadd.f32 %v2461, %v2672
      %v2751 = vadd.f32 %v2464, %v2672
      %v2752 = vadd.f32 %v2469, %v2672
      %v2753 = vadd.f32 %v2472, %v2672
      %v2754 = vadd.f32 %v2477, %v2672
      %v2755 = vadd.f32 %v2480, %v2672
      %v2756 = vadd.f32 %v2485, %v2672
      %v2757 = vadd.f32 %v2488, %v2672
      %v2758 = vadd.f32 %v2493, %v2672
      %v2759 = vadd.f32 %v2496, %v2672
      %v2760 = vadd.f32 %v2501, %v2672
      %v2761 = vadd.f32 %v2504, %v2672
      %v2762 = vadd.f32 %v2509, %v2672
      %v2763 = vadd.f32 %v2512, %v2672
      %v2764 = vadd.f32 %v2517, %v2672
      %v2765 = vadd.f32 %v2520, %v2672
      %v2766 = vadd.f32 %v2525, %v2672
      %v2767 = vadd.f32 %v2528, %v2672
      %v2768 = vadd.f32 %v2533, %v2672
      %v2769 = vadd.f32 %v2536, %v2672
      %v2770 = vadd.f32 %v2541, %v2672
      %v2771 = vadd.f32 %v2544, %v2672
      %v2772 = vadd.f32 %v2549, %v2672
      %v2773 = vadd.f32 %v2552, %v2672
      %v2774 = vadd.f32 %v2557, %v2672
      %v2775 = vadd.f32 %v2560, %v2672
      %v2776 = vadd.f32 %v2565, %v2672
      %v2777 = vadd.f32 %v2568, %v2672
      %v2778 = vadd.f32 %v2573, %v2672
      %v2779 = vadd.f32 %v2576, %v2672
      %v2780 = vadd.f32 %v2581, %v2672
      %v2781 = vadd.f32 %v2584, %v2672
      %v2782 = vadd.f32 %v2589, %v2672
      %v2783 = vadd.f32 %v2592, %v2672
      %v2784 = vadd.f32 %v2597, %v2672
      %v2785 = vadd.f32 %v2600, %v2672
      %v2786 = vadd.f32 %v2605, %v2672
      %v2787 = vadd.f32 %v2608, %v2672
      %v2788 = vadd.f32 %v2613, %v2672
      %v2789 = vadd.f32 %v2616, %v2672
      %v2790 = vadd.f32 %v2621, %v2672
      %v2791 = vadd.f32 %v2624, %v2672
      %v2792 = vadd.f32 %v2629, %v2672
      %v2793 = vadd.f32 %v2632, %v2672
      %v2794 = vadd.f32 %v2637, %v2672
      %v2795 = vadd.f32 %v2640, %v2672
      %v2796 = vadd.f32 %v2645, %v2672
      %v2797 = vadd.f32 %v2648, %v2672
      %v2798 = vadd.f32 %v2653, %v2672
      %v2799 = vadd.f32 %v2656, %v2672
      %v2800 = vadd.f32 %v2661, %v2672
      %v2801 = vadd.f32 %v2664, %v2672
      %v2802 = vpack.c.bf16 %v2675, %v2674
      %v2803 = vpack.c.bf16 %v2677, %v2676
      %v2804 = vpack.c.bf16 %v2679, %v2678
      %v2805 = vpack.c.bf16 %v2681, %v2680
      %v2806 = vpack.c.bf16 %v2683, %v2682
      %v2807 = vpack.c.bf16 %v2685, %v2684
      %v2808 = vpack.c.bf16 %v2687, %v2686
      %v2809 = vpack.c.bf16 %v2689, %v2688
      %v2810 = vpack.c.bf16 %v2691, %v2690
      %v2811 = vpack.c.bf16 %v2693, %v2692
      %v2812 = vpack.c.bf16 %v2695, %v2694
      %v2813 = vpack.c.bf16 %v2697, %v2696
      %v2814 = vpack.c.bf16 %v2699, %v2698
      %v2815 = vpack.c.bf16 %v2701, %v2700
      %v2816 = vpack.c.bf16 %v2703, %v2702
      %v2817 = vpack.c.bf16 %v2705, %v2704
      %v2818 = vpack.c.bf16 %v2707, %v2706
      %v2819 = vpack.c.bf16 %v2709, %v2708
      %v2820 = vpack.c.bf16 %v2711, %v2710
      %v2821 = vpack.c.bf16 %v2713, %v2712
      %v2822 = vpack.c.bf16 %v2715, %v2714
      %v2823 = vpack.c.bf16 %v2717, %v2716
      %v2824 = vpack.c.bf16 %v2719, %v2718
      %v2825 = vpack.c.bf16 %v2721, %v2720
      %v2826 = vpack.c.bf16 %v2723, %v2722
      %v2827 = vpack.c.bf16 %v2725, %v2724
      %v2828 = vpack.c.bf16 %v2727, %v2726
      %v2829 = vpack.c.bf16 %v2729, %v2728
      %v2830 = vpack.c.bf16 %v2731, %v2730
      %v2831 = vpack.c.bf16 %v2733, %v2732
      %v2832 = vpack.c.bf16 %v2735, %v2734
      %v2833 = vpack.c.bf16 %v2737, %v2736
      %v2834 = vpack.c.bf16 %v2739, %v2738
      %v2835 = vpack.c.bf16 %v2741, %v2740
      %v2836 = vpack.c.bf16 %v2743, %v2742
      %v2837 = vpack.c.bf16 %v2745, %v2744
      %v2838 = vpack.c.bf16 %v2747, %v2746
      %v2839 = vpack.c.bf16 %v2749, %v2748
      %v2840 = vpack.c.bf16 %v2751, %v2750
      %v2841 = vpack.c.bf16 %v2753, %v2752
      %v2842 = vpack.c.bf16 %v2755, %v2754
      %v2843 = vpack.c.bf16 %v2757, %v2756
      %v2844 = vpack.c.bf16 %v2759, %v2758
      %v2845 = vpack.c.bf16 %v2761, %v2760
      %v2846 = vpack.c.bf16 %v2763, %v2762
      %v2847 = vpack.c.bf16 %v2765, %v2764
      %v2848 = vpack.c.bf16 %v2767, %v2766
      %v2849 = vpack.c.bf16 %v2769, %v2768
      %v2850 = vpack.c.bf16 %v2771, %v2770
      %v2851 = vpack.c.bf16 %v2773, %v2772
      %v2852 = vpack.c.bf16 %v2775, %v2774
      %v2853 = vpack.c.bf16 %v2777, %v2776
      %v2854 = vpack.c.bf16 %v2779, %v2778
      %v2855 = vpack.c.bf16 %v2781, %v2780
      %v2856 = vpack.c.bf16 %v2783, %v2782
      %v2857 = vpack.c.bf16 %v2785, %v2784
      %v2858 = vpack.c.bf16 %v2787, %v2786
      %v2859 = vpack.c.bf16 %v2789, %v2788
      %v2860 = vpack.c.bf16 %v2791, %v2790
      %v2861 = vpack.c.bf16 %v2793, %v2792
      %v2862 = vpack.c.bf16 %v2795, %v2794
      %v2863 = vpack.c.bf16 %v2797, %v2796
      %v2864 = vpack.c.bf16 %v2799, %v2798
      %v2865 = vpack.c.bf16 %v2801, %v2800
      %v2930 = vunpack.c.l.b16 %v2802
      %v2931 = vunpack.c.h.b16 %v2802
      %v2932 = vunpack.c.l.b16 %v2803
      %v2933 = vunpack.c.h.b16 %v2803
      %v2934 = vunpack.c.l.b16 %v2804
      %v2935 = vunpack.c.h.b16 %v2804
      %v2936 = vunpack.c.l.b16 %v2805
      %v2937 = vunpack.c.h.b16 %v2805
      %v2938 = vunpack.c.l.b16 %v2806
      %v2939 = vunpack.c.h.b16 %v2806
      %v2940 = vunpack.c.l.b16 %v2807
      %v2941 = vunpack.c.h.b16 %v2807
      %v2942 = vunpack.c.l.b16 %v2808
      %v2943 = vunpack.c.h.b16 %v2808
      %v2944 = vunpack.c.l.b16 %v2809
      %v2945 = vunpack.c.h.b16 %v2809
      %v2946 = vunpack.c.l.b16 %v2810
      %v2947 = vunpack.c.h.b16 %v2810
      %v2948 = vunpack.c.l.b16 %v2811
      %v2949 = vunpack.c.h.b16 %v2811
      %v2950 = vunpack.c.l.b16 %v2812
      %v2951 = vunpack.c.h.b16 %v2812
      %v2952 = vunpack.c.l.b16 %v2813
      %v2953 = vunpack.c.h.b16 %v2813
      %v2954 = vunpack.c.l.b16 %v2814
      %v2955 = vunpack.c.h.b16 %v2814
      %v2956 = vunpack.c.l.b16 %v2815
      %v2957 = vunpack.c.h.b16 %v2815
      %v2958 = vunpack.c.l.b16 %v2816
      %v2959 = vunpack.c.h.b16 %v2816
      %v2960 = vunpack.c.l.b16 %v2817
      %v2961 = vunpack.c.h.b16 %v2817
      %v2962 = vunpack.c.l.b16 %v2818
      %v2963 = vunpack.c.h.b16 %v2818
      %v2964 = vunpack.c.l.b16 %v2819
      %v2965 = vunpack.c.h.b16 %v2819
      %v2966 = vunpack.c.l.b16 %v2820
      %v2967 = vunpack.c.h.b16 %v2820
      %v2968 = vunpack.c.l.b16 %v2821
      %v2969 = vunpack.c.h.b16 %v2821
      %v2970 = vunpack.c.l.b16 %v2822
      %v2971 = vunpack.c.h.b16 %v2822
      %v2972 = vunpack.c.l.b16 %v2823
      %v2973 = vunpack.c.h.b16 %v2823
      %v2974 = vunpack.c.l.b16 %v2824
      %v2975 = vunpack.c.h.b16 %v2824
      %v2976 = vunpack.c.l.b16 %v2825
      %v2977 = vunpack.c.h.b16 %v2825
      %v2978 = vunpack.c.l.b16 %v2826
      %v2979 = vunpack.c.h.b16 %v2826
      %v2980 = vunpack.c.l.b16 %v2827
      %v2981 = vunpack.c.h.b16 %v2827
      %v2982 = vunpack.c.l.b16 %v2828
      %v2983 = vunpack.c.h.b16 %v2828
      %v2984 = vunpack.c.l.b16 %v2829
      %v2985 = vunpack.c.h.b16 %v2829
      %v2986 = vunpack.c.l.b16 %v2830
      %v2987 = vunpack.c.h.b16 %v2830
      %v2988 = vunpack.c.l.b16 %v2831
      %v2989 = vunpack.c.h.b16 %v2831
      %v2990 = vunpack.c.l.b16 %v2832
      %v2991 = vunpack.c.h.b16 %v2832
      %v2992 = vunpack.c.l.b16 %v2833
      %v2993 = vunpack.c.h.b16 %v2833
      %v2994 = vunpack.c.l.b16 %v2834
      %v2995 = vunpack.c.h.b16 %v2834
      %v2996 = vunpack.c.l.b16 %v2835
      %v2997 = vunpack.c.h.b16 %v2835
      %v2998 = vunpack.c.l.b16 %v2836
      %v2999 = vunpack.c.h.b16 %v2836
      %v3000 = vunpack.c.l.b16 %v2837
      %v3001 = vunpack.c.h.b16 %v2837
      %v3002 = vunpack.c.l.b16 %v2838
      %v3003 = vunpack.c.h.b16 %v2838
      %v3004 = vunpack.c.l.b16 %v2839
      %v3005 = vunpack.c.h.b16 %v2839
      %v3006 = vunpack.c.l.b16 %v2840
      %v3007 = vunpack.c.h.b16 %v2840
      %v3008 = vunpack.c.l.b16 %v2841
      %v3009 = vunpack.c.h.b16 %v2841
      %v3010 = vunpack.c.l.b16 %v2842
      %v3011 = vunpack.c.h.b16 %v2842
      %v3012 = vunpack.c.l.b16 %v2843
      %v3013 = vunpack.c.h.b16 %v2843
      %v3014 = vunpack.c.l.b16 %v2844
      %v3015 = vunpack.c.h.b16 %v2844
      %v3016 = vunpack.c.l.b16 %v2845
      %v3017 = vunpack.c.h.b16 %v2845
      %v3018 = vunpack.c.l.b16 %v2846
      %v3019 = vunpack.c.h.b16 %v2846
      %v3020 = vunpack.c.l.b16 %v2847
      %v3021 = vunpack.c.h.b16 %v2847
      %v3022 = vunpack.c.l.b16 %v2848
      %v3023 = vunpack.c.h.b16 %v2848
      %v3024 = vunpack.c.l.b16 %v2849
      %v3025 = vunpack.c.h.b16 %v2849
      %v3026 = vunpack.c.l.b16 %v2850
      %v3027 = vunpack.c.h.b16 %v2850
      %v3028 = vunpack.c.l.b16 %v2851
      %v3029 = vunpack.c.h.b16 %v2851
      %v3030 = vunpack.c.l.b16 %v2852
      %v3031 = vunpack.c.h.b16 %v2852
      %v3032 = vunpack.c.l.b16 %v2853
      %v3033 = vunpack.c.h.b16 %v2853
      %v3034 = vunpack.c.l.b16 %v2854
      %v3035 = vunpack.c.h.b16 %v2854
      %v3036 = vunpack.c.l.b16 %v2855
      %v3037 = vunpack.c.h.b16 %v2855
      %v3038 = vunpack.c.l.b16 %v2856
      %v3039 = vunpack.c.h.b16 %v2856
      %v3040 = vunpack.c.l.b16 %v2857
      %v3041 = vunpack.c.h.b16 %v2857
      %v3042 = vunpack.c.l.b16 %v2858
      %v3043 = vunpack.c.h.b16 %v2858
      %v3044 = vunpack.c.l.b16 %v2859
      %v3045 = vunpack.c.h.b16 %v2859
      %v3046 = vunpack.c.l.b16 %v2860
      %v3047 = vunpack.c.h.b16 %v2860
      %v3048 = vunpack.c.l.b16 %v2861
      %v3049 = vunpack.c.h.b16 %v2861
      %v3050 = vunpack.c.l.b16 %v2862
      %v3051 = vunpack.c.h.b16 %v2862
      %v3052 = vunpack.c.l.b16 %v2863
      %v3053 = vunpack.c.h.b16 %v2863
      %v3054 = vunpack.c.l.b16 %v2864
      %v3055 = vunpack.c.h.b16 %v2864
      %v3056 = vunpack.c.l.b16 %v2865
      %v3057 = vunpack.c.h.b16 %v2865
      %v3058 = vpack.c.b16 %v2930, %v2930
      %v3059 = vpack.c.b16 %v2931, %v2931
      %v3060 = vpack.c.b16 %v2932, %v2932
      %v3061 = vpack.c.b16 %v2933, %v2933
      %v3062 = vpack.c.b16 %v2934, %v2934
      %v3063 = vpack.c.b16 %v2935, %v2935
      %v3064 = vpack.c.b16 %v2936, %v2936
      %v3065 = vpack.c.b16 %v2937, %v2937
      %v3066 = vpack.c.b16 %v2938, %v2938
      %v3067 = vpack.c.b16 %v2939, %v2939
      %v3068 = vpack.c.b16 %v2940, %v2940
      %v3069 = vpack.c.b16 %v2941, %v2941
      %v3070 = vpack.c.b16 %v2942, %v2942
      %v3071 = vpack.c.b16 %v2943, %v2943
      %v3072 = vpack.c.b16 %v2944, %v2944
      %v3073 = vpack.c.b16 %v2945, %v2945
      %v3074 = vpack.c.b16 %v2946, %v2946
      %v3075 = vpack.c.b16 %v2947, %v2947
      %v3076 = vpack.c.b16 %v2948, %v2948
      %v3077 = vpack.c.b16 %v2949, %v2949
      %v3078 = vpack.c.b16 %v2950, %v2950
      %v3079 = vpack.c.b16 %v2951, %v2951
      %v3080 = vpack.c.b16 %v2952, %v2952
      %v3081 = vpack.c.b16 %v2953, %v2953
      %v3082 = vpack.c.b16 %v2954, %v2954
      %v3083 = vpack.c.b16 %v2955, %v2955
      %v3084 = vpack.c.b16 %v2956, %v2956
      %v3085 = vpack.c.b16 %v2957, %v2957
      %v3086 = vpack.c.b16 %v2958, %v2958
      %v3087 = vpack.c.b16 %v2959, %v2959
      %v3088 = vpack.c.b16 %v2960, %v2960
      %v3089 = vpack.c.b16 %v2961, %v2961
      %v3090 = vpack.c.b16 %v2962, %v2962
      %v3091 = vpack.c.b16 %v2963, %v2963
      %v3092 = vpack.c.b16 %v2964, %v2964
      %v3093 = vpack.c.b16 %v2965, %v2965
      %v3094 = vpack.c.b16 %v2966, %v2966
      %v3095 = vpack.c.b16 %v2967, %v2967
      %v3096 = vpack.c.b16 %v2968, %v2968
      %v3097 = vpack.c.b16 %v2969, %v2969
      %v3098 = vpack.c.b16 %v2970, %v2970
      %v3099 = vpack.c.b16 %v2971, %v2971
      %v3100 = vpack.c.b16 %v2972, %v2972
      %v3101 = vpack.c.b16 %v2973, %v2973
      %v3102 = vpack.c.b16 %v2974, %v2974
      %v3103 = vpack.c.b16 %v2975, %v2975
      %v3104 = vpack.c.b16 %v2976, %v2976
      %v3105 = vpack.c.b16 %v2977, %v2977
      %v3106 = vpack.c.b16 %v2978, %v2978
      %v3107 = vpack.c.b16 %v2979, %v2979
      %v3108 = vpack.c.b16 %v2980, %v2980
      %v3109 = vpack.c.b16 %v2981, %v2981
      %v3110 = vpack.c.b16 %v2982, %v2982
      %v3111 = vpack.c.b16 %v2983, %v2983
      %v3112 = vpack.c.b16 %v2984, %v2984
      %v3113 = vpack.c.b16 %v2985, %v2985
      %v3114 = vpack.c.b16 %v2986, %v2986
      %v3115 = vpack.c.b16 %v2987, %v2987
      %v3116 = vpack.c.b16 %v2988, %v2988
      %v3117 = vpack.c.b16 %v2989, %v2989
      %v3118 = vpack.c.b16 %v2990, %v2990
      %v3119 = vpack.c.b16 %v2991, %v2991
      %v3120 = vpack.c.b16 %v2992, %v2992
      %v3121 = vpack.c.b16 %v2993, %v2993
      %v3122 = vpack.c.b16 %v2994, %v2994
      %v3123 = vpack.c.b16 %v2995, %v2995
      %v3124 = vpack.c.b16 %v2996, %v2996
      %v3125 = vpack.c.b16 %v2997, %v2997
      %v3126 = vpack.c.b16 %v2998, %v2998
      %v3127 = vpack.c.b16 %v2999, %v2999
      %v3128 = vpack.c.b16 %v3000, %v3000
      %v3129 = vpack.c.b16 %v3001, %v3001
      %v3130 = vpack.c.b16 %v3002, %v3002
      %v3131 = vpack.c.b16 %v3003, %v3003
      %v3132 = vpack.c.b16 %v3004, %v3004
      %v3133 = vpack.c.b16 %v3005, %v3005
      %v3134 = vpack.c.b16 %v3006, %v3006
      %v3135 = vpack.c.b16 %v3007, %v3007
      %v3136 = vpack.c.b16 %v3008, %v3008
      %v3137 = vpack.c.b16 %v3009, %v3009
      %v3138 = vpack.c.b16 %v3010, %v3010
      %v3139 = vpack.c.b16 %v3011, %v3011
      %v3140 = vpack.c.b16 %v3012, %v3012
      %v3141 = vpack.c.b16 %v3013, %v3013
      %v3142 = vpack.c.b16 %v3014, %v3014
      %v3143 = vpack.c.b16 %v3015, %v3015
      %v3144 = vpack.c.b16 %v3016, %v3016
      %v3145 = vpack.c.b16 %v3017, %v3017
      %v3146 = vpack.c.b16 %v3018, %v3018
      %v3147 = vpack.c.b16 %v3019, %v3019
      %v3148 = vpack.c.b16 %v3020, %v3020
      %v3149 = vpack.c.b16 %v3021, %v3021
      %v3150 = vpack.c.b16 %v3022, %v3022
      %v3151 = vpack.c.b16 %v3023, %v3023
      %v3152 = vpack.c.b16 %v3024, %v3024
      %v3153 = vpack.c.b16 %v3025, %v3025
      %v3154 = vpack.c.b16 %v3026, %v3026
      %v3155 = vpack.c.b16 %v3027, %v3027
      %v3156 = vpack.c.b16 %v3028, %v3028
      %v3157 = vpack.c.b16 %v3029, %v3029
      %v3158 = vpack.c.b16 %v3030, %v3030
      %v3159 = vpack.c.b16 %v3031, %v3031
      %v3160 = vpack.c.b16 %v3032, %v3032
      %v3161 = vpack.c.b16 %v3033, %v3033
      %v3162 = vpack.c.b16 %v3034, %v3034
      %v3163 = vpack.c.b16 %v3035, %v3035
      %v3164 = vpack.c.b16 %v3036, %v3036
      %v3165 = vpack.c.b16 %v3037, %v3037
      %v3166 = vpack.c.b16 %v3038, %v3038
      %v3167 = vpack.c.b16 %v3039, %v3039
      %v3168 = vpack.c.b16 %v3040, %v3040
      %v3169 = vpack.c.b16 %v3041, %v3041
      %v3170 = vpack.c.b16 %v3042, %v3042
      %v3171 = vpack.c.b16 %v3043, %v3043
      %v3172 = vpack.c.b16 %v3044, %v3044
      %v3173 = vpack.c.b16 %v3045, %v3045
      %v3174 = vpack.c.b16 %v3046, %v3046
      %v3175 = vpack.c.b16 %v3047, %v3047
      %v3176 = vpack.c.b16 %v3048, %v3048
      %v3177 = vpack.c.b16 %v3049, %v3049
      %v3178 = vpack.c.b16 %v3050, %v3050
      %v3179 = vpack.c.b16 %v3051, %v3051
      %v3180 = vpack.c.b16 %v3052, %v3052
      %v3181 = vpack.c.b16 %v3053, %v3053
      %v3182 = vpack.c.b16 %v3054, %v3054
      %v3183 = vpack.c.b16 %v3055, %v3055
      %v3184 = vpack.c.b16 %v3056, %v3056
      %v3185 = vpack.c.b16 %v3057, %v3057
      %3314 = vst [vmem:[%s248] sm:$0xf] %v3058
      %3315 = vst [vmem:[%s248 + $0x4] sm:$0xf] %v3059
      %3316 = vst [vmem:[%s248 + $0x8] sm:$0xf] %v3060
      %3317 = vst [vmem:[%s248 + $0xc] sm:$0xf] %v3061
      %3318 = vst [vmem:[%s248 + $0x10] sm:$0xf] %v3062
      %3319 = vst [vmem:[%s248 + $0x14] sm:$0xf] %v3063
      %3320 = vst [vmem:[%s248 + $0x18] sm:$0xf] %v3064
      %3321 = vst [vmem:[%s248 + $0x1c] sm:$0xf] %v3065
      %3322 = vst [vmem:[%s248 + $0x20] sm:$0xf] %v3066
      %3323 = vst [vmem:[%s248 + $0x24] sm:$0xf] %v3067
      %3324 = vst [vmem:[%s248 + $0x28] sm:$0xf] %v3068
      %3325 = vst [vmem:[%s248 + $0x2c] sm:$0xf] %v3069
      %3326 = vst [vmem:[%s248 + $0x30] sm:$0xf] %v3070
      %3327 = vst [vmem:[%s248 + $0x34] sm:$0xf] %v3071
      %3328 = vst [vmem:[%s248 + $0x38] sm:$0xf] %v3072
      %3329 = vst [vmem:[%s248 + $0x3c] sm:$0xf] %v3073
      %3330 = vst [vmem:[%s248 + $0x40] sm:$0xf] %v3074
      %3331 = vst [vmem:[%s248 + $0x44] sm:$0xf] %v3075
      %3332 = vst [vmem:[%s248 + $0x48] sm:$0xf] %v3076
      %3333 = vst [vmem:[%s248 + $0x4c] sm:$0xf] %v3077
      %3334 = vst [vmem:[%s248 + $0x50] sm:$0xf] %v3078
      %3335 = vst [vmem:[%s248 + $0x54] sm:$0xf] %v3079
      %3336 = vst [vmem:[%s248 + $0x58] sm:$0xf] %v3080
      %3337 = vst [vmem:[%s248 + $0x5c] sm:$0xf] %v3081
      %3338 = vst [vmem:[%s248 + $0x60] sm:$0xf] %v3082
      %3339 = vst [vmem:[%s248 + $0x64] sm:$0xf] %v3083
      %3340 = vst [vmem:[%s248 + $0x68] sm:$0xf] %v3084
      %3341 = vst [vmem:[%s248 + $0x6c] sm:$0xf] %v3085
      %3342 = vst [vmem:[%s248 + $0x70] sm:$0xf] %v3086
      %3343 = vst [vmem:[%s248 + $0x74] sm:$0xf] %v3087
      %3344 = vst [vmem:[%s248 + $0x78] sm:$0xf] %v3088
      %3345 = vst [vmem:[%s248 + $0x7c] sm:$0xf] %v3089
      %3346 = vst [vmem:[%s248 + $0x80] sm:$0xf] %v3090
      %3347 = vst [vmem:[%s248 + $0x84] sm:$0xf] %v3091
      %3348 = vst [vmem:[%s248 + $0x88] sm:$0xf] %v3092
      %3349 = vst [vmem:[%s248 + $0x8c] sm:$0xf] %v3093
      %3350 = vst [vmem:[%s248 + $0x90] sm:$0xf] %v3094
      %3351 = vst [vmem:[%s248 + $0x94] sm:$0xf] %v3095
      %3352 = vst [vmem:[%s248 + $0x98] sm:$0xf] %v3096
      %3353 = vst [vmem:[%s248 + $0x9c] sm:$0xf] %v3097
      %3354 = vst [vmem:[%s248 + $0xa0] sm:$0xf] %v3098
      %3355 = vst [vmem:[%s248 + $0xa4] sm:$0xf] %v3099
      %3356 = vst [vmem:[%s248 + $0xa8] sm:$0xf] %v3100
      %3357 = vst [vmem:[%s248 + $0xac] sm:$0xf] %v3101
      %3358 = vst [vmem:[%s248 + $0xb0] sm:$0xf] %v3102
      %3359 = vst [vmem:[%s248 + $0xb4] sm:$0xf] %v3103
      %3360 = vst [vmem:[%s248 + $0xb8] sm:$0xf] %v3104
      %3361 = vst [vmem:[%s248 + $0xbc] sm:$0xf] %v3105
      %3362 = vst [vmem:[%s248 + $0xc0] sm:$0xf] %v3106
      %3363 = vst [vmem:[%s248 + $0xc4] sm:$0xf] %v3107
      %3364 = vst [vmem:[%s248 + $0xc8] sm:$0xf] %v3108
      %3365 = vst [vmem:[%s248 + $0xcc] sm:$0xf] %v3109
      %3366 = vst [vmem:[%s248 + $0xd0] sm:$0xf] %v3110
      %3367 = vst [vmem:[%s248 + $0xd4] sm:$0xf] %v3111
      %3368 = vst [vmem:[%s248 + $0xd8] sm:$0xf] %v3112
      %3369 = vst [vmem:[%s248 + $0xdc] sm:$0xf] %v3113
      %3370 = vst [vmem:[%s248 + $0xe0] sm:$0xf] %v3114
      %3371 = vst [vmem:[%s248 + $0xe4] sm:$0xf] %v3115
      %3372 = vst [vmem:[%s248 + $0xe8] sm:$0xf] %v3116
      %3373 = vst [vmem:[%s248 + $0xec] sm:$0xf] %v3117
      %3374 = vst [vmem:[%s248 + $0xf0] sm:$0xf] %v3118
      %3375 = vst [vmem:[%s248 + $0xf4] sm:$0xf] %v3119
      %3376 = vst [vmem:[%s248 + $0xf8] sm:$0xf] %v3120
      %3377 = vst [vmem:[%s248 + $0xfc] sm:$0xf] %v3121
      %3378 = vst [vmem:[%s248 + $0x100] sm:$0xf] %v3122
      %3379 = vst [vmem:[%s248 + $0x104] sm:$0xf] %v3123
      %3380 = vst [vmem:[%s248 + $0x108] sm:$0xf] %v3124
      %3381 = vst [vmem:[%s248 + $0x10c] sm:$0xf] %v3125
      %3382 = vst [vmem:[%s248 + $0x110] sm:$0xf] %v3126
      %3383 = vst [vmem:[%s248 + $0x114] sm:$0xf] %v3127
      %3384 = vst [vmem:[%s248 + $0x118] sm:$0xf] %v3128
      %3385 = vst [vmem:[%s248 + $0x11c] sm:$0xf] %v3129
      %3386 = vst [vmem:[%s248 + $0x120] sm:$0xf] %v3130
      %3387 = vst [vmem:[%s248 + $0x124] sm:$0xf] %v3131
      %3388 = vst [vmem:[%s248 + $0x128] sm:$0xf] %v3132
      %3389 = vst [vmem:[%s248 + $0x12c] sm:$0xf] %v3133
      %3390 = vst [vmem:[%s248 + $0x130] sm:$0xf] %v3134
      %3391 = vst [vmem:[%s248 + $0x134] sm:$0xf] %v3135
      %3392 = vst [vmem:[%s248 + $0x138] sm:$0xf] %v3136
      %3393 = vst [vmem:[%s248 + $0x13c] sm:$0xf] %v3137
      %3394 = vst [vmem:[%s248 + $0x140] sm:$0xf] %v3138
      %3395 = vst [vmem:[%s248 + $0x144] sm:$0xf] %v3139
      %3396 = vst [vmem:[%s248 + $0x148] sm:$0xf] %v3140
      %3397 = vst [vmem:[%s248 + $0x14c] sm:$0xf] %v3141
      %3398 = vst [vmem:[%s248 + $0x150] sm:$0xf] %v3142
      %3399 = vst [vmem:[%s248 + $0x154] sm:$0xf] %v3143
      %3400 = vst [vmem:[%s248 + $0x158] sm:$0xf] %v3144
      %3401 = vst [vmem:[%s248 + $0x15c] sm:$0xf] %v3145
      %3402 = vst [vmem:[%s248 + $0x160] sm:$0xf] %v3146
      %3403 = vst [vmem:[%s248 + $0x164] sm:$0xf] %v3147
      %3404 = vst [vmem:[%s248 + $0x168] sm:$0xf] %v3148
      %3405 = vst [vmem:[%s248 + $0x16c] sm:$0xf] %v3149
      %3406 = vst [vmem:[%s248 + $0x170] sm:$0xf] %v3150
      %3407 = vst [vmem:[%s248 + $0x174] sm:$0xf] %v3151
      %3408 = vst [vmem:[%s248 + $0x178] sm:$0xf] %v3152
      %3409 = vst [vmem:[%s248 + $0x17c] sm:$0xf] %v3153
      %3410 = vst [vmem:[%s248 + $0x180] sm:$0xf] %v3154
      %3411 = vst [vmem:[%s248 + $0x184] sm:$0xf] %v3155
      %3412 = vst [vmem:[%s248 + $0x188] sm:$0xf] %v3156
      %3413 = vst [vmem:[%s248 + $0x18c] sm:$0xf] %v3157
      %3414 = vst [vmem:[%s248 + $0x190] sm:$0xf] %v3158
      %3415 = vst [vmem:[%s248 + $0x194] sm:$0xf] %v3159
      %3416 = vst [vmem:[%s248 + $0x198] sm:$0xf] %v3160
      %3417 = vst [vmem:[%s248 + $0x19c] sm:$0xf] %v3161
      %3418 = vst [vmem:[%s248 + $0x1a0] sm:$0xf] %v3162
      %3419 = vst [vmem:[%s248 + $0x1a4] sm:$0xf] %v3163
      %3420 = vst [vmem:[%s248 + $0x1a8] sm:$0xf] %v3164
      %3421 = vst [vmem:[%s248 + $0x1ac] sm:$0xf] %v3165
      %3422 = vst [vmem:[%s248 + $0x1b0] sm:$0xf] %v3166
      %3423 = vst [vmem:[%s248 + $0x1b4] sm:$0xf] %v3167
      %3424 = vst [vmem:[%s248 + $0x1b8] sm:$0xf] %v3168
      %3425 = vst [vmem:[%s248 + $0x1bc] sm:$0xf] %v3169
      %3426 = vst [vmem:[%s248 + $0x1c0] sm:$0xf] %v3170
      %3427 = vst [vmem:[%s248 + $0x1c4] sm:$0xf] %v3171
      %3428 = vst [vmem:[%s248 + $0x1c8] sm:$0xf] %v3172
      %3429 = vst [vmem:[%s248 + $0x1cc] sm:$0xf] %v3173
      %3430 = vst [vmem:[%s248 + $0x1d0] sm:$0xf] %v3174
      %3431 = vst [vmem:[%s248 + $0x1d4] sm:$0xf] %v3175
      %3432 = vst [vmem:[%s248 + $0x1d8] sm:$0xf] %v3176
      %3433 = vst [vmem:[%s248 + $0x1dc] sm:$0xf] %v3177
      %3434 = vst [vmem:[%s248 + $0x1e0] sm:$0xf] %v3178
      %3435 = vst [vmem:[%s248 + $0x1e4] sm:$0xf] %v3179
      %3436 = vst [vmem:[%s248 + $0x1e8] sm:$0xf] %v3180
      %3437 = vst [vmem:[%s248 + $0x1ec] sm:$0xf] %v3181
      %3438 = vst [vmem:[%s248 + $0x1f0] sm:$0xf] %v3182
      %3439 = vst [vmem:[%s248 + $0x1f4] sm:$0xf] %v3183
      %3440 = vst [vmem:[%s248 + $0x1f8] sm:$0xf] %v3184
      %3441 = vst [vmem:[%s248 + $0x1fc] sm:$0xf] %v3185
      %s3442 = smul.u32 128, %s16
      %p3443 = scmp.lt.s32.totalorder %s3442, 255
      %s3444 = scalar_select %p3443, %s3442, 255
      %s3445 = smul.addr %s3444, 4
      %s3446 = scalar_lea.vmem %s5, %s3445
      // Predicated region
      $region41: #{liif_fpn_pred_forward.11} parent=39 // pred_check
        %p3447 = pneg %p149
      $region42: #{liif_fpn_pred_forward.11} parent=39 // pred_check_branch
        %3449 = sbr.rel (%p3447) target = $region44
      $region43: #{liif_fpn_pred_forward.11} parent=39 // pred_region
        %s3450 = smul.u32 128, %s16
      $region44: #{liif_fpn_pred_forward.11} parent=39 // pred_fallthru
        _
    $region40: #{liif_fpn_pred_forward.11} parent=5 // pred_fallthru
      _
    %p3451 = scmp.le.s32.totalorder 2, %s11
    // Predicated region
    $region45: #{liif_fpn_pred_forward.11} parent=5 // pred_check
      %p3452 = pneg %p3451
    $region46: #{liif_fpn_pred_forward.11} parent=5 // pred_check_branch
      %3454 = sbr.rel (%p3452) target = $region48
    $region47: #{liif_fpn_pred_forward.11} parent=5 // pred_region
      %s3455 = ssub.s32 %s11, 2
      // Predicated region
      $region49: #{liif_fpn_pred_forward.11} parent=47 // pred_check
        %p3456 = pneg %p155
      $region50: #{liif_fpn_pred_forward.11} parent=47 // pred_check_branch
        %3458 = sbr.rel (%p3456) target = $region52
      $region51: #{liif_fpn_pred_forward.11} parent=47 // pred_region
        %s3459 = smul.u32 128, %s17
        %p3460 = scmp.lt.s32.totalorder %s3459, 255
        %s3461 = scalar_select %p3460, %s3459, 255
        %s3462 = smul.addr %s3461, 4
        %s3463 = scalar_lea.vmem %s5, %s3462
      $region52: #{liif_fpn_pred_forward.11} parent=47 // pred_fallthru
        _
    $region48: #{liif_fpn_pred_forward.11} parent=5 // pred_fallthru
      _
  $region6: #{liif_fpn_pred_forward.11} parent=0 // loop_footer
    %s15 = sadd.s32 1, %s11
  $region7: #{liif_fpn_pred_forward.11} parent=0 // loop_footer_branch
    %10 = sbr.rel target = $region3
  $region8: #{liif_fpn_pred_forward.11} parent=0 // loop_exit
    _

// kernel: liif_fpn_pred_forward.12
$region0: #{liif_fpn_pred_forward.12}
  #allocation0 [shape = 'u32[]', space=smem, size = 0x4, offset = 0x4, fixed_abs, tag = 'smem constant byte address 0x4 - core index']
  #allocation1 [shape = 'u32[144,128]{1,0:T(1,128)}', space=vmem, size = 0x12000, scoped, tag = 'internal scratch']
  %s0 = inlined_call_operand.vmem [shape: bf16[512,72], index: 0, kind: input, shape index: {}]
  %s1 = inlined_call_operand.vmem [shape: bf16[72,128], index: 1, kind: input, shape index: {}]
  %s2 = inlined_call_operand.vmem [shape: bf16[512,8], index: 2, kind: input, shape index: {}]
  %s3 = inlined_call_operand.vmem [shape: bf16[8,128], index: 3, kind: input, shape index: {}]
  %s4 = inlined_call_operand.vmem [shape: f32[1,128], index: 4, kind: input, shape index: {}]
  %s5 = inlined_call_operand.vmem [shape: bf16[512,128], index: 5, kind: output, shape index: {}]
  %s6 = sld [smem:[#allocation0]]
  $region30: #{liif_fpn_pred_forward.12} parent=0
    _
  %s8 = ssub.s32 1, %s6
  %s9 = scalar_select 0, %s8, %s6
  // Predicated region
  $region2: #{liif_fpn_pred_forward.12} parent=0 // pred_check
    _
  $region3: #{liif_fpn_pred_forward.12} parent=0 // pred_check_branch
    %11 = sbr.rel (0) target = $region5
  $region4: #{liif_fpn_pred_forward.12} parent=0 // pred_region
    _
  $region5: #{liif_fpn_pred_forward.12} parent=0 // pred_fallthru
    _
  // Predicated region
  $region6: #{liif_fpn_pred_forward.12} parent=0 // pred_check
    _
  $region7: #{liif_fpn_pred_forward.12} parent=0 // pred_check_branch
    %13 = sbr.rel (0) target = $region9
  $region8: #{liif_fpn_pred_forward.12} parent=0 // pred_region
    _
  $region9: #{liif_fpn_pred_forward.12} parent=0 // pred_fallthru
    _
  // Predicated region
  $region10: #{liif_fpn_pred_forward.12} parent=0 // pred_check
    _
  $region11: #{liif_fpn_pred_forward.12} parent=0 // pred_check_branch
    %15 = sbr.rel (0) target = $region13
  $region12: #{liif_fpn_pred_forward.12} parent=0 // pred_region
    _
  $region13: #{liif_fpn_pred_forward.12} parent=0 // pred_fallthru
    _
  // Predicated region
  $region14: #{liif_fpn_pred_forward.12} parent=0 // pred_check
    _
  $region15: #{liif_fpn_pred_forward.12} parent=0 // pred_check_branch
    %17 = sbr.rel (0) target = $region17
  $region16: #{liif_fpn_pred_forward.12} parent=0 // pred_region
    _
  $region17: #{liif_fpn_pred_forward.12} parent=0 // pred_fallthru
    _
  // Predicated region
  $region18: #{liif_fpn_pred_forward.12} parent=0 // pred_check
    _
  $region19: #{liif_fpn_pred_forward.12} parent=0 // pred_check_branch
    %19 = sbr.rel (0) target = $region21
  $region20: #{liif_fpn_pred_forward.12} parent=0 // pred_region
    _
  $region21: #{liif_fpn_pred_forward.12} parent=0 // pred_fallthru
    _
  %v21 = vld [vmem:[%s0] sm:$0xf]
  %v22 = vld [vmem:[%s0 + $0x4] sm:$0xf]
  %v23 = vld [vmem:[%s0 + $0x8] sm:$0xf]
  %v24 = vld [vmem:[%s0 + $0xc] sm:$0xf]
  %v25 = vld [vmem:[%s0 + $0x10] sm:$0xf]
  %v26 = vld [vmem:[%s0 + $0x14] sm:$0xf]
  %v27 = vld [vmem:[%s0 + $0x18] sm:$0xf]
  %v28 = vld [vmem:[%s0 + $0x1c] sm:$0xf]
  %v29 = vld [vmem:[%s0 + $0x20] sm:$0xf]
  %v30 = vld [vmem:[%s0 + $0x24] sm:$0xf]
  %v31 = vld [vmem:[%s0 + $0x28] sm:$0xf]
  %v32 = vld [vmem:[%s0 + $0x2c] sm:$0xf]
  %v33 = vld [vmem:[%s0 + $0x30] sm:$0xf]
  %v34 = vld [vmem:[%s0 + $0x34] sm:$0xf]
  %v35 = vld [vmem:[%s0 + $0x38] sm:$0xf]
  %v36 = vld [vmem:[%s0 + $0x3c] sm:$0xf]
  %v37 = vld [vmem:[%s0 + $0x40] sm:$0xf]
  %v38 = vld [vmem:[%s0 + $0x44] sm:$0xf]
  %v39 = vld [vmem:[%s0 + $0x48] sm:$0xf]
  %v40 = vld [vmem:[%s0 + $0x4c] sm:$0xf]
  %v41 = vld [vmem:[%s0 + $0x50] sm:$0xf]
  %v42 = vld [vmem:[%s0 + $0x54] sm:$0xf]
  %v43 = vld [vmem:[%s0 + $0x58] sm:$0xf]
  %v44 = vld [vmem:[%s0 + $0x5c] sm:$0xf]
  %v45 = vld [vmem:[%s0 + $0x60] sm:$0xf]
  %v46 = vld [vmem:[%s0 + $0x64] sm:$0xf]
  %v47 = vld [vmem:[%s0 + $0x68] sm:$0xf]
  %v48 = vld [vmem:[%s0 + $0x6c] sm:$0xf]
  %v49 = vld [vmem:[%s0 + $0x70] sm:$0xf]
  %v50 = vld [vmem:[%s0 + $0x74] sm:$0xf]
  %v51 = vld [vmem:[%s0 + $0x78] sm:$0xf]
  %v52 = vld [vmem:[%s0 + $0x7c] sm:$0xf]
  %v53 = vld [vmem:[%s0 + $0x80] sm:$0xf]
  %v54 = vld [vmem:[%s0 + $0x84] sm:$0xf]
  %v55 = vld [vmem:[%s0 + $0x88] sm:$0xf]
  %v56 = vld [vmem:[%s0 + $0x8c] sm:$0xf]
  %v57 = vld [vmem:[%s0 + $0x90] sm:$0xf]
  %v58 = vld [vmem:[%s0 + $0x94] sm:$0xf]
  %v59 = vld [vmem:[%s0 + $0x98] sm:$0xf]
  %v60 = vld [vmem:[%s0 + $0x9c] sm:$0xf]
  %v61 = vld [vmem:[%s0 + $0xa0] sm:$0xf]
  %v62 = vld [vmem:[%s0 + $0xa4] sm:$0xf]
  %v63 = vld [vmem:[%s0 + $0xa8] sm:$0xf]
  %v64 = vld [vmem:[%s0 + $0xac] sm:$0xf]
  %v65 = vld [vmem:[%s0 + $0xb0] sm:$0xf]
  %v66 = vld [vmem:[%s0 + $0xb4] sm:$0xf]
  %v67 = vld [vmem:[%s0 + $0xb8] sm:$0xf]
  %v68 = vld [vmem:[%s0 + $0xbc] sm:$0xf]
  %v69 = vld [vmem:[%s0 + $0xc0] sm:$0xf]
  %v70 = vld [vmem:[%s0 + $0xc4] sm:$0xf]
  %v71 = vld [vmem:[%s0 + $0xc8] sm:$0xf]
  %v72 = vld [vmem:[%s0 + $0xcc] sm:$0xf]
  %v73 = vld [vmem:[%s0 + $0xd0] sm:$0xf]
  %v74 = vld [vmem:[%s0 + $0xd4] sm:$0xf]
  %v75 = vld [vmem:[%s0 + $0xd8] sm:$0xf]
  %v76 = vld [vmem:[%s0 + $0xdc] sm:$0xf]
  %v77 = vld [vmem:[%s0 + $0xe0] sm:$0xf]
  %v78 = vld [vmem:[%s0 + $0xe4] sm:$0xf]
  %v79 = vld [vmem:[%s0 + $0xe8] sm:$0xf]
  %v80 = vld [vmem:[%s0 + $0xec] sm:$0xf]
  %v81 = vld [vmem:[%s0 + $0xf0] sm:$0xf]
  %v82 = vld [vmem:[%s0 + $0xf4] sm:$0xf]
  %v83 = vld [vmem:[%s0 + $0xf8] sm:$0xf]
  %v84 = vld [vmem:[%s0 + $0xfc] sm:$0xf]
  %v85 = vld [vmem:[%s1] sm:$0xf]
  %v86 = vld [vmem:[%s1 + $0x4] sm:$0xf]
  %v87 = vld [vmem:[%s1 + $0x8] sm:$0xf]
  %v88 = vld [vmem:[%s1 + $0xc] sm:$0xf]
  %v89 = vld [vmem:[%s1 + $0x10] sm:$0xf]
  %v90 = vld [vmem:[%s1 + $0x14] sm:$0xf]
  %v91 = vld [vmem:[%s1 + $0x18] sm:$0xf]
  %v92 = vld [vmem:[%s1 + $0x1c] sm:$0xf]
  %v93 = vld [vmem:[%s1 + $0x20] sm:$0xf]
  %v94 = vld [vmem:[%s2] sm:$0xf]
  %v95 = vld [vmem:[%s2 + $0x4] sm:$0xf]
  %v96 = vld [vmem:[%s2 + $0x8] sm:$0xf]
  %v97 = vld [vmem:[%s2 + $0xc] sm:$0xf]
  %v98 = vld [vmem:[%s2 + $0x10] sm:$0xf]
  %v99 = vld [vmem:[%s2 + $0x14] sm:$0xf]
  %v100 = vld [vmem:[%s2 + $0x18] sm:$0xf]
  %v101 = vld [vmem:[%s2 + $0x1c] sm:$0xf]
  %v102 = vld [vmem:[%s2 + $0x20] sm:$0xf]
  %v103 = vld [vmem:[%s2 + $0x24] sm:$0xf]
  %v104 = vld [vmem:[%s2 + $0x28] sm:$0xf]
  %v105 = vld [vmem:[%s2 + $0x2c] sm:$0xf]
  %v106 = vld [vmem:[%s2 + $0x30] sm:$0xf]
  %v107 = vld [vmem:[%s2 + $0x34] sm:$0xf]
  %v108 = vld [vmem:[%s2 + $0x38] sm:$0xf]
  %v109 = vld [vmem:[%s2 + $0x3c] sm:$0xf]
  %v110 = vld [vmem:[%s2 + $0x40] sm:$0xf]
  %v111 = vld [vmem:[%s2 + $0x44] sm:$0xf]
  %v112 = vld [vmem:[%s2 + $0x48] sm:$0xf]
  %v113 = vld [vmem:[%s2 + $0x4c] sm:$0xf]
  %v114 = vld [vmem:[%s2 + $0x50] sm:$0xf]
  %v115 = vld [vmem:[%s2 + $0x54] sm:$0xf]
  %v116 = vld [vmem:[%s2 + $0x58] sm:$0xf]
  %v117 = vld [vmem:[%s2 + $0x5c] sm:$0xf]
  %v118 = vld [vmem:[%s2 + $0x60] sm:$0xf]
  %v119 = vld [vmem:[%s2 + $0x64] sm:$0xf]
  %v120 = vld [vmem:[%s2 + $0x68] sm:$0xf]
  %v121 = vld [vmem:[%s2 + $0x6c] sm:$0xf]
  %v122 = vld [vmem:[%s2 + $0x70] sm:$0xf]
  %v123 = vld [vmem:[%s2 + $0x74] sm:$0xf]
  %v124 = vld [vmem:[%s2 + $0x78] sm:$0xf]
  %v125 = vld [vmem:[%s2 + $0x7c] sm:$0xf]
  %v126 = vld [vmem:[%s2 + $0x80] sm:$0xf]
  %v127 = vld [vmem:[%s2 + $0x84] sm:$0xf]
  %v128 = vld [vmem:[%s2 + $0x88] sm:$0xf]
  %v129 = vld [vmem:[%s2 + $0x8c] sm:$0xf]
  %v130 = vld [vmem:[%s2 + $0x90] sm:$0xf]
  %v131 = vld [vmem:[%s2 + $0x94] sm:$0xf]
  %v132 = vld [vmem:[%s2 + $0x98] sm:$0xf]
  %v133 = vld [vmem:[%s2 + $0x9c] sm:$0xf]
  %v134 = vld [vmem:[%s2 + $0xa0] sm:$0xf]
  %v135 = vld [vmem:[%s2 + $0xa4] sm:$0xf]
  %v136 = vld [vmem:[%s2 + $0xa8] sm:$0xf]
  %v137 = vld [vmem:[%s2 + $0xac] sm:$0xf]
  %v138 = vld [vmem:[%s2 + $0xb0] sm:$0xf]
  %v139 = vld [vmem:[%s2 + $0xb4] sm:$0xf]
  %v140 = vld [vmem:[%s2 + $0xb8] sm:$0xf]
  %v141 = vld [vmem:[%s2 + $0xbc] sm:$0xf]
  %v142 = vld [vmem:[%s2 + $0xc0] sm:$0xf]
  %v143 = vld [vmem:[%s2 + $0xc4] sm:$0xf]
  %v144 = vld [vmem:[%s2 + $0xc8] sm:$0xf]
  %v145 = vld [vmem:[%s2 + $0xcc] sm:$0xf]
  %v146 = vld [vmem:[%s2 + $0xd0] sm:$0xf]
  %v147 = vld [vmem:[%s2 + $0xd4] sm:$0xf]
  %v148 = vld [vmem:[%s2 + $0xd8] sm:$0xf]
  %v149 = vld [vmem:[%s2 + $0xdc] sm:$0xf]
  %v150 = vld [vmem:[%s2 + $0xe0] sm:$0xf]
  %v151 = vld [vmem:[%s2 + $0xe4] sm:$0xf]
  %v152 = vld [vmem:[%s2 + $0xe8] sm:$0xf]
  %v153 = vld [vmem:[%s2 + $0xec] sm:$0xf]
  %v154 = vld [vmem:[%s2 + $0xf0] sm:$0xf]
  %v155 = vld [vmem:[%s2 + $0xf4] sm:$0xf]
  %v156 = vld [vmem:[%s2 + $0xf8] sm:$0xf]
  %v157 = vld [vmem:[%s2 + $0xfc] sm:$0xf]
  %v158 = vld [vmem:[%s3] sm:$0xf]
  %v223 = vunpack.c.l.b16 %v94
  %v224 = vunpack.c.l.b16 %v95
  %v225 = vunpack.c.l.b16 %v96
  %v226 = vunpack.c.l.b16 %v97
  %v227 = vunpack.c.l.b16 %v98
  %v228 = vunpack.c.l.b16 %v99
  %v229 = vunpack.c.l.b16 %v100
  %v230 = vunpack.c.l.b16 %v101
  %v231 = vunpack.c.l.b16 %v102
  %v232 = vunpack.c.l.b16 %v103
  %v233 = vunpack.c.l.b16 %v104
  %v234 = vunpack.c.l.b16 %v105
  %v235 = vunpack.c.l.b16 %v106
  %v236 = vunpack.c.l.b16 %v107
  %v237 = vunpack.c.l.b16 %v108
  %v238 = vunpack.c.l.b16 %v109
  %v239 = vunpack.c.l.b16 %v110
  %v240 = vunpack.c.l.b16 %v111
  %v241 = vunpack.c.l.b16 %v112
  %v242 = vunpack.c.l.b16 %v113
  %v243 = vunpack.c.l.b16 %v114
  %v244 = vunpack.c.l.b16 %v115
  %v245 = vunpack.c.l.b16 %v116
  %v246 = vunpack.c.l.b16 %v117
  %v247 = vunpack.c.l.b16 %v118
  %v248 = vunpack.c.l.b16 %v119
  %v249 = vunpack.c.l.b16 %v120
  %v250 = vunpack.c.l.b16 %v121
  %v251 = vunpack.c.l.b16 %v122
  %v252 = vunpack.c.l.b16 %v123
  %v253 = vunpack.c.l.b16 %v124
  %v254 = vunpack.c.l.b16 %v125
  %v255 = vunpack.c.l.b16 %v126
  %v256 = vunpack.c.l.b16 %v127
  %v257 = vunpack.c.l.b16 %v128
  %v258 = vunpack.c.l.b16 %v129
  %v259 = vunpack.c.l.b16 %v130
  %v260 = vunpack.c.l.b16 %v131
  %v261 = vunpack.c.l.b16 %v132
  %v262 = vunpack.c.l.b16 %v133
  %v263 = vunpack.c.l.b16 %v134
  %v264 = vunpack.c.l.b16 %v135
  %v265 = vunpack.c.l.b16 %v136
  %v266 = vunpack.c.l.b16 %v137
  %v267 = vunpack.c.l.b16 %v138
  %v268 = vunpack.c.l.b16 %v139
  %v269 = vunpack.c.l.b16 %v140
  %v270 = vunpack.c.l.b16 %v141
  %v271 = vunpack.c.l.b16 %v142
  %v272 = vunpack.c.l.b16 %v143
  %v273 = vunpack.c.l.b16 %v144
  %v274 = vunpack.c.l.b16 %v145
  %v275 = vunpack.c.l.b16 %v146
  %v276 = vunpack.c.l.b16 %v147
  %v277 = vunpack.c.l.b16 %v148
  %v278 = vunpack.c.l.b16 %v149
  %v279 = vunpack.c.l.b16 %v150
  %v280 = vunpack.c.l.b16 %v151
  %v281 = vunpack.c.l.b16 %v152
  %v282 = vunpack.c.l.b16 %v153
  %v283 = vunpack.c.l.b16 %v154
  %v284 = vunpack.c.l.b16 %v155
  %v285 = vunpack.c.l.b16 %v156
  %v286 = vunpack.c.l.b16 %v157
  %v287 = vpack.c.b16 %v224, %v223
  %v288 = vpack.c.b16 %v226, %v225
  %v289 = vpack.c.b16 %v228, %v227
  %v290 = vpack.c.b16 %v230, %v229
  %v291 = vpack.c.b16 %v232, %v231
  %v292 = vpack.c.b16 %v234, %v233
  %v293 = vpack.c.b16 %v236, %v235
  %v294 = vpack.c.b16 %v238, %v237
  %v295 = vpack.c.b16 %v240, %v239
  %v296 = vpack.c.b16 %v242, %v241
  %v297 = vpack.c.b16 %v244, %v243
  %v298 = vpack.c.b16 %v246, %v245
  %v299 = vpack.c.b16 %v248, %v247
  %v300 = vpack.c.b16 %v250, %v249
  %v301 = vpack.c.b16 %v252, %v251
  %v302 = vpack.c.b16 %v254, %v253
  %v303 = vpack.c.b16 %v256, %v255
  %v304 = vpack.c.b16 %v258, %v257
  %v305 = vpack.c.b16 %v260, %v259
  %v306 = vpack.c.b16 %v262, %v261
  %v307 = vpack.c.b16 %v264, %v263
  %v308 = vpack.c.b16 %v266, %v265
  %v309 = vpack.c.b16 %v268, %v267
  %v310 = vpack.c.b16 %v270, %v269
  %v311 = vpack.c.b16 %v272, %v271
  %v312 = vpack.c.b16 %v274, %v273
  %v313 = vpack.c.b16 %v276, %v275
  %v314 = vpack.c.b16 %v278, %v277
  %v315 = vpack.c.b16 %v280, %v279
  %v316 = vpack.c.b16 %v282, %v281
  %v317 = vpack.c.b16 %v284, %v283
  %v318 = vpack.c.b16 %v286, %v285
  %vm319 = vcmask 64512
  %v321 = vsel %vm319, %v287, 0
  %v324 = vsel %vm319, %v288, 0
  %v327 = vsel %vm319, %v289, 0
  %v330 = vsel %vm319, %v290, 0
  %v333 = vsel %vm319, %v291, 0
  %v336 = vsel %vm319, %v292, 0
  %v339 = vsel %vm319, %v293, 0
  %v342 = vsel %vm319, %v294, 0
  %v345 = vsel %vm319, %v295, 0
  %v348 = vsel %vm319, %v296, 0
  %v351 = vsel %vm319, %v297, 0
  %v354 = vsel %vm319, %v298, 0
  %v357 = vsel %vm319, %v299, 0
  %v360 = vsel %vm319, %v300, 0
  %v363 = vsel %vm319, %v301, 0
  %v366 = vsel %vm319, %v302, 0
  %v369 = vsel %vm319, %v303, 0
  %v372 = vsel %vm319, %v304, 0
  %v375 = vsel %vm319, %v305, 0
  %v378 = vsel %vm319, %v306, 0
  %v381 = vsel %vm319, %v307, 0
  %v384 = vsel %vm319, %v308, 0
  %v387 = vsel %vm319, %v309, 0
  %v390 = vsel %vm319, %v310, 0
  %v393 = vsel %vm319, %v311, 0
  %v396 = vsel %vm319, %v312, 0
  %v399 = vsel %vm319, %v313, 0
  %v402 = vsel %vm319, %v314, 0
  %v405 = vsel %vm319, %v315, 0
  %v408 = vsel %vm319, %v316, 0
  %v411 = vsel %vm319, %v317, 0
  %v414 = vsel %vm319, %v318, 0
  %vm416 = vcmask 1043456
  %v418 = vsel %vm416, %v158, 0
  %420 = vmatprep.subr.bf16.mxu0 0
  %421 = vmatpush1.bf16.msra.mxu0 %v418
  %422 = vmatprep.subr.bf16.mxu0 0
  %423 = vmatpush1.bf16.msra.mxu0 0
  %424 = vmatprep.subr.bf16.mxu0 0
  %425 = vmatpush1.bf16.msra.mxu0 0
  %426 = vmatprep.subr.bf16.mxu0 0
  %427 = vmatpush1.bf16.msra.mxu0 0
  %428 = vmatprep.subr.bf16.mxu0 0
  %429 = vmatpush1.bf16.msra.mxu0 0
  %430 = vmatprep.subr.bf16.mxu0 0
  %431 = vmatpush1.bf16.msra.mxu0 0
  %432 = vmatprep.subr.bf16.mxu0 0
  %433 = vmatpush1.bf16.msra.mxu0 0
  %434 = vmatprep.subr.bf16.mxu0 0
  %435 = vmatpush1.bf16.msra.mxu0 0
  %436 = vmatprep.subr.bf16.mxu0 0
  %437 = vmatpush1.bf16.msra.mxu0 0
  %438 = vmatprep.subr.bf16.mxu0 0
  %439 = vmatpush1.bf16.msra.mxu0 0
  %440 = vmatprep.subr.bf16.mxu0 0
  %441 = vmatpush1.bf16.msra.mxu0 0
  %442 = vmatprep.subr.bf16.mxu0 0
  %443 = vmatpush1.bf16.msra.mxu0 0
  %444 = vmatprep.subr.bf16.mxu0 0
  %445 = vmatpush1.bf16.msra.mxu0 0
  %446 = vmatprep.subr.bf16.mxu0 0
  %447 = vmatpush1.bf16.msra.mxu0 0
  %448 = vmatprep.subr.bf16.mxu0 0
  %449 = vmatpush1.bf16.msra.mxu0 0
  %450 = vmatprep.subr.bf16.mxu0 0
  %451 = vmatpush1.bf16.msra.mxu0 0
  %452 = vmatprep.mubr.bf16.mxu0 0
  %453 = vmatmul.mubr.bf16.gmra.mrb[0].mxu0 %v321
  %v454 = vpop.f32.mrb[0].mxu0
  %v455 = vadd.f32 0.0, %v454
  %v456 = vpop.f32.mrb[0].mxu0
  %v457 = vpop.f32.mrb[0].mxu0
  %v458 = vadd.f32 0.0, %v457
  %v459 = vpop.f32.mrb[0].mxu0
  %460 = vmatprep.mubr.bf16.mxu0 0
  %461 = vmatmul.mubr.bf16.gmra.mrb[0].mxu0 %v324
  %v462 = vpop.f32.mrb[0].mxu0
  %v463 = vadd.f32 0.0, %v462
  %v464 = vpop.f32.mrb[0].mxu0
  %v465 = vpop.f32.mrb[0].mxu0
  %v466 = vadd.f32 0.0, %v465
  %v467 = vpop.f32.mrb[0].mxu0
  %468 = vmatprep.mubr.bf16.mxu0 0
  %469 = vmatmul.mubr.bf16.gmra.mrb[0].mxu0 %v327
  %v470 = vpop.f32.mrb[0].mxu0
  %v471 = vadd.f32 0.0, %v470
  %v472 = vpop.f32.mrb[0].mxu0
  %v473 = vpop.f32.mrb[0].mxu0
  %v474 = vadd.f32 0.0, %v473
  %v475 = vpop.f32.mrb[0].mxu0
  %476 = vmatprep.mubr.bf16.mxu0 0
  %477 = vmatmul.mubr.bf16.gmra.mrb[0].mxu0 %v330
  %v478 = vpop.f32.mrb[0].mxu0
  %v479 = vadd.f32 0.0, %v478
  %v480 = vpop.f32.mrb[0].mxu0
  %v481 = vpop.f32.mrb[0].mxu0
  %v482 = vadd.f32 0.0, %v481
  %v483 = vpop.f32.mrb[0].mxu0
  %484 = vmatprep.mubr.bf16.mxu0 0
  %485 = vmatmul.mubr.bf16.gmra.mrb[0].mxu0 %v333
  %v486 = vpop.f32.mrb[0].mxu0
  %v487 = vadd.f32 0.0, %v486
  %v488 = vpop.f32.mrb[0].mxu0
  %v489 = vpop.f32.mrb[0].mxu0
  %v490 = vadd.f32 0.0, %v489
  %v491 = vpop.f32.mrb[0].mxu0
  %492 = vmatprep.mubr.bf16.mxu0 0
  %493 = vmatmul.mubr.bf16.gmra.mrb[0].mxu0 %v336
  %v494 = vpop.f32.mrb[0].mxu0
  %v495 = vadd.f32 0.0, %v494
  %v496 = vpop.f32.mrb[0].mxu0
  %v497 = vpop.f32.mrb[0].mxu0
  %v498 = vadd.f32 0.0, %v497
  %v499 = vpop.f32.mrb[0].mxu0
  %500 = vmatprep.mubr.bf16.mxu0 0
  %501 = vmatmul.mubr.bf16.gmra.mrb[0].mxu0 %v339
  %v502 = vpop.f32.mrb[0].mxu0
  %v503 = vadd.f32 0.0, %v502
  %v504 = vpop.f32.mrb[0].mxu0
  %v505 = vpop.f32.mrb[0].mxu0
  %v506 = vadd.f32 0.0, %v505
  %v507 = vpop.f32.mrb[0].mxu0
  %508 = vmatprep.mubr.bf16.mxu0 0
  %509 = vmatmul.mubr.bf16.gmra.mrb[0].mxu0 %v342
  %v510 = vpop.f32.mrb[0].mxu0
  %v511 = vadd.f32 0.0, %v510
  %v512 = vpop.f32.mrb[0].mxu0
  %v513 = vpop.f32.mrb[0].mxu0
  %v514 = vadd.f32 0.0, %v513
  %v515 = vpop.f32.mrb[0].mxu0
  %516 = vmatprep.mubr.bf16.mxu0 0
  %517 = vmatmul.mubr.bf16.gmra.mrb[0].mxu0 %v345
  %v518 = vpop.f32.mrb[0].mxu0
  %v519 = vadd.f32 0.0, %v518
  %v520 = vpop.f32.mrb[0].mxu0
  %v521 = vpop.f32.mrb[0].mxu0
  %v522 = vadd.f32 0.0, %v521
  %v523 = vpop.f32.mrb[0].mxu0
  %524 = vmatprep.mubr.bf16.mxu0 0
  %525 = vmatmul.mubr.bf16.gmra.mrb[0].mxu0 %v348
  %v526 = vpop.f32.mrb[0].mxu0
  %v527 = vadd.f32 0.0, %v526
  %v528 = vpop.f32.mrb[0].mxu0
  %v529 = vpop.f32.mrb[0].mxu0
  %v530 = vadd.f32 0.0, %v529
  %v531 = vpop.f32.mrb[0].mxu0
  %532 = vmatprep.mubr.bf16.mxu0 0
  %533 = vmatmul.mubr.bf16.gmra.mrb[0].mxu0 %v351
  %v534 = vpop.f32.mrb[0].mxu0
  %v535 = vadd.f32 0.0, %v534
  %v536 = vpop.f32.mrb[0].mxu0
  %v537 = vpop.f32.mrb[0].mxu0
  %v538 = vadd.f32 0.0, %v537
  %v539 = vpop.f32.mrb[0].mxu0
  %540 = vmatprep.mubr.bf16.mxu0 0
  %541 = vmatmul.mubr.bf16.gmra.mrb[0].mxu0 %v354
  %v542 = vpop.f32.mrb[0].mxu0
  %v543 = vadd.f32 0.0, %v542
  %v544 = vpop.f32.mrb[0].mxu0
  %v545 = vpop.f32.mrb[0].mxu0
  %v546 = vadd.f32 0.0, %v545
  %v547 = vpop.f32.mrb[0].mxu0
  %548 = vmatprep.mubr.bf16.mxu0 0
  %549 = vmatmul.mubr.bf16.gmra.mrb[0].mxu0 %v357
  %v550 = vpop.f32.mrb[0].mxu0
  %v551 = vadd.f32 0.0, %v550
  %v552 = vpop.f32.mrb[0].mxu0
  %v553 = vpop.f32.mrb[0].mxu0
  %v554 = vadd.f32 0.0, %v553
  %v555 = vpop.f32.mrb[0].mxu0
  %556 = vmatprep.mubr.bf16.mxu0 0
  %557 = vmatmul.mubr.bf16.gmra.mrb[0].mxu0 %v360
  %v558 = vpop.f32.mrb[0].mxu0
  %v559 = vadd.f32 0.0, %v558
  %v560 = vpop.f32.mrb[0].mxu0
  %v561 = vpop.f32.mrb[0].mxu0
  %v562 = vadd.f32 0.0, %v561
  %v563 = vpop.f32.mrb[0].mxu0
  %564 = vmatprep.mubr.bf16.mxu0 0
  %565 = vmatmul.mubr.bf16.gmra.mrb[0].mxu0 %v363
  %v566 = vpop.f32.mrb[0].mxu0
  %v567 = vadd.f32 0.0, %v566
  %v568 = vpop.f32.mrb[0].mxu0
  %v569 = vpop.f32.mrb[0].mxu0
  %v570 = vadd.f32 0.0, %v569
  %v571 = vpop.f32.mrb[0].mxu0
  %572 = vmatprep.mubr.bf16.mxu0 0
  %573 = vmatmul.mubr.bf16.gmra.mrb[0].mxu0 %v366
  %v574 = vpop.f32.mrb[0].mxu0
  %v575 = vadd.f32 0.0, %v574
  %v576 = vpop.f32.mrb[0].mxu0
  %v577 = vpop.f32.mrb[0].mxu0
  %v578 = vadd.f32 0.0, %v577
  %v579 = vpop.f32.mrb[0].mxu0
  %580 = vmatprep.mubr.bf16.mxu0 0
  %581 = vmatmul.mubr.bf16.gmra.mrb[0].mxu0 %v369
  %v582 = vpop.f32.mrb[0].mxu0
  %v583 = vadd.f32 0.0, %v582
  %v584 = vpop.f32.mrb[0].mxu0
  %v585 = vpop.f32.mrb[0].mxu0
  %v586 = vadd.f32 0.0, %v585
  %v587 = vpop.f32.mrb[0].mxu0
  %588 = vmatprep.mubr.bf16.mxu0 0
  %589 = vmatmul.mubr.bf16.gmra.mrb[0].mxu0 %v372
  %v590 = vpop.f32.mrb[0].mxu0
  %v591 = vadd.f32 0.0, %v590
  %v592 = vpop.f32.mrb[0].mxu0
  %v593 = vpop.f32.mrb[0].mxu0
  %v594 = vadd.f32 0.0, %v593
  %v595 = vpop.f32.mrb[0].mxu0
  %596 = vmatprep.mubr.bf16.mxu0 0
  %597 = vmatmul.mubr.bf16.gmra.mrb[0].mxu0 %v375
  %v598 = vpop.f32.mrb[0].mxu0
  %v599 = vadd.f32 0.0, %v598
  %v600 = vpop.f32.mrb[0].mxu0
  %v601 = vpop.f32.mrb[0].mxu0
  %v602 = vadd.f32 0.0, %v601
  %v603 = vpop.f32.mrb[0].mxu0
  %604 = vmatprep.mubr.bf16.mxu0 0
  %605 = vmatmul.mubr.bf16.gmra.mrb[0].mxu0 %v378
  %v606 = vpop.f32.mrb[0].mxu0
  %v607 = vadd.f32 0.0, %v606
  %v608 = vpop.f32.mrb[0].mxu0
  %v609 = vpop.f32.mrb[0].mxu0
  %v610 = vadd.f32 0.0, %v609
  %v611 = vpop.f32.mrb[0].mxu0
  %612 = vmatprep.mubr.bf16.mxu0 0
  %613 = vmatmul.mubr.bf16.gmra.mrb[0].mxu0 %v381
  %v614 = vpop.f32.mrb[0].mxu0
  %v615 = vadd.f32 0.0, %v614
  %v616 = vpop.f32.mrb[0].mxu0
  %v617 = vpop.f32.mrb[0].mxu0
  %v618 = vadd.f32 0.0, %v617
  %v619 = vpop.f32.mrb[0].mxu0
  %620 = vmatprep.mubr.bf16.mxu0 0
  %621 = vmatmul.mubr.bf16.gmra.mrb[0].mxu0 %v384
  %v622 = vpop.f32.mrb[0].mxu0
  %v623 = vadd.f32 0.0, %v622
  %v624 = vpop.f32.mrb[0].mxu0
  %v625 = vpop.f32.mrb[0].mxu0
  %v626 = vadd.f32 0.0, %v625
  %v627 = vpop.f32.mrb[0].mxu0
  %628 = vmatprep.mubr.bf16.mxu0 0
  %629 = vmatmul.mubr.bf16.gmra.mrb[0].mxu0 %v387
  %v630 = vpop.f32.mrb[0].mxu0
  %v631 = vadd.f32 0.0, %v630
  %v632 = vpop.f32.mrb[0].mxu0
  %v633 = vpop.f32.mrb[0].mxu0
  %v634 = vadd.f32 0.0, %v633
  %v635 = vpop.f32.mrb[0].mxu0
  %636 = vmatprep.mubr.bf16.mxu0 0
  %637 = vmatmul.mubr.bf16.gmra.mrb[0].mxu0 %v390
  %v638 = vpop.f32.mrb[0].mxu0
  %v639 = vadd.f32 0.0, %v638
  %v640 = vpop.f32.mrb[0].mxu0
  %v641 = vpop.f32.mrb[0].mxu0
  %v642 = vadd.f32 0.0, %v641
  %v643 = vpop.f32.mrb[0].mxu0
  %644 = vmatprep.mubr.bf16.mxu0 0
  %645 = vmatmul.mubr.bf16.gmra.mrb[0].mxu0 %v393
  %v646 = vpop.f32.mrb[0].mxu0
  %v647 = vadd.f32 0.0, %v646
  %v648 = vpop.f32.mrb[0].mxu0
  %v649 = vpop.f32.mrb[0].mxu0
  %v650 = vadd.f32 0.0, %v649
  %v651 = vpop.f32.mrb[0].mxu0
  %652 = vmatprep.mubr.bf16.mxu0 0
  %653 = vmatmul.mubr.bf16.gmra.mrb[0].mxu0 %v396
  %v654 = vpop.f32.mrb[0].mxu0
  %v655 = vadd.f32 0.0, %v654
  %v656 = vpop.f32.mrb[0].mxu0
  %v657 = vpop.f32.mrb[0].mxu0
  %v658 = vadd.f32 0.0, %v657
  %v659 = vpop.f32.mrb[0].mxu0
  %660 = vmatprep.mubr.bf16.mxu0 0
  %661 = vmatmul.mubr.bf16.gmra.mrb[0].mxu0 %v399
  %v662 = vpop.f32.mrb[0].mxu0
  %v663 = vadd.f32 0.0, %v662
  %v664 = vpop.f32.mrb[0].mxu0
  %v665 = vpop.f32.mrb[0].mxu0
  %v666 = vadd.f32 0.0, %v665
  %v667 = vpop.f32.mrb[0].mxu0
  %668 = vmatprep.mubr.bf16.mxu0 0
  %669 = vmatmul.mubr.bf16.gmra.mrb[0].mxu0 %v402
  %v670 = vpop.f32.mrb[0].mxu0
  %v671 = vadd.f32 0.0, %v670
  %v672 = vpop.f32.mrb[0].mxu0
  %v673 = vpop.f32.mrb[0].mxu0
  %v674 = vadd.f32 0.0, %v673
  %v675 = vpop.f32.mrb[0].mxu0
  %676 = vmatprep.mubr.bf16.mxu0 0
  %677 = vmatmul.mubr.bf16.gmra.mrb[0].mxu0 %v405
  %v678 = vpop.f32.mrb[0].mxu0
  %v679 = vadd.f32 0.0, %v678
  %v680 = vpop.f32.mrb[0].mxu0
  %v681 = vpop.f32.mrb[0].mxu0
  %v682 = vadd.f32 0.0, %v681
  %v683 = vpop.f32.mrb[0].mxu0
  %684 = vmatprep.mubr.bf16.mxu0 0
  %685 = vmatmul.mubr.bf16.gmra.mrb[0].mxu0 %v408
  %v686 = vpop.f32.mrb[0].mxu0
  %v687 = vadd.f32 0.0, %v686
  %v688 = vpop.f32.mrb[0].mxu0
  %v689 = vpop.f32.mrb[0].mxu0
  %v690 = vadd.f32 0.0, %v689
  %v691 = vpop.f32.mrb[0].mxu0
  %692 = vmatprep.mubr.bf16.mxu0 0
  %693 = vmatmul.mubr.bf16.gmra.mrb[0].mxu0 %v411
  %v694 = vpop.f32.mrb[0].mxu0
  %v695 = vadd.f32 0.0, %v694
  %v696 = vpop.f32.mrb[0].mxu0
  %v697 = vpop.f32.mrb[0].mxu0
  %v698 = vadd.f32 0.0, %v697
  %v699 = vpop.f32.mrb[0].mxu0
  %700 = vmatprep.mubr.bf16.mxu0 0
  %701 = vmatmul.mubr.bf16.gmra.mrb[0].mxu0 %v414
  %v702 = vpop.f32.mrb[0].mxu0
  %v703 = vadd.f32 0.0, %v702
  %v704 = vpop.f32.mrb[0].mxu0
  %v705 = vpop.f32.mrb[0].mxu0
  %v706 = vadd.f32 0.0, %v705
  %v707 = vpop.f32.mrb[0].mxu0
  %708 = vdwg.mxu0
  %v773 = vunpack.c.l.b16 %v21
  %v774 = vunpack.c.l.b16 %v22
  %v775 = vunpack.c.l.b16 %v23
  %v776 = vunpack.c.l.b16 %v24
  %v777 = vunpack.c.l.b16 %v25
  %v778 = vunpack.c.l.b16 %v26
  %v779 = vunpack.c.l.b16 %v27
  %v780 = vunpack.c.l.b16 %v28
  %v781 = vunpack.c.l.b16 %v29
  %v782 = vunpack.c.l.b16 %v30
  %v783 = vunpack.c.l.b16 %v31
  %v784 = vunpack.c.l.b16 %v32
  %v785 = vunpack.c.l.b16 %v33
  %v786 = vunpack.c.l.b16 %v34
  %v787 = vunpack.c.l.b16 %v35
  %v788 = vunpack.c.l.b16 %v36
  %v789 = vunpack.c.l.b16 %v37
  %v790 = vunpack.c.l.b16 %v38
  %v791 = vunpack.c.l.b16 %v39
  %v792 = vunpack.c.l.b16 %v40
  %v793 = vunpack.c.l.b16 %v41
  %v794 = vunpack.c.l.b16 %v42
  %v795 = vunpack.c.l.b16 %v43
  %v796 = vunpack.c.l.b16 %v44
  %v797 = vunpack.c.l.b16 %v45
  %v798 = vunpack.c.l.b16 %v46
  %v799 = vunpack.c.l.b16 %v47
  %v800 = vunpack.c.l.b16 %v48
  %v801 = vunpack.c.l.b16 %v49
  %v802 = vunpack.c.l.b16 %v50
  %v803 = vunpack.c.l.b16 %v51
  %v804 = vunpack.c.l.b16 %v52
  %v805 = vunpack.c.l.b16 %v53
  %v806 = vunpack.c.l.b16 %v54
  %v807 = vunpack.c.l.b16 %v55
  %v808 = vunpack.c.l.b16 %v56
  %v809 = vunpack.c.l.b16 %v57
  %v810 = vunpack.c.l.b16 %v58
  %v811 = vunpack.c.l.b16 %v59
  %v812 = vunpack.c.l.b16 %v60
  %v813 = vunpack.c.l.b16 %v61
  %v814 = vunpack.c.l.b16 %v62
  %v815 = vunpack.c.l.b16 %v63
  %v816 = vunpack.c.l.b16 %v64
  %v817 = vunpack.c.l.b16 %v65
  %v818 = vunpack.c.l.b16 %v66
  %v819 = vunpack.c.l.b16 %v67
  %v820 = vunpack.c.l.b16 %v68
  %v821 = vunpack.c.l.b16 %v69
  %v822 = vunpack.c.l.b16 %v70
  %v823 = vunpack.c.l.b16 %v71
  %v824 = vunpack.c.l.b16 %v72
  %v825 = vunpack.c.l.b16 %v73
  %v826 = vunpack.c.l.b16 %v74
  %v827 = vunpack.c.l.b16 %v75
  %v828 = vunpack.c.l.b16 %v76
  %v829 = vunpack.c.l.b16 %v77
  %v830 = vunpack.c.l.b16 %v78
  %v831 = vunpack.c.l.b16 %v79
  %v832 = vunpack.c.l.b16 %v80
  %v833 = vunpack.c.l.b16 %v81
  %v834 = vunpack.c.l.b16 %v82
  %v835 = vunpack.c.l.b16 %v83
  %v836 = vunpack.c.l.b16 %v84
  %v837 = vpack.c.b16 %v774, %v773
  %v838 = vpack.c.b16 %v776, %v775
  %v839 = vpack.c.b16 %v778, %v777
  %v840 = vpack.c.b16 %v780, %v779
  %v841 = vpack.c.b16 %v782, %v781
  %v842 = vpack.c.b16 %v784, %v783
  %v843 = vpack.c.b16 %v786, %v785
  %v844 = vpack.c.b16 %v788, %v787
  %v845 = vpack.c.b16 %v790, %v789
  %v846 = vpack.c.b16 %v792, %v791
  %v847 = vpack.c.b16 %v794, %v793
  %v848 = vpack.c.b16 %v796, %v795
  %v849 = vpack.c.b16 %v798, %v797
  %v850 = vpack.c.b16 %v800, %v799
  %v851 = vpack.c.b16 %v802, %v801
  %v852 = vpack.c.b16 %v804, %v803
  %v853 = vpack.c.b16 %v806, %v805
  %v854 = vpack.c.b16 %v808, %v807
  %v855 = vpack.c.b16 %v810, %v809
  %v856 = vpack.c.b16 %v812, %v811
  %v857 = vpack.c.b16 %v814, %v813
  %v858 = vpack.c.b16 %v816, %v815
  %v859 = vpack.c.b16 %v818, %v817
  %v860 = vpack.c.b16 %v820, %v819
  %v861 = vpack.c.b16 %v822, %v821
  %v862 = vpack.c.b16 %v824, %v823
  %v863 = vpack.c.b16 %v826, %v825
  %v864 = vpack.c.b16 %v828, %v827
  %v865 = vpack.c.b16 %v830, %v829
  %v866 = vpack.c.b16 %v832, %v831
  %v867 = vpack.c.b16 %v834, %v833
  %v868 = vpack.c.b16 %v836, %v835
  %v878 = vunpack.c.l.b16 %v85
  %v879 = vunpack.c.l.b16 %v86
  %v880 = vunpack.c.l.b16 %v87
  %v881 = vunpack.c.l.b16 %v88
  %v882 = vunpack.c.l.b16 %v89
  %v883 = vunpack.c.l.b16 %v90
  %v884 = vunpack.c.l.b16 %v91
  %v885 = vunpack.c.l.b16 %v92
  %v886 = vunpack.c.l.b16 %v93
  %v887 = vpack.c.b16 %v879, %v878
  %v888 = vpack.c.b16 %v881, %v880
  %v889 = vpack.c.b16 %v883, %v882
  %v890 = vpack.c.b16 %v885, %v884
  %v891 = vpack.c.b16 %v886, %v886
  %vm896 = vcmask 588800
  %v898 = vsel %vm896, %v837, 0
  %v901 = vsel %vm896, %v838, 0
  %v904 = vsel %vm896, %v839, 0
  %v907 = vsel %vm896, %v840, 0
  %v910 = vsel %vm896, %v841, 0
  %v913 = vsel %vm896, %v842, 0
  %v916 = vsel %vm896, %v843, 0
  %v919 = vsel %vm896, %v844, 0
  %v922 = vsel %vm896, %v845, 0
  %v925 = vsel %vm896, %v846, 0
  %v928 = vsel %vm896, %v847, 0
  %v931 = vsel %vm896, %v848, 0
  %v934 = vsel %vm896, %v849, 0
  %v937 = vsel %vm896, %v850, 0
  %v940 = vsel %vm896, %v851, 0
  %v943 = vsel %vm896, %v852, 0
  %v946 = vsel %vm896, %v853, 0
  %v949 = vsel %vm896, %v854, 0
  %v952 = vsel %vm896, %v855, 0
  %v955 = vsel %vm896, %v856, 0
  %v958 = vsel %vm896, %v857, 0
  %v961 = vsel %vm896, %v858, 0
  %v964 = vsel %vm896, %v859, 0
  %v967 = vsel %vm896, %v860, 0
  %v970 = vsel %vm896, %v861, 0
  %v973 = vsel %vm896, %v862, 0
  %v976 = vsel %vm896, %v863, 0
  %v979 = vsel %vm896, %v864, 0
  %v982 = vsel %vm896, %v865, 0
  %v985 = vsel %vm896, %v866, 0
  %v988 = vsel %vm896, %v867, 0
  %v991 = vsel %vm896, %v868, 0
  %v994 = vsel %vm416, %v891, 0
  %996 = vmatprep.subr.bf16.mxu0 0
  %997 = vmatpush1.bf16.msra.mxu0 %v887
  %998 = vmatprep.subr.bf16.mxu0 0
  %999 = vmatpush1.bf16.msra.mxu0 %v888
  %1000 = vmatprep.subr.bf16.mxu0 0
  %1001 = vmatpush1.bf16.msra.mxu0 %v889
  %1002 = vmatprep.subr.bf16.mxu0 0
  %1003 = vmatpush1.bf16.msra.mxu0 %v890
  %1004 = vmatprep.subr.bf16.mxu0 0
  %1005 = vmatpush1.bf16.msra.mxu0 %v994
  %1006 = vmatprep.subr.bf16.mxu0 0
  %1007 = vmatpush1.bf16.msra.mxu0 0
  %1008 = vmatprep.subr.bf16.mxu0 0
  %1009 = vmatpush1.bf16.msra.mxu0 0
  %1010 = vmatprep.subr.bf16.mxu0 0
  %1011 = vmatpush1.bf16.msra.mxu0 0
  %1012 = vmatprep.subr.bf16.mxu0 0
  %1013 = vmatpush1.bf16.msra.mxu0 0
  %1014 = vmatprep.subr.bf16.mxu0 0
  %1015 = vmatpush1.bf16.msra.mxu0 0
  %1016 = vmatprep.subr.bf16.mxu0 0
  %1017 = vmatpush1.bf16.msra.mxu0 0
  %1018 = vmatprep.subr.bf16.mxu0 0
  %1019 = vmatpush1.bf16.msra.mxu0 0
  %1020 = vmatprep.subr.bf16.mxu0 0
  %1021 = vmatpush1.bf16.msra.mxu0 0
  %1022 = vmatprep.subr.bf16.mxu0 0
  %1023 = vmatpush1.bf16.msra.mxu0 0
  %1024 = vmatprep.subr.bf16.mxu0 0
  %1025 = vmatpush1.bf16.msra.mxu0 0
  %1026 = vmatprep.subr.bf16.mxu0 0
  %1027 = vmatpush1.bf16.msra.mxu0 0
  %1028 = vmatprep.mubr.bf16.mxu0 0
  %1029 = vmatmul.mubr.bf16.gmra.mrb[0].mxu0 %v898
  %v1030 = vpop.f32.mrb[0].mxu0
  %v1031 = vadd.f32 %v455, %v1030
  %v1032 = vpop.f32.mrb[0].mxu0
  %v1033 = vpop.f32.mrb[0].mxu0
  %v1034 = vadd.f32 %v458, %v1033
  %v1035 = vpop.f32.mrb[0].mxu0
  %1036 = vmatprep.mubr.bf16.mxu0 0
  %1037 = vmatmul.mubr.bf16.gmra.mrb[0].mxu0 %v901
  %v1038 = vpop.f32.mrb[0].mxu0
  %v1039 = vadd.f32 %v463, %v1038
  %v1040 = vpop.f32.mrb[0].mxu0
  %v1041 = vpop.f32.mrb[0].mxu0
  %v1042 = vadd.f32 %v466, %v1041
  %v1043 = vpop.f32.mrb[0].mxu0
  %1044 = vmatprep.mubr.bf16.mxu0 0
  %1045 = vmatmul.mubr.bf16.gmra.mrb[0].mxu0 %v904
  %v1046 = vpop.f32.mrb[0].mxu0
  %v1047 = vadd.f32 %v471, %v1046
  %v1048 = vpop.f32.mrb[0].mxu0
  %v1049 = vpop.f32.mrb[0].mxu0
  %v1050 = vadd.f32 %v474, %v1049
  %v1051 = vpop.f32.mrb[0].mxu0
  %1052 = vmatprep.mubr.bf16.mxu0 0
  %1053 = vmatmul.mubr.bf16.gmra.mrb[0].mxu0 %v907
  %v1054 = vpop.f32.mrb[0].mxu0
  %v1055 = vadd.f32 %v479, %v1054
  %v1056 = vpop.f32.mrb[0].mxu0
  %v1057 = vpop.f32.mrb[0].mxu0
  %v1058 = vadd.f32 %v482, %v1057
  %v1059 = vpop.f32.mrb[0].mxu0
  %1060 = vmatprep.mubr.bf16.mxu0 0
  %1061 = vmatmul.mubr.bf16.gmra.mrb[0].mxu0 %v910
  %v1062 = vpop.f32.mrb[0].mxu0
  %v1063 = vadd.f32 %v487, %v1062
  %v1064 = vpop.f32.mrb[0].mxu0
  %v1065 = vpop.f32.mrb[0].mxu0
  %v1066 = vadd.f32 %v490, %v1065
  %v1067 = vpop.f32.mrb[0].mxu0
  %1068 = vmatprep.mubr.bf16.mxu0 0
  %1069 = vmatmul.mubr.bf16.gmra.mrb[0].mxu0 %v913
  %v1070 = vpop.f32.mrb[0].mxu0
  %v1071 = vadd.f32 %v495, %v1070
  %v1072 = vpop.f32.mrb[0].mxu0
  %v1073 = vpop.f32.mrb[0].mxu0
  %v1074 = vadd.f32 %v498, %v1073
  %v1075 = vpop.f32.mrb[0].mxu0
  %1076 = vmatprep.mubr.bf16.mxu0 0
  %1077 = vmatmul.mubr.bf16.gmra.mrb[0].mxu0 %v916
  %v1078 = vpop.f32.mrb[0].mxu0
  %v1079 = vadd.f32 %v503, %v1078
  %v1080 = vpop.f32.mrb[0].mxu0
  %v1081 = vpop.f32.mrb[0].mxu0
  %v1082 = vadd.f32 %v506, %v1081
  %v1083 = vpop.f32.mrb[0].mxu0
  %1084 = vmatprep.mubr.bf16.mxu0 0
  %1085 = vmatmul.mubr.bf16.gmra.mrb[0].mxu0 %v919
  %v1086 = vpop.f32.mrb[0].mxu0
  %v1087 = vadd.f32 %v511, %v1086
  %v1088 = vpop.f32.mrb[0].mxu0
  %v1089 = vpop.f32.mrb[0].mxu0
  %v1090 = vadd.f32 %v514, %v1089
  %v1091 = vpop.f32.mrb[0].mxu0
  %1092 = vmatprep.mubr.bf16.mxu0 0
  %1093 = vmatmul.mubr.bf16.gmra.mrb[0].mxu0 %v922
  %v1094 = vpop.f32.mrb[0].mxu0
  %v1095 = vadd.f32 %v519, %v1094
  %v1096 = vpop.f32.mrb[0].mxu0
  %v1097 = vpop.f32.mrb[0].mxu0
  %v1098 = vadd.f32 %v522, %v1097
  %v1099 = vpop.f32.mrb[0].mxu0
  %1100 = vmatprep.mubr.bf16.mxu0 0
  %1101 = vmatmul.mubr.bf16.gmra.mrb[0].mxu0 %v925
  %v1102 = vpop.f32.mrb[0].mxu0
  %v1103 = vadd.f32 %v527, %v1102
  %v1104 = vpop.f32.mrb[0].mxu0
  %v1105 = vpop.f32.mrb[0].mxu0
  %v1106 = vadd.f32 %v530, %v1105
  %v1107 = vpop.f32.mrb[0].mxu0
  %1108 = vmatprep.mubr.bf16.mxu0 0
  %1109 = vmatmul.mubr.bf16.gmra.mrb[0].mxu0 %v928
  %v1110 = vpop.f32.mrb[0].mxu0
  %v1111 = vadd.f32 %v535, %v1110
  %v1112 = vpop.f32.mrb[0].mxu0
  %v1113 = vpop.f32.mrb[0].mxu0
  %v1114 = vadd.f32 %v538, %v1113
  %v1115 = vpop.f32.mrb[0].mxu0
  %1116 = vmatprep.mubr.bf16.mxu0 0
  %1117 = vmatmul.mubr.bf16.gmra.mrb[0].mxu0 %v931
  %v1118 = vpop.f32.mrb[0].mxu0
  %v1119 = vadd.f32 %v543, %v1118
  %v1120 = vpop.f32.mrb[0].mxu0
  %v1121 = vpop.f32.mrb[0].mxu0
  %v1122 = vadd.f32 %v546, %v1121
  %v1123 = vpop.f32.mrb[0].mxu0
  %1124 = vmatprep.mubr.bf16.mxu0 0
  %1125 = vmatmul.mubr.bf16.gmra.mrb[0].mxu0 %v934
  %v1126 = vpop.f32.mrb[0].mxu0
  %v1127 = vadd.f32 %v551, %v1126
  %v1128 = vpop.f32.mrb[0].mxu0
  %v1129 = vpop.f32.mrb[0].mxu0
  %v1130 = vadd.f32 %v554, %v1129
  %v1131 = vpop.f32.mrb[0].mxu0
  %1132 = vmatprep.mubr.bf16.mxu0 0
  %1133 = vmatmul.mubr.bf16.gmra.mrb[0].mxu0 %v937
  %v1134 = vpop.f32.mrb[0].mxu0
  %v1135 = vadd.f32 %v559, %v1134
  %v1136 = vpop.f32.mrb[0].mxu0
  %v1137 = vpop.f32.mrb[0].mxu0
  %v1138 = vadd.f32 %v562, %v1137
  %v1139 = vpop.f32.mrb[0].mxu0
  %1140 = vmatprep.mubr.bf16.mxu0 0
  %1141 = vmatmul.mubr.bf16.gmra.mrb[0].mxu0 %v940
  %v1142 = vpop.f32.mrb[0].mxu0
  %v1143 = vadd.f32 %v567, %v1142
  %v1144 = vpop.f32.mrb[0].mxu0
  %v1145 = vpop.f32.mrb[0].mxu0
  %v1146 = vadd.f32 %v570, %v1145
  %v1147 = vpop.f32.mrb[0].mxu0
  %1148 = vmatprep.mubr.bf16.mxu0 0
  %1149 = vmatmul.mubr.bf16.gmra.mrb[0].mxu0 %v943
  %v1150 = vpop.f32.mrb[0].mxu0
  %v1151 = vadd.f32 %v575, %v1150
  %v1152 = vpop.f32.mrb[0].mxu0
  %v1153 = vpop.f32.mrb[0].mxu0
  %v1154 = vadd.f32 %v578, %v1153
  %v1155 = vpop.f32.mrb[0].mxu0
  %1156 = vmatprep.mubr.bf16.mxu0 0
  %1157 = vmatmul.mubr.bf16.gmra.mrb[0].mxu0 %v946
  %v1158 = vpop.f32.mrb[0].mxu0
  %v1159 = vadd.f32 %v583, %v1158
  %v1160 = vpop.f32.mrb[0].mxu0
  %v1161 = vpop.f32.mrb[0].mxu0
  %v1162 = vadd.f32 %v586, %v1161
  %v1163 = vpop.f32.mrb[0].mxu0
  %1164 = vmatprep.mubr.bf16.mxu0 0
  %1165 = vmatmul.mubr.bf16.gmra.mrb[0].mxu0 %v949
  %v1166 = vpop.f32.mrb[0].mxu0
  %v1167 = vadd.f32 %v591, %v1166
  %v1168 = vpop.f32.mrb[0].mxu0
  %v1169 = vpop.f32.mrb[0].mxu0
  %v1170 = vadd.f32 %v594, %v1169
  %v1171 = vpop.f32.mrb[0].mxu0
  %1172 = vmatprep.mubr.bf16.mxu0 0
  %1173 = vmatmul.mubr.bf16.gmra.mrb[0].mxu0 %v952
  %v1174 = vpop.f32.mrb[0].mxu0
  %v1175 = vadd.f32 %v599, %v1174
  %v1176 = vpop.f32.mrb[0].mxu0
  %v1177 = vpop.f32.mrb[0].mxu0
  %v1178 = vadd.f32 %v602, %v1177
  %v1179 = vpop.f32.mrb[0].mxu0
  %1180 = vmatprep.mubr.bf16.mxu0 0
  %1181 = vmatmul.mubr.bf16.gmra.mrb[0].mxu0 %v955
  %v1182 = vpop.f32.mrb[0].mxu0
  %v1183 = vadd.f32 %v607, %v1182
  %v1184 = vpop.f32.mrb[0].mxu0
  %v1185 = vpop.f32.mrb[0].mxu0
  %v1186 = vadd.f32 %v610, %v1185
  %v1187 = vpop.f32.mrb[0].mxu0
  %1188 = vmatprep.mubr.bf16.mxu0 0
  %1189 = vmatmul.mubr.bf16.gmra.mrb[0].mxu0 %v958
  %v1190 = vpop.f32.mrb[0].mxu0
  %v1191 = vadd.f32 %v615, %v1190
  %v1192 = vpop.f32.mrb[0].mxu0
  %v1193 = vpop.f32.mrb[0].mxu0
  %v1194 = vadd.f32 %v618, %v1193
  %v1195 = vpop.f32.mrb[0].mxu0
  %1196 = vmatprep.mubr.bf16.mxu0 0
  %1197 = vmatmul.mubr.bf16.gmra.mrb[0].mxu0 %v961
  %v1198 = vpop.f32.mrb[0].mxu0
  %v1199 = vadd.f32 %v623, %v1198
  %v1200 = vpop.f32.mrb[0].mxu0
  %v1201 = vpop.f32.mrb[0].mxu0
  %v1202 = vadd.f32 %v626, %v1201
  %v1203 = vpop.f32.mrb[0].mxu0
  %1204 = vmatprep.mubr.bf16.mxu0 0
  %1205 = vmatmul.mubr.bf16.gmra.mrb[0].mxu0 %v964
  %v1206 = vpop.f32.mrb[0].mxu0
  %v1207 = vadd.f32 %v631, %v1206
  %v1208 = vpop.f32.mrb[0].mxu0
  %v1209 = vpop.f32.mrb[0].mxu0
  %v1210 = vadd.f32 %v634, %v1209
  %v1211 = vpop.f32.mrb[0].mxu0
  %1212 = vmatprep.mubr.bf16.mxu0 0
  %1213 = vmatmul.mubr.bf16.gmra.mrb[0].mxu0 %v967
  %v1214 = vpop.f32.mrb[0].mxu0
  %v1215 = vadd.f32 %v639, %v1214
  %v1216 = vpop.f32.mrb[0].mxu0
  %v1217 = vpop.f32.mrb[0].mxu0
  %v1218 = vadd.f32 %v642, %v1217
  %v1219 = vpop.f32.mrb[0].mxu0
  %1220 = vmatprep.mubr.bf16.mxu0 0
  %1221 = vmatmul.mubr.bf16.gmra.mrb[0].mxu0 %v970
  %v1222 = vpop.f32.mrb[0].mxu0
  %v1223 = vadd.f32 %v647, %v1222
  %v1224 = vpop.f32.mrb[0].mxu0
  %v1225 = vpop.f32.mrb[0].mxu0
  %v1226 = vadd.f32 %v650, %v1225
  %v1227 = vpop.f32.mrb[0].mxu0
  %1228 = vmatprep.mubr.bf16.mxu0 0
  %1229 = vmatmul.mubr.bf16.gmra.mrb[0].mxu0 %v973
  %v1230 = vpop.f32.mrb[0].mxu0
  %v1231 = vadd.f32 %v655, %v1230
  %v1232 = vpop.f32.mrb[0].mxu0
  %v1233 = vpop.f32.mrb[0].mxu0
  %v1234 = vadd.f32 %v658, %v1233
  %v1235 = vpop.f32.mrb[0].mxu0
  %1236 = vmatprep.mubr.bf16.mxu0 0
  %1237 = vmatmul.mubr.bf16.gmra.mrb[0].mxu0 %v976
  %v1238 = vpop.f32.mrb[0].mxu0
  %v1239 = vadd.f32 %v663, %v1238
  %v1240 = vpop.f32.mrb[0].mxu0
  %v1241 = vpop.f32.mrb[0].mxu0
  %v1242 = vadd.f32 %v666, %v1241
  %v1243 = vpop.f32.mrb[0].mxu0
  %1244 = vmatprep.mubr.bf16.mxu0 0
  %1245 = vmatmul.mubr.bf16.gmra.mrb[0].mxu0 %v979
  %v1246 = vpop.f32.mrb[0].mxu0
  %v1247 = vadd.f32 %v671, %v1246
  %v1248 = vpop.f32.mrb[0].mxu0
  %v1249 = vpop.f32.mrb[0].mxu0
  %v1250 = vadd.f32 %v674, %v1249
  %v1251 = vpop.f32.mrb[0].mxu0
  %1252 = vmatprep.mubr.bf16.mxu0 0
  %1253 = vmatmul.mubr.bf16.gmra.mrb[0].mxu0 %v982
  %v1254 = vpop.f32.mrb[0].mxu0
  %v1255 = vadd.f32 %v679, %v1254
  %v1256 = vpop.f32.mrb[0].mxu0
  %v1257 = vpop.f32.mrb[0].mxu0
  %v1258 = vadd.f32 %v682, %v1257
  %v1259 = vpop.f32.mrb[0].mxu0
  %1260 = vmatprep.mubr.bf16.mxu0 0
  %1261 = vmatmul.mubr.bf16.gmra.mrb[0].mxu0 %v985
  %v1262 = vpop.f32.mrb[0].mxu0
  %v1263 = vadd.f32 %v687, %v1262
  %v1264 = vpop.f32.mrb[0].mxu0
  %v1265 = vpop.f32.mrb[0].mxu0
  %v1266 = vadd.f32 %v690, %v1265
  %v1267 = vpop.f32.mrb[0].mxu0
  %1268 = vmatprep.mubr.bf16.mxu0 0
  %1269 = vmatmul.mubr.bf16.gmra.mrb[0].mxu0 %v988
  %v1270 = vpop.f32.mrb[0].mxu0
  %v1271 = vadd.f32 %v695, %v1270
  %v1272 = vpop.f32.mrb[0].mxu0
  %v1273 = vpop.f32.mrb[0].mxu0
  %v1274 = vadd.f32 %v698, %v1273
  %v1275 = vpop.f32.mrb[0].mxu0
  %1276 = vmatprep.mubr.bf16.mxu0 0
  %1277 = vmatmul.mubr.bf16.gmra.mrb[0].mxu0 %v991
  %v1278 = vpop.f32.mrb[0].mxu0
  %v1279 = vadd.f32 %v703, %v1278
  %v1280 = vpop.f32.mrb[0].mxu0
  %v1281 = vpop.f32.mrb[0].mxu0
  %v1282 = vadd.f32 %v706, %v1281
  %v1283 = vpop.f32.mrb[0].mxu0
  %1284 = vdwg.mxu0
  %v1285 = vld [vmem:[%s4] sm:$0x1]
  %v1287 = vlaneseq
  %v1288 = vshrl.u32 %v1287, 7
  %v1289 = vsub.s32 0, %v1288
  %v1290 = vrot.slane %v1285, %v1289
  %v1292 = vadd.f32 %v1031, %v1290
  %v1293 = vadd.f32 %v1034, %v1290
  %v1294 = vadd.f32 %v1039, %v1290
  %v1295 = vadd.f32 %v1042, %v1290
  %v1296 = vadd.f32 %v1047, %v1290
  %v1297 = vadd.f32 %v1050, %v1290
  %v1298 = vadd.f32 %v1055, %v1290
  %v1299 = vadd.f32 %v1058, %v1290
  %v1300 = vadd.f32 %v1063, %v1290
  %v1301 = vadd.f32 %v1066, %v1290
  %v1302 = vadd.f32 %v1071, %v1290
  %v1303 = vadd.f32 %v1074, %v1290
  %v1304 = vadd.f32 %v1079, %v1290
  %v1305 = vadd.f32 %v1082, %v1290
  %v1306 = vadd.f32 %v1087, %v1290
  %v1307 = vadd.f32 %v1090, %v1290
  %v1308 = vadd.f32 %v1095, %v1290
  %v1309 = vadd.f32 %v1098, %v1290
  %v1310 = vadd.f32 %v1103, %v1290
  %v1311 = vadd.f32 %v1106, %v1290
  %v1312 = vadd.f32 %v1111, %v1290
  %v1313 = vadd.f32 %v1114, %v1290
  %v1314 = vadd.f32 %v1119, %v1290
  %v1315 = vadd.f32 %v1122, %v1290
  %v1316 = vadd.f32 %v1127, %v1290
  %v1317 = vadd.f32 %v1130, %v1290
  %v1318 = vadd.f32 %v1135, %v1290
  %v1319 = vadd.f32 %v1138, %v1290
  %v1320 = vadd.f32 %v1143, %v1290
  %v1321 = vadd.f32 %v1146, %v1290
  %v1322 = vadd.f32 %v1151, %v1290
  %v1323 = vadd.f32 %v1154, %v1290
  %v1324 = vadd.f32 %v1159, %v1290
  %v1325 = vadd.f32 %v1162, %v1290
  %v1326 = vadd.f32 %v1167, %v1290
  %v1327 = vadd.f32 %v1170, %v1290
  %v1328 = vadd.f32 %v1175, %v1290
  %v1329 = vadd.f32 %v1178, %v1290
  %v1330 = vadd.f32 %v1183, %v1290
  %v1331 = vadd.f32 %v1186, %v1290
  %v1332 = vadd.f32 %v1191, %v1290
  %v1333 = vadd.f32 %v1194, %v1290
  %v1334 = vadd.f32 %v1199, %v1290
  %v1335 = vadd.f32 %v1202, %v1290
  %v1336 = vadd.f32 %v1207, %v1290
  %v1337 = vadd.f32 %v1210, %v1290
  %v1338 = vadd.f32 %v1215, %v1290
  %v1339 = vadd.f32 %v1218, %v1290
  %v1340 = vadd.f32 %v1223, %v1290
  %v1341 = vadd.f32 %v1226, %v1290
  %v1342 = vadd.f32 %v1231, %v1290
  %v1343 = vadd.f32 %v1234, %v1290
  %v1344 = vadd.f32 %v1239, %v1290
  %v1345 = vadd.f32 %v1242, %v1290
  %v1346 = vadd.f32 %v1247, %v1290
  %v1347 = vadd.f32 %v1250, %v1290
  %v1348 = vadd.f32 %v1255, %v1290
  %v1349 = vadd.f32 %v1258, %v1290
  %v1350 = vadd.f32 %v1263, %v1290
  %v1351 = vadd.f32 %v1266, %v1290
  %v1352 = vadd.f32 %v1271, %v1290
  %v1353 = vadd.f32 %v1274, %v1290
  %v1354 = vadd.f32 %v1279, %v1290
  %v1355 = vadd.f32 %v1282, %v1290
  %v1356 = vpack.c.bf16 %v1293, %v1292
  %v1357 = vpack.c.bf16 %v1295, %v1294
  %v1358 = vpack.c.bf16 %v1297, %v1296
  %v1359 = vpack.c.bf16 %v1299, %v1298
  %v1360 = vpack.c.bf16 %v1301, %v1300
  %v1361 = vpack.c.bf16 %v1303, %v1302
  %v1362 = vpack.c.bf16 %v1305, %v1304
  %v1363 = vpack.c.bf16 %v1307, %v1306
  %v1364 = vpack.c.bf16 %v1309, %v1308
  %v1365 = vpack.c.bf16 %v1311, %v1310
  %v1366 = vpack.c.bf16 %v1313, %v1312
  %v1367 = vpack.c.bf16 %v1315, %v1314
  %v1368 = vpack.c.bf16 %v1317, %v1316
  %v1369 = vpack.c.bf16 %v1319, %v1318
  %v1370 = vpack.c.bf16 %v1321, %v1320
  %v1371 = vpack.c.bf16 %v1323, %v1322
  %v1372 = vpack.c.bf16 %v1325, %v1324
  %v1373 = vpack.c.bf16 %v1327, %v1326
  %v1374 = vpack.c.bf16 %v1329, %v1328
  %v1375 = vpack.c.bf16 %v1331, %v1330
  %v1376 = vpack.c.bf16 %v1333, %v1332
  %v1377 = vpack.c.bf16 %v1335, %v1334
  %v1378 = vpack.c.bf16 %v1337, %v1336
  %v1379 = vpack.c.bf16 %v1339, %v1338
  %v1380 = vpack.c.bf16 %v1341, %v1340
  %v1381 = vpack.c.bf16 %v1343, %v1342
  %v1382 = vpack.c.bf16 %v1345, %v1344
  %v1383 = vpack.c.bf16 %v1347, %v1346
  %v1384 = vpack.c.bf16 %v1349, %v1348
  %v1385 = vpack.c.bf16 %v1351, %v1350
  %v1386 = vpack.c.bf16 %v1353, %v1352
  %v1387 = vpack.c.bf16 %v1355, %v1354
  %v1420 = vunpack.c.l.b16 %v1356
  %v1421 = vunpack.c.h.b16 %v1356
  %v1422 = vunpack.c.l.b16 %v1357
  %v1423 = vunpack.c.h.b16 %v1357
  %v1424 = vunpack.c.l.b16 %v1358
  %v1425 = vunpack.c.h.b16 %v1358
  %v1426 = vunpack.c.l.b16 %v1359
  %v1427 = vunpack.c.h.b16 %v1359
  %v1428 = vunpack.c.l.b16 %v1360
  %v1429 = vunpack.c.h.b16 %v1360
  %v1430 = vunpack.c.l.b16 %v1361
  %v1431 = vunpack.c.h.b16 %v1361
  %v1432 = vunpack.c.l.b16 %v1362
  %v1433 = vunpack.c.h.b16 %v1362
  %v1434 = vunpack.c.l.b16 %v1363
  %v1435 = vunpack.c.h.b16 %v1363
  %v1436 = vunpack.c.l.b16 %v1364
  %v1437 = vunpack.c.h.b16 %v1364
  %v1438 = vunpack.c.l.b16 %v1365
  %v1439 = vunpack.c.h.b16 %v1365
  %v1440 = vunpack.c.l.b16 %v1366
  %v1441 = vunpack.c.h.b16 %v1366
  %v1442 = vunpack.c.l.b16 %v1367
  %v1443 = vunpack.c.h.b16 %v1367
  %v1444 = vunpack.c.l.b16 %v1368
  %v1445 = vunpack.c.h.b16 %v1368
  %v1446 = vunpack.c.l.b16 %v1369
  %v1447 = vunpack.c.h.b16 %v1369
  %v1448 = vunpack.c.l.b16 %v1370
  %v1449 = vunpack.c.h.b16 %v1370
  %v1450 = vunpack.c.l.b16 %v1371
  %v1451 = vunpack.c.h.b16 %v1371
  %v1452 = vunpack.c.l.b16 %v1372
  %v1453 = vunpack.c.h.b16 %v1372
  %v1454 = vunpack.c.l.b16 %v1373
  %v1455 = vunpack.c.h.b16 %v1373
  %v1456 = vunpack.c.l.b16 %v1374
  %v1457 = vunpack.c.h.b16 %v1374
  %v1458 = vunpack.c.l.b16 %v1375
  %v1459 = vunpack.c.h.b16 %v1375
  %v1460 = vunpack.c.l.b16 %v1376
  %v1461 = vunpack.c.h.b16 %v1376
  %v1462 = vunpack.c.l.b16 %v1377
  %v1463 = vunpack.c.h.b16 %v1377
  %v1464 = vunpack.c.l.b16 %v1378
  %v1465 = vunpack.c.h.b16 %v1378
  %v1466 = vunpack.c.l.b16 %v1379
  %v1467 = vunpack.c.h.b16 %v1379
  %v1468 = vunpack.c.l.b16 %v1380
  %v1469 = vunpack.c.h.b16 %v1380
  %v1470 = vunpack.c.l.b16 %v1381
  %v1471 = vunpack.c.h.b16 %v1381
  %v1472 = vunpack.c.l.b16 %v1382
  %v1473 = vunpack.c.h.b16 %v1382
  %v1474 = vunpack.c.l.b16 %v1383
  %v1475 = vunpack.c.h.b16 %v1383
  %v1476 = vunpack.c.l.b16 %v1384
  %v1477 = vunpack.c.h.b16 %v1384
  %v1478 = vunpack.c.l.b16 %v1385
  %v1479 = vunpack.c.h.b16 %v1385
  %v1480 = vunpack.c.l.b16 %v1386
  %v1481 = vunpack.c.h.b16 %v1386
  %v1482 = vunpack.c.l.b16 %v1387
  %v1483 = vunpack.c.h.b16 %v1387
  %v1484 = vpack.c.b16 %v1420, %v1420
  %v1485 = vpack.c.b16 %v1421, %v1421
  %v1486 = vpack.c.b16 %v1422, %v1422
  %v1487 = vpack.c.b16 %v1423, %v1423
  %v1488 = vpack.c.b16 %v1424, %v1424
  %v1489 = vpack.c.b16 %v1425, %v1425
  %v1490 = vpack.c.b16 %v1426, %v1426
  %v1491 = vpack.c.b16 %v1427, %v1427
  %v1492 = vpack.c.b16 %v1428, %v1428
  %v1493 = vpack.c.b16 %v1429, %v1429
  %v1494 = vpack.c.b16 %v1430, %v1430
  %v1495 = vpack.c.b16 %v1431, %v1431
  %v1496 = vpack.c.b16 %v1432, %v1432
  %v1497 = vpack.c.b16 %v1433, %v1433
  %v1498 = vpack.c.b16 %v1434, %v1434
  %v1499 = vpack.c.b16 %v1435, %v1435
  %v1500 = vpack.c.b16 %v1436, %v1436
  %v1501 = vpack.c.b16 %v1437, %v1437
  %v1502 = vpack.c.b16 %v1438, %v1438
  %v1503 = vpack.c.b16 %v1439, %v1439
  %v1504 = vpack.c.b16 %v1440, %v1440
  %v1505 = vpack.c.b16 %v1441, %v1441
  %v1506 = vpack.c.b16 %v1442, %v1442
  %v1507 = vpack.c.b16 %v1443, %v1443
  %v1508 = vpack.c.b16 %v1444, %v1444
  %v1509 = vpack.c.b16 %v1445, %v1445
  %v1510 = vpack.c.b16 %v1446, %v1446
  %v1511 = vpack.c.b16 %v1447, %v1447
  %v1512 = vpack.c.b16 %v1448, %v1448
  %v1513 = vpack.c.b16 %v1449, %v1449
  %v1514 = vpack.c.b16 %v1450, %v1450
  %v1515 = vpack.c.b16 %v1451, %v1451
  %v1516 = vpack.c.b16 %v1452, %v1452
  %v1517 = vpack.c.b16 %v1453, %v1453
  %v1518 = vpack.c.b16 %v1454, %v1454
  %v1519 = vpack.c.b16 %v1455, %v1455
  %v1520 = vpack.c.b16 %v1456, %v1456
  %v1521 = vpack.c.b16 %v1457, %v1457
  %v1522 = vpack.c.b16 %v1458, %v1458
  %v1523 = vpack.c.b16 %v1459, %v1459
  %v1524 = vpack.c.b16 %v1460, %v1460
  %v1525 = vpack.c.b16 %v1461, %v1461
  %v1526 = vpack.c.b16 %v1462, %v1462
  %v1527 = vpack.c.b16 %v1463, %v1463
  %v1528 = vpack.c.b16 %v1464, %v1464
  %v1529 = vpack.c.b16 %v1465, %v1465
  %v1530 = vpack.c.b16 %v1466, %v1466
  %v1531 = vpack.c.b16 %v1467, %v1467
  %v1532 = vpack.c.b16 %v1468, %v1468
  %v1533 = vpack.c.b16 %v1469, %v1469
  %v1534 = vpack.c.b16 %v1470, %v1470
  %v1535 = vpack.c.b16 %v1471, %v1471
  %v1536 = vpack.c.b16 %v1472, %v1472
  %v1537 = vpack.c.b16 %v1473, %v1473
  %v1538 = vpack.c.b16 %v1474, %v1474
  %v1539 = vpack.c.b16 %v1475, %v1475
  %v1540 = vpack.c.b16 %v1476, %v1476
  %v1541 = vpack.c.b16 %v1477, %v1477
  %v1542 = vpack.c.b16 %v1478, %v1478
  %v1543 = vpack.c.b16 %v1479, %v1479
  %v1544 = vpack.c.b16 %v1480, %v1480
  %v1545 = vpack.c.b16 %v1481, %v1481
  %v1546 = vpack.c.b16 %v1482, %v1482
  %v1547 = vpack.c.b16 %v1483, %v1483
  %1612 = vst [vmem:[%s5] sm:$0xf] %v1484
  %1613 = vst [vmem:[%s5 + $0x4] sm:$0xf] %v1485
  %1614 = vst [vmem:[%s5 + $0x8] sm:$0xf] %v1486
  %1615 = vst [vmem:[%s5 + $0xc] sm:$0xf] %v1487
  %1616 = vst [vmem:[%s5 + $0x10] sm:$0xf] %v1488
  %1617 = vst [vmem:[%s5 + $0x14] sm:$0xf] %v1489
  %1618 = vst [vmem:[%s5 + $0x18] sm:$0xf] %v1490
  %1619 = vst [vmem:[%s5 + $0x1c] sm:$0xf] %v1491
  %1620 = vst [vmem:[%s5 + $0x20] sm:$0xf] %v1492
  %1621 = vst [vmem:[%s5 + $0x24] sm:$0xf] %v1493
  %1622 = vst [vmem:[%s5 + $0x28] sm:$0xf] %v1494
  %1623 = vst [vmem:[%s5 + $0x2c] sm:$0xf] %v1495
  %1624 = vst [vmem:[%s5 + $0x30] sm:$0xf] %v1496
  %1625 = vst [vmem:[%s5 + $0x34] sm:$0xf] %v1497
  %1626 = vst [vmem:[%s5 + $0x38] sm:$0xf] %v1498
  %1627 = vst [vmem:[%s5 + $0x3c] sm:$0xf] %v1499
  %1628 = vst [vmem:[%s5 + $0x40] sm:$0xf] %v1500
  %1629 = vst [vmem:[%s5 + $0x44] sm:$0xf] %v1501
  %1630 = vst [vmem:[%s5 + $0x48] sm:$0xf] %v1502
  %1631 = vst [vmem:[%s5 + $0x4c] sm:$0xf] %v1503
  %1632 = vst [vmem:[%s5 + $0x50] sm:$0xf] %v1504
  %1633 = vst [vmem:[%s5 + $0x54] sm:$0xf] %v1505
  %1634 = vst [vmem:[%s5 + $0x58] sm:$0xf] %v1506
  %1635 = vst [vmem:[%s5 + $0x5c] sm:$0xf] %v1507
  %1636 = vst [vmem:[%s5 + $0x60] sm:$0xf] %v1508
  %1637 = vst [vmem:[%s5 + $0x64] sm:$0xf] %v1509
  %1638 = vst [vmem:[%s5 + $0x68] sm:$0xf] %v1510
  %1639 = vst [vmem:[%s5 + $0x6c] sm:$0xf] %v1511
  %1640 = vst [vmem:[%s5 + $0x70] sm:$0xf] %v1512
  %1641 = vst [vmem:[%s5 + $0x74] sm:$0xf] %v1513
  %1642 = vst [vmem:[%s5 + $0x78] sm:$0xf] %v1514
  %1643 = vst [vmem:[%s5 + $0x7c] sm:$0xf] %v1515
  %1644 = vst [vmem:[%s5 + $0x80] sm:$0xf] %v1516
  %1645 = vst [vmem:[%s5 + $0x84] sm:$0xf] %v1517
  %1646 = vst [vmem:[%s5 + $0x88] sm:$0xf] %v1518
  %1647 = vst [vmem:[%s5 + $0x8c] sm:$0xf] %v1519
  %1648 = vst [vmem:[%s5 + $0x90] sm:$0xf] %v1520
  %1649 = vst [vmem:[%s5 + $0x94] sm:$0xf] %v1521
  %1650 = vst [vmem:[%s5 + $0x98] sm:$0xf] %v1522
  %1651 = vst [vmem:[%s5 + $0x9c] sm:$0xf] %v1523
  %1652 = vst [vmem:[%s5 + $0xa0] sm:$0xf] %v1524
  %1653 = vst [vmem:[%s5 + $0xa4] sm:$0xf] %v1525
  %1654 = vst [vmem:[%s5 + $0xa8] sm:$0xf] %v1526
  %1655 = vst [vmem:[%s5 + $0xac] sm:$0xf] %v1527
  %1656 = vst [vmem:[%s5 + $0xb0] sm:$0xf] %v1528
  %1657 = vst [vmem:[%s5 + $0xb4] sm:$0xf] %v1529
  %1658 = vst [vmem:[%s5 + $0xb8] sm:$0xf] %v1530
  %1659 = vst [vmem:[%s5 + $0xbc] sm:$0xf] %v1531
  %1660 = vst [vmem:[%s5 + $0xc0] sm:$0xf] %v1532
  %1661 = vst [vmem:[%s5 + $0xc4] sm:$0xf] %v1533
  %1662 = vst [vmem:[%s5 + $0xc8] sm:$0xf] %v1534
  %1663 = vst [vmem:[%s5 + $0xcc] sm:$0xf] %v1535
  %1664 = vst [vmem:[%s5 + $0xd0] sm:$0xf] %v1536
  %1665 = vst [vmem:[%s5 + $0xd4] sm:$0xf] %v1537
  %1666 = vst [vmem:[%s5 + $0xd8] sm:$0xf] %v1538
  %1667 = vst [vmem:[%s5 + $0xdc] sm:$0xf] %v1539
  %1668 = vst [vmem:[%s5 + $0xe0] sm:$0xf] %v1540
  %1669 = vst [vmem:[%s5 + $0xe4] sm:$0xf] %v1541
  %1670 = vst [vmem:[%s5 + $0xe8] sm:$0xf] %v1542
  %1671 = vst [vmem:[%s5 + $0xec] sm:$0xf] %v1543
  %1672 = vst [vmem:[%s5 + $0xf0] sm:$0xf] %v1544
  %1673 = vst [vmem:[%s5 + $0xf4] sm:$0xf] %v1545
  %1674 = vst [vmem:[%s5 + $0xf8] sm:$0xf] %v1546
  %1675 = vst [vmem:[%s5 + $0xfc] sm:$0xf] %v1547
  // Predicated region
  $region22: #{liif_fpn_pred_forward.12} parent=0 // pred_check
    _
  $region23: #{liif_fpn_pred_forward.12} parent=0 // pred_check_branch
    %1677 = sbr.rel (0) target = $region25
  $region24: #{liif_fpn_pred_forward.12} parent=0 // pred_region
    _
  $region25: #{liif_fpn_pred_forward.12} parent=0 // pred_fallthru
    _
  // Predicated region
  $region26: #{liif_fpn_pred_forward.12} parent=0 // pred_check
    _
  $region27: #{liif_fpn_pred_forward.12} parent=0 // pred_check_branch
    %1679 = sbr.rel (0) target = $region29
  $region28: #{liif_fpn_pred_forward.12} parent=0 // pred_region
    _
  $region29: #{liif_fpn_pred_forward.12} parent=0 // pred_fallthru
    _

// kernel: liif_fpn_pred_forward.13
$region0: #{liif_fpn_pred_forward.13}
  #allocation0 [shape = 'u32[]', space=smem, size = 0x4, offset = 0x4, fixed_abs, tag = 'smem constant byte address 0x4 - core index']
  #allocation1 [shape = 'u32[144,128]{1,0:T(1,128)}', space=vmem, size = 0x12000, scoped, tag = 'internal scratch']
  %s0 = inlined_call_operand.vmem [shape: bf16[512,8], index: 0, kind: input, shape index: {}]
  %s1 = inlined_call_operand.vmem [shape: bf16[512,8], index: 1, kind: input, shape index: {}]
  %s2 = inlined_call_operand.vmem [shape: bf16[512,8], index: 2, kind: input, shape index: {}]
  %s3 = inlined_call_operand.vmem [shape: bf16[512,8], index: 3, kind: input, shape index: {}]
  %s4 = inlined_call_operand.vmem [shape: f32[512,8], index: 4, kind: input, shape index: {}]
  %s5 = inlined_call_operand.vmem [shape: f32[512,128], index: 5, kind: input, shape index: {}]
  %s6 = inlined_call_operand.vmem [shape: bf16[8,32], index: 6, kind: input, shape index: {}]
  %s7 = inlined_call_operand.vmem [shape: bf16[8,32], index: 7, kind: input, shape index: {}]
  %s8 = inlined_call_operand.vmem [shape: bf16[8,32], index: 8, kind: input, shape index: {}]
  %s9 = inlined_call_operand.vmem [shape: bf16[8,32], index: 9, kind: input, shape index: {}]
  %s10 = inlined_call_operand.vmem [shape: f32[8,32], index: 10, kind: input, shape index: {}]
  %s11 = inlined_call_operand.vmem [shape: f32[1,32], index: 11, kind: input, shape index: {}]
  %s12 = inlined_call_operand.vmem [shape: f32[32,32], index: 12, kind: input, shape index: {}]
  %s13 = inlined_call_operand.vmem [shape: f32[1,32], index: 13, kind: input, shape index: {}]
  %s14 = inlined_call_operand.vmem [shape: f32[32,128], index: 14, kind: input, shape index: {}]
  %s15 = inlined_call_operand.vmem [shape: f32[1,128], index: 15, kind: input, shape index: {}]
  %s16 = inlined_call_operand.vmem [shape: f32[512,128], index: 16, kind: output, shape index: {}]
  %s17 = sld [smem:[#allocation0]]
  $region74: #{liif_fpn_pred_forward.13} parent=0
    _
  %s19 = ssub.s32 1, %s17
  %s20 = scalar_select 0, %s19, %s17
  // Predicated region
  $region2: #{liif_fpn_pred_forward.13} parent=0 // pred_check
    _
  $region3: #{liif_fpn_pred_forward.13} parent=0 // pred_check_branch
    %22 = sbr.rel (0) target = $region5
  $region4: #{liif_fpn_pred_forward.13} parent=0 // pred_region
    _
  $region5: #{liif_fpn_pred_forward.13} parent=0 // pred_fallthru
    _
  // Predicated region
  $region6: #{liif_fpn_pred_forward.13} parent=0 // pred_check
    _
  $region7: #{liif_fpn_pred_forward.13} parent=0 // pred_check_branch
    %24 = sbr.rel (0) target = $region9
  $region8: #{liif_fpn_pred_forward.13} parent=0 // pred_region
    _
  $region9: #{liif_fpn_pred_forward.13} parent=0 // pred_fallthru
    _
  // Predicated region
  $region10: #{liif_fpn_pred_forward.13} parent=0 // pred_check
    _
  $region11: #{liif_fpn_pred_forward.13} parent=0 // pred_check_branch
    %26 = sbr.rel (0) target = $region13
  $region12: #{liif_fpn_pred_forward.13} parent=0 // pred_region
    _
  $region13: #{liif_fpn_pred_forward.13} parent=0 // pred_fallthru
    _
  // Predicated region
  $region14: #{liif_fpn_pred_forward.13} parent=0 // pred_check
    _
  $region15: #{liif_fpn_pred_forward.13} parent=0 // pred_check_branch
    %28 = sbr.rel (0) target = $region17
  $region16: #{liif_fpn_pred_forward.13} parent=0 // pred_region
    _
  $region17: #{liif_fpn_pred_forward.13} parent=0 // pred_fallthru
    _
  // Predicated region
  $region18: #{liif_fpn_pred_forward.13} parent=0 // pred_check
    _
  $region19: #{liif_fpn_pred_forward.13} parent=0 // pred_check_branch
    %30 = sbr.rel (0) target = $region21
  $region20: #{liif_fpn_pred_forward.13} parent=0 // pred_region
    _
  $region21: #{liif_fpn_pred_forward.13} parent=0 // pred_fallthru
    _
  // Predicated region
  $region22: #{liif_fpn_pred_forward.13} parent=0 // pred_check
    _
  $region23: #{liif_fpn_pred_forward.13} parent=0 // pred_check_branch
    %32 = sbr.rel (0) target = $region25
  $region24: #{liif_fpn_pred_forward.13} parent=0 // pred_region
    _
  $region25: #{liif_fpn_pred_forward.13} parent=0 // pred_fallthru
    _
  // Predicated region
  $region26: #{liif_fpn_pred_forward.13} parent=0 // pred_check
    _
  $region27: #{liif_fpn_pred_forward.13} parent=0 // pred_check_branch
    %34 = sbr.rel (0) target = $region29
  $region28: #{liif_fpn_pred_forward.13} parent=0 // pred_region
    _
  $region29: #{liif_fpn_pred_forward.13} parent=0 // pred_fallthru
    _
  // Predicated region
  $region30: #{liif_fpn_pred_forward.13} parent=0 // pred_check
    _
  $region31: #{liif_fpn_pred_forward.13} parent=0 // pred_check_branch
    %36 = sbr.rel (0) target = $region33
  $region32: #{liif_fpn_pred_forward.13} parent=0 // pred_region
    _
  $region33: #{liif_fpn_pred_forward.13} parent=0 // pred_fallthru
    _
  // Predicated region
  $region34: #{liif_fpn_pred_forward.13} parent=0 // pred_check
    _
  $region35: #{liif_fpn_pred_forward.13} parent=0 // pred_check_branch
    %38 = sbr.rel (0) target = $region37
  $region36: #{liif_fpn_pred_forward.13} parent=0 // pred_region
    _
  $region37: #{liif_fpn_pred_forward.13} parent=0 // pred_fallthru
    _
  // Predicated region
  $region38: #{liif_fpn_pred_forward.13} parent=0 // pred_check
    _
  $region39: #{liif_fpn_pred_forward.13} parent=0 // pred_check_branch
    %40 = sbr.rel (0) target = $region41
  $region40: #{liif_fpn_pred_forward.13} parent=0 // pred_region
    _
  $region41: #{liif_fpn_pred_forward.13} parent=0 // pred_fallthru
    _
  // Predicated region
  $region42: #{liif_fpn_pred_forward.13} parent=0 // pred_check
    _
  $region43: #{liif_fpn_pred_forward.13} parent=0 // pred_check_branch
    %42 = sbr.rel (0) target = $region45
  $region44: #{liif_fpn_pred_forward.13} parent=0 // pred_region
    _
  $region45: #{liif_fpn_pred_forward.13} parent=0 // pred_fallthru
    _
  // Predicated region
  $region46: #{liif_fpn_pred_forward.13} parent=0 // pred_check
    _
  $region47: #{liif_fpn_pred_forward.13} parent=0 // pred_check_branch
    %44 = sbr.rel (0) target = $region49
  $region48: #{liif_fpn_pred_forward.13} parent=0 // pred_region
    _
  $region49: #{liif_fpn_pred_forward.13} parent=0 // pred_fallthru
    _
  // Predicated region
  $region50: #{liif_fpn_pred_forward.13} parent=0 // pred_check
    _
  $region51: #{liif_fpn_pred_forward.13} parent=0 // pred_check_branch
    %46 = sbr.rel (0) target = $region53
  $region52: #{liif_fpn_pred_forward.13} parent=0 // pred_region
    _
  $region53: #{liif_fpn_pred_forward.13} parent=0 // pred_fallthru
    _
  // Predicated region
  $region54: #{liif_fpn_pred_forward.13} parent=0 // pred_check
    _
  $region55: #{liif_fpn_pred_forward.13} parent=0 // pred_check_branch
    %48 = sbr.rel (0) target = $region57
  $region56: #{liif_fpn_pred_forward.13} parent=0 // pred_region
    _
  $region57: #{liif_fpn_pred_forward.13} parent=0 // pred_fallthru
    _
  // Predicated region
  $region58: #{liif_fpn_pred_forward.13} parent=0 // pred_check
    _
  $region59: #{liif_fpn_pred_forward.13} parent=0 // pred_check_branch
    %50 = sbr.rel (0) target = $region61
  $region60: #{liif_fpn_pred_forward.13} parent=0 // pred_region
    _
  $region61: #{liif_fpn_pred_forward.13} parent=0 // pred_fallthru
    _
  // Predicated region
  $region62: #{liif_fpn_pred_forward.13} parent=0 // pred_check
    _
  $region63: #{liif_fpn_pred_forward.13} parent=0 // pred_check_branch
    %52 = sbr.rel (0) target = $region65
  $region64: #{liif_fpn_pred_forward.13} parent=0 // pred_region
    _
  $region65: #{liif_fpn_pred_forward.13} parent=0 // pred_fallthru
    _
  %v54 = vld [vmem:[%s0] sm:$0xf]
  %v55 = vld [vmem:[%s0 + $0x4] sm:$0xf]
  %v56 = vld [vmem:[%s0 + $0x8] sm:$0xf]
  %v57 = vld [vmem:[%s0 + $0xc] sm:$0xf]
  %v58 = vld [vmem:[%s0 + $0x10] sm:$0xf]
  %v59 = vld [vmem:[%s0 + $0x14] sm:$0xf]
  %v60 = vld [vmem:[%s0 + $0x18] sm:$0xf]
  %v61 = vld [vmem:[%s0 + $0x1c] sm:$0xf]
  %v62 = vld [vmem:[%s0 + $0x20] sm:$0xf]
  %v63 = vld [vmem:[%s0 + $0x24] sm:$0xf]
  %v64 = vld [vmem:[%s0 + $0x28] sm:$0xf]
  %v65 = vld [vmem:[%s0 + $0x2c] sm:$0xf]
  %v66 = vld [vmem:[%s0 + $0x30] sm:$0xf]
  %v67 = vld [vmem:[%s0 + $0x34] sm:$0xf]
  %v68 = vld [vmem:[%s0 + $0x38] sm:$0xf]
  %v69 = vld [vmem:[%s0 + $0x3c] sm:$0xf]
  %v70 = vld [vmem:[%s0 + $0x40] sm:$0xf]
  %v71 = vld [vmem:[%s0 + $0x44] sm:$0xf]
  %v72 = vld [vmem:[%s0 + $0x48] sm:$0xf]
  %v73 = vld [vmem:[%s0 + $0x4c] sm:$0xf]
  %v74 = vld [vmem:[%s0 + $0x50] sm:$0xf]
  %v75 = vld [vmem:[%s0 + $0x54] sm:$0xf]
  %v76 = vld [vmem:[%s0 + $0x58] sm:$0xf]
  %v77 = vld [vmem:[%s0 + $0x5c] sm:$0xf]
  %v78 = vld [vmem:[%s0 + $0x60] sm:$0xf]
  %v79 = vld [vmem:[%s0 + $0x64] sm:$0xf]
  %v80 = vld [vmem:[%s0 + $0x68] sm:$0xf]
  %v81 = vld [vmem:[%s0 + $0x6c] sm:$0xf]
  %v82 = vld [vmem:[%s0 + $0x70] sm:$0xf]
  %v83 = vld [vmem:[%s0 + $0x74] sm:$0xf]
  %v84 = vld [vmem:[%s0 + $0x78] sm:$0xf]
  %v85 = vld [vmem:[%s0 + $0x7c] sm:$0xf]
  %v86 = vld [vmem:[%s0 + $0x80] sm:$0xf]
  %v87 = vld [vmem:[%s0 + $0x84] sm:$0xf]
  %v88 = vld [vmem:[%s0 + $0x88] sm:$0xf]
  %v89 = vld [vmem:[%s0 + $0x8c] sm:$0xf]
  %v90 = vld [vmem:[%s0 + $0x90] sm:$0xf]
  %v91 = vld [vmem:[%s0 + $0x94] sm:$0xf]
  %v92 = vld [vmem:[%s0 + $0x98] sm:$0xf]
  %v93 = vld [vmem:[%s0 + $0x9c] sm:$0xf]
  %v94 = vld [vmem:[%s0 + $0xa0] sm:$0xf]
  %v95 = vld [vmem:[%s0 + $0xa4] sm:$0xf]
  %v96 = vld [vmem:[%s0 + $0xa8] sm:$0xf]
  %v97 = vld [vmem:[%s0 + $0xac] sm:$0xf]
  %v98 = vld [vmem:[%s0 + $0xb0] sm:$0xf]
  %v99 = vld [vmem:[%s0 + $0xb4] sm:$0xf]
  %v100 = vld [vmem:[%s0 + $0xb8] sm:$0xf]
  %v101 = vld [vmem:[%s0 + $0xbc] sm:$0xf]
  %v102 = vld [vmem:[%s0 + $0xc0] sm:$0xf]
  %v103 = vld [vmem:[%s0 + $0xc4] sm:$0xf]
  %v104 = vld [vmem:[%s0 + $0xc8] sm:$0xf]
  %v105 = vld [vmem:[%s0 + $0xcc] sm:$0xf]
  %v106 = vld [vmem:[%s0 + $0xd0] sm:$0xf]
  %v107 = vld [vmem:[%s0 + $0xd4] sm:$0xf]
  %v108 = vld [vmem:[%s0 + $0xd8] sm:$0xf]
  %v109 = vld [vmem:[%s0 + $0xdc] sm:$0xf]
  %v110 = vld [vmem:[%s0 + $0xe0] sm:$0xf]
  %v111 = vld [vmem:[%s0 + $0xe4] sm:$0xf]
  %v112 = vld [vmem:[%s0 + $0xe8] sm:$0xf]
  %v113 = vld [vmem:[%s0 + $0xec] sm:$0xf]
  %v114 = vld [vmem:[%s0 + $0xf0] sm:$0xf]
  %v115 = vld [vmem:[%s0 + $0xf4] sm:$0xf]
  %v116 = vld [vmem:[%s0 + $0xf8] sm:$0xf]
  %v117 = vld [vmem:[%s0 + $0xfc] sm:$0xf]
  %v118 = vld [vmem:[%s6] sm:$0xf]
  %v119 = vld [vmem:[%s1] sm:$0xf]
  %v120 = vld [vmem:[%s1 + $0x4] sm:$0xf]
  %v121 = vld [vmem:[%s1 + $0x8] sm:$0xf]
  %v122 = vld [vmem:[%s1 + $0xc] sm:$0xf]
  %v123 = vld [vmem:[%s1 + $0x10] sm:$0xf]
  %v124 = vld [vmem:[%s1 + $0x14] sm:$0xf]
  %v125 = vld [vmem:[%s1 + $0x18] sm:$0xf]
  %v126 = vld [vmem:[%s1 + $0x1c] sm:$0xf]
  %v127 = vld [vmem:[%s1 + $0x20] sm:$0xf]
  %v128 = vld [vmem:[%s1 + $0x24] sm:$0xf]
  %v129 = vld [vmem:[%s1 + $0x28] sm:$0xf]
  %v130 = vld [vmem:[%s1 + $0x2c] sm:$0xf]
  %v131 = vld [vmem:[%s1 + $0x30] sm:$0xf]
  %v132 = vld [vmem:[%s1 + $0x34] sm:$0xf]
  %v133 = vld [vmem:[%s1 + $0x38] sm:$0xf]
  %v134 = vld [vmem:[%s1 + $0x3c] sm:$0xf]
  %v135 = vld [vmem:[%s1 + $0x40] sm:$0xf]
  %v136 = vld [vmem:[%s1 + $0x44] sm:$0xf]
  %v137 = vld [vmem:[%s1 + $0x48] sm:$0xf]
  %v138 = vld [vmem:[%s1 + $0x4c] sm:$0xf]
  %v139 = vld [vmem:[%s1 + $0x50] sm:$0xf]
  %v140 = vld [vmem:[%s1 + $0x54] sm:$0xf]
  %v141 = vld [vmem:[%s1 + $0x58] sm:$0xf]
  %v142 = vld [vmem:[%s1 + $0x5c] sm:$0xf]
  %v143 = vld [vmem:[%s1 + $0x60] sm:$0xf]
  %v144 = vld [vmem:[%s1 + $0x64] sm:$0xf]
  %v145 = vld [vmem:[%s1 + $0x68] sm:$0xf]
  %v146 = vld [vmem:[%s1 + $0x6c] sm:$0xf]
  %v147 = vld [vmem:[%s1 + $0x70] sm:$0xf]
  %v148 = vld [vmem:[%s1 + $0x74] sm:$0xf]
  %v149 = vld [vmem:[%s1 + $0x78] sm:$0xf]
  %v150 = vld [vmem:[%s1 + $0x7c] sm:$0xf]
  %v151 = vld [vmem:[%s1 + $0x80] sm:$0xf]
  %v152 = vld [vmem:[%s1 + $0x84] sm:$0xf]
  %v153 = vld [vmem:[%s1 + $0x88] sm:$0xf]
  %v154 = vld [vmem:[%s1 + $0x8c] sm:$0xf]
  %v155 = vld [vmem:[%s1 + $0x90] sm:$0xf]
  %v156 = vld [vmem:[%s1 + $0x94] sm:$0xf]
  %v157 = vld [vmem:[%s1 + $0x98] sm:$0xf]
  %v158 = vld [vmem:[%s1 + $0x9c] sm:$0xf]
  %v159 = vld [vmem:[%s1 + $0xa0] sm:$0xf]
  %v160 = vld [vmem:[%s1 + $0xa4] sm:$0xf]
  %v161 = vld [vmem:[%s1 + $0xa8] sm:$0xf]
  %v162 = vld [vmem:[%s1 + $0xac] sm:$0xf]
  %v163 = vld [vmem:[%s1 + $0xb0] sm:$0xf]
  %v164 = vld [vmem:[%s1 + $0xb4] sm:$0xf]
  %v165 = vld [vmem:[%s1 + $0xb8] sm:$0xf]
  %v166 = vld [vmem:[%s1 + $0xbc] sm:$0xf]
  %v167 = vld [vmem:[%s1 + $0xc0] sm:$0xf]
  %v168 = vld [vmem:[%s1 + $0xc4] sm:$0xf]
  %v169 = vld [vmem:[%s1 + $0xc8] sm:$0xf]
  %v170 = vld [vmem:[%s1 + $0xcc] sm:$0xf]
  %v171 = vld [vmem:[%s1 + $0xd0] sm:$0xf]
  %v172 = vld [vmem:[%s1 + $0xd4] sm:$0xf]
  %v173 = vld [vmem:[%s1 + $0xd8] sm:$0xf]
  %v174 = vld [vmem:[%s1 + $0xdc] sm:$0xf]
  %v175 = vld [vmem:[%s1 + $0xe0] sm:$0xf]
  %v176 = vld [vmem:[%s1 + $0xe4] sm:$0xf]
  %v177 = vld [vmem:[%s1 + $0xe8] sm:$0xf]
  %v178 = vld [vmem:[%s1 + $0xec] sm:$0xf]
  %v179 = vld [vmem:[%s1 + $0xf0] sm:$0xf]
  %v180 = vld [vmem:[%s1 + $0xf4] sm:$0xf]
  %v181 = vld [vmem:[%s1 + $0xf8] sm:$0xf]
  %v182 = vld [vmem:[%s1 + $0xfc] sm:$0xf]
  %v183 = vld [vmem:[%s7] sm:$0xf]
  %v248 = vunpack.c.l.b16 %v119
  %v249 = vunpack.c.l.b16 %v120
  %v250 = vunpack.c.l.b16 %v121
  %v251 = vunpack.c.l.b16 %v122
  %v252 = vunpack.c.l.b16 %v123
  %v253 = vunpack.c.l.b16 %v124
  %v254 = vunpack.c.l.b16 %v125
  %v255 = vunpack.c.l.b16 %v126
  %v256 = vunpack.c.l.b16 %v127
  %v257 = vunpack.c.l.b16 %v128
  %v258 = vunpack.c.l.b16 %v129
  %v259 = vunpack.c.l.b16 %v130
  %v260 = vunpack.c.l.b16 %v131
  %v261 = vunpack.c.l.b16 %v132
  %v262 = vunpack.c.l.b16 %v133
  %v263 = vunpack.c.l.b16 %v134
  %v264 = vunpack.c.l.b16 %v135
  %v265 = vunpack.c.l.b16 %v136
  %v266 = vunpack.c.l.b16 %v137
  %v267 = vunpack.c.l.b16 %v138
  %v268 = vunpack.c.l.b16 %v139
  %v269 = vunpack.c.l.b16 %v140
  %v270 = vunpack.c.l.b16 %v141
  %v271 = vunpack.c.l.b16 %v142
  %v272 = vunpack.c.l.b16 %v143
  %v273 = vunpack.c.l.b16 %v144
  %v274 = vunpack.c.l.b16 %v145
  %v275 = vunpack.c.l.b16 %v146
  %v276 = vunpack.c.l.b16 %v147
  %v277 = vunpack.c.l.b16 %v148
  %v278 = vunpack.c.l.b16 %v149
  %v279 = vunpack.c.l.b16 %v150
  %v280 = vunpack.c.l.b16 %v151
  %v281 = vunpack.c.l.b16 %v152
  %v282 = vunpack.c.l.b16 %v153
  %v283 = vunpack.c.l.b16 %v154
  %v284 = vunpack.c.l.b16 %v155
  %v285 = vunpack.c.l.b16 %v156
  %v286 = vunpack.c.l.b16 %v157
  %v287 = vunpack.c.l.b16 %v158
  %v288 = vunpack.c.l.b16 %v159
  %v289 = vunpack.c.l.b16 %v160
  %v290 = vunpack.c.l.b16 %v161
  %v291 = vunpack.c.l.b16 %v162
  %v292 = vunpack.c.l.b16 %v163
  %v293 = vunpack.c.l.b16 %v164
  %v294 = vunpack.c.l.b16 %v165
  %v295 = vunpack.c.l.b16 %v166
  %v296 = vunpack.c.l.b16 %v167
  %v297 = vunpack.c.l.b16 %v168
  %v298 = vunpack.c.l.b16 %v169
  %v299 = vunpack.c.l.b16 %v170
  %v300 = vunpack.c.l.b16 %v171
  %v301 = vunpack.c.l.b16 %v172
  %v302 = vunpack.c.l.b16 %v173
  %v303 = vunpack.c.l.b16 %v174
  %v304 = vunpack.c.l.b16 %v175
  %v305 = vunpack.c.l.b16 %v176
  %v306 = vunpack.c.l.b16 %v177
  %v307 = vunpack.c.l.b16 %v178
  %v308 = vunpack.c.l.b16 %v179
  %v309 = vunpack.c.l.b16 %v180
  %v310 = vunpack.c.l.b16 %v181
  %v311 = vunpack.c.l.b16 %v182
  %v312 = vpack.c.b16 %v249, %v248
  %v313 = vpack.c.b16 %v251, %v250
  %v314 = vpack.c.b16 %v253, %v252
  %v315 = vpack.c.b16 %v255, %v254
  %v316 = vpack.c.b16 %v257, %v256
  %v317 = vpack.c.b16 %v259, %v258
  %v318 = vpack.c.b16 %v261, %v260
  %v319 = vpack.c.b16 %v263, %v262
  %v320 = vpack.c.b16 %v265, %v264
  %v321 = vpack.c.b16 %v267, %v266
  %v322 = vpack.c.b16 %v269, %v268
  %v323 = vpack.c.b16 %v271, %v270
  %v324 = vpack.c.b16 %v273, %v272
  %v325 = vpack.c.b16 %v275, %v274
  %v326 = vpack.c.b16 %v277, %v276
  %v327 = vpack.c.b16 %v279, %v278
  %v328 = vpack.c.b16 %v281, %v280
  %v329 = vpack.c.b16 %v283, %v282
  %v330 = vpack.c.b16 %v285, %v284
  %v331 = vpack.c.b16 %v287, %v286
  %v332 = vpack.c.b16 %v289, %v288
  %v333 = vpack.c.b16 %v291, %v290
  %v334 = vpack.c.b16 %v293, %v292
  %v335 = vpack.c.b16 %v295, %v294
  %v336 = vpack.c.b16 %v297, %v296
  %v337 = vpack.c.b16 %v299, %v298
  %v338 = vpack.c.b16 %v301, %v300
  %v339 = vpack.c.b16 %v303, %v302
  %v340 = vpack.c.b16 %v305, %v304
  %v341 = vpack.c.b16 %v307, %v306
  %v342 = vpack.c.b16 %v309, %v308
  %v343 = vpack.c.b16 %v311, %v310
  %vm344 = vcmask 64512
  %v346 = vsel %vm344, %v312, 0
  %v349 = vsel %vm344, %v313, 0
  %v352 = vsel %vm344, %v314, 0
  %v355 = vsel %vm344, %v315, 0
  %v358 = vsel %vm344, %v316, 0
  %v361 = vsel %vm344, %v317, 0
  %v364 = vsel %vm344, %v318, 0
  %v367 = vsel %vm344, %v319, 0
  %v370 = vsel %vm344, %v320, 0
  %v373 = vsel %vm344, %v321, 0
  %v376 = vsel %vm344, %v322, 0
  %v379 = vsel %vm344, %v323, 0
  %v382 = vsel %vm344, %v324, 0
  %v385 = vsel %vm344, %v325, 0
  %v388 = vsel %vm344, %v326, 0
  %v391 = vsel %vm344, %v327, 0
  %v394 = vsel %vm344, %v328, 0
  %v397 = vsel %vm344, %v329, 0
  %v400 = vsel %vm344, %v330, 0
  %v403 = vsel %vm344, %v331, 0
  %v406 = vsel %vm344, %v332, 0
  %v409 = vsel %vm344, %v333, 0
  %v412 = vsel %vm344, %v334, 0
  %v415 = vsel %vm344, %v335, 0
  %v418 = vsel %vm344, %v336, 0
  %v421 = vsel %vm344, %v337, 0
  %v424 = vsel %vm344, %v338, 0
  %v427 = vsel %vm344, %v339, 0
  %v430 = vsel %vm344, %v340, 0
  %v433 = vsel %vm344, %v341, 0
  %v436 = vsel %vm344, %v342, 0
  %v439 = vsel %vm344, %v343, 0
  %vm441 = vcmask 1043456
  %v443 = vsel %vm441, %v183, 0
  %445 = vmatprep.subr.bf16.mxu0 0
  %446 = vmatpush1.bf16.msra.mxu0 %v443
  %447 = vmatprep.subr.bf16.mxu0 0
  %448 = vmatpush1.bf16.msra.mxu0 0
  %449 = vmatprep.subr.bf16.mxu0 0
  %450 = vmatpush1.bf16.msra.mxu0 0
  %451 = vmatprep.subr.bf16.mxu0 0
  %452 = vmatpush1.bf16.msra.mxu0 0
  %453 = vmatprep.subr.bf16.mxu0 0
  %454 = vmatpush1.bf16.msra.mxu0 0
  %455 = vmatprep.subr.bf16.mxu0 0
  %456 = vmatpush1.bf16.msra.mxu0 0
  %457 = vmatprep.subr.bf16.mxu0 0
  %458 = vmatpush1.bf16.msra.mxu0 0
  %459 = vmatprep.subr.bf16.mxu0 0
  %460 = vmatpush1.bf16.msra.mxu0 0
  %461 = vmatprep.subr.bf16.mxu0 0
  %462 = vmatpush1.bf16.msra.mxu0 0
  %463 = vmatprep.subr.bf16.mxu0 0
  %464 = vmatpush1.bf16.msra.mxu0 0
  %465 = vmatprep.subr.bf16.mxu0 0
  %466 = vmatpush1.bf16.msra.mxu0 0
  %467 = vmatprep.subr.bf16.mxu0 0
  %468 = vmatpush1.bf16.msra.mxu0 0
  %469 = vmatprep.subr.bf16.mxu0 0
  %470 = vmatpush1.bf16.msra.mxu0 0
  %471 = vmatprep.subr.bf16.mxu0 0
  %472 = vmatpush1.bf16.msra.mxu0 0
  %473 = vmatprep.subr.bf16.mxu0 0
  %474 = vmatpush1.bf16.msra.mxu0 0
  %475 = vmatprep.subr.bf16.mxu0 0
  %476 = vmatpush1.bf16.msra.mxu0 0
  %477 = vmatprep.mubr.bf16.mxu0 0
  %478 = vmatmul.mubr.bf16.gmra.mrb[0].mxu0 %v346
  %v479 = vpop.f32.mrb[0].mxu0
  %v480 = vadd.f32 0.0, %v479
  %v481 = vpop.f32.mrb[0].mxu0
  %v482 = vpop.f32.mrb[0].mxu0
  %v483 = vadd.f32 0.0, %v482
  %v484 = vpop.f32.mrb[0].mxu0
  %485 = vmatprep.mubr.bf16.mxu0 0
  %486 = vmatmul.mubr.bf16.gmra.mrb[0].mxu0 %v349
  %v487 = vpop.f32.mrb[0].mxu0
  %v488 = vadd.f32 0.0, %v487
  %v489 = vpop.f32.mrb[0].mxu0
  %v490 = vpop.f32.mrb[0].mxu0
  %v491 = vadd.f32 0.0, %v490
  %v492 = vpop.f32.mrb[0].mxu0
  %493 = vmatprep.mubr.bf16.mxu0 0
  %494 = vmatmul.mubr.bf16.gmra.mrb[0].mxu0 %v352
  %v495 = vpop.f32.mrb[0].mxu0
  %v496 = vadd.f32 0.0, %v495
  %v497 = vpop.f32.mrb[0].mxu0
  %v498 = vpop.f32.mrb[0].mxu0
  %v499 = vadd.f32 0.0, %v498
  %v500 = vpop.f32.mrb[0].mxu0
  %501 = vmatprep.mubr.bf16.mxu0 0
  %502 = vmatmul.mubr.bf16.gmra.mrb[0].mxu0 %v355
  %v503 = vpop.f32.mrb[0].mxu0
  %v504 = vadd.f32 0.0, %v503
  %v505 = vpop.f32.mrb[0].mxu0
  %v506 = vpop.f32.mrb[0].mxu0
  %v507 = vadd.f32 0.0, %v506
  %v508 = vpop.f32.mrb[0].mxu0
  %509 = vmatprep.mubr.bf16.mxu0 0
  %510 = vmatmul.mubr.bf16.gmra.mrb[0].mxu0 %v358
  %v511 = vpop.f32.mrb[0].mxu0
  %v512 = vadd.f32 0.0, %v511
  %v513 = vpop.f32.mrb[0].mxu0
  %v514 = vpop.f32.mrb[0].mxu0
  %v515 = vadd.f32 0.0, %v514
  %v516 = vpop.f32.mrb[0].mxu0
  %517 = vmatprep.mubr.bf16.mxu0 0
  %518 = vmatmul.mubr.bf16.gmra.mrb[0].mxu0 %v361
  %v519 = vpop.f32.mrb[0].mxu0
  %v520 = vadd.f32 0.0, %v519
  %v521 = vpop.f32.mrb[0].mxu0
  %v522 = vpop.f32.mrb[0].mxu0
  %v523 = vadd.f32 0.0, %v522
  %v524 = vpop.f32.mrb[0].mxu0
  %525 = vmatprep.mubr.bf16.mxu0 0
  %526 = vmatmul.mubr.bf16.gmra.mrb[0].mxu0 %v364
  %v527 = vpop.f32.mrb[0].mxu0
  %v528 = vadd.f32 0.0, %v527
  %v529 = vpop.f32.mrb[0].mxu0
  %v530 = vpop.f32.mrb[0].mxu0
  %v531 = vadd.f32 0.0, %v530
  %v532 = vpop.f32.mrb[0].mxu0
  %533 = vmatprep.mubr.bf16.mxu0 0
  %534 = vmatmul.mubr.bf16.gmra.mrb[0].mxu0 %v367
  %v535 = vpop.f32.mrb[0].mxu0
  %v536 = vadd.f32 0.0, %v535
  %v537 = vpop.f32.mrb[0].mxu0
  %v538 = vpop.f32.mrb[0].mxu0
  %v539 = vadd.f32 0.0, %v538
  %v540 = vpop.f32.mrb[0].mxu0
  %541 = vmatprep.mubr.bf16.mxu0 0
  %542 = vmatmul.mubr.bf16.gmra.mrb[0].mxu0 %v370
  %v543 = vpop.f32.mrb[0].mxu0
  %v544 = vadd.f32 0.0, %v543
  %v545 = vpop.f32.mrb[0].mxu0
  %v546 = vpop.f32.mrb[0].mxu0
  %v547 = vadd.f32 0.0, %v546
  %v548 = vpop.f32.mrb[0].mxu0
  %549 = vmatprep.mubr.bf16.mxu0 0
  %550 = vmatmul.mubr.bf16.gmra.mrb[0].mxu0 %v373
  %v551 = vpop.f32.mrb[0].mxu0
  %v552 = vadd.f32 0.0, %v551
  %v553 = vpop.f32.mrb[0].mxu0
  %v554 = vpop.f32.mrb[0].mxu0
  %v555 = vadd.f32 0.0, %v554
  %v556 = vpop.f32.mrb[0].mxu0
  %557 = vmatprep.mubr.bf16.mxu0 0
  %558 = vmatmul.mubr.bf16.gmra.mrb[0].mxu0 %v376
  %v559 = vpop.f32.mrb[0].mxu0
  %v560 = vadd.f32 0.0, %v559
  %v561 = vpop.f32.mrb[0].mxu0
  %v562 = vpop.f32.mrb[0].mxu0
  %v563 = vadd.f32 0.0, %v562
  %v564 = vpop.f32.mrb[0].mxu0
  %565 = vmatprep.mubr.bf16.mxu0 0
  %566 = vmatmul.mubr.bf16.gmra.mrb[0].mxu0 %v379
  %v567 = vpop.f32.mrb[0].mxu0
  %v568 = vadd.f32 0.0, %v567
  %v569 = vpop.f32.mrb[0].mxu0
  %v570 = vpop.f32.mrb[0].mxu0
  %v571 = vadd.f32 0.0, %v570
  %v572 = vpop.f32.mrb[0].mxu0
  %573 = vmatprep.mubr.bf16.mxu0 0
  %574 = vmatmul.mubr.bf16.gmra.mrb[0].mxu0 %v382
  %v575 = vpop.f32.mrb[0].mxu0
  %v576 = vadd.f32 0.0, %v575
  %v577 = vpop.f32.mrb[0].mxu0
  %v578 = vpop.f32.mrb[0].mxu0
  %v579 = vadd.f32 0.0, %v578
  %v580 = vpop.f32.mrb[0].mxu0
  %581 = vmatprep.mubr.bf16.mxu0 0
  %582 = vmatmul.mubr.bf16.gmra.mrb[0].mxu0 %v385
  %v583 = vpop.f32.mrb[0].mxu0
  %v584 = vadd.f32 0.0, %v583
  %v585 = vpop.f32.mrb[0].mxu0
  %v586 = vpop.f32.mrb[0].mxu0
  %v587 = vadd.f32 0.0, %v586
  %v588 = vpop.f32.mrb[0].mxu0
  %589 = vmatprep.mubr.bf16.mxu0 0
  %590 = vmatmul.mubr.bf16.gmra.mrb[0].mxu0 %v388
  %v591 = vpop.f32.mrb[0].mxu0
  %v592 = vadd.f32 0.0, %v591
  %v593 = vpop.f32.mrb[0].mxu0
  %v594 = vpop.f32.mrb[0].mxu0
  %v595 = vadd.f32 0.0, %v594
  %v596 = vpop.f32.mrb[0].mxu0
  %597 = vmatprep.mubr.bf16.mxu0 0
  %598 = vmatmul.mubr.bf16.gmra.mrb[0].mxu0 %v391
  %v599 = vpop.f32.mrb[0].mxu0
  %v600 = vadd.f32 0.0, %v599
  %v601 = vpop.f32.mrb[0].mxu0
  %v602 = vpop.f32.mrb[0].mxu0
  %v603 = vadd.f32 0.0, %v602
  %v604 = vpop.f32.mrb[0].mxu0
  %605 = vmatprep.mubr.bf16.mxu0 0
  %606 = vmatmul.mubr.bf16.gmra.mrb[0].mxu0 %v394
  %v607 = vpop.f32.mrb[0].mxu0
  %v608 = vadd.f32 0.0, %v607
  %v609 = vpop.f32.mrb[0].mxu0
  %v610 = vpop.f32.mrb[0].mxu0
  %v611 = vadd.f32 0.0, %v610
  %v612 = vpop.f32.mrb[0].mxu0
  %613 = vmatprep.mubr.bf16.mxu0 0
  %614 = vmatmul.mubr.bf16.gmra.mrb[0].mxu0 %v397
  %v615 = vpop.f32.mrb[0].mxu0
  %v616 = vadd.f32 0.0, %v615
  %v617 = vpop.f32.mrb[0].mxu0
  %v618 = vpop.f32.mrb[0].mxu0
  %v619 = vadd.f32 0.0, %v618
  %v620 = vpop.f32.mrb[0].mxu0
  %621 = vmatprep.mubr.bf16.mxu0 0
  %622 = vmatmul.mubr.bf16.gmra.mrb[0].mxu0 %v400
  %v623 = vpop.f32.mrb[0].mxu0
  %v624 = vadd.f32 0.0, %v623
  %v625 = vpop.f32.mrb[0].mxu0
  %v626 = vpop.f32.mrb[0].mxu0
  %v627 = vadd.f32 0.0, %v626
  %v628 = vpop.f32.mrb[0].mxu0
  %629 = vmatprep.mubr.bf16.mxu0 0
  %630 = vmatmul.mubr.bf16.gmra.mrb[0].mxu0 %v403
  %v631 = vpop.f32.mrb[0].mxu0
  %v632 = vadd.f32 0.0, %v631
  %v633 = vpop.f32.mrb[0].mxu0
  %v634 = vpop.f32.mrb[0].mxu0
  %v635 = vadd.f32 0.0, %v634
  %v636 = vpop.f32.mrb[0].mxu0
  %637 = vmatprep.mubr.bf16.mxu0 0
  %638 = vmatmul.mubr.bf16.gmra.mrb[0].mxu0 %v406
  %v639 = vpop.f32.mrb[0].mxu0
  %v640 = vadd.f32 0.0, %v639
  %v641 = vpop.f32.mrb[0].mxu0
  %v642 = vpop.f32.mrb[0].mxu0
  %v643 = vadd.f32 0.0, %v642
  %v644 = vpop.f32.mrb[0].mxu0
  %645 = vmatprep.mubr.bf16.mxu0 0
  %646 = vmatmul.mubr.bf16.gmra.mrb[0].mxu0 %v409
  %v647 = vpop.f32.mrb[0].mxu0
  %v648 = vadd.f32 0.0, %v647
  %v649 = vpop.f32.mrb[0].mxu0
  %v650 = vpop.f32.mrb[0].mxu0
  %v651 = vadd.f32 0.0, %v650
  %v652 = vpop.f32.mrb[0].mxu0
  %653 = vmatprep.mubr.bf16.mxu0 0
  %654 = vmatmul.mubr.bf16.gmra.mrb[0].mxu0 %v412
  %v655 = vpop.f32.mrb[0].mxu0
  %v656 = vadd.f32 0.0, %v655
  %v657 = vpop.f32.mrb[0].mxu0
  %v658 = vpop.f32.mrb[0].mxu0
  %v659 = vadd.f32 0.0, %v658
  %v660 = vpop.f32.mrb[0].mxu0
  %661 = vmatprep.mubr.bf16.mxu0 0
  %662 = vmatmul.mubr.bf16.gmra.mrb[0].mxu0 %v415
  %v663 = vpop.f32.mrb[0].mxu0
  %v664 = vadd.f32 0.0, %v663
  %v665 = vpop.f32.mrb[0].mxu0
  %v666 = vpop.f32.mrb[0].mxu0
  %v667 = vadd.f32 0.0, %v666
  %v668 = vpop.f32.mrb[0].mxu0
  %669 = vmatprep.mubr.bf16.mxu0 0
  %670 = vmatmul.mubr.bf16.gmra.mrb[0].mxu0 %v418
  %v671 = vpop.f32.mrb[0].mxu0
  %v672 = vadd.f32 0.0, %v671
  %v673 = vpop.f32.mrb[0].mxu0
  %v674 = vpop.f32.mrb[0].mxu0
  %v675 = vadd.f32 0.0, %v674
  %v676 = vpop.f32.mrb[0].mxu0
  %677 = vmatprep.mubr.bf16.mxu0 0
  %678 = vmatmul.mubr.bf16.gmra.mrb[0].mxu0 %v421
  %v679 = vpop.f32.mrb[0].mxu0
  %v680 = vadd.f32 0.0, %v679
  %v681 = vpop.f32.mrb[0].mxu0
  %v682 = vpop.f32.mrb[0].mxu0
  %v683 = vadd.f32 0.0, %v682
  %v684 = vpop.f32.mrb[0].mxu0
  %685 = vmatprep.mubr.bf16.mxu0 0
  %686 = vmatmul.mubr.bf16.gmra.mrb[0].mxu0 %v424
  %v687 = vpop.f32.mrb[0].mxu0
  %v688 = vadd.f32 0.0, %v687
  %v689 = vpop.f32.mrb[0].mxu0
  %v690 = vpop.f32.mrb[0].mxu0
  %v691 = vadd.f32 0.0, %v690
  %v692 = vpop.f32.mrb[0].mxu0
  %693 = vmatprep.mubr.bf16.mxu0 0
  %694 = vmatmul.mubr.bf16.gmra.mrb[0].mxu0 %v427
  %v695 = vpop.f32.mrb[0].mxu0
  %v696 = vadd.f32 0.0, %v695
  %v697 = vpop.f32.mrb[0].mxu0
  %v698 = vpop.f32.mrb[0].mxu0
  %v699 = vadd.f32 0.0, %v698
  %v700 = vpop.f32.mrb[0].mxu0
  %701 = vmatprep.mubr.bf16.mxu0 0
  %702 = vmatmul.mubr.bf16.gmra.mrb[0].mxu0 %v430
  %v703 = vpop.f32.mrb[0].mxu0
  %v704 = vadd.f32 0.0, %v703
  %v705 = vpop.f32.mrb[0].mxu0
  %v706 = vpop.f32.mrb[0].mxu0
  %v707 = vadd.f32 0.0, %v706
  %v708 = vpop.f32.mrb[0].mxu0
  %709 = vmatprep.mubr.bf16.mxu0 0
  %710 = vmatmul.mubr.bf16.gmra.mrb[0].mxu0 %v433
  %v711 = vpop.f32.mrb[0].mxu0
  %v712 = vadd.f32 0.0, %v711
  %v713 = vpop.f32.mrb[0].mxu0
  %v714 = vpop.f32.mrb[0].mxu0
  %v715 = vadd.f32 0.0, %v714
  %v716 = vpop.f32.mrb[0].mxu0
  %717 = vmatprep.mubr.bf16.mxu0 0
  %718 = vmatmul.mubr.bf16.gmra.mrb[0].mxu0 %v436
  %v719 = vpop.f32.mrb[0].mxu0
  %v720 = vadd.f32 0.0, %v719
  %v721 = vpop.f32.mrb[0].mxu0
  %v722 = vpop.f32.mrb[0].mxu0
  %v723 = vadd.f32 0.0, %v722
  %v724 = vpop.f32.mrb[0].mxu0
  %725 = vmatprep.mubr.bf16.mxu0 0
  %726 = vmatmul.mubr.bf16.gmra.mrb[0].mxu0 %v439
  %v727 = vpop.f32.mrb[0].mxu0
  %v728 = vadd.f32 0.0, %v727
  %v729 = vpop.f32.mrb[0].mxu0
  %v730 = vpop.f32.mrb[0].mxu0
  %v731 = vadd.f32 0.0, %v730
  %v732 = vpop.f32.mrb[0].mxu0
  %733 = vdwg.mxu0
  %v798 = vunpack.c.l.b16 %v54
  %v799 = vunpack.c.l.b16 %v55
  %v800 = vunpack.c.l.b16 %v56
  %v801 = vunpack.c.l.b16 %v57
  %v802 = vunpack.c.l.b16 %v58
  %v803 = vunpack.c.l.b16 %v59
  %v804 = vunpack.c.l.b16 %v60
  %v805 = vunpack.c.l.b16 %v61
  %v806 = vunpack.c.l.b16 %v62
  %v807 = vunpack.c.l.b16 %v63
  %v808 = vunpack.c.l.b16 %v64
  %v809 = vunpack.c.l.b16 %v65
  %v810 = vunpack.c.l.b16 %v66
  %v811 = vunpack.c.l.b16 %v67
  %v812 = vunpack.c.l.b16 %v68
  %v813 = vunpack.c.l.b16 %v69
  %v814 = vunpack.c.l.b16 %v70
  %v815 = vunpack.c.l.b16 %v71
  %v816 = vunpack.c.l.b16 %v72
  %v817 = vunpack.c.l.b16 %v73
  %v818 = vunpack.c.l.b16 %v74
  %v819 = vunpack.c.l.b16 %v75
  %v820 = vunpack.c.l.b16 %v76
  %v821 = vunpack.c.l.b16 %v77
  %v822 = vunpack.c.l.b16 %v78
  %v823 = vunpack.c.l.b16 %v79
  %v824 = vunpack.c.l.b16 %v80
  %v825 = vunpack.c.l.b16 %v81
  %v826 = vunpack.c.l.b16 %v82
  %v827 = vunpack.c.l.b16 %v83
  %v828 = vunpack.c.l.b16 %v84
  %v829 = vunpack.c.l.b16 %v85
  %v830 = vunpack.c.l.b16 %v86
  %v831 = vunpack.c.l.b16 %v87
  %v832 = vunpack.c.l.b16 %v88
  %v833 = vunpack.c.l.b16 %v89
  %v834 = vunpack.c.l.b16 %v90
  %v835 = vunpack.c.l.b16 %v91
  %v836 = vunpack.c.l.b16 %v92
  %v837 = vunpack.c.l.b16 %v93
  %v838 = vunpack.c.l.b16 %v94
  %v839 = vunpack.c.l.b16 %v95
  %v840 = vunpack.c.l.b16 %v96
  %v841 = vunpack.c.l.b16 %v97
  %v842 = vunpack.c.l.b16 %v98
  %v843 = vunpack.c.l.b16 %v99
  %v844 = vunpack.c.l.b16 %v100
  %v845 = vunpack.c.l.b16 %v101
  %v846 = vunpack.c.l.b16 %v102
  %v847 = vunpack.c.l.b16 %v103
  %v848 = vunpack.c.l.b16 %v104
  %v849 = vunpack.c.l.b16 %v105
  %v850 = vunpack.c.l.b16 %v106
  %v851 = vunpack.c.l.b16 %v107
  %v852 = vunpack.c.l.b16 %v108
  %v853 = vunpack.c.l.b16 %v109
  %v854 = vunpack.c.l.b16 %v110
  %v855 = vunpack.c.l.b16 %v111
  %v856 = vunpack.c.l.b16 %v112
  %v857 = vunpack.c.l.b16 %v113
  %v858 = vunpack.c.l.b16 %v114
  %v859 = vunpack.c.l.b16 %v115
  %v860 = vunpack.c.l.b16 %v116
  %v861 = vunpack.c.l.b16 %v117
  %v862 = vpack.c.b16 %v799, %v798
  %v863 = vpack.c.b16 %v801, %v800
  %v864 = vpack.c.b16 %v803, %v802
  %v865 = vpack.c.b16 %v805, %v804
  %v866 = vpack.c.b16 %v807, %v806
  %v867 = vpack.c.b16 %v809, %v808
  %v868 = vpack.c.b16 %v811, %v810
  %v869 = vpack.c.b16 %v813, %v812
  %v870 = vpack.c.b16 %v815, %v814
  %v871 = vpack.c.b16 %v817, %v816
  %v872 = vpack.c.b16 %v819, %v818
  %v873 = vpack.c.b16 %v821, %v820
  %v874 = vpack.c.b16 %v823, %v822
  %v875 = vpack.c.b16 %v825, %v824
  %v876 = vpack.c.b16 %v827, %v826
  %v877 = vpack.c.b16 %v829, %v828
  %v878 = vpack.c.b16 %v831, %v830
  %v879 = vpack.c.b16 %v833, %v832
  %v880 = vpack.c.b16 %v835, %v834
  %v881 = vpack.c.b16 %v837, %v836
  %v882 = vpack.c.b16 %v839, %v838
  %v883 = vpack.c.b16 %v841, %v840
  %v884 = vpack.c.b16 %v843, %v842
  %v885 = vpack.c.b16 %v845, %v844
  %v886 = vpack.c.b16 %v847, %v846
  %v887 = vpack.c.b16 %v849, %v848
  %v888 = vpack.c.b16 %v851, %v850
  %v889 = vpack.c.b16 %v853, %v852
  %v890 = vpack.c.b16 %v855, %v854
  %v891 = vpack.c.b16 %v857, %v856
  %v892 = vpack.c.b16 %v859, %v858
  %v893 = vpack.c.b16 %v861, %v860
  %v895 = vsel %vm344, %v862, 0
  %v898 = vsel %vm344, %v863, 0
  %v901 = vsel %vm344, %v864, 0
  %v904 = vsel %vm344, %v865, 0
  %v907 = vsel %vm344, %v866, 0
  %v910 = vsel %vm344, %v867, 0
  %v913 = vsel %vm344, %v868, 0
  %v916 = vsel %vm344, %v869, 0
  %v919 = vsel %vm344, %v870, 0
  %v922 = vsel %vm344, %v871, 0
  %v925 = vsel %vm344, %v872, 0
  %v928 = vsel %vm344, %v873, 0
  %v931 = vsel %vm344, %v874, 0
  %v934 = vsel %vm344, %v875, 0
  %v937 = vsel %vm344, %v876, 0
  %v940 = vsel %vm344, %v877, 0
  %v943 = vsel %vm344, %v878, 0
  %v946 = vsel %vm344, %v879, 0
  %v949 = vsel %vm344, %v880, 0
  %v952 = vsel %vm344, %v881, 0
  %v955 = vsel %vm344, %v882, 0
  %v958 = vsel %vm344, %v883, 0
  %v961 = vsel %vm344, %v884, 0
  %v964 = vsel %vm344, %v885, 0
  %v967 = vsel %vm344, %v886, 0
  %v970 = vsel %vm344, %v887, 0
  %v973 = vsel %vm344, %v888, 0
  %v976 = vsel %vm344, %v889, 0
  %v979 = vsel %vm344, %v890, 0
  %v982 = vsel %vm344, %v891, 0
  %v985 = vsel %vm344, %v892, 0
  %v988 = vsel %vm344, %v893, 0
  %v991 = vsel %vm441, %v118, 0
  %993 = vmatprep.subr.bf16.mxu0 0
  %994 = vmatpush1.bf16.msra.mxu0 %v991
  %995 = vmatprep.subr.bf16.mxu0 0
  %996 = vmatpush1.bf16.msra.mxu0 0
  %997 = vmatprep.subr.bf16.mxu0 0
  %998 = vmatpush1.bf16.msra.mxu0 0
  %999 = vmatprep.subr.bf16.mxu0 0
  %1000 = vmatpush1.bf16.msra.mxu0 0
  %1001 = vmatprep.subr.bf16.mxu0 0
  %1002 = vmatpush1.bf16.msra.mxu0 0
  %1003 = vmatprep.subr.bf16.mxu0 0
  %1004 = vmatpush1.bf16.msra.mxu0 0
  %1005 = vmatprep.subr.bf16.mxu0 0
  %1006 = vmatpush1.bf16.msra.mxu0 0
  %1007 = vmatprep.subr.bf16.mxu0 0
  %1008 = vmatpush1.bf16.msra.mxu0 0
  %1009 = vmatprep.subr.bf16.mxu0 0
  %1010 = vmatpush1.bf16.msra.mxu0 0
  %1011 = vmatprep.subr.bf16.mxu0 0
  %1012 = vmatpush1.bf16.msra.mxu0 0
  %1013 = vmatprep.subr.bf16.mxu0 0
  %1014 = vmatpush1.bf16.msra.mxu0 0
  %1015 = vmatprep.subr.bf16.mxu0 0
  %1016 = vmatpush1.bf16.msra.mxu0 0
  %1017 = vmatprep.subr.bf16.mxu0 0
  %1018 = vmatpush1.bf16.msra.mxu0 0
  %1019 = vmatprep.subr.bf16.mxu0 0
  %1020 = vmatpush1.bf16.msra.mxu0 0
  %1021 = vmatprep.subr.bf16.mxu0 0
  %1022 = vmatpush1.bf16.msra.mxu0 0
  %1023 = vmatprep.subr.bf16.mxu0 0
  %1024 = vmatpush1.bf16.msra.mxu0 0
  %1025 = vmatprep.mubr.bf16.mxu0 0
  %1026 = vmatmul.mubr.bf16.gmra.mrb[0].mxu0 %v895
  %v1027 = vpop.f32.mrb[0].mxu0
  %v1028 = vadd.f32 %v480, %v1027
  %v1029 = vpop.f32.mrb[0].mxu0
  %v1030 = vpop.f32.mrb[0].mxu0
  %v1031 = vadd.f32 %v483, %v1030
  %v1032 = vpop.f32.mrb[0].mxu0
  %1033 = vmatprep.mubr.bf16.mxu0 0
  %1034 = vmatmul.mubr.bf16.gmra.mrb[0].mxu0 %v898
  %v1035 = vpop.f32.mrb[0].mxu0
  %v1036 = vadd.f32 %v488, %v1035
  %v1037 = vpop.f32.mrb[0].mxu0
  %v1038 = vpop.f32.mrb[0].mxu0
  %v1039 = vadd.f32 %v491, %v1038
  %v1040 = vpop.f32.mrb[0].mxu0
  %1041 = vmatprep.mubr.bf16.mxu0 0
  %1042 = vmatmul.mubr.bf16.gmra.mrb[0].mxu0 %v901
  %v1043 = vpop.f32.mrb[0].mxu0
  %v1044 = vadd.f32 %v496, %v1043
  %v1045 = vpop.f32.mrb[0].mxu0
  %v1046 = vpop.f32.mrb[0].mxu0
  %v1047 = vadd.f32 %v499, %v1046
  %v1048 = vpop.f32.mrb[0].mxu0
  %1049 = vmatprep.mubr.bf16.mxu0 0
  %1050 = vmatmul.mubr.bf16.gmra.mrb[0].mxu0 %v904
  %v1051 = vpop.f32.mrb[0].mxu0
  %v1052 = vadd.f32 %v504, %v1051
  %v1053 = vpop.f32.mrb[0].mxu0
  %v1054 = vpop.f32.mrb[0].mxu0
  %v1055 = vadd.f32 %v507, %v1054
  %v1056 = vpop.f32.mrb[0].mxu0
  %1057 = vmatprep.mubr.bf16.mxu0 0
  %1058 = vmatmul.mubr.bf16.gmra.mrb[0].mxu0 %v907
  %v1059 = vpop.f32.mrb[0].mxu0
  %v1060 = vadd.f32 %v512, %v1059
  %v1061 = vpop.f32.mrb[0].mxu0
  %v1062 = vpop.f32.mrb[0].mxu0
  %v1063 = vadd.f32 %v515, %v1062
  %v1064 = vpop.f32.mrb[0].mxu0
  %1065 = vmatprep.mubr.bf16.mxu0 0
  %1066 = vmatmul.mubr.bf16.gmra.mrb[0].mxu0 %v910
  %v1067 = vpop.f32.mrb[0].mxu0
  %v1068 = vadd.f32 %v520, %v1067
  %v1069 = vpop.f32.mrb[0].mxu0
  %v1070 = vpop.f32.mrb[0].mxu0
  %v1071 = vadd.f32 %v523, %v1070
  %v1072 = vpop.f32.mrb[0].mxu0
  %1073 = vmatprep.mubr.bf16.mxu0 0
  %1074 = vmatmul.mubr.bf16.gmra.mrb[0].mxu0 %v913
  %v1075 = vpop.f32.mrb[0].mxu0
  %v1076 = vadd.f32 %v528, %v1075
  %v1077 = vpop.f32.mrb[0].mxu0
  %v1078 = vpop.f32.mrb[0].mxu0
  %v1079 = vadd.f32 %v531, %v1078
  %v1080 = vpop.f32.mrb[0].mxu0
  %1081 = vmatprep.mubr.bf16.mxu0 0
  %1082 = vmatmul.mubr.bf16.gmra.mrb[0].mxu0 %v916
  %v1083 = vpop.f32.mrb[0].mxu0
  %v1084 = vadd.f32 %v536, %v1083
  %v1085 = vpop.f32.mrb[0].mxu0
  %v1086 = vpop.f32.mrb[0].mxu0
  %v1087 = vadd.f32 %v539, %v1086
  %v1088 = vpop.f32.mrb[0].mxu0
  %1089 = vmatprep.mubr.bf16.mxu0 0
  %1090 = vmatmul.mubr.bf16.gmra.mrb[0].mxu0 %v919
  %v1091 = vpop.f32.mrb[0].mxu0
  %v1092 = vadd.f32 %v544, %v1091
  %v1093 = vpop.f32.mrb[0].mxu0
  %v1094 = vpop.f32.mrb[0].mxu0
  %v1095 = vadd.f32 %v547, %v1094
  %v1096 = vpop.f32.mrb[0].mxu0
  %1097 = vmatprep.mubr.bf16.mxu0 0
  %1098 = vmatmul.mubr.bf16.gmra.mrb[0].mxu0 %v922
  %v1099 = vpop.f32.mrb[0].mxu0
  %v1100 = vadd.f32 %v552, %v1099
  %v1101 = vpop.f32.mrb[0].mxu0
  %v1102 = vpop.f32.mrb[0].mxu0
  %v1103 = vadd.f32 %v555, %v1102
  %v1104 = vpop.f32.mrb[0].mxu0
  %1105 = vmatprep.mubr.bf16.mxu0 0
  %1106 = vmatmul.mubr.bf16.gmra.mrb[0].mxu0 %v925
  %v1107 = vpop.f32.mrb[0].mxu0
  %v1108 = vadd.f32 %v560, %v1107
  %v1109 = vpop.f32.mrb[0].mxu0
  %v1110 = vpop.f32.mrb[0].mxu0
  %v1111 = vadd.f32 %v563, %v1110
  %v1112 = vpop.f32.mrb[0].mxu0
  %1113 = vmatprep.mubr.bf16.mxu0 0
  %1114 = vmatmul.mubr.bf16.gmra.mrb[0].mxu0 %v928
  %v1115 = vpop.f32.mrb[0].mxu0
  %v1116 = vadd.f32 %v568, %v1115
  %v1117 = vpop.f32.mrb[0].mxu0
  %v1118 = vpop.f32.mrb[0].mxu0
  %v1119 = vadd.f32 %v571, %v1118
  %v1120 = vpop.f32.mrb[0].mxu0
  %1121 = vmatprep.mubr.bf16.mxu0 0
  %1122 = vmatmul.mubr.bf16.gmra.mrb[0].mxu0 %v931
  %v1123 = vpop.f32.mrb[0].mxu0
  %v1124 = vadd.f32 %v576, %v1123
  %v1125 = vpop.f32.mrb[0].mxu0
  %v1126 = vpop.f32.mrb[0].mxu0
  %v1127 = vadd.f32 %v579, %v1126
  %v1128 = vpop.f32.mrb[0].mxu0
  %1129 = vmatprep.mubr.bf16.mxu0 0
  %1130 = vmatmul.mubr.bf16.gmra.mrb[0].mxu0 %v934
  %v1131 = vpop.f32.mrb[0].mxu0
  %v1132 = vadd.f32 %v584, %v1131
  %v1133 = vpop.f32.mrb[0].mxu0
  %v1134 = vpop.f32.mrb[0].mxu0
  %v1135 = vadd.f32 %v587, %v1134
  %v1136 = vpop.f32.mrb[0].mxu0
  %1137 = vmatprep.mubr.bf16.mxu0 0
  %1138 = vmatmul.mubr.bf16.gmra.mrb[0].mxu0 %v937
  %v1139 = vpop.f32.mrb[0].mxu0
  %v1140 = vadd.f32 %v592, %v1139
  %v1141 = vpop.f32.mrb[0].mxu0
  %v1142 = vpop.f32.mrb[0].mxu0
  %v1143 = vadd.f32 %v595, %v1142
  %v1144 = vpop.f32.mrb[0].mxu0
  %1145 = vmatprep.mubr.bf16.mxu0 0
  %1146 = vmatmul.mubr.bf16.gmra.mrb[0].mxu0 %v940
  %v1147 = vpop.f32.mrb[0].mxu0
  %v1148 = vadd.f32 %v600, %v1147
  %v1149 = vpop.f32.mrb[0].mxu0
  %v1150 = vpop.f32.mrb[0].mxu0
  %v1151 = vadd.f32 %v603, %v1150
  %v1152 = vpop.f32.mrb[0].mxu0
  %1153 = vmatprep.mubr.bf16.mxu0 0
  %1154 = vmatmul.mubr.bf16.gmra.mrb[0].mxu0 %v943
  %v1155 = vpop.f32.mrb[0].mxu0
  %v1156 = vadd.f32 %v608, %v1155
  %v1157 = vpop.f32.mrb[0].mxu0
  %v1158 = vpop.f32.mrb[0].mxu0
  %v1159 = vadd.f32 %v611, %v1158
  %v1160 = vpop.f32.mrb[0].mxu0
  %1161 = vmatprep.mubr.bf16.mxu0 0
  %1162 = vmatmul.mubr.bf16.gmra.mrb[0].mxu0 %v946
  %v1163 = vpop.f32.mrb[0].mxu0
  %v1164 = vadd.f32 %v616, %v1163
  %v1165 = vpop.f32.mrb[0].mxu0
  %v1166 = vpop.f32.mrb[0].mxu0
  %v1167 = vadd.f32 %v619, %v1166
  %v1168 = vpop.f32.mrb[0].mxu0
  %1169 = vmatprep.mubr.bf16.mxu0 0
  %1170 = vmatmul.mubr.bf16.gmra.mrb[0].mxu0 %v949
  %v1171 = vpop.f32.mrb[0].mxu0
  %v1172 = vadd.f32 %v624, %v1171
  %v1173 = vpop.f32.mrb[0].mxu0
  %v1174 = vpop.f32.mrb[0].mxu0
  %v1175 = vadd.f32 %v627, %v1174
  %v1176 = vpop.f32.mrb[0].mxu0
  %1177 = vmatprep.mubr.bf16.mxu0 0
  %1178 = vmatmul.mubr.bf16.gmra.mrb[0].mxu0 %v952
  %v1179 = vpop.f32.mrb[0].mxu0
  %v1180 = vadd.f32 %v632, %v1179
  %v1181 = vpop.f32.mrb[0].mxu0
  %v1182 = vpop.f32.mrb[0].mxu0
  %v1183 = vadd.f32 %v635, %v1182
  %v1184 = vpop.f32.mrb[0].mxu0
  %1185 = vmatprep.mubr.bf16.mxu0 0
  %1186 = vmatmul.mubr.bf16.gmra.mrb[0].mxu0 %v955
  %v1187 = vpop.f32.mrb[0].mxu0
  %v1188 = vadd.f32 %v640, %v1187
  %v1189 = vpop.f32.mrb[0].mxu0
  %v1190 = vpop.f32.mrb[0].mxu0
  %v1191 = vadd.f32 %v643, %v1190
  %v1192 = vpop.f32.mrb[0].mxu0
  %1193 = vmatprep.mubr.bf16.mxu0 0
  %1194 = vmatmul.mubr.bf16.gmra.mrb[0].mxu0 %v958
  %v1195 = vpop.f32.mrb[0].mxu0
  %v1196 = vadd.f32 %v648, %v1195
  %v1197 = vpop.f32.mrb[0].mxu0
  %v1198 = vpop.f32.mrb[0].mxu0
  %v1199 = vadd.f32 %v651, %v1198
  %v1200 = vpop.f32.mrb[0].mxu0
  %1201 = vmatprep.mubr.bf16.mxu0 0
  %1202 = vmatmul.mubr.bf16.gmra.mrb[0].mxu0 %v961
  %v1203 = vpop.f32.mrb[0].mxu0
  %v1204 = vadd.f32 %v656, %v1203
  %v1205 = vpop.f32.mrb[0].mxu0
  %v1206 = vpop.f32.mrb[0].mxu0
  %v1207 = vadd.f32 %v659, %v1206
  %v1208 = vpop.f32.mrb[0].mxu0
  %1209 = vmatprep.mubr.bf16.mxu0 0
  %1210 = vmatmul.mubr.bf16.gmra.mrb[0].mxu0 %v964
  %v1211 = vpop.f32.mrb[0].mxu0
  %v1212 = vadd.f32 %v664, %v1211
  %v1213 = vpop.f32.mrb[0].mxu0
  %v1214 = vpop.f32.mrb[0].mxu0
  %v1215 = vadd.f32 %v667, %v1214
  %v1216 = vpop.f32.mrb[0].mxu0
  %1217 = vmatprep.mubr.bf16.mxu0 0
  %1218 = vmatmul.mubr.bf16.gmra.mrb[0].mxu0 %v967
  %v1219 = vpop.f32.mrb[0].mxu0
  %v1220 = vadd.f32 %v672, %v1219
  %v1221 = vpop.f32.mrb[0].mxu0
  %v1222 = vpop.f32.mrb[0].mxu0
  %v1223 = vadd.f32 %v675, %v1222
  %v1224 = vpop.f32.mrb[0].mxu0
  %1225 = vmatprep.mubr.bf16.mxu0 0
  %1226 = vmatmul.mubr.bf16.gmra.mrb[0].mxu0 %v970
  %v1227 = vpop.f32.mrb[0].mxu0
  %v1228 = vadd.f32 %v680, %v1227
  %v1229 = vpop.f32.mrb[0].mxu0
  %v1230 = vpop.f32.mrb[0].mxu0
  %v1231 = vadd.f32 %v683, %v1230
  %v1232 = vpop.f32.mrb[0].mxu0
  %1233 = vmatprep.mubr.bf16.mxu0 0
  %1234 = vmatmul.mubr.bf16.gmra.mrb[0].mxu0 %v973
  %v1235 = vpop.f32.mrb[0].mxu0
  %v1236 = vadd.f32 %v688, %v1235
  %v1237 = vpop.f32.mrb[0].mxu0
  %v1238 = vpop.f32.mrb[0].mxu0
  %v1239 = vadd.f32 %v691, %v1238
  %v1240 = vpop.f32.mrb[0].mxu0
  %1241 = vmatprep.mubr.bf16.mxu0 0
  %1242 = vmatmul.mubr.bf16.gmra.mrb[0].mxu0 %v976
  %v1243 = vpop.f32.mrb[0].mxu0
  %v1244 = vadd.f32 %v696, %v1243
  %v1245 = vpop.f32.mrb[0].mxu0
  %v1246 = vpop.f32.mrb[0].mxu0
  %v1247 = vadd.f32 %v699, %v1246
  %v1248 = vpop.f32.mrb[0].mxu0
  %1249 = vmatprep.mubr.bf16.mxu0 0
  %1250 = vmatmul.mubr.bf16.gmra.mrb[0].mxu0 %v979
  %v1251 = vpop.f32.mrb[0].mxu0
  %v1252 = vadd.f32 %v704, %v1251
  %v1253 = vpop.f32.mrb[0].mxu0
  %v1254 = vpop.f32.mrb[0].mxu0
  %v1255 = vadd.f32 %v707, %v1254
  %v1256 = vpop.f32.mrb[0].mxu0
  %1257 = vmatprep.mubr.bf16.mxu0 0
  %1258 = vmatmul.mubr.bf16.gmra.mrb[0].mxu0 %v982
  %v1259 = vpop.f32.mrb[0].mxu0
  %v1260 = vadd.f32 %v712, %v1259
  %v1261 = vpop.f32.mrb[0].mxu0
  %v1262 = vpop.f32.mrb[0].mxu0
  %v1263 = vadd.f32 %v715, %v1262
  %v1264 = vpop.f32.mrb[0].mxu0
  %1265 = vmatprep.mubr.bf16.mxu0 0
  %1266 = vmatmul.mubr.bf16.gmra.mrb[0].mxu0 %v985
  %v1267 = vpop.f32.mrb[0].mxu0
  %v1268 = vadd.f32 %v720, %v1267
  %v1269 = vpop.f32.mrb[0].mxu0
  %v1270 = vpop.f32.mrb[0].mxu0
  %v1271 = vadd.f32 %v723, %v1270
  %v1272 = vpop.f32.mrb[0].mxu0
  %1273 = vmatprep.mubr.bf16.mxu0 0
  %1274 = vmatmul.mubr.bf16.gmra.mrb[0].mxu0 %v988
  %v1275 = vpop.f32.mrb[0].mxu0
  %v1276 = vadd.f32 %v728, %v1275
  %v1277 = vpop.f32.mrb[0].mxu0
  %v1278 = vpop.f32.mrb[0].mxu0
  %v1279 = vadd.f32 %v731, %v1278
  %v1280 = vpop.f32.mrb[0].mxu0
  %1281 = vdwg.mxu0
  %v1282 = vld [vmem:[%s2] sm:$0xf]
  %v1283 = vld [vmem:[%s2 + $0x4] sm:$0xf]
  %v1284 = vld [vmem:[%s2 + $0x8] sm:$0xf]
  %v1285 = vld [vmem:[%s2 + $0xc] sm:$0xf]
  %v1286 = vld [vmem:[%s2 + $0x10] sm:$0xf]
  %v1287 = vld [vmem:[%s2 + $0x14] sm:$0xf]
  %v1288 = vld [vmem:[%s2 + $0x18] sm:$0xf]
  %v1289 = vld [vmem:[%s2 + $0x1c] sm:$0xf]
  %v1290 = vld [vmem:[%s2 + $0x20] sm:$0xf]
  %v1291 = vld [vmem:[%s2 + $0x24] sm:$0xf]
  %v1292 = vld [vmem:[%s2 + $0x28] sm:$0xf]
  %v1293 = vld [vmem:[%s2 + $0x2c] sm:$0xf]
  %v1294 = vld [vmem:[%s2 + $0x30] sm:$0xf]
  %v1295 = vld [vmem:[%s2 + $0x34] sm:$0xf]
  %v1296 = vld [vmem:[%s2 + $0x38] sm:$0xf]
  %v1297 = vld [vmem:[%s2 + $0x3c] sm:$0xf]
  %v1298 = vld [vmem:[%s2 + $0x40] sm:$0xf]
  %v1299 = vld [vmem:[%s2 + $0x44] sm:$0xf]
  %v1300 = vld [vmem:[%s2 + $0x48] sm:$0xf]
  %v1301 = vld [vmem:[%s2 + $0x4c] sm:$0xf]
  %v1302 = vld [vmem:[%s2 + $0x50] sm:$0xf]
  %v1303 = vld [vmem:[%s2 + $0x54] sm:$0xf]
  %v1304 = vld [vmem:[%s2 + $0x58] sm:$0xf]
  %v1305 = vld [vmem:[%s2 + $0x5c] sm:$0xf]
  %v1306 = vld [vmem:[%s2 + $0x60] sm:$0xf]
  %v1307 = vld [vmem:[%s2 + $0x64] sm:$0xf]
  %v1308 = vld [vmem:[%s2 + $0x68] sm:$0xf]
  %v1309 = vld [vmem:[%s2 + $0x6c] sm:$0xf]
  %v1310 = vld [vmem:[%s2 + $0x70] sm:$0xf]
  %v1311 = vld [vmem:[%s2 + $0x74] sm:$0xf]
  %v1312 = vld [vmem:[%s2 + $0x78] sm:$0xf]
  %v1313 = vld [vmem:[%s2 + $0x7c] sm:$0xf]
  %v1314 = vld [vmem:[%s2 + $0x80] sm:$0xf]
  %v1315 = vld [vmem:[%s2 + $0x84] sm:$0xf]
  %v1316 = vld [vmem:[%s2 + $0x88] sm:$0xf]
  %v1317 = vld [vmem:[%s2 + $0x8c] sm:$0xf]
  %v1318 = vld [vmem:[%s2 + $0x90] sm:$0xf]
  %v1319 = vld [vmem:[%s2 + $0x94] sm:$0xf]
  %v1320 = vld [vmem:[%s2 + $0x98] sm:$0xf]
  %v1321 = vld [vmem:[%s2 + $0x9c] sm:$0xf]
  %v1322 = vld [vmem:[%s2 + $0xa0] sm:$0xf]
  %v1323 = vld [vmem:[%s2 + $0xa4] sm:$0xf]
  %v1324 = vld [vmem:[%s2 + $0xa8] sm:$0xf]
  %v1325 = vld [vmem:[%s2 + $0xac] sm:$0xf]
  %v1326 = vld [vmem:[%s2 + $0xb0] sm:$0xf]
  %v1327 = vld [vmem:[%s2 + $0xb4] sm:$0xf]
  %v1328 = vld [vmem:[%s2 + $0xb8] sm:$0xf]
  %v1329 = vld [vmem:[%s2 + $0xbc] sm:$0xf]
  %v1330 = vld [vmem:[%s2 + $0xc0] sm:$0xf]
  %v1331 = vld [vmem:[%s2 + $0xc4] sm:$0xf]
  %v1332 = vld [vmem:[%s2 + $0xc8] sm:$0xf]
  %v1333 = vld [vmem:[%s2 + $0xcc] sm:$0xf]
  %v1334 = vld [vmem:[%s2 + $0xd0] sm:$0xf]
  %v1335 = vld [vmem:[%s2 + $0xd4] sm:$0xf]
  %v1336 = vld [vmem:[%s2 + $0xd8] sm:$0xf]
  %v1337 = vld [vmem:[%s2 + $0xdc] sm:$0xf]
  %v1338 = vld [vmem:[%s2 + $0xe0] sm:$0xf]
  %v1339 = vld [vmem:[%s2 + $0xe4] sm:$0xf]
  %v1340 = vld [vmem:[%s2 + $0xe8] sm:$0xf]
  %v1341 = vld [vmem:[%s2 + $0xec] sm:$0xf]
  %v1342 = vld [vmem:[%s2 + $0xf0] sm:$0xf]
  %v1343 = vld [vmem:[%s2 + $0xf4] sm:$0xf]
  %v1344 = vld [vmem:[%s2 + $0xf8] sm:$0xf]
  %v1345 = vld [vmem:[%s2 + $0xfc] sm:$0xf]
  %v1346 = vld [vmem:[%s8] sm:$0xf]
  %v1411 = vunpack.c.l.b16 %v1282
  %v1412 = vunpack.c.l.b16 %v1283
  %v1413 = vunpack.c.l.b16 %v1284
  %v1414 = vunpack.c.l.b16 %v1285
  %v1415 = vunpack.c.l.b16 %v1286
  %v1416 = vunpack.c.l.b16 %v1287
  %v1417 = vunpack.c.l.b16 %v1288
  %v1418 = vunpack.c.l.b16 %v1289
  %v1419 = vunpack.c.l.b16 %v1290
  %v1420 = vunpack.c.l.b16 %v1291
  %v1421 = vunpack.c.l.b16 %v1292
  %v1422 = vunpack.c.l.b16 %v1293
  %v1423 = vunpack.c.l.b16 %v1294
  %v1424 = vunpack.c.l.b16 %v1295
  %v1425 = vunpack.c.l.b16 %v1296
  %v1426 = vunpack.c.l.b16 %v1297
  %v1427 = vunpack.c.l.b16 %v1298
  %v1428 = vunpack.c.l.b16 %v1299
  %v1429 = vunpack.c.l.b16 %v1300
  %v1430 = vunpack.c.l.b16 %v1301
  %v1431 = vunpack.c.l.b16 %v1302
  %v1432 = vunpack.c.l.b16 %v1303
  %v1433 = vunpack.c.l.b16 %v1304
  %v1434 = vunpack.c.l.b16 %v1305
  %v1435 = vunpack.c.l.b16 %v1306
  %v1436 = vunpack.c.l.b16 %v1307
  %v1437 = vunpack.c.l.b16 %v1308
  %v1438 = vunpack.c.l.b16 %v1309
  %v1439 = vunpack.c.l.b16 %v1310
  %v1440 = vunpack.c.l.b16 %v1311
  %v1441 = vunpack.c.l.b16 %v1312
  %v1442 = vunpack.c.l.b16 %v1313
  %v1443 = vunpack.c.l.b16 %v1314
  %v1444 = vunpack.c.l.b16 %v1315
  %v1445 = vunpack.c.l.b16 %v1316
  %v1446 = vunpack.c.l.b16 %v1317
  %v1447 = vunpack.c.l.b16 %v1318
  %v1448 = vunpack.c.l.b16 %v1319
  %v1449 = vunpack.c.l.b16 %v1320
  %v1450 = vunpack.c.l.b16 %v1321
  %v1451 = vunpack.c.l.b16 %v1322
  %v1452 = vunpack.c.l.b16 %v1323
  %v1453 = vunpack.c.l.b16 %v1324
  %v1454 = vunpack.c.l.b16 %v1325
  %v1455 = vunpack.c.l.b16 %v1326
  %v1456 = vunpack.c.l.b16 %v1327
  %v1457 = vunpack.c.l.b16 %v1328
  %v1458 = vunpack.c.l.b16 %v1329
  %v1459 = vunpack.c.l.b16 %v1330
  %v1460 = vunpack.c.l.b16 %v1331
  %v1461 = vunpack.c.l.b16 %v1332
  %v1462 = vunpack.c.l.b16 %v1333
  %v1463 = vunpack.c.l.b16 %v1334
  %v1464 = vunpack.c.l.b16 %v1335
  %v1465 = vunpack.c.l.b16 %v1336
  %v1466 = vunpack.c.l.b16 %v1337
  %v1467 = vunpack.c.l.b16 %v1338
  %v1468 = vunpack.c.l.b16 %v1339
  %v1469 = vunpack.c.l.b16 %v1340
  %v1470 = vunpack.c.l.b16 %v1341
  %v1471 = vunpack.c.l.b16 %v1342
  %v1472 = vunpack.c.l.b16 %v1343
  %v1473 = vunpack.c.l.b16 %v1344
  %v1474 = vunpack.c.l.b16 %v1345
  %v1475 = vpack.c.b16 %v1412, %v1411
  %v1476 = vpack.c.b16 %v1414, %v1413
  %v1477 = vpack.c.b16 %v1416, %v1415
  %v1478 = vpack.c.b16 %v1418, %v1417
  %v1479 = vpack.c.b16 %v1420, %v1419
  %v1480 = vpack.c.b16 %v1422, %v1421
  %v1481 = vpack.c.b16 %v1424, %v1423
  %v1482 = vpack.c.b16 %v1426, %v1425
  %v1483 = vpack.c.b16 %v1428, %v1427
  %v1484 = vpack.c.b16 %v1430, %v1429
  %v1485 = vpack.c.b16 %v1432, %v1431
  %v1486 = vpack.c.b16 %v1434, %v1433
  %v1487 = vpack.c.b16 %v1436, %v1435
  %v1488 = vpack.c.b16 %v1438, %v1437
  %v1489 = vpack.c.b16 %v1440, %v1439
  %v1490 = vpack.c.b16 %v1442, %v1441
  %v1491 = vpack.c.b16 %v1444, %v1443
  %v1492 = vpack.c.b16 %v1446, %v1445
  %v1493 = vpack.c.b16 %v1448, %v1447
  %v1494 = vpack.c.b16 %v1450, %v1449
  %v1495 = vpack.c.b16 %v1452, %v1451
  %v1496 = vpack.c.b16 %v1454, %v1453
  %v1497 = vpack.c.b16 %v1456, %v1455
  %v1498 = vpack.c.b16 %v1458, %v1457
  %v1499 = vpack.c.b16 %v1460, %v1459
  %v1500 = vpack.c.b16 %v1462, %v1461
  %v1501 = vpack.c.b16 %v1464, %v1463
  %v1502 = vpack.c.b16 %v1466, %v1465
  %v1503 = vpack.c.b16 %v1468, %v1467
  %v1504 = vpack.c.b16 %v1470, %v1469
  %v1505 = vpack.c.b16 %v1472, %v1471
  %v1506 = vpack.c.b16 %v1474, %v1473
  %v1508 = vsel %vm344, %v1475, 0
  %v1511 = vsel %vm344, %v1476, 0
  %v1514 = vsel %vm344, %v1477, 0
  %v1517 = vsel %vm344, %v1478, 0
  %v1520 = vsel %vm344, %v1479, 0
  %v1523 = vsel %vm344, %v1480, 0
  %v1526 = vsel %vm344, %v1481, 0
  %v1529 = vsel %vm344, %v1482, 0
  %v1532 = vsel %vm344, %v1483, 0
  %v1535 = vsel %vm344, %v1484, 0
  %v1538 = vsel %vm344, %v1485, 0
  %v1541 = vsel %vm344, %v1486, 0
  %v1544 = vsel %vm344, %v1487, 0
  %v1547 = vsel %vm344, %v1488, 0
  %v1550 = vsel %vm344, %v1489, 0
  %v1553 = vsel %vm344, %v1490, 0
  %v1556 = vsel %vm344, %v1491, 0
  %v1559 = vsel %vm344, %v1492, 0
  %v1562 = vsel %vm344, %v1493, 0
  %v1565 = vsel %vm344, %v1494, 0
  %v1568 = vsel %vm344, %v1495, 0
  %v1571 = vsel %vm344, %v1496, 0
  %v1574 = vsel %vm344, %v1497, 0
  %v1577 = vsel %vm344, %v1498, 0
  %v1580 = vsel %vm344, %v1499, 0
  %v1583 = vsel %vm344, %v1500, 0
  %v1586 = vsel %vm344, %v1501, 0
  %v1589 = vsel %vm344, %v1502, 0
  %v1592 = vsel %vm344, %v1503, 0
  %v1595 = vsel %vm344, %v1504, 0
  %v1598 = vsel %vm344, %v1505, 0
  %v1601 = vsel %vm344, %v1506, 0
  %v1604 = vsel %vm441, %v1346, 0
  %1606 = vmatprep.subr.bf16.mxu0 0
  %1607 = vmatpush1.bf16.msra.mxu0 %v1604
  %1608 = vmatprep.subr.bf16.mxu0 0
  %1609 = vmatpush1.bf16.msra.mxu0 0
  %1610 = vmatprep.subr.bf16.mxu0 0
  %1611 = vmatpush1.bf16.msra.mxu0 0
  %1612 = vmatprep.subr.bf16.mxu0 0
  %1613 = vmatpush1.bf16.msra.mxu0 0
  %1614 = vmatprep.subr.bf16.mxu0 0
  %1615 = vmatpush1.bf16.msra.mxu0 0
  %1616 = vmatprep.subr.bf16.mxu0 0
  %1617 = vmatpush1.bf16.msra.mxu0 0
  %1618 = vmatprep.subr.bf16.mxu0 0
  %1619 = vmatpush1.bf16.msra.mxu0 0
  %1620 = vmatprep.subr.bf16.mxu0 0
  %1621 = vmatpush1.bf16.msra.mxu0 0
  %1622 = vmatprep.subr.bf16.mxu0 0
  %1623 = vmatpush1.bf16.msra.mxu0 0
  %1624 = vmatprep.subr.bf16.mxu0 0
  %1625 = vmatpush1.bf16.msra.mxu0 0
  %1626 = vmatprep.subr.bf16.mxu0 0
  %1627 = vmatpush1.bf16.msra.mxu0 0
  %1628 = vmatprep.subr.bf16.mxu0 0
  %1629 = vmatpush1.bf16.msra.mxu0 0
  %1630 = vmatprep.subr.bf16.mxu0 0
  %1631 = vmatpush1.bf16.msra.mxu0 0
  %1632 = vmatprep.subr.bf16.mxu0 0
  %1633 = vmatpush1.bf16.msra.mxu0 0
  %1634 = vmatprep.subr.bf16.mxu0 0
  %1635 = vmatpush1.bf16.msra.mxu0 0
  %1636 = vmatprep.subr.bf16.mxu0 0
  %1637 = vmatpush1.bf16.msra.mxu0 0
  %1638 = vmatprep.mubr.bf16.mxu0 0
  %1639 = vmatmul.mubr.bf16.gmra.mrb[0].mxu0 %v1508
  %v1640 = vpop.f32.mrb[0].mxu0
  %v1641 = vadd.f32 0.0, %v1640
  %v1642 = vpop.f32.mrb[0].mxu0
  %v1643 = vpop.f32.mrb[0].mxu0
  %v1644 = vadd.f32 0.0, %v1643
  %v1645 = vpop.f32.mrb[0].mxu0
  %1646 = vmatprep.mubr.bf16.mxu0 0
  %1647 = vmatmul.mubr.bf16.gmra.mrb[0].mxu0 %v1511
  %v1648 = vpop.f32.mrb[0].mxu0
  %v1649 = vadd.f32 0.0, %v1648
  %v1650 = vpop.f32.mrb[0].mxu0
  %v1651 = vpop.f32.mrb[0].mxu0
  %v1652 = vadd.f32 0.0, %v1651
  %v1653 = vpop.f32.mrb[0].mxu0
  %1654 = vmatprep.mubr.bf16.mxu0 0
  %1655 = vmatmul.mubr.bf16.gmra.mrb[0].mxu0 %v1514
  %v1656 = vpop.f32.mrb[0].mxu0
  %v1657 = vadd.f32 0.0, %v1656
  %v1658 = vpop.f32.mrb[0].mxu0
  %v1659 = vpop.f32.mrb[0].mxu0
  %v1660 = vadd.f32 0.0, %v1659
  %v1661 = vpop.f32.mrb[0].mxu0
  %1662 = vmatprep.mubr.bf16.mxu0 0
  %1663 = vmatmul.mubr.bf16.gmra.mrb[0].mxu0 %v1517
  %v1664 = vpop.f32.mrb[0].mxu0
  %v1665 = vadd.f32 0.0, %v1664
  %v1666 = vpop.f32.mrb[0].mxu0
  %v1667 = vpop.f32.mrb[0].mxu0
  %v1668 = vadd.f32 0.0, %v1667
  %v1669 = vpop.f32.mrb[0].mxu0
  %1670 = vmatprep.mubr.bf16.mxu0 0
  %1671 = vmatmul.mubr.bf16.gmra.mrb[0].mxu0 %v1520
  %v1672 = vpop.f32.mrb[0].mxu0
  %v1673 = vadd.f32 0.0, %v1672
  %v1674 = vpop.f32.mrb[0].mxu0
  %v1675 = vpop.f32.mrb[0].mxu0
  %v1676 = vadd.f32 0.0, %v1675
  %v1677 = vpop.f32.mrb[0].mxu0
  %1678 = vmatprep.mubr.bf16.mxu0 0
  %1679 = vmatmul.mubr.bf16.gmra.mrb[0].mxu0 %v1523
  %v1680 = vpop.f32.mrb[0].mxu0
  %v1681 = vadd.f32 0.0, %v1680
  %v1682 = vpop.f32.mrb[0].mxu0
  %v1683 = vpop.f32.mrb[0].mxu0
  %v1684 = vadd.f32 0.0, %v1683
  %v1685 = vpop.f32.mrb[0].mxu0
  %1686 = vmatprep.mubr.bf16.mxu0 0
  %1687 = vmatmul.mubr.bf16.gmra.mrb[0].mxu0 %v1526
  %v1688 = vpop.f32.mrb[0].mxu0
  %v1689 = vadd.f32 0.0, %v1688
  %v1690 = vpop.f32.mrb[0].mxu0
  %v1691 = vpop.f32.mrb[0].mxu0
  %v1692 = vadd.f32 0.0, %v1691
  %v1693 = vpop.f32.mrb[0].mxu0
  %1694 = vmatprep.mubr.bf16.mxu0 0
  %1695 = vmatmul.mubr.bf16.gmra.mrb[0].mxu0 %v1529
  %v1696 = vpop.f32.mrb[0].mxu0
  %v1697 = vadd.f32 0.0, %v1696
  %v1698 = vpop.f32.mrb[0].mxu0
  %v1699 = vpop.f32.mrb[0].mxu0
  %v1700 = vadd.f32 0.0, %v1699
  %v1701 = vpop.f32.mrb[0].mxu0
  %1702 = vmatprep.mubr.bf16.mxu0 0
  %1703 = vmatmul.mubr.bf16.gmra.mrb[0].mxu0 %v1532
  %v1704 = vpop.f32.mrb[0].mxu0
  %v1705 = vadd.f32 0.0, %v1704
  %v1706 = vpop.f32.mrb[0].mxu0
  %v1707 = vpop.f32.mrb[0].mxu0
  %v1708 = vadd.f32 0.0, %v1707
  %v1709 = vpop.f32.mrb[0].mxu0
  %1710 = vmatprep.mubr.bf16.mxu0 0
  %1711 = vmatmul.mubr.bf16.gmra.mrb[0].mxu0 %v1535
  %v1712 = vpop.f32.mrb[0].mxu0
  %v1713 = vadd.f32 0.0, %v1712
  %v1714 = vpop.f32.mrb[0].mxu0
  %v1715 = vpop.f32.mrb[0].mxu0
  %v1716 = vadd.f32 0.0, %v1715
  %v1717 = vpop.f32.mrb[0].mxu0
  %1718 = vmatprep.mubr.bf16.mxu0 0
  %1719 = vmatmul.mubr.bf16.gmra.mrb[0].mxu0 %v1538
  %v1720 = vpop.f32.mrb[0].mxu0
  %v1721 = vadd.f32 0.0, %v1720
  %v1722 = vpop.f32.mrb[0].mxu0
  %v1723 = vpop.f32.mrb[0].mxu0
  %v1724 = vadd.f32 0.0, %v1723
  %v1725 = vpop.f32.mrb[0].mxu0
  %1726 = vmatprep.mubr.bf16.mxu0 0
  %1727 = vmatmul.mubr.bf16.gmra.mrb[0].mxu0 %v1541
  %v1728 = vpop.f32.mrb[0].mxu0
  %v1729 = vadd.f32 0.0, %v1728
  %v1730 = vpop.f32.mrb[0].mxu0
  %v1731 = vpop.f32.mrb[0].mxu0
  %v1732 = vadd.f32 0.0, %v1731
  %v1733 = vpop.f32.mrb[0].mxu0
  %1734 = vmatprep.mubr.bf16.mxu0 0
  %1735 = vmatmul.mubr.bf16.gmra.mrb[0].mxu0 %v1544
  %v1736 = vpop.f32.mrb[0].mxu0
  %v1737 = vadd.f32 0.0, %v1736
  %v1738 = vpop.f32.mrb[0].mxu0
  %v1739 = vpop.f32.mrb[0].mxu0
  %v1740 = vadd.f32 0.0, %v1739
  %v1741 = vpop.f32.mrb[0].mxu0
  %1742 = vmatprep.mubr.bf16.mxu0 0
  %1743 = vmatmul.mubr.bf16.gmra.mrb[0].mxu0 %v1547
  %v1744 = vpop.f32.mrb[0].mxu0
  %v1745 = vadd.f32 0.0, %v1744
  %v1746 = vpop.f32.mrb[0].mxu0
  %v1747 = vpop.f32.mrb[0].mxu0
  %v1748 = vadd.f32 0.0, %v1747
  %v1749 = vpop.f32.mrb[0].mxu0
  %1750 = vmatprep.mubr.bf16.mxu0 0
  %1751 = vmatmul.mubr.bf16.gmra.mrb[0].mxu0 %v1550
  %v1752 = vpop.f32.mrb[0].mxu0
  %v1753 = vadd.f32 0.0, %v1752
  %v1754 = vpop.f32.mrb[0].mxu0
  %v1755 = vpop.f32.mrb[0].mxu0
  %v1756 = vadd.f32 0.0, %v1755
  %v1757 = vpop.f32.mrb[0].mxu0
  %1758 = vmatprep.mubr.bf16.mxu0 0
  %1759 = vmatmul.mubr.bf16.gmra.mrb[0].mxu0 %v1553
  %v1760 = vpop.f32.mrb[0].mxu0
  %v1761 = vadd.f32 0.0, %v1760
  %v1762 = vpop.f32.mrb[0].mxu0
  %v1763 = vpop.f32.mrb[0].mxu0
  %v1764 = vadd.f32 0.0, %v1763
  %v1765 = vpop.f32.mrb[0].mxu0
  %1766 = vmatprep.mubr.bf16.mxu0 0
  %1767 = vmatmul.mubr.bf16.gmra.mrb[0].mxu0 %v1556
  %v1768 = vpop.f32.mrb[0].mxu0
  %v1769 = vadd.f32 0.0, %v1768
  %v1770 = vpop.f32.mrb[0].mxu0
  %v1771 = vpop.f32.mrb[0].mxu0
  %v1772 = vadd.f32 0.0, %v1771
  %v1773 = vpop.f32.mrb[0].mxu0
  %1774 = vmatprep.mubr.bf16.mxu0 0
  %1775 = vmatmul.mubr.bf16.gmra.mrb[0].mxu0 %v1559
  %v1776 = vpop.f32.mrb[0].mxu0
  %v1777 = vadd.f32 0.0, %v1776
  %v1778 = vpop.f32.mrb[0].mxu0
  %v1779 = vpop.f32.mrb[0].mxu0
  %v1780 = vadd.f32 0.0, %v1779
  %v1781 = vpop.f32.mrb[0].mxu0
  %1782 = vmatprep.mubr.bf16.mxu0 0
  %1783 = vmatmul.mubr.bf16.gmra.mrb[0].mxu0 %v1562
  %v1784 = vpop.f32.mrb[0].mxu0
  %v1785 = vadd.f32 0.0, %v1784
  %v1786 = vpop.f32.mrb[0].mxu0
  %v1787 = vpop.f32.mrb[0].mxu0
  %v1788 = vadd.f32 0.0, %v1787
  %v1789 = vpop.f32.mrb[0].mxu0
  %1790 = vmatprep.mubr.bf16.mxu0 0
  %1791 = vmatmul.mubr.bf16.gmra.mrb[0].mxu0 %v1565
  %v1792 = vpop.f32.mrb[0].mxu0
  %v1793 = vadd.f32 0.0, %v1792
  %v1794 = vpop.f32.mrb[0].mxu0
  %v1795 = vpop.f32.mrb[0].mxu0
  %v1796 = vadd.f32 0.0, %v1795
  %v1797 = vpop.f32.mrb[0].mxu0
  %1798 = vmatprep.mubr.bf16.mxu0 0
  %1799 = vmatmul.mubr.bf16.gmra.mrb[0].mxu0 %v1568
  %v1800 = vpop.f32.mrb[0].mxu0
  %v1801 = vadd.f32 0.0, %v1800
  %v1802 = vpop.f32.mrb[0].mxu0
  %v1803 = vpop.f32.mrb[0].mxu0
  %v1804 = vadd.f32 0.0, %v1803
  %v1805 = vpop.f32.mrb[0].mxu0
  %1806 = vmatprep.mubr.bf16.mxu0 0
  %1807 = vmatmul.mubr.bf16.gmra.mrb[0].mxu0 %v1571
  %v1808 = vpop.f32.mrb[0].mxu0
  %v1809 = vadd.f32 0.0, %v1808
  %v1810 = vpop.f32.mrb[0].mxu0
  %v1811 = vpop.f32.mrb[0].mxu0
  %v1812 = vadd.f32 0.0, %v1811
  %v1813 = vpop.f32.mrb[0].mxu0
  %1814 = vmatprep.mubr.bf16.mxu0 0
  %1815 = vmatmul.mubr.bf16.gmra.mrb[0].mxu0 %v1574
  %v1816 = vpop.f32.mrb[0].mxu0
  %v1817 = vadd.f32 0.0, %v1816
  %v1818 = vpop.f32.mrb[0].mxu0
  %v1819 = vpop.f32.mrb[0].mxu0
  %v1820 = vadd.f32 0.0, %v1819
  %v1821 = vpop.f32.mrb[0].mxu0
  %1822 = vmatprep.mubr.bf16.mxu0 0
  %1823 = vmatmul.mubr.bf16.gmra.mrb[0].mxu0 %v1577
  %v1824 = vpop.f32.mrb[0].mxu0
  %v1825 = vadd.f32 0.0, %v1824
  %v1826 = vpop.f32.mrb[0].mxu0
  %v1827 = vpop.f32.mrb[0].mxu0
  %v1828 = vadd.f32 0.0, %v1827
  %v1829 = vpop.f32.mrb[0].mxu0
  %1830 = vmatprep.mubr.bf16.mxu0 0
  %1831 = vmatmul.mubr.bf16.gmra.mrb[0].mxu0 %v1580
  %v1832 = vpop.f32.mrb[0].mxu0
  %v1833 = vadd.f32 0.0, %v1832
  %v1834 = vpop.f32.mrb[0].mxu0
  %v1835 = vpop.f32.mrb[0].mxu0
  %v1836 = vadd.f32 0.0, %v1835
  %v1837 = vpop.f32.mrb[0].mxu0
  %1838 = vmatprep.mubr.bf16.mxu0 0
  %1839 = vmatmul.mubr.bf16.gmra.mrb[0].mxu0 %v1583
  %v1840 = vpop.f32.mrb[0].mxu0
  %v1841 = vadd.f32 0.0, %v1840
  %v1842 = vpop.f32.mrb[0].mxu0
  %v1843 = vpop.f32.mrb[0].mxu0
  %v1844 = vadd.f32 0.0, %v1843
  %v1845 = vpop.f32.mrb[0].mxu0
  %1846 = vmatprep.mubr.bf16.mxu0 0
  %1847 = vmatmul.mubr.bf16.gmra.mrb[0].mxu0 %v1586
  %v1848 = vpop.f32.mrb[0].mxu0
  %v1849 = vadd.f32 0.0, %v1848
  %v1850 = vpop.f32.mrb[0].mxu0
  %v1851 = vpop.f32.mrb[0].mxu0
  %v1852 = vadd.f32 0.0, %v1851
  %v1853 = vpop.f32.mrb[0].mxu0
  %1854 = vmatprep.mubr.bf16.mxu0 0
  %1855 = vmatmul.mubr.bf16.gmra.mrb[0].mxu0 %v1589
  %v1856 = vpop.f32.mrb[0].mxu0
  %v1857 = vadd.f32 0.0, %v1856
  %v1858 = vpop.f32.mrb[0].mxu0
  %v1859 = vpop.f32.mrb[0].mxu0
  %v1860 = vadd.f32 0.0, %v1859
  %v1861 = vpop.f32.mrb[0].mxu0
  %1862 = vmatprep.mubr.bf16.mxu0 0
  %1863 = vmatmul.mubr.bf16.gmra.mrb[0].mxu0 %v1592
  %v1864 = vpop.f32.mrb[0].mxu0
  %v1865 = vadd.f32 0.0, %v1864
  %v1866 = vpop.f32.mrb[0].mxu0
  %v1867 = vpop.f32.mrb[0].mxu0
  %v1868 = vadd.f32 0.0, %v1867
  %v1869 = vpop.f32.mrb[0].mxu0
  %1870 = vmatprep.mubr.bf16.mxu0 0
  %1871 = vmatmul.mubr.bf16.gmra.mrb[0].mxu0 %v1595
  %v1872 = vpop.f32.mrb[0].mxu0
  %v1873 = vadd.f32 0.0, %v1872
  %v1874 = vpop.f32.mrb[0].mxu0
  %v1875 = vpop.f32.mrb[0].mxu0
  %v1876 = vadd.f32 0.0, %v1875
  %v1877 = vpop.f32.mrb[0].mxu0
  %1878 = vmatprep.mubr.bf16.mxu0 0
  %1879 = vmatmul.mubr.bf16.gmra.mrb[0].mxu0 %v1598
  %v1880 = vpop.f32.mrb[0].mxu0
  %v1881 = vadd.f32 0.0, %v1880
  %v1882 = vpop.f32.mrb[0].mxu0
  %v1883 = vpop.f32.mrb[0].mxu0
  %v1884 = vadd.f32 0.0, %v1883
  %v1885 = vpop.f32.mrb[0].mxu0
  %1886 = vmatprep.mubr.bf16.mxu0 0
  %1887 = vmatmul.mubr.bf16.gmra.mrb[0].mxu0 %v1601
  %v1888 = vpop.f32.mrb[0].mxu0
  %v1889 = vadd.f32 0.0, %v1888
  %v1890 = vpop.f32.mrb[0].mxu0
  %v1891 = vpop.f32.mrb[0].mxu0
  %v1892 = vadd.f32 0.0, %v1891
  %v1893 = vpop.f32.mrb[0].mxu0
  %1894 = vdwg.mxu0
  %v1895 = vadd.f32 %v1028, %v1641
  %v1896 = vadd.f32 %v1031, %v1644
  %v1897 = vadd.f32 %v1036, %v1649
  %v1898 = vadd.f32 %v1039, %v1652
  %v1899 = vadd.f32 %v1044, %v1657
  %v1900 = vadd.f32 %v1047, %v1660
  %v1901 = vadd.f32 %v1052, %v1665
  %v1902 = vadd.f32 %v1055, %v1668
  %v1903 = vadd.f32 %v1060, %v1673
  %v1904 = vadd.f32 %v1063, %v1676
  %v1905 = vadd.f32 %v1068, %v1681
  %v1906 = vadd.f32 %v1071, %v1684
  %v1907 = vadd.f32 %v1076, %v1689
  %v1908 = vadd.f32 %v1079, %v1692
  %v1909 = vadd.f32 %v1084, %v1697
  %v1910 = vadd.f32 %v1087, %v1700
  %v1911 = vadd.f32 %v1092, %v1705
  %v1912 = vadd.f32 %v1095, %v1708
  %v1913 = vadd.f32 %v1100, %v1713
  %v1914 = vadd.f32 %v1103, %v1716
  %v1915 = vadd.f32 %v1108, %v1721
  %v1916 = vadd.f32 %v1111, %v1724
  %v1917 = vadd.f32 %v1116, %v1729
  %v1918 = vadd.f32 %v1119, %v1732
  %v1919 = vadd.f32 %v1124, %v1737
  %v1920 = vadd.f32 %v1127, %v1740
  %v1921 = vadd.f32 %v1132, %v1745
  %v1922 = vadd.f32 %v1135, %v1748
  %v1923 = vadd.f32 %v1140, %v1753
  %v1924 = vadd.f32 %v1143, %v1756
  %v1925 = vadd.f32 %v1148, %v1761
  %v1926 = vadd.f32 %v1151, %v1764
  %v1927 = vadd.f32 %v1156, %v1769
  %v1928 = vadd.f32 %v1159, %v1772
  %v1929 = vadd.f32 %v1164, %v1777
  %v1930 = vadd.f32 %v1167, %v1780
  %v1931 = vadd.f32 %v1172, %v1785
  %v1932 = vadd.f32 %v1175, %v1788
  %v1933 = vadd.f32 %v1180, %v1793
  %v1934 = vadd.f32 %v1183, %v1796
  %v1935 = vadd.f32 %v1188, %v1801
  %v1936 = vadd.f32 %v1191, %v1804
  %v1937 = vadd.f32 %v1196, %v1809
  %v1938 = vadd.f32 %v1199, %v1812
  %v1939 = vadd.f32 %v1204, %v1817
  %v1940 = vadd.f32 %v1207, %v1820
  %v1941 = vadd.f32 %v1212, %v1825
  %v1942 = vadd.f32 %v1215, %v1828
  %v1943 = vadd.f32 %v1220, %v1833
  %v1944 = vadd.f32 %v1223, %v1836
  %v1945 = vadd.f32 %v1228, %v1841
  %v1946 = vadd.f32 %v1231, %v1844
  %v1947 = vadd.f32 %v1236, %v1849
  %v1948 = vadd.f32 %v1239, %v1852
  %v1949 = vadd.f32 %v1244, %v1857
  %v1950 = vadd.f32 %v1247, %v1860
  %v1951 = vadd.f32 %v1252, %v1865
  %v1952 = vadd.f32 %v1255, %v1868
  %v1953 = vadd.f32 %v1260, %v1873
  %v1954 = vadd.f32 %v1263, %v1876
  %v1955 = vadd.f32 %v1268, %v1881
  %v1956 = vadd.f32 %v1271, %v1884
  %v1957 = vadd.f32 %v1276, %v1889
  %v1958 = vadd.f32 %v1279, %v1892
  %v1959 = vld [vmem:[%s3] sm:$0xf]
  %v1960 = vld [vmem:[%s3 + $0x4] sm:$0xf]
  %v1961 = vld [vmem:[%s3 + $0x8] sm:$0xf]
  %v1962 = vld [vmem:[%s3 + $0xc] sm:$0xf]
  %v1963 = vld [vmem:[%s3 + $0x10] sm:$0xf]
  %v1964 = vld [vmem:[%s3 + $0x14] sm:$0xf]
  %v1965 = vld [vmem:[%s3 + $0x18] sm:$0xf]
  %v1966 = vld [vmem:[%s3 + $0x1c] sm:$0xf]
  %v1967 = vld [vmem:[%s3 + $0x20] sm:$0xf]
  %v1968 = vld [vmem:[%s3 + $0x24] sm:$0xf]
  %v1969 = vld [vmem:[%s3 + $0x28] sm:$0xf]
  %v1970 = vld [vmem:[%s3 + $0x2c] sm:$0xf]
  %v1971 = vld [vmem:[%s3 + $0x30] sm:$0xf]
  %v1972 = vld [vmem:[%s3 + $0x34] sm:$0xf]
  %v1973 = vld [vmem:[%s3 + $0x38] sm:$0xf]
  %v1974 = vld [vmem:[%s3 + $0x3c] sm:$0xf]
  %v1975 = vld [vmem:[%s3 + $0x40] sm:$0xf]
  %v1976 = vld [vmem:[%s3 + $0x44] sm:$0xf]
  %v1977 = vld [vmem:[%s3 + $0x48] sm:$0xf]
  %v1978 = vld [vmem:[%s3 + $0x4c] sm:$0xf]
  %v1979 = vld [vmem:[%s3 + $0x50] sm:$0xf]
  %v1980 = vld [vmem:[%s3 + $0x54] sm:$0xf]
  %v1981 = vld [vmem:[%s3 + $0x58] sm:$0xf]
  %v1982 = vld [vmem:[%s3 + $0x5c] sm:$0xf]
  %v1983 = vld [vmem:[%s3 + $0x60] sm:$0xf]
  %v1984 = vld [vmem:[%s3 + $0x64] sm:$0xf]
  %v1985 = vld [vmem:[%s3 + $0x68] sm:$0xf]
  %v1986 = vld [vmem:[%s3 + $0x6c] sm:$0xf]
  %v1987 = vld [vmem:[%s3 + $0x70] sm:$0xf]
  %v1988 = vld [vmem:[%s3 + $0x74] sm:$0xf]
  %v1989 = vld [vmem:[%s3 + $0x78] sm:$0xf]
  %v1990 = vld [vmem:[%s3 + $0x7c] sm:$0xf]
  %v1991 = vld [vmem:[%s3 + $0x80] sm:$0xf]
  %v1992 = vld [vmem:[%s3 + $0x84] sm:$0xf]
  %v1993 = vld [vmem:[%s3 + $0x88] sm:$0xf]
  %v1994 = vld [vmem:[%s3 + $0x8c] sm:$0xf]
  %v1995 = vld [vmem:[%s3 + $0x90] sm:$0xf]
  %v1996 = vld [vmem:[%s3 + $0x94] sm:$0xf]
  %v1997 = vld [vmem:[%s3 + $0x98] sm:$0xf]
  %v1998 = vld [vmem:[%s3 + $0x9c] sm:$0xf]
  %v1999 = vld [vmem:[%s3 + $0xa0] sm:$0xf]
  %v2000 = vld [vmem:[%s3 + $0xa4] sm:$0xf]
  %v2001 = vld [vmem:[%s3 + $0xa8] sm:$0xf]
  %v2002 = vld [vmem:[%s3 + $0xac] sm:$0xf]
  %v2003 = vld [vmem:[%s3 + $0xb0] sm:$0xf]
  %v2004 = vld [vmem:[%s3 + $0xb4] sm:$0xf]
  %v2005 = vld [vmem:[%s3 + $0xb8] sm:$0xf]
  %v2006 = vld [vmem:[%s3 + $0xbc] sm:$0xf]
  %v2007 = vld [vmem:[%s3 + $0xc0] sm:$0xf]
  %v2008 = vld [vmem:[%s3 + $0xc4] sm:$0xf]
  %v2009 = vld [vmem:[%s3 + $0xc8] sm:$0xf]
  %v2010 = vld [vmem:[%s3 + $0xcc] sm:$0xf]
  %v2011 = vld [vmem:[%s3 + $0xd0] sm:$0xf]
  %v2012 = vld [vmem:[%s3 + $0xd4] sm:$0xf]
  %v2013 = vld [vmem:[%s3 + $0xd8] sm:$0xf]
  %v2014 = vld [vmem:[%s3 + $0xdc] sm:$0xf]
  %v2015 = vld [vmem:[%s3 + $0xe0] sm:$0xf]
  %v2016 = vld [vmem:[%s3 + $0xe4] sm:$0xf]
  %v2017 = vld [vmem:[%s3 + $0xe8] sm:$0xf]
  %v2018 = vld [vmem:[%s3 + $0xec] sm:$0xf]
  %v2019 = vld [vmem:[%s3 + $0xf0] sm:$0xf]
  %v2020 = vld [vmem:[%s3 + $0xf4] sm:$0xf]
  %v2021 = vld [vmem:[%s3 + $0xf8] sm:$0xf]
  %v2022 = vld [vmem:[%s3 + $0xfc] sm:$0xf]
  %v2023 = vld [vmem:[%s9] sm:$0xf]
  %v2088 = vunpack.c.l.b16 %v1959
  %v2089 = vunpack.c.l.b16 %v1960
  %v2090 = vunpack.c.l.b16 %v1961
  %v2091 = vunpack.c.l.b16 %v1962
  %v2092 = vunpack.c.l.b16 %v1963
  %v2093 = vunpack.c.l.b16 %v1964
  %v2094 = vunpack.c.l.b16 %v1965
  %v2095 = vunpack.c.l.b16 %v1966
  %v2096 = vunpack.c.l.b16 %v1967
  %v2097 = vunpack.c.l.b16 %v1968
  %v2098 = vunpack.c.l.b16 %v1969
  %v2099 = vunpack.c.l.b16 %v1970
  %v2100 = vunpack.c.l.b16 %v1971
  %v2101 = vunpack.c.l.b16 %v1972
  %v2102 = vunpack.c.l.b16 %v1973
  %v2103 = vunpack.c.l.b16 %v1974
  %v2104 = vunpack.c.l.b16 %v1975
  %v2105 = vunpack.c.l.b16 %v1976
  %v2106 = vunpack.c.l.b16 %v1977
  %v2107 = vunpack.c.l.b16 %v1978
  %v2108 = vunpack.c.l.b16 %v1979
  %v2109 = vunpack.c.l.b16 %v1980
  %v2110 = vunpack.c.l.b16 %v1981
  %v2111 = vunpack.c.l.b16 %v1982
  %v2112 = vunpack.c.l.b16 %v1983
  %v2113 = vunpack.c.l.b16 %v1984
  %v2114 = vunpack.c.l.b16 %v1985
  %v2115 = vunpack.c.l.b16 %v1986
  %v2116 = vunpack.c.l.b16 %v1987
  %v2117 = vunpack.c.l.b16 %v1988
  %v2118 = vunpack.c.l.b16 %v1989
  %v2119 = vunpack.c.l.b16 %v1990
  %v2120 = vunpack.c.l.b16 %v1991
  %v2121 = vunpack.c.l.b16 %v1992
  %v2122 = vunpack.c.l.b16 %v1993
  %v2123 = vunpack.c.l.b16 %v1994
  %v2124 = vunpack.c.l.b16 %v1995
  %v2125 = vunpack.c.l.b16 %v1996
  %v2126 = vunpack.c.l.b16 %v1997
  %v2127 = vunpack.c.l.b16 %v1998
  %v2128 = vunpack.c.l.b16 %v1999
  %v2129 = vunpack.c.l.b16 %v2000
  %v2130 = vunpack.c.l.b16 %v2001
  %v2131 = vunpack.c.l.b16 %v2002
  %v2132 = vunpack.c.l.b16 %v2003
  %v2133 = vunpack.c.l.b16 %v2004
  %v2134 = vunpack.c.l.b16 %v2005
  %v2135 = vunpack.c.l.b16 %v2006
  %v2136 = vunpack.c.l.b16 %v2007
  %v2137 = vunpack.c.l.b16 %v2008
  %v2138 = vunpack.c.l.b16 %v2009
  %v2139 = vunpack.c.l.b16 %v2010
  %v2140 = vunpack.c.l.b16 %v2011
  %v2141 = vunpack.c.l.b16 %v2012
  %v2142 = vunpack.c.l.b16 %v2013
  %v2143 = vunpack.c.l.b16 %v2014
  %v2144 = vunpack.c.l.b16 %v2015
  %v2145 = vunpack.c.l.b16 %v2016
  %v2146 = vunpack.c.l.b16 %v2017
  %v2147 = vunpack.c.l.b16 %v2018
  %v2148 = vunpack.c.l.b16 %v2019
  %v2149 = vunpack.c.l.b16 %v2020
  %v2150 = vunpack.c.l.b16 %v2021
  %v2151 = vunpack.c.l.b16 %v2022
  %v2152 = vpack.c.b16 %v2089, %v2088
  %v2153 = vpack.c.b16 %v2091, %v2090
  %v2154 = vpack.c.b16 %v2093, %v2092
  %v2155 = vpack.c.b16 %v2095, %v2094
  %v2156 = vpack.c.b16 %v2097, %v2096
  %v2157 = vpack.c.b16 %v2099, %v2098
  %v2158 = vpack.c.b16 %v2101, %v2100
  %v2159 = vpack.c.b16 %v2103, %v2102
  %v2160 = vpack.c.b16 %v2105, %v2104
  %v2161 = vpack.c.b16 %v2107, %v2106
  %v2162 = vpack.c.b16 %v2109, %v2108
  %v2163 = vpack.c.b16 %v2111, %v2110
  %v2164 = vpack.c.b16 %v2113, %v2112
  %v2165 = vpack.c.b16 %v2115, %v2114
  %v2166 = vpack.c.b16 %v2117, %v2116
  %v2167 = vpack.c.b16 %v2119, %v2118
  %v2168 = vpack.c.b16 %v2121, %v2120
  %v2169 = vpack.c.b16 %v2123, %v2122
  %v2170 = vpack.c.b16 %v2125, %v2124
  %v2171 = vpack.c.b16 %v2127, %v2126
  %v2172 = vpack.c.b16 %v2129, %v2128
  %v2173 = vpack.c.b16 %v2131, %v2130
  %v2174 = vpack.c.b16 %v2133, %v2132
  %v2175 = vpack.c.b16 %v2135, %v2134
  %v2176 = vpack.c.b16 %v2137, %v2136
  %v2177 = vpack.c.b16 %v2139, %v2138
  %v2178 = vpack.c.b16 %v2141, %v2140
  %v2179 = vpack.c.b16 %v2143, %v2142
  %v2180 = vpack.c.b16 %v2145, %v2144
  %v2181 = vpack.c.b16 %v2147, %v2146
  %v2182 = vpack.c.b16 %v2149, %v2148
  %v2183 = vpack.c.b16 %v2151, %v2150
  %v2185 = vsel %vm344, %v2152, 0
  %v2188 = vsel %vm344, %v2153, 0
  %v2191 = vsel %vm344, %v2154, 0
  %v2194 = vsel %vm344, %v2155, 0
  %v2197 = vsel %vm344, %v2156, 0
  %v2200 = vsel %vm344, %v2157, 0
  %v2203 = vsel %vm344, %v2158, 0
  %v2206 = vsel %vm344, %v2159, 0
  %v2209 = vsel %vm344, %v2160, 0
  %v2212 = vsel %vm344, %v2161, 0
  %v2215 = vsel %vm344, %v2162, 0
  %v2218 = vsel %vm344, %v2163, 0
  %v2221 = vsel %vm344, %v2164, 0
  %v2224 = vsel %vm344, %v2165, 0
  %v2227 = vsel %vm344, %v2166, 0
  %v2230 = vsel %vm344, %v2167, 0
  %v2233 = vsel %vm344, %v2168, 0
  %v2236 = vsel %vm344, %v2169, 0
  %v2239 = vsel %vm344, %v2170, 0
  %v2242 = vsel %vm344, %v2171, 0
  %v2245 = vsel %vm344, %v2172, 0
  %v2248 = vsel %vm344, %v2173, 0
  %v2251 = vsel %vm344, %v2174, 0
  %v2254 = vsel %vm344, %v2175, 0
  %v2257 = vsel %vm344, %v2176, 0
  %v2260 = vsel %vm344, %v2177, 0
  %v2263 = vsel %vm344, %v2178, 0
  %v2266 = vsel %vm344, %v2179, 0
  %v2269 = vsel %vm344, %v2180, 0
  %v2272 = vsel %vm344, %v2181, 0
  %v2275 = vsel %vm344, %v2182, 0
  %v2278 = vsel %vm344, %v2183, 0
  %v2281 = vsel %vm441, %v2023, 0
  %2283 = vmatprep.subr.bf16.mxu0 0
  %2284 = vmatpush1.bf16.msra.mxu0 %v2281
  %2285 = vmatprep.subr.bf16.mxu0 0
  %2286 = vmatpush1.bf16.msra.mxu0 0
  %2287 = vmatprep.subr.bf16.mxu0 0
  %2288 = vmatpush1.bf16.msra.mxu0 0
  %2289 = vmatprep.subr.bf16.mxu0 0
  %2290 = vmatpush1.bf16.msra.mxu0 0
  %2291 = vmatprep.subr.bf16.mxu0 0
  %2292 = vmatpush1.bf16.msra.mxu0 0
  %2293 = vmatprep.subr.bf16.mxu0 0
  %2294 = vmatpush1.bf16.msra.mxu0 0
  %2295 = vmatprep.subr.bf16.mxu0 0
  %2296 = vmatpush1.bf16.msra.mxu0 0
  %2297 = vmatprep.subr.bf16.mxu0 0
  %2298 = vmatpush1.bf16.msra.mxu0 0
  %2299 = vmatprep.subr.bf16.mxu0 0
  %2300 = vmatpush1.bf16.msra.mxu0 0
  %2301 = vmatprep.subr.bf16.mxu0 0
  %2302 = vmatpush1.bf16.msra.mxu0 0
  %2303 = vmatprep.subr.bf16.mxu0 0
  %2304 = vmatpush1.bf16.msra.mxu0 0
  %2305 = vmatprep.subr.bf16.mxu0 0
  %2306 = vmatpush1.bf16.msra.mxu0 0
  %2307 = vmatprep.subr.bf16.mxu0 0
  %2308 = vmatpush1.bf16.msra.mxu0 0
  %2309 = vmatprep.subr.bf16.mxu0 0
  %2310 = vmatpush1.bf16.msra.mxu0 0
  %2311 = vmatprep.subr.bf16.mxu0 0
  %2312 = vmatpush1.bf16.msra.mxu0 0
  %2313 = vmatprep.subr.bf16.mxu0 0
  %2314 = vmatpush1.bf16.msra.mxu0 0
  %2315 = vmatprep.mubr.bf16.mxu0 0
  %2316 = vmatmul.mubr.bf16.gmra.mrb[0].mxu0 %v2185
  %v2317 = vpop.f32.mrb[0].mxu0
  %v2318 = vadd.f32 0.0, %v2317
  %v2319 = vpop.f32.mrb[0].mxu0
  %v2320 = vpop.f32.mrb[0].mxu0
  %v2321 = vadd.f32 0.0, %v2320
  %v2322 = vpop.f32.mrb[0].mxu0
  %2323 = vmatprep.mubr.bf16.mxu0 0
  %2324 = vmatmul.mubr.bf16.gmra.mrb[0].mxu0 %v2188
  %v2325 = vpop.f32.mrb[0].mxu0
  %v2326 = vadd.f32 0.0, %v2325
  %v2327 = vpop.f32.mrb[0].mxu0
  %v2328 = vpop.f32.mrb[0].mxu0
  %v2329 = vadd.f32 0.0, %v2328
  %v2330 = vpop.f32.mrb[0].mxu0
  %2331 = vmatprep.mubr.bf16.mxu0 0
  %2332 = vmatmul.mubr.bf16.gmra.mrb[0].mxu0 %v2191
  %v2333 = vpop.f32.mrb[0].mxu0
  %v2334 = vadd.f32 0.0, %v2333
  %v2335 = vpop.f32.mrb[0].mxu0
  %v2336 = vpop.f32.mrb[0].mxu0
  %v2337 = vadd.f32 0.0, %v2336
  %v2338 = vpop.f32.mrb[0].mxu0
  %2339 = vmatprep.mubr.bf16.mxu0 0
  %2340 = vmatmul.mubr.bf16.gmra.mrb[0].mxu0 %v2194
  %v2341 = vpop.f32.mrb[0].mxu0
  %v2342 = vadd.f32 0.0, %v2341
  %v2343 = vpop.f32.mrb[0].mxu0
  %v2344 = vpop.f32.mrb[0].mxu0
  %v2345 = vadd.f32 0.0, %v2344
  %v2346 = vpop.f32.mrb[0].mxu0
  %2347 = vmatprep.mubr.bf16.mxu0 0
  %2348 = vmatmul.mubr.bf16.gmra.mrb[0].mxu0 %v2197
  %v2349 = vpop.f32.mrb[0].mxu0
  %v2350 = vadd.f32 0.0, %v2349
  %v2351 = vpop.f32.mrb[0].mxu0
  %v2352 = vpop.f32.mrb[0].mxu0
  %v2353 = vadd.f32 0.0, %v2352
  %v2354 = vpop.f32.mrb[0].mxu0
  %2355 = vmatprep.mubr.bf16.mxu0 0
  %2356 = vmatmul.mubr.bf16.gmra.mrb[0].mxu0 %v2200
  %v2357 = vpop.f32.mrb[0].mxu0
  %v2358 = vadd.f32 0.0, %v2357
  %v2359 = vpop.f32.mrb[0].mxu0
  %v2360 = vpop.f32.mrb[0].mxu0
  %v2361 = vadd.f32 0.0, %v2360
  %v2362 = vpop.f32.mrb[0].mxu0
  %2363 = vmatprep.mubr.bf16.mxu0 0
  %2364 = vmatmul.mubr.bf16.gmra.mrb[0].mxu0 %v2203
  %v2365 = vpop.f32.mrb[0].mxu0
  %v2366 = vadd.f32 0.0, %v2365
  %v2367 = vpop.f32.mrb[0].mxu0
  %v2368 = vpop.f32.mrb[0].mxu0
  %v2369 = vadd.f32 0.0, %v2368
  %v2370 = vpop.f32.mrb[0].mxu0
  %2371 = vmatprep.mubr.bf16.mxu0 0
  %2372 = vmatmul.mubr.bf16.gmra.mrb[0].mxu0 %v2206
  %v2373 = vpop.f32.mrb[0].mxu0
  %v2374 = vadd.f32 0.0, %v2373
  %v2375 = vpop.f32.mrb[0].mxu0
  %v2376 = vpop.f32.mrb[0].mxu0
  %v2377 = vadd.f32 0.0, %v2376
  %v2378 = vpop.f32.mrb[0].mxu0
  %2379 = vmatprep.mubr.bf16.mxu0 0
  %2380 = vmatmul.mubr.bf16.gmra.mrb[0].mxu0 %v2209
  %v2381 = vpop.f32.mrb[0].mxu0
  %v2382 = vadd.f32 0.0, %v2381
  %v2383 = vpop.f32.mrb[0].mxu0
  %v2384 = vpop.f32.mrb[0].mxu0
  %v2385 = vadd.f32 0.0, %v2384
  %v2386 = vpop.f32.mrb[0].mxu0
  %2387 = vmatprep.mubr.bf16.mxu0 0
  %2388 = vmatmul.mubr.bf16.gmra.mrb[0].mxu0 %v2212
  %v2389 = vpop.f32.mrb[0].mxu0
  %v2390 = vadd.f32 0.0, %v2389
  %v2391 = vpop.f32.mrb[0].mxu0
  %v2392 = vpop.f32.mrb[0].mxu0
  %v2393 = vadd.f32 0.0, %v2392
  %v2394 = vpop.f32.mrb[0].mxu0
  %2395 = vmatprep.mubr.bf16.mxu0 0
  %2396 = vmatmul.mubr.bf16.gmra.mrb[0].mxu0 %v2215
  %v2397 = vpop.f32.mrb[0].mxu0
  %v2398 = vadd.f32 0.0, %v2397
  %v2399 = vpop.f32.mrb[0].mxu0
  %v2400 = vpop.f32.mrb[0].mxu0
  %v2401 = vadd.f32 0.0, %v2400
  %v2402 = vpop.f32.mrb[0].mxu0
  %2403 = vmatprep.mubr.bf16.mxu0 0
  %2404 = vmatmul.mubr.bf16.gmra.mrb[0].mxu0 %v2218
  %v2405 = vpop.f32.mrb[0].mxu0
  %v2406 = vadd.f32 0.0, %v2405
  %v2407 = vpop.f32.mrb[0].mxu0
  %v2408 = vpop.f32.mrb[0].mxu0
  %v2409 = vadd.f32 0.0, %v2408
  %v2410 = vpop.f32.mrb[0].mxu0
  %2411 = vmatprep.mubr.bf16.mxu0 0
  %2412 = vmatmul.mubr.bf16.gmra.mrb[0].mxu0 %v2221
  %v2413 = vpop.f32.mrb[0].mxu0
  %v2414 = vadd.f32 0.0, %v2413
  %v2415 = vpop.f32.mrb[0].mxu0
  %v2416 = vpop.f32.mrb[0].mxu0
  %v2417 = vadd.f32 0.0, %v2416
  %v2418 = vpop.f32.mrb[0].mxu0
  %2419 = vmatprep.mubr.bf16.mxu0 0
  %2420 = vmatmul.mubr.bf16.gmra.mrb[0].mxu0 %v2224
  %v2421 = vpop.f32.mrb[0].mxu0
  %v2422 = vadd.f32 0.0, %v2421
  %v2423 = vpop.f32.mrb[0].mxu0
  %v2424 = vpop.f32.mrb[0].mxu0
  %v2425 = vadd.f32 0.0, %v2424
  %v2426 = vpop.f32.mrb[0].mxu0
  %2427 = vmatprep.mubr.bf16.mxu0 0
  %2428 = vmatmul.mubr.bf16.gmra.mrb[0].mxu0 %v2227
  %v2429 = vpop.f32.mrb[0].mxu0
  %v2430 = vadd.f32 0.0, %v2429
  %v2431 = vpop.f32.mrb[0].mxu0
  %v2432 = vpop.f32.mrb[0].mxu0
  %v2433 = vadd.f32 0.0, %v2432
  %v2434 = vpop.f32.mrb[0].mxu0
  %2435 = vmatprep.mubr.bf16.mxu0 0
  %2436 = vmatmul.mubr.bf16.gmra.mrb[0].mxu0 %v2230
  %v2437 = vpop.f32.mrb[0].mxu0
  %v2438 = vadd.f32 0.0, %v2437
  %v2439 = vpop.f32.mrb[0].mxu0
  %v2440 = vpop.f32.mrb[0].mxu0
  %v2441 = vadd.f32 0.0, %v2440
  %v2442 = vpop.f32.mrb[0].mxu0
  %2443 = vmatprep.mubr.bf16.mxu0 0
  %2444 = vmatmul.mubr.bf16.gmra.mrb[0].mxu0 %v2233
  %v2445 = vpop.f32.mrb[0].mxu0
  %v2446 = vadd.f32 0.0, %v2445
  %v2447 = vpop.f32.mrb[0].mxu0
  %v2448 = vpop.f32.mrb[0].mxu0
  %v2449 = vadd.f32 0.0, %v2448
  %v2450 = vpop.f32.mrb[0].mxu0
  %2451 = vmatprep.mubr.bf16.mxu0 0
  %2452 = vmatmul.mubr.bf16.gmra.mrb[0].mxu0 %v2236
  %v2453 = vpop.f32.mrb[0].mxu0
  %v2454 = vadd.f32 0.0, %v2453
  %v2455 = vpop.f32.mrb[0].mxu0
  %v2456 = vpop.f32.mrb[0].mxu0
  %v2457 = vadd.f32 0.0, %v2456
  %v2458 = vpop.f32.mrb[0].mxu0
  %2459 = vmatprep.mubr.bf16.mxu0 0
  %2460 = vmatmul.mubr.bf16.gmra.mrb[0].mxu0 %v2239
  %v2461 = vpop.f32.mrb[0].mxu0
  %v2462 = vadd.f32 0.0, %v2461
  %v2463 = vpop.f32.mrb[0].mxu0
  %v2464 = vpop.f32.mrb[0].mxu0
  %v2465 = vadd.f32 0.0, %v2464
  %v2466 = vpop.f32.mrb[0].mxu0
  %2467 = vmatprep.mubr.bf16.mxu0 0
  %2468 = vmatmul.mubr.bf16.gmra.mrb[0].mxu0 %v2242
  %v2469 = vpop.f32.mrb[0].mxu0
  %v2470 = vadd.f32 0.0, %v2469
  %v2471 = vpop.f32.mrb[0].mxu0
  %v2472 = vpop.f32.mrb[0].mxu0
  %v2473 = vadd.f32 0.0, %v2472
  %v2474 = vpop.f32.mrb[0].mxu0
  %2475 = vmatprep.mubr.bf16.mxu0 0
  %2476 = vmatmul.mubr.bf16.gmra.mrb[0].mxu0 %v2245
  %v2477 = vpop.f32.mrb[0].mxu0
  %v2478 = vadd.f32 0.0, %v2477
  %v2479 = vpop.f32.mrb[0].mxu0
  %v2480 = vpop.f32.mrb[0].mxu0
  %v2481 = vadd.f32 0.0, %v2480
  %v2482 = vpop.f32.mrb[0].mxu0
  %2483 = vmatprep.mubr.bf16.mxu0 0
  %2484 = vmatmul.mubr.bf16.gmra.mrb[0].mxu0 %v2248
  %v2485 = vpop.f32.mrb[0].mxu0
  %v2486 = vadd.f32 0.0, %v2485
  %v2487 = vpop.f32.mrb[0].mxu0
  %v2488 = vpop.f32.mrb[0].mxu0
  %v2489 = vadd.f32 0.0, %v2488
  %v2490 = vpop.f32.mrb[0].mxu0
  %2491 = vmatprep.mubr.bf16.mxu0 0
  %2492 = vmatmul.mubr.bf16.gmra.mrb[0].mxu0 %v2251
  %v2493 = vpop.f32.mrb[0].mxu0
  %v2494 = vadd.f32 0.0, %v2493
  %v2495 = vpop.f32.mrb[0].mxu0
  %v2496 = vpop.f32.mrb[0].mxu0
  %v2497 = vadd.f32 0.0, %v2496
  %v2498 = vpop.f32.mrb[0].mxu0
  %2499 = vmatprep.mubr.bf16.mxu0 0
  %2500 = vmatmul.mubr.bf16.gmra.mrb[0].mxu0 %v2254
  %v2501 = vpop.f32.mrb[0].mxu0
  %v2502 = vadd.f32 0.0, %v2501
  %v2503 = vpop.f32.mrb[0].mxu0
  %v2504 = vpop.f32.mrb[0].mxu0
  %v2505 = vadd.f32 0.0, %v2504
  %v2506 = vpop.f32.mrb[0].mxu0
  %2507 = vmatprep.mubr.bf16.mxu0 0
  %2508 = vmatmul.mubr.bf16.gmra.mrb[0].mxu0 %v2257
  %v2509 = vpop.f32.mrb[0].mxu0
  %v2510 = vadd.f32 0.0, %v2509
  %v2511 = vpop.f32.mrb[0].mxu0
  %v2512 = vpop.f32.mrb[0].mxu0
  %v2513 = vadd.f32 0.0, %v2512
  %v2514 = vpop.f32.mrb[0].mxu0
  %2515 = vmatprep.mubr.bf16.mxu0 0
  %2516 = vmatmul.mubr.bf16.gmra.mrb[0].mxu0 %v2260
  %v2517 = vpop.f32.mrb[0].mxu0
  %v2518 = vadd.f32 0.0, %v2517
  %v2519 = vpop.f32.mrb[0].mxu0
  %v2520 = vpop.f32.mrb[0].mxu0
  %v2521 = vadd.f32 0.0, %v2520
  %v2522 = vpop.f32.mrb[0].mxu0
  %2523 = vmatprep.mubr.bf16.mxu0 0
  %2524 = vmatmul.mubr.bf16.gmra.mrb[0].mxu0 %v2263
  %v2525 = vpop.f32.mrb[0].mxu0
  %v2526 = vadd.f32 0.0, %v2525
  %v2527 = vpop.f32.mrb[0].mxu0
  %v2528 = vpop.f32.mrb[0].mxu0
  %v2529 = vadd.f32 0.0, %v2528
  %v2530 = vpop.f32.mrb[0].mxu0
  %2531 = vmatprep.mubr.bf16.mxu0 0
  %2532 = vmatmul.mubr.bf16.gmra.mrb[0].mxu0 %v2266
  %v2533 = vpop.f32.mrb[0].mxu0
  %v2534 = vadd.f32 0.0, %v2533
  %v2535 = vpop.f32.mrb[0].mxu0
  %v2536 = vpop.f32.mrb[0].mxu0
  %v2537 = vadd.f32 0.0, %v2536
  %v2538 = vpop.f32.mrb[0].mxu0
  %2539 = vmatprep.mubr.bf16.mxu0 0
  %2540 = vmatmul.mubr.bf16.gmra.mrb[0].mxu0 %v2269
  %v2541 = vpop.f32.mrb[0].mxu0
  %v2542 = vadd.f32 0.0, %v2541
  %v2543 = vpop.f32.mrb[0].mxu0
  %v2544 = vpop.f32.mrb[0].mxu0
  %v2545 = vadd.f32 0.0, %v2544
  %v2546 = vpop.f32.mrb[0].mxu0
  %2547 = vmatprep.mubr.bf16.mxu0 0
  %2548 = vmatmul.mubr.bf16.gmra.mrb[0].mxu0 %v2272
  %v2549 = vpop.f32.mrb[0].mxu0
  %v2550 = vadd.f32 0.0, %v2549
  %v2551 = vpop.f32.mrb[0].mxu0
  %v2552 = vpop.f32.mrb[0].mxu0
  %v2553 = vadd.f32 0.0, %v2552
  %v2554 = vpop.f32.mrb[0].mxu0
  %2555 = vmatprep.mubr.bf16.mxu0 0
  %2556 = vmatmul.mubr.bf16.gmra.mrb[0].mxu0 %v2275
  %v2557 = vpop.f32.mrb[0].mxu0
  %v2558 = vadd.f32 0.0, %v2557
  %v2559 = vpop.f32.mrb[0].mxu0
  %v2560 = vpop.f32.mrb[0].mxu0
  %v2561 = vadd.f32 0.0, %v2560
  %v2562 = vpop.f32.mrb[0].mxu0
  %2563 = vmatprep.mubr.bf16.mxu0 0
  %2564 = vmatmul.mubr.bf16.gmra.mrb[0].mxu0 %v2278
  %v2565 = vpop.f32.mrb[0].mxu0
  %v2566 = vadd.f32 0.0, %v2565
  %v2567 = vpop.f32.mrb[0].mxu0
  %v2568 = vpop.f32.mrb[0].mxu0
  %v2569 = vadd.f32 0.0, %v2568
  %v2570 = vpop.f32.mrb[0].mxu0
  %2571 = vdwg.mxu0
  %v2572 = vadd.f32 %v1895, %v2318
  %v2573 = vadd.f32 %v1896, %v2321
  %v2574 = vadd.f32 %v1897, %v2326
  %v2575 = vadd.f32 %v1898, %v2329
  %v2576 = vadd.f32 %v1899, %v2334
  %v2577 = vadd.f32 %v1900, %v2337
  %v2578 = vadd.f32 %v1901, %v2342
  %v2579 = vadd.f32 %v1902, %v2345
  %v2580 = vadd.f32 %v1903, %v2350
  %v2581 = vadd.f32 %v1904, %v2353
  %v2582 = vadd.f32 %v1905, %v2358
  %v2583 = vadd.f32 %v1906, %v2361
  %v2584 = vadd.f32 %v1907, %v2366
  %v2585 = vadd.f32 %v1908, %v2369
  %v2586 = vadd.f32 %v1909, %v2374
  %v2587 = vadd.f32 %v1910, %v2377
  %v2588 = vadd.f32 %v1911, %v2382
  %v2589 = vadd.f32 %v1912, %v2385
  %v2590 = vadd.f32 %v1913, %v2390
  %v2591 = vadd.f32 %v1914, %v2393
  %v2592 = vadd.f32 %v1915, %v2398
  %v2593 = vadd.f32 %v1916, %v2401
  %v2594 = vadd.f32 %v1917, %v2406
  %v2595 = vadd.f32 %v1918, %v2409
  %v2596 = vadd.f32 %v1919, %v2414
  %v2597 = vadd.f32 %v1920, %v2417
  %v2598 = vadd.f32 %v1921, %v2422
  %v2599 = vadd.f32 %v1922, %v2425
  %v2600 = vadd.f32 %v1923, %v2430
  %v2601 = vadd.f32 %v1924, %v2433
  %v2602 = vadd.f32 %v1925, %v2438
  %v2603 = vadd.f32 %v1926, %v2441
  %v2604 = vadd.f32 %v1927, %v2446
  %v2605 = vadd.f32 %v1928, %v2449
  %v2606 = vadd.f32 %v1929, %v2454
  %v2607 = vadd.f32 %v1930, %v2457
  %v2608 = vadd.f32 %v1931, %v2462
  %v2609 = vadd.f32 %v1932, %v2465
  %v2610 = vadd.f32 %v1933, %v2470
  %v2611 = vadd.f32 %v1934, %v2473
  %v2612 = vadd.f32 %v1935, %v2478
  %v2613 = vadd.f32 %v1936, %v2481
  %v2614 = vadd.f32 %v1937, %v2486
  %v2615 = vadd.f32 %v1938, %v2489
  %v2616 = vadd.f32 %v1939, %v2494
  %v2617 = vadd.f32 %v1940, %v2497
  %v2618 = vadd.f32 %v1941, %v2502
  %v2619 = vadd.f32 %v1942, %v2505
  %v2620 = vadd.f32 %v1943, %v2510
  %v2621 = vadd.f32 %v1944, %v2513
  %v2622 = vadd.f32 %v1945, %v2518
  %v2623 = vadd.f32 %v1946, %v2521
  %v2624 = vadd.f32 %v1947, %v2526
  %v2625 = vadd.f32 %v1948, %v2529
  %v2626 = vadd.f32 %v1949, %v2534
  %v2627 = vadd.f32 %v1950, %v2537
  %v2628 = vadd.f32 %v1951, %v2542
  %v2629 = vadd.f32 %v1952, %v2545
  %v2630 = vadd.f32 %v1953, %v2550
  %v2631 = vadd.f32 %v1954, %v2553
  %v2632 = vadd.f32 %v1955, %v2558
  %v2633 = vadd.f32 %v1956, %v2561
  %v2634 = vadd.f32 %v1957, %v2566
  %v2635 = vadd.f32 %v1958, %v2569
  %v2636 = vld [vmem:[%s4] sm:$0xff]
  %v2637 = vld [vmem:[%s4 + $0x8] sm:$0xff]
  %v2638 = vld [vmem:[%s4 + $0x10] sm:$0xff]
  %v2639 = vld [vmem:[%s4 + $0x18] sm:$0xff]
  %v2640 = vld [vmem:[%s4 + $0x20] sm:$0xff]
  %v2641 = vld [vmem:[%s4 + $0x28] sm:$0xff]
  %v2642 = vld [vmem:[%s4 + $0x30] sm:$0xff]
  %v2643 = vld [vmem:[%s4 + $0x38] sm:$0xff]
  %v2644 = vld [vmem:[%s4 + $0x40] sm:$0xff]
  %v2645 = vld [vmem:[%s4 + $0x48] sm:$0xff]
  %v2646 = vld [vmem:[%s4 + $0x50] sm:$0xff]
  %v2647 = vld [vmem:[%s4 + $0x58] sm:$0xff]
  %v2648 = vld [vmem:[%s4 + $0x60] sm:$0xff]
  %v2649 = vld [vmem:[%s4 + $0x68] sm:$0xff]
  %v2650 = vld [vmem:[%s4 + $0x70] sm:$0xff]
  %v2651 = vld [vmem:[%s4 + $0x78] sm:$0xff]
  %v2652 = vld [vmem:[%s4 + $0x80] sm:$0xff]
  %v2653 = vld [vmem:[%s4 + $0x88] sm:$0xff]
  %v2654 = vld [vmem:[%s4 + $0x90] sm:$0xff]
  %v2655 = vld [vmem:[%s4 + $0x98] sm:$0xff]
  %v2656 = vld [vmem:[%s4 + $0xa0] sm:$0xff]
  %v2657 = vld [vmem:[%s4 + $0xa8] sm:$0xff]
  %v2658 = vld [vmem:[%s4 + $0xb0] sm:$0xff]
  %v2659 = vld [vmem:[%s4 + $0xb8] sm:$0xff]
  %v2660 = vld [vmem:[%s4 + $0xc0] sm:$0xff]
  %v2661 = vld [vmem:[%s4 + $0xc8] sm:$0xff]
  %v2662 = vld [vmem:[%s4 + $0xd0] sm:$0xff]
  %v2663 = vld [vmem:[%s4 + $0xd8] sm:$0xff]
  %v2664 = vld [vmem:[%s4 + $0xe0] sm:$0xff]
  %v2665 = vld [vmem:[%s4 + $0xe8] sm:$0xff]
  %v2666 = vld [vmem:[%s4 + $0xf0] sm:$0xff]
  %v2667 = vld [vmem:[%s4 + $0xf8] sm:$0xff]
  %v2668 = vld [vmem:[%s4 + $0x100] sm:$0xff]
  %v2669 = vld [vmem:[%s4 + $0x108] sm:$0xff]
  %v2670 = vld [vmem:[%s4 + $0x110] sm:$0xff]
  %v2671 = vld [vmem:[%s4 + $0x118] sm:$0xff]
  %v2672 = vld [vmem:[%s4 + $0x120] sm:$0xff]
  %v2673 = vld [vmem:[%s4 + $0x128] sm:$0xff]
  %v2674 = vld [vmem:[%s4 + $0x130] sm:$0xff]
  %v2675 = vld [vmem:[%s4 + $0x138] sm:$0xff]
  %v2676 = vld [vmem:[%s4 + $0x140] sm:$0xff]
  %v2677 = vld [vmem:[%s4 + $0x148] sm:$0xff]
  %v2678 = vld [vmem:[%s4 + $0x150] sm:$0xff]
  %v2679 = vld [vmem:[%s4 + $0x158] sm:$0xff]
  %v2680 = vld [vmem:[%s4 + $0x160] sm:$0xff]
  %v2681 = vld [vmem:[%s4 + $0x168] sm:$0xff]
  %v2682 = vld [vmem:[%s4 + $0x170] sm:$0xff]
  %v2683 = vld [vmem:[%s4 + $0x178] sm:$0xff]
  %v2684 = vld [vmem:[%s4 + $0x180] sm:$0xff]
  %v2685 = vld [vmem:[%s4 + $0x188] sm:$0xff]
  %v2686 = vld [vmem:[%s4 + $0x190] sm:$0xff]
  %v2687 = vld [vmem:[%s4 + $0x198] sm:$0xff]
  %v2688 = vld [vmem:[%s4 + $0x1a0] sm:$0xff]
  %v2689 = vld [vmem:[%s4 + $0x1a8] sm:$0xff]
  %v2690 = vld [vmem:[%s4 + $0x1b0] sm:$0xff]
  %v2691 = vld [vmem:[%s4 + $0x1b8] sm:$0xff]
  %v2692 = vld [vmem:[%s4 + $0x1c0] sm:$0xff]
  %v2693 = vld [vmem:[%s4 + $0x1c8] sm:$0xff]
  %v2694 = vld [vmem:[%s4 + $0x1d0] sm:$0xff]
  %v2695 = vld [vmem:[%s4 + $0x1d8] sm:$0xff]
  %v2696 = vld [vmem:[%s4 + $0x1e0] sm:$0xff]
  %v2697 = vld [vmem:[%s4 + $0x1e8] sm:$0xff]
  %v2698 = vld [vmem:[%s4 + $0x1f0] sm:$0xff]
  %v2699 = vld [vmem:[%s4 + $0x1f8] sm:$0xff]
  %v2700 = vld [vmem:[%s10] sm:$0xff]
  %v2702 = vsel %vm344, %v2636, 0
  %v2705 = vsel %vm344, %v2637, 0
  %v2708 = vsel %vm344, %v2638, 0
  %v2711 = vsel %vm344, %v2639, 0
  %v2714 = vsel %vm344, %v2640, 0
  %v2717 = vsel %vm344, %v2641, 0
  %v2720 = vsel %vm344, %v2642, 0
  %v2723 = vsel %vm344, %v2643, 0
  %v2726 = vsel %vm344, %v2644, 0
  %v2729 = vsel %vm344, %v2645, 0
  %v2732 = vsel %vm344, %v2646, 0
  %v2735 = vsel %vm344, %v2647, 0
  %v2738 = vsel %vm344, %v2648, 0
  %v2741 = vsel %vm344, %v2649, 0
  %v2744 = vsel %vm344, %v2650, 0
  %v2747 = vsel %vm344, %v2651, 0
  %v2750 = vsel %vm344, %v2652, 0
  %v2753 = vsel %vm344, %v2653, 0
  %v2756 = vsel %vm344, %v2654, 0
  %v2759 = vsel %vm344, %v2655, 0
  %v2762 = vsel %vm344, %v2656, 0
  %v2765 = vsel %vm344, %v2657, 0
  %v2768 = vsel %vm344, %v2658, 0
  %v2771 = vsel %vm344, %v2659, 0
  %v2774 = vsel %vm344, %v2660, 0
  %v2777 = vsel %vm344, %v2661, 0
  %v2780 = vsel %vm344, %v2662, 0
  %v2783 = vsel %vm344, %v2663, 0
  %v2786 = vsel %vm344, %v2664, 0
  %v2789 = vsel %vm344, %v2665, 0
  %v2792 = vsel %vm344, %v2666, 0
  %v2795 = vsel %vm344, %v2667, 0
  %v2798 = vsel %vm344, %v2668, 0
  %v2801 = vsel %vm344, %v2669, 0
  %v2804 = vsel %vm344, %v2670, 0
  %v2807 = vsel %vm344, %v2671, 0
  %v2810 = vsel %vm344, %v2672, 0
  %v2813 = vsel %vm344, %v2673, 0
  %v2816 = vsel %vm344, %v2674, 0
  %v2819 = vsel %vm344, %v2675, 0
  %v2822 = vsel %vm344, %v2676, 0
  %v2825 = vsel %vm344, %v2677, 0
  %v2828 = vsel %vm344, %v2678, 0
  %v2831 = vsel %vm344, %v2679, 0
  %v2834 = vsel %vm344, %v2680, 0
  %v2837 = vsel %vm344, %v2681, 0
  %v2840 = vsel %vm344, %v2682, 0
  %v2843 = vsel %vm344, %v2683, 0
  %v2846 = vsel %vm344, %v2684, 0
  %v2849 = vsel %vm344, %v2685, 0
  %v2852 = vsel %vm344, %v2686, 0
  %v2855 = vsel %vm344, %v2687, 0
  %v2858 = vsel %vm344, %v2688, 0
  %v2861 = vsel %vm344, %v2689, 0
  %v2864 = vsel %vm344, %v2690, 0
  %v2867 = vsel %vm344, %v2691, 0
  %v2870 = vsel %vm344, %v2692, 0
  %v2873 = vsel %vm344, %v2693, 0
  %v2876 = vsel %vm344, %v2694, 0
  %v2879 = vsel %vm344, %v2695, 0
  %v2882 = vsel %vm344, %v2696, 0
  %v2885 = vsel %vm344, %v2697, 0
  %v2888 = vsel %vm344, %v2698, 0
  %v2891 = vsel %vm344, %v2699, 0
  %2893 = vmatprep.subr.mxu0 0.0
  %2894 = vmatpush1.msra.mxu0 %v2700
  %2895 = vmatprep.subr.mxu0 0.0
  %2896 = vmatpush1.msra.mxu0 0.0
  %2897 = vmatprep.subr.mxu0 0.0
  %2898 = vmatpush1.msra.mxu0 0.0
  %2899 = vmatprep.subr.mxu0 0.0
  %2900 = vmatpush1.msra.mxu0 0.0
  %2901 = vmatprep.subr.mxu0 0.0
  %2902 = vmatpush1.msra.mxu0 0.0
  %2903 = vmatprep.subr.mxu0 0.0
  %2904 = vmatpush1.msra.mxu0 0.0
  %2905 = vmatprep.subr.mxu0 0.0
  %2906 = vmatpush1.msra.mxu0 0.0
  %2907 = vmatprep.subr.mxu0 0.0
  %2908 = vmatpush1.msra.mxu0 0.0
  %2909 = vmatprep.subr.mxu0 0.0
  %2910 = vmatpush1.msra.mxu0 0.0
  %2911 = vmatprep.subr.mxu0 0.0
  %2912 = vmatpush1.msra.mxu0 0.0
  %2913 = vmatprep.subr.mxu0 0.0
  %2914 = vmatpush1.msra.mxu0 0.0
  %2915 = vmatprep.subr.mxu0 0.0
  %2916 = vmatpush1.msra.mxu0 0.0
  %2917 = vmatprep.subr.mxu0 0.0
  %2918 = vmatpush1.msra.mxu0 0.0
  %2919 = vmatprep.subr.mxu0 0.0
  %2920 = vmatpush1.msra.mxu0 0.0
  %2921 = vmatprep.subr.mxu0 0.0
  %2922 = vmatpush1.msra.mxu0 0.0
  %2923 = vmatprep.subr.mxu0 0.0
  %2924 = vmatpush1.msra.mxu0 0.0
  %2925 = vmatprep.subr.mxu0 0.0
  %2926 = vmatpush1.msra.mxu0 0.0
  %2927 = vmatprep.subr.mxu0 0.0
  %2928 = vmatpush1.msra.mxu0 0.0
  %2929 = vmatprep.subr.mxu0 0.0
  %2930 = vmatpush1.msra.mxu0 0.0
  %2931 = vmatprep.subr.mxu0 0.0
  %2932 = vmatpush1.msra.mxu0 0.0
  %2933 = vmatprep.subr.mxu0 0.0
  %2934 = vmatpush1.msra.mxu0 0.0
  %2935 = vmatprep.subr.mxu0 0.0
  %2936 = vmatpush1.msra.mxu0 0.0
  %2937 = vmatprep.subr.mxu0 0.0
  %2938 = vmatpush1.msra.mxu0 0.0
  %2939 = vmatprep.subr.mxu0 0.0
  %2940 = vmatpush1.msra.mxu0 0.0
  %2941 = vmatprep.subr.mxu0 0.0
  %2942 = vmatpush1.msra.mxu0 0.0
  %2943 = vmatprep.subr.mxu0 0.0
  %2944 = vmatpush1.msra.mxu0 0.0
  %2945 = vmatprep.subr.mxu0 0.0
  %2946 = vmatpush1.msra.mxu0 0.0
  %2947 = vmatprep.subr.mxu0 0.0
  %2948 = vmatpush1.msra.mxu0 0.0
  %2949 = vmatprep.subr.mxu0 0.0
  %2950 = vmatpush1.msra.mxu0 0.0
  %2951 = vmatprep.subr.mxu0 0.0
  %2952 = vmatpush1.msra.mxu0 0.0
  %2953 = vmatprep.subr.mxu0 0.0
  %2954 = vmatpush1.msra.mxu0 0.0
  %2955 = vmatprep.subr.mxu0 0.0
  %2956 = vmatpush1.msra.mxu0 0.0
  %2957 = vmatprep.mubr.f32.mxu0 0.0
  %2958 = vmatmul.mubr.f32.gmra.mrb[0].mxu0 %v2702
  %v2959 = vpop.f32.mrb[0].mxu0
  %v2960 = vadd.f32 0.0, %v2959
  %v2961 = vpop.f32.mrb[0].mxu0
  %2962 = vmatprep.mubr.f32.mxu0 0.0
  %2963 = vmatmul.mubr.f32.gmra.mrb[0].mxu0 %v2705
  %v2964 = vpop.f32.mrb[0].mxu0
  %v2965 = vadd.f32 0.0, %v2964
  %v2966 = vpop.f32.mrb[0].mxu0
  %2967 = vmatprep.mubr.f32.mxu0 0.0
  %2968 = vmatmul.mubr.f32.gmra.mrb[0].mxu0 %v2708
  %v2969 = vpop.f32.mrb[0].mxu0
  %v2970 = vadd.f32 0.0, %v2969
  %v2971 = vpop.f32.mrb[0].mxu0
  %2972 = vmatprep.mubr.f32.mxu0 0.0
  %2973 = vmatmul.mubr.f32.gmra.mrb[0].mxu0 %v2711
  %v2974 = vpop.f32.mrb[0].mxu0
  %v2975 = vadd.f32 0.0, %v2974
  %v2976 = vpop.f32.mrb[0].mxu0
  %2977 = vmatprep.mubr.f32.mxu0 0.0
  %2978 = vmatmul.mubr.f32.gmra.mrb[0].mxu0 %v2714
  %v2979 = vpop.f32.mrb[0].mxu0
  %v2980 = vadd.f32 0.0, %v2979
  %v2981 = vpop.f32.mrb[0].mxu0
  %2982 = vmatprep.mubr.f32.mxu0 0.0
  %2983 = vmatmul.mubr.f32.gmra.mrb[0].mxu0 %v2717
  %v2984 = vpop.f32.mrb[0].mxu0
  %v2985 = vadd.f32 0.0, %v2984
  %v2986 = vpop.f32.mrb[0].mxu0
  %2987 = vmatprep.mubr.f32.mxu0 0.0
  %2988 = vmatmul.mubr.f32.gmra.mrb[0].mxu0 %v2720
  %v2989 = vpop.f32.mrb[0].mxu0
  %v2990 = vadd.f32 0.0, %v2989
  %v2991 = vpop.f32.mrb[0].mxu0
  %2992 = vmatprep.mubr.f32.mxu0 0.0
  %2993 = vmatmul.mubr.f32.gmra.mrb[0].mxu0 %v2723
  %v2994 = vpop.f32.mrb[0].mxu0
  %v2995 = vadd.f32 0.0, %v2994
  %v2996 = vpop.f32.mrb[0].mxu0
  %2997 = vmatprep.mubr.f32.mxu0 0.0
  %2998 = vmatmul.mubr.f32.gmra.mrb[0].mxu0 %v2726
  %v2999 = vpop.f32.mrb[0].mxu0
  %v3000 = vadd.f32 0.0, %v2999
  %v3001 = vpop.f32.mrb[0].mxu0
  %3002 = vmatprep.mubr.f32.mxu0 0.0
  %3003 = vmatmul.mubr.f32.gmra.mrb[0].mxu0 %v2729
  %v3004 = vpop.f32.mrb[0].mxu0
  %v3005 = vadd.f32 0.0, %v3004
  %v3006 = vpop.f32.mrb[0].mxu0
  %3007 = vmatprep.mubr.f32.mxu0 0.0
  %3008 = vmatmul.mubr.f32.gmra.mrb[0].mxu0 %v2732
  %v3009 = vpop.f32.mrb[0].mxu0
  %v3010 = vadd.f32 0.0, %v3009
  %v3011 = vpop.f32.mrb[0].mxu0
  %3012 = vmatprep.mubr.f32.mxu0 0.0
  %3013 = vmatmul.mubr.f32.gmra.mrb[0].mxu0 %v2735
  %v3014 = vpop.f32.mrb[0].mxu0
  %v3015 = vadd.f32 0.0, %v3014
  %v3016 = vpop.f32.mrb[0].mxu0
  %3017 = vmatprep.mubr.f32.mxu0 0.0
  %3018 = vmatmul.mubr.f32.gmra.mrb[0].mxu0 %v2738
  %v3019 = vpop.f32.mrb[0].mxu0
  %v3020 = vadd.f32 0.0, %v3019
  %v3021 = vpop.f32.mrb[0].mxu0
  %3022 = vmatprep.mubr.f32.mxu0 0.0
  %3023 = vmatmul.mubr.f32.gmra.mrb[0].mxu0 %v2741
  %v3024 = vpop.f32.mrb[0].mxu0
  %v3025 = vadd.f32 0.0, %v3024
  %v3026 = vpop.f32.mrb[0].mxu0
  %3027 = vmatprep.mubr.f32.mxu0 0.0
  %3028 = vmatmul.mubr.f32.gmra.mrb[0].mxu0 %v2744
  %v3029 = vpop.f32.mrb[0].mxu0
  %v3030 = vadd.f32 0.0, %v3029
  %v3031 = vpop.f32.mrb[0].mxu0
  %3032 = vmatprep.mubr.f32.mxu0 0.0
  %3033 = vmatmul.mubr.f32.gmra.mrb[0].mxu0 %v2747
  %v3034 = vpop.f32.mrb[0].mxu0
  %v3035 = vadd.f32 0.0, %v3034
  %v3036 = vpop.f32.mrb[0].mxu0
  %3037 = vmatprep.mubr.f32.mxu0 0.0
  %3038 = vmatmul.mubr.f32.gmra.mrb[0].mxu0 %v2750
  %v3039 = vpop.f32.mrb[0].mxu0
  %v3040 = vadd.f32 0.0, %v3039
  %v3041 = vpop.f32.mrb[0].mxu0
  %3042 = vmatprep.mubr.f32.mxu0 0.0
  %3043 = vmatmul.mubr.f32.gmra.mrb[0].mxu0 %v2753
  %v3044 = vpop.f32.mrb[0].mxu0
  %v3045 = vadd.f32 0.0, %v3044
  %v3046 = vpop.f32.mrb[0].mxu0
  %3047 = vmatprep.mubr.f32.mxu0 0.0
  %3048 = vmatmul.mubr.f32.gmra.mrb[0].mxu0 %v2756
  %v3049 = vpop.f32.mrb[0].mxu0
  %v3050 = vadd.f32 0.0, %v3049
  %v3051 = vpop.f32.mrb[0].mxu0
  %3052 = vmatprep.mubr.f32.mxu0 0.0
  %3053 = vmatmul.mubr.f32.gmra.mrb[0].mxu0 %v2759
  %v3054 = vpop.f32.mrb[0].mxu0
  %v3055 = vadd.f32 0.0, %v3054
  %v3056 = vpop.f32.mrb[0].mxu0
  %3057 = vmatprep.mubr.f32.mxu0 0.0
  %3058 = vmatmul.mubr.f32.gmra.mrb[0].mxu0 %v2762
  %v3059 = vpop.f32.mrb[0].mxu0
  %v3060 = vadd.f32 0.0, %v3059
  %v3061 = vpop.f32.mrb[0].mxu0
  %3062 = vmatprep.mubr.f32.mxu0 0.0
  %3063 = vmatmul.mubr.f32.gmra.mrb[0].mxu0 %v2765
  %v3064 = vpop.f32.mrb[0].mxu0
  %v3065 = vadd.f32 0.0, %v3064
  %v3066 = vpop.f32.mrb[0].mxu0
  %3067 = vmatprep.mubr.f32.mxu0 0.0
  %3068 = vmatmul.mubr.f32.gmra.mrb[0].mxu0 %v2768
  %v3069 = vpop.f32.mrb[0].mxu0
  %v3070 = vadd.f32 0.0, %v3069
  %v3071 = vpop.f32.mrb[0].mxu0
  %3072 = vmatprep.mubr.f32.mxu0 0.0
  %3073 = vmatmul.mubr.f32.gmra.mrb[0].mxu0 %v2771
  %v3074 = vpop.f32.mrb[0].mxu0
  %v3075 = vadd.f32 0.0, %v3074
  %v3076 = vpop.f32.mrb[0].mxu0
  %3077 = vmatprep.mubr.f32.mxu0 0.0
  %3078 = vmatmul.mubr.f32.gmra.mrb[0].mxu0 %v2774
  %v3079 = vpop.f32.mrb[0].mxu0
  %v3080 = vadd.f32 0.0, %v3079
  %v3081 = vpop.f32.mrb[0].mxu0
  %3082 = vmatprep.mubr.f32.mxu0 0.0
  %3083 = vmatmul.mubr.f32.gmra.mrb[0].mxu0 %v2777
  %v3084 = vpop.f32.mrb[0].mxu0
  %v3085 = vadd.f32 0.0, %v3084
  %v3086 = vpop.f32.mrb[0].mxu0
  %3087 = vmatprep.mubr.f32.mxu0 0.0
  %3088 = vmatmul.mubr.f32.gmra.mrb[0].mxu0 %v2780
  %v3089 = vpop.f32.mrb[0].mxu0
  %v3090 = vadd.f32 0.0, %v3089
  %v3091 = vpop.f32.mrb[0].mxu0
  %3092 = vmatprep.mubr.f32.mxu0 0.0
  %3093 = vmatmul.mubr.f32.gmra.mrb[0].mxu0 %v2783
  %v3094 = vpop.f32.mrb[0].mxu0
  %v3095 = vadd.f32 0.0, %v3094
  %v3096 = vpop.f32.mrb[0].mxu0
  %3097 = vmatprep.mubr.f32.mxu0 0.0
  %3098 = vmatmul.mubr.f32.gmra.mrb[0].mxu0 %v2786
  %v3099 = vpop.f32.mrb[0].mxu0
  %v3100 = vadd.f32 0.0, %v3099
  %v3101 = vpop.f32.mrb[0].mxu0
  %3102 = vmatprep.mubr.f32.mxu0 0.0
  %3103 = vmatmul.mubr.f32.gmra.mrb[0].mxu0 %v2789
  %v3104 = vpop.f32.mrb[0].mxu0
  %v3105 = vadd.f32 0.0, %v3104
  %v3106 = vpop.f32.mrb[0].mxu0
  %3107 = vmatprep.mubr.f32.mxu0 0.0
  %3108 = vmatmul.mubr.f32.gmra.mrb[0].mxu0 %v2792
  %v3109 = vpop.f32.mrb[0].mxu0
  %v3110 = vadd.f32 0.0, %v3109
  %v3111 = vpop.f32.mrb[0].mxu0
  %3112 = vmatprep.mubr.f32.mxu0 0.0
  %3113 = vmatmul.mubr.f32.gmra.mrb[0].mxu0 %v2795
  %v3114 = vpop.f32.mrb[0].mxu0
  %v3115 = vadd.f32 0.0, %v3114
  %v3116 = vpop.f32.mrb[0].mxu0
  %3117 = vmatprep.mubr.f32.mxu0 0.0
  %3118 = vmatmul.mubr.f32.gmra.mrb[0].mxu0 %v2798
  %v3119 = vpop.f32.mrb[0].mxu0
  %v3120 = vadd.f32 0.0, %v3119
  %v3121 = vpop.f32.mrb[0].mxu0
  %3122 = vmatprep.mubr.f32.mxu0 0.0
  %3123 = vmatmul.mubr.f32.gmra.mrb[0].mxu0 %v2801
  %v3124 = vpop.f32.mrb[0].mxu0
  %v3125 = vadd.f32 0.0, %v3124
  %v3126 = vpop.f32.mrb[0].mxu0
  %3127 = vmatprep.mubr.f32.mxu0 0.0
  %3128 = vmatmul.mubr.f32.gmra.mrb[0].mxu0 %v2804
  %v3129 = vpop.f32.mrb[0].mxu0
  %v3130 = vadd.f32 0.0, %v3129
  %v3131 = vpop.f32.mrb[0].mxu0
  %3132 = vmatprep.mubr.f32.mxu0 0.0
  %3133 = vmatmul.mubr.f32.gmra.mrb[0].mxu0 %v2807
  %v3134 = vpop.f32.mrb[0].mxu0
  %v3135 = vadd.f32 0.0, %v3134
  %v3136 = vpop.f32.mrb[0].mxu0
  %3137 = vmatprep.mubr.f32.mxu0 0.0
  %3138 = vmatmul.mubr.f32.gmra.mrb[0].mxu0 %v2810
  %v3139 = vpop.f32.mrb[0].mxu0
  %v3140 = vadd.f32 0.0, %v3139
  %v3141 = vpop.f32.mrb[0].mxu0
  %3142 = vmatprep.mubr.f32.mxu0 0.0
  %3143 = vmatmul.mubr.f32.gmra.mrb[0].mxu0 %v2813
  %v3144 = vpop.f32.mrb[0].mxu0
  %v3145 = vadd.f32 0.0, %v3144
  %v3146 = vpop.f32.mrb[0].mxu0
  %3147 = vmatprep.mubr.f32.mxu0 0.0
  %3148 = vmatmul.mubr.f32.gmra.mrb[0].mxu0 %v2816
  %v3149 = vpop.f32.mrb[0].mxu0
  %v3150 = vadd.f32 0.0, %v3149
  %v3151 = vpop.f32.mrb[0].mxu0
  %3152 = vmatprep.mubr.f32.mxu0 0.0
  %3153 = vmatmul.mubr.f32.gmra.mrb[0].mxu0 %v2819
  %v3154 = vpop.f32.mrb[0].mxu0
  %v3155 = vadd.f32 0.0, %v3154
  %v3156 = vpop.f32.mrb[0].mxu0
  %3157 = vmatprep.mubr.f32.mxu0 0.0
  %3158 = vmatmul.mubr.f32.gmra.mrb[0].mxu0 %v2822
  %v3159 = vpop.f32.mrb[0].mxu0
  %v3160 = vadd.f32 0.0, %v3159
  %v3161 = vpop.f32.mrb[0].mxu0
  %3162 = vmatprep.mubr.f32.mxu0 0.0
  %3163 = vmatmul.mubr.f32.gmra.mrb[0].mxu0 %v2825
  %v3164 = vpop.f32.mrb[0].mxu0
  %v3165 = vadd.f32 0.0, %v3164
  %v3166 = vpop.f32.mrb[0].mxu0
  %3167 = vmatprep.mubr.f32.mxu0 0.0
  %3168 = vmatmul.mubr.f32.gmra.mrb[0].mxu0 %v2828
  %v3169 = vpop.f32.mrb[0].mxu0
  %v3170 = vadd.f32 0.0, %v3169
  %v3171 = vpop.f32.mrb[0].mxu0
  %3172 = vmatprep.mubr.f32.mxu0 0.0
  %3173 = vmatmul.mubr.f32.gmra.mrb[0].mxu0 %v2831
  %v3174 = vpop.f32.mrb[0].mxu0
  %v3175 = vadd.f32 0.0, %v3174
  %v3176 = vpop.f32.mrb[0].mxu0
  %3177 = vmatprep.mubr.f32.mxu0 0.0
  %3178 = vmatmul.mubr.f32.gmra.mrb[0].mxu0 %v2834
  %v3179 = vpop.f32.mrb[0].mxu0
  %v3180 = vadd.f32 0.0, %v3179
  %v3181 = vpop.f32.mrb[0].mxu0
  %3182 = vmatprep.mubr.f32.mxu0 0.0
  %3183 = vmatmul.mubr.f32.gmra.mrb[0].mxu0 %v2837
  %v3184 = vpop.f32.mrb[0].mxu0
  %v3185 = vadd.f32 0.0, %v3184
  %v3186 = vpop.f32.mrb[0].mxu0
  %3187 = vmatprep.mubr.f32.mxu0 0.0
  %3188 = vmatmul.mubr.f32.gmra.mrb[0].mxu0 %v2840
  %v3189 = vpop.f32.mrb[0].mxu0
  %v3190 = vadd.f32 0.0, %v3189
  %v3191 = vpop.f32.mrb[0].mxu0
  %3192 = vmatprep.mubr.f32.mxu0 0.0
  %3193 = vmatmul.mubr.f32.gmra.mrb[0].mxu0 %v2843
  %v3194 = vpop.f32.mrb[0].mxu0
  %v3195 = vadd.f32 0.0, %v3194
  %v3196 = vpop.f32.mrb[0].mxu0
  %3197 = vmatprep.mubr.f32.mxu0 0.0
  %3198 = vmatmul.mubr.f32.gmra.mrb[0].mxu0 %v2846
  %v3199 = vpop.f32.mrb[0].mxu0
  %v3200 = vadd.f32 0.0, %v3199
  %v3201 = vpop.f32.mrb[0].mxu0
  %3202 = vmatprep.mubr.f32.mxu0 0.0
  %3203 = vmatmul.mubr.f32.gmra.mrb[0].mxu0 %v2849
  %v3204 = vpop.f32.mrb[0].mxu0
  %v3205 = vadd.f32 0.0, %v3204
  %v3206 = vpop.f32.mrb[0].mxu0
  %3207 = vmatprep.mubr.f32.mxu0 0.0
  %3208 = vmatmul.mubr.f32.gmra.mrb[0].mxu0 %v2852
  %v3209 = vpop.f32.mrb[0].mxu0
  %v3210 = vadd.f32 0.0, %v3209
  %v3211 = vpop.f32.mrb[0].mxu0
  %3212 = vmatprep.mubr.f32.mxu0 0.0
  %3213 = vmatmul.mubr.f32.gmra.mrb[0].mxu0 %v2855
  %v3214 = vpop.f32.mrb[0].mxu0
  %v3215 = vadd.f32 0.0, %v3214
  %v3216 = vpop.f32.mrb[0].mxu0
  %3217 = vmatprep.mubr.f32.mxu0 0.0
  %3218 = vmatmul.mubr.f32.gmra.mrb[0].mxu0 %v2858
  %v3219 = vpop.f32.mrb[0].mxu0
  %v3220 = vadd.f32 0.0, %v3219
  %v3221 = vpop.f32.mrb[0].mxu0
  %3222 = vmatprep.mubr.f32.mxu0 0.0
  %3223 = vmatmul.mubr.f32.gmra.mrb[0].mxu0 %v2861
  %v3224 = vpop.f32.mrb[0].mxu0
  %v3225 = vadd.f32 0.0, %v3224
  %v3226 = vpop.f32.mrb[0].mxu0
  %3227 = vmatprep.mubr.f32.mxu0 0.0
  %3228 = vmatmul.mubr.f32.gmra.mrb[0].mxu0 %v2864
  %v3229 = vpop.f32.mrb[0].mxu0
  %v3230 = vadd.f32 0.0, %v3229
  %v3231 = vpop.f32.mrb[0].mxu0
  %3232 = vmatprep.mubr.f32.mxu0 0.0
  %3233 = vmatmul.mubr.f32.gmra.mrb[0].mxu0 %v2867
  %v3234 = vpop.f32.mrb[0].mxu0
  %v3235 = vadd.f32 0.0, %v3234
  %v3236 = vpop.f32.mrb[0].mxu0
  %3237 = vmatprep.mubr.f32.mxu0 0.0
  %3238 = vmatmul.mubr.f32.gmra.mrb[0].mxu0 %v2870
  %v3239 = vpop.f32.mrb[0].mxu0
  %v3240 = vadd.f32 0.0, %v3239
  %v3241 = vpop.f32.mrb[0].mxu0
  %3242 = vmatprep.mubr.f32.mxu0 0.0
  %3243 = vmatmul.mubr.f32.gmra.mrb[0].mxu0 %v2873
  %v3244 = vpop.f32.mrb[0].mxu0
  %v3245 = vadd.f32 0.0, %v3244
  %v3246 = vpop.f32.mrb[0].mxu0
  %3247 = vmatprep.mubr.f32.mxu0 0.0
  %3248 = vmatmul.mubr.f32.gmra.mrb[0].mxu0 %v2876
  %v3249 = vpop.f32.mrb[0].mxu0
  %v3250 = vadd.f32 0.0, %v3249
  %v3251 = vpop.f32.mrb[0].mxu0
  %3252 = vmatprep.mubr.f32.mxu0 0.0
  %3253 = vmatmul.mubr.f32.gmra.mrb[0].mxu0 %v2879
  %v3254 = vpop.f32.mrb[0].mxu0
  %v3255 = vadd.f32 0.0, %v3254
  %v3256 = vpop.f32.mrb[0].mxu0
  %3257 = vmatprep.mubr.f32.mxu0 0.0
  %3258 = vmatmul.mubr.f32.gmra.mrb[0].mxu0 %v2882
  %v3259 = vpop.f32.mrb[0].mxu0
  %v3260 = vadd.f32 0.0, %v3259
  %v3261 = vpop.f32.mrb[0].mxu0
  %3262 = vmatprep.mubr.f32.mxu0 0.0
  %3263 = vmatmul.mubr.f32.gmra.mrb[0].mxu0 %v2885
  %v3264 = vpop.f32.mrb[0].mxu0
  %v3265 = vadd.f32 0.0, %v3264
  %v3266 = vpop.f32.mrb[0].mxu0
  %3267 = vmatprep.mubr.f32.mxu0 0.0
  %3268 = vmatmul.mubr.f32.gmra.mrb[0].mxu0 %v2888
  %v3269 = vpop.f32.mrb[0].mxu0
  %v3270 = vadd.f32 0.0, %v3269
  %v3271 = vpop.f32.mrb[0].mxu0
  %3272 = vmatprep.mubr.f32.mxu0 0.0
  %3273 = vmatmul.mubr.f32.gmra.mrb[0].mxu0 %v2891
  %v3274 = vpop.f32.mrb[0].mxu0
  %v3275 = vadd.f32 0.0, %v3274
  %v3276 = vpop.f32.mrb[0].mxu0
  %3277 = vdwg.mxu0
  %v3278 = vadd.f32 %v2572, %v2960
  %v3279 = vadd.f32 %v2573, %v2965
  %v3280 = vadd.f32 %v2574, %v2970
  %v3281 = vadd.f32 %v2575, %v2975
  %v3282 = vadd.f32 %v2576, %v2980
  %v3283 = vadd.f32 %v2577, %v2985
  %v3284 = vadd.f32 %v2578, %v2990
  %v3285 = vadd.f32 %v2579, %v2995
  %v3286 = vadd.f32 %v2580, %v3000
  %v3287 = vadd.f32 %v2581, %v3005
  %v3288 = vadd.f32 %v2582, %v3010
  %v3289 = vadd.f32 %v2583, %v3015
  %v3290 = vadd.f32 %v2584, %v3020
  %v3291 = vadd.f32 %v2585, %v3025
  %v3292 = vadd.f32 %v2586, %v3030
  %v3293 = vadd.f32 %v2587, %v3035
  %v3294 = vadd.f32 %v2588, %v3040
  %v3295 = vadd.f32 %v2589, %v3045
  %v3296 = vadd.f32 %v2590, %v3050
  %v3297 = vadd.f32 %v2591, %v3055
  %v3298 = vadd.f32 %v2592, %v3060
  %v3299 = vadd.f32 %v2593, %v3065
  %v3300 = vadd.f32 %v2594, %v3070
  %v3301 = vadd.f32 %v2595, %v3075
  %v3302 = vadd.f32 %v2596, %v3080
  %v3303 = vadd.f32 %v2597, %v3085
  %v3304 = vadd.f32 %v2598, %v3090
  %v3305 = vadd.f32 %v2599, %v3095
  %v3306 = vadd.f32 %v2600, %v3100
  %v3307 = vadd.f32 %v2601, %v3105
  %v3308 = vadd.f32 %v2602, %v3110
  %v3309 = vadd.f32 %v2603, %v3115
  %v3310 = vadd.f32 %v2604, %v3120
  %v3311 = vadd.f32 %v2605, %v3125
  %v3312 = vadd.f32 %v2606, %v3130
  %v3313 = vadd.f32 %v2607, %v3135
  %v3314 = vadd.f32 %v2608, %v3140
  %v3315 = vadd.f32 %v2609, %v3145
  %v3316 = vadd.f32 %v2610, %v3150
  %v3317 = vadd.f32 %v2611, %v3155
  %v3318 = vadd.f32 %v2612, %v3160
  %v3319 = vadd.f32 %v2613, %v3165
  %v3320 = vadd.f32 %v2614, %v3170
  %v3321 = vadd.f32 %v2615, %v3175
  %v3322 = vadd.f32 %v2616, %v3180
  %v3323 = vadd.f32 %v2617, %v3185
  %v3324 = vadd.f32 %v2618, %v3190
  %v3325 = vadd.f32 %v2619, %v3195
  %v3326 = vadd.f32 %v2620, %v3200
  %v3327 = vadd.f32 %v2621, %v3205
  %v3328 = vadd.f32 %v2622, %v3210
  %v3329 = vadd.f32 %v2623, %v3215
  %v3330 = vadd.f32 %v2624, %v3220
  %v3331 = vadd.f32 %v2625, %v3225
  %v3332 = vadd.f32 %v2626, %v3230
  %v3333 = vadd.f32 %v2627, %v3235
  %v3334 = vadd.f32 %v2628, %v3240
  %v3335 = vadd.f32 %v2629, %v3245
  %v3336 = vadd.f32 %v2630, %v3250
  %v3337 = vadd.f32 %v2631, %v3255
  %v3338 = vadd.f32 %v2632, %v3260
  %v3339 = vadd.f32 %v2633, %v3265
  %v3340 = vadd.f32 %v2634, %v3270
  %v3341 = vadd.f32 %v2635, %v3275
  %v3342 = vld [vmem:[%s11] sm:$0x1]
  %v3344 = vlaneseq
  %v3345 = vshrl.u32 %v3344, 7
  %v3346 = vsub.s32 0, %v3345
  %v3347 = vrot.slane %v3342, %v3346
  %v3349 = vadd.f32 %v3278, %v3347
  %v3350 = vadd.f32 %v3279, %v3347
  %v3351 = vadd.f32 %v3280, %v3347
  %v3352 = vadd.f32 %v3281, %v3347
  %v3353 = vadd.f32 %v3282, %v3347
  %v3354 = vadd.f32 %v3283, %v3347
  %v3355 = vadd.f32 %v3284, %v3347
  %v3356 = vadd.f32 %v3285, %v3347
  %v3357 = vadd.f32 %v3286, %v3347
  %v3358 = vadd.f32 %v3287, %v3347
  %v3359 = vadd.f32 %v3288, %v3347
  %v3360 = vadd.f32 %v3289, %v3347
  %v3361 = vadd.f32 %v3290, %v3347
  %v3362 = vadd.f32 %v3291, %v3347
  %v3363 = vadd.f32 %v3292, %v3347
  %v3364 = vadd.f32 %v3293, %v3347
  %v3365 = vadd.f32 %v3294, %v3347
  %v3366 = vadd.f32 %v3295, %v3347
  %v3367 = vadd.f32 %v3296, %v3347
  %v3368 = vadd.f32 %v3297, %v3347
  %v3369 = vadd.f32 %v3298, %v3347
  %v3370 = vadd.f32 %v3299, %v3347
  %v3371 = vadd.f32 %v3300, %v3347
  %v3372 = vadd.f32 %v3301, %v3347
  %v3373 = vadd.f32 %v3302, %v3347
  %v3374 = vadd.f32 %v3303, %v3347
  %v3375 = vadd.f32 %v3304, %v3347
  %v3376 = vadd.f32 %v3305, %v3347
  %v3377 = vadd.f32 %v3306, %v3347
  %v3378 = vadd.f32 %v3307, %v3347
  %v3379 = vadd.f32 %v3308, %v3347
  %v3380 = vadd.f32 %v3309, %v3347
  %v3381 = vadd.f32 %v3310, %v3347
  %v3382 = vadd.f32 %v3311, %v3347
  %v3383 = vadd.f32 %v3312, %v3347
  %v3384 = vadd.f32 %v3313, %v3347
  %v3385 = vadd.f32 %v3314, %v3347
  %v3386 = vadd.f32 %v3315, %v3347
  %v3387 = vadd.f32 %v3316, %v3347
  %v3388 = vadd.f32 %v3317, %v3347
  %v3389 = vadd.f32 %v3318, %v3347
  %v3390 = vadd.f32 %v3319, %v3347
  %v3391 = vadd.f32 %v3320, %v3347
  %v3392 = vadd.f32 %v3321, %v3347
  %v3393 = vadd.f32 %v3322, %v3347
  %v3394 = vadd.f32 %v3323, %v3347
  %v3395 = vadd.f32 %v3324, %v3347
  %v3396 = vadd.f32 %v3325, %v3347
  %v3397 = vadd.f32 %v3326, %v3347
  %v3398 = vadd.f32 %v3327, %v3347
  %v3399 = vadd.f32 %v3328, %v3347
  %v3400 = vadd.f32 %v3329, %v3347
  %v3401 = vadd.f32 %v3330, %v3347
  %v3402 = vadd.f32 %v3331, %v3347
  %v3403 = vadd.f32 %v3332, %v3347
  %v3404 = vadd.f32 %v3333, %v3347
  %v3405 = vadd.f32 %v3334, %v3347
  %v3406 = vadd.f32 %v3335, %v3347
  %v3407 = vadd.f32 %v3336, %v3347
  %v3408 = vadd.f32 %v3337, %v3347
  %v3409 = vadd.f32 %v3338, %v3347
  %v3410 = vadd.f32 %v3339, %v3347
  %v3411 = vadd.f32 %v3340, %v3347
  %v3412 = vadd.f32 %v3341, %v3347
  %v3413 = vmax.f32 %v3349, 0.0
  %v3414 = vmax.f32 %v3350, 0.0
  %v3415 = vmax.f32 %v3351, 0.0
  %v3416 = vmax.f32 %v3352, 0.0
  %v3417 = vmax.f32 %v3353, 0.0
  %v3418 = vmax.f32 %v3354, 0.0
  %v3419 = vmax.f32 %v3355, 0.0
  %v3420 = vmax.f32 %v3356, 0.0
  %v3421 = vmax.f32 %v3357, 0.0
  %v3422 = vmax.f32 %v3358, 0.0
  %v3423 = vmax.f32 %v3359, 0.0
  %v3424 = vmax.f32 %v3360, 0.0
  %v3425 = vmax.f32 %v3361, 0.0
  %v3426 = vmax.f32 %v3362, 0.0
  %v3427 = vmax.f32 %v3363, 0.0
  %v3428 = vmax.f32 %v3364, 0.0
  %v3429 = vmax.f32 %v3365, 0.0
  %v3430 = vmax.f32 %v3366, 0.0
  %v3431 = vmax.f32 %v3367, 0.0
  %v3432 = vmax.f32 %v3368, 0.0
  %v3433 = vmax.f32 %v3369, 0.0
  %v3434 = vmax.f32 %v3370, 0.0
  %v3435 = vmax.f32 %v3371, 0.0
  %v3436 = vmax.f32 %v3372, 0.0
  %v3437 = vmax.f32 %v3373, 0.0
  %v3438 = vmax.f32 %v3374, 0.0
  %v3439 = vmax.f32 %v3375, 0.0
  %v3440 = vmax.f32 %v3376, 0.0
  %v3441 = vmax.f32 %v3377, 0.0
  %v3442 = vmax.f32 %v3378, 0.0
  %v3443 = vmax.f32 %v3379, 0.0
  %v3444 = vmax.f32 %v3380, 0.0
  %v3445 = vmax.f32 %v3381, 0.0
  %v3446 = vmax.f32 %v3382, 0.0
  %v3447 = vmax.f32 %v3383, 0.0
  %v3448 = vmax.f32 %v3384, 0.0
  %v3449 = vmax.f32 %v3385, 0.0
  %v3450 = vmax.f32 %v3386, 0.0
  %v3451 = vmax.f32 %v3387, 0.0
  %v3452 = vmax.f32 %v3388, 0.0
  %v3453 = vmax.f32 %v3389, 0.0
  %v3454 = vmax.f32 %v3390, 0.0
  %v3455 = vmax.f32 %v3391, 0.0
  %v3456 = vmax.f32 %v3392, 0.0
  %v3457 = vmax.f32 %v3393, 0.0
  %v3458 = vmax.f32 %v3394, 0.0
  %v3459 = vmax.f32 %v3395, 0.0
  %v3460 = vmax.f32 %v3396, 0.0
  %v3461 = vmax.f32 %v3397, 0.0
  %v3462 = vmax.f32 %v3398, 0.0
  %v3463 = vmax.f32 %v3399, 0.0
  %v3464 = vmax.f32 %v3400, 0.0
  %v3465 = vmax.f32 %v3401, 0.0
  %v3466 = vmax.f32 %v3402, 0.0
  %v3467 = vmax.f32 %v3403, 0.0
  %v3468 = vmax.f32 %v3404, 0.0
  %v3469 = vmax.f32 %v3405, 0.0
  %v3470 = vmax.f32 %v3406, 0.0
  %v3471 = vmax.f32 %v3407, 0.0
  %v3472 = vmax.f32 %v3408, 0.0
  %v3473 = vmax.f32 %v3409, 0.0
  %v3474 = vmax.f32 %v3410, 0.0
  %v3475 = vmax.f32 %v3411, 0.0
  %v3476 = vmax.f32 %v3412, 0.0
  %v3477 = vld [vmem:[%s12] sm:$0xff]
  %v3478 = vld [vmem:[%s12 + $0x8] sm:$0xff]
  %v3479 = vld [vmem:[%s12 + $0x10] sm:$0xff]
  %v3480 = vld [vmem:[%s12 + $0x18] sm:$0xff]
  %v3481 = vld [vmem:[%s13] sm:$0x1]
  %v3483 = vlaneseq
  %v3484 = vshrl.u32 %v3483, 7
  %v3485 = vsub.s32 0, %v3484
  %v3486 = vrot.slane %v3481, %v3485
  %vm3488 = vcmask 261120
  %v3490 = vsel %vm3488, %v3413, 0
  %v3493 = vsel %vm3488, %v3414, 0
  %v3496 = vsel %vm3488, %v3415, 0
  %v3499 = vsel %vm3488, %v3416, 0
  %v3502 = vsel %vm3488, %v3417, 0
  %v3505 = vsel %vm3488, %v3418, 0
  %v3508 = vsel %vm3488, %v3419, 0
  %v3511 = vsel %vm3488, %v3420, 0
  %v3514 = vsel %vm3488, %v3421, 0
  %v3517 = vsel %vm3488, %v3422, 0
  %v3520 = vsel %vm3488, %v3423, 0
  %v3523 = vsel %vm3488, %v3424, 0
  %v3526 = vsel %vm3488, %v3425, 0
  %v3529 = vsel %vm3488, %v3426, 0
  %v3532 = vsel %vm3488, %v3427, 0
  %v3535 = vsel %vm3488, %v3428, 0
  %v3538 = vsel %vm3488, %v3429, 0
  %v3541 = vsel %vm3488, %v3430, 0
  %v3544 = vsel %vm3488, %v3431, 0
  %v3547 = vsel %vm3488, %v3432, 0
  %v3550 = vsel %vm3488, %v3433, 0
  %v3553 = vsel %vm3488, %v3434, 0
  %v3556 = vsel %vm3488, %v3435, 0
  %v3559 = vsel %vm3488, %v3436, 0
  %v3562 = vsel %vm3488, %v3437, 0
  %v3565 = vsel %vm3488, %v3438, 0
  %v3568 = vsel %vm3488, %v3439, 0
  %v3571 = vsel %vm3488, %v3440, 0
  %v3574 = vsel %vm3488, %v3441, 0
  %v3577 = vsel %vm3488, %v3442, 0
  %v3580 = vsel %vm3488, %v3443, 0
  %v3583 = vsel %vm3488, %v3444, 0
  %v3586 = vsel %vm3488, %v3445, 0
  %v3589 = vsel %vm3488, %v3446, 0
  %v3592 = vsel %vm3488, %v3447, 0
  %v3595 = vsel %vm3488, %v3448, 0
  %v3598 = vsel %vm3488, %v3449, 0
  %v3601 = vsel %vm3488, %v3450, 0
  %v3604 = vsel %vm3488, %v3451, 0
  %v3607 = vsel %vm3488, %v3452, 0
  %v3610 = vsel %vm3488, %v3453, 0
  %v3613 = vsel %vm3488, %v3454, 0
  %v3616 = vsel %vm3488, %v3455, 0
  %v3619 = vsel %vm3488, %v3456, 0
  %v3622 = vsel %vm3488, %v3457, 0
  %v3625 = vsel %vm3488, %v3458, 0
  %v3628 = vsel %vm3488, %v3459, 0
  %v3631 = vsel %vm3488, %v3460, 0
  %v3634 = vsel %vm3488, %v3461, 0
  %v3637 = vsel %vm3488, %v3462, 0
  %v3640 = vsel %vm3488, %v3463, 0
  %v3643 = vsel %vm3488, %v3464, 0
  %v3646 = vsel %vm3488, %v3465, 0
  %v3649 = vsel %vm3488, %v3466, 0
  %v3652 = vsel %vm3488, %v3467, 0
  %v3655 = vsel %vm3488, %v3468, 0
  %v3658 = vsel %vm3488, %v3469, 0
  %v3661 = vsel %vm3488, %v3470, 0
  %v3664 = vsel %vm3488, %v3471, 0
  %v3667 = vsel %vm3488, %v3472, 0
  %v3670 = vsel %vm3488, %v3473, 0
  %v3673 = vsel %vm3488, %v3474, 0
  %v3676 = vsel %vm3488, %v3475, 0
  %v3679 = vsel %vm3488, %v3476, 0
  %3681 = vmatprep.subr.mxu0 0.0
  %3682 = vmatpush1.msra.mxu0 %v3477
  %3683 = vmatprep.subr.mxu0 0.0
  %3684 = vmatpush1.msra.mxu0 %v3478
  %3685 = vmatprep.subr.mxu0 0.0
  %3686 = vmatpush1.msra.mxu0 %v3479
  %3687 = vmatprep.subr.mxu0 0.0
  %3688 = vmatpush1.msra.mxu0 %v3480
  %3689 = vmatprep.subr.mxu0 0.0
  %3690 = vmatpush1.msra.mxu0 0.0
  %3691 = vmatprep.subr.mxu0 0.0
  %3692 = vmatpush1.msra.mxu0 0.0
  %3693 = vmatprep.subr.mxu0 0.0
  %3694 = vmatpush1.msra.mxu0 0.0
  %3695 = vmatprep.subr.mxu0 0.0
  %3696 = vmatpush1.msra.mxu0 0.0
  %3697 = vmatprep.subr.mxu0 0.0
  %3698 = vmatpush1.msra.mxu0 0.0
  %3699 = vmatprep.subr.mxu0 0.0
  %3700 = vmatpush1.msra.mxu0 0.0
  %3701 = vmatprep.subr.mxu0 0.0
  %3702 = vmatpush1.msra.mxu0 0.0
  %3703 = vmatprep.subr.mxu0 0.0
  %3704 = vmatpush1.msra.mxu0 0.0
  %3705 = vmatprep.subr.mxu0 0.0
  %3706 = vmatpush1.msra.mxu0 0.0
  %3707 = vmatprep.subr.mxu0 0.0
  %3708 = vmatpush1.msra.mxu0 0.0
  %3709 = vmatprep.subr.mxu0 0.0
  %3710 = vmatpush1.msra.mxu0 0.0
  %3711 = vmatprep.subr.mxu0 0.0
  %3712 = vmatpush1.msra.mxu0 0.0
  %3713 = vmatprep.subr.mxu0 0.0
  %3714 = vmatpush1.msra.mxu0 0.0
  %3715 = vmatprep.subr.mxu0 0.0
  %3716 = vmatpush1.msra.mxu0 0.0
  %3717 = vmatprep.subr.mxu0 0.0
  %3718 = vmatpush1.msra.mxu0 0.0
  %3719 = vmatprep.subr.mxu0 0.0
  %3720 = vmatpush1.msra.mxu0 0.0
  %3721 = vmatprep.subr.mxu0 0.0
  %3722 = vmatpush1.msra.mxu0 0.0
  %3723 = vmatprep.subr.mxu0 0.0
  %3724 = vmatpush1.msra.mxu0 0.0
  %3725 = vmatprep.subr.mxu0 0.0
  %3726 = vmatpush1.msra.mxu0 0.0
  %3727 = vmatprep.subr.mxu0 0.0
  %3728 = vmatpush1.msra.mxu0 0.0
  %3729 = vmatprep.subr.mxu0 0.0
  %3730 = vmatpush1.msra.mxu0 0.0
  %3731 = vmatprep.subr.mxu0 0.0
  %3732 = vmatpush1.msra.mxu0 0.0
  %3733 = vmatprep.subr.mxu0 0.0
  %3734 = vmatpush1.msra.mxu0 0.0
  %3735 = vmatprep.subr.mxu0 0.0
  %3736 = vmatpush1.msra.mxu0 0.0
  %3737 = vmatprep.subr.mxu0 0.0
  %3738 = vmatpush1.msra.mxu0 0.0
  %3739 = vmatprep.subr.mxu0 0.0
  %3740 = vmatpush1.msra.mxu0 0.0
  %3741 = vmatprep.subr.mxu0 0.0
  %3742 = vmatpush1.msra.mxu0 0.0
  %3743 = vmatprep.subr.mxu0 0.0
  %3744 = vmatpush1.msra.mxu0 0.0
  %3745 = vmatprep.mubr.f32.mxu0 0.0
  %3746 = vmatmul.mubr.f32.gmra.mrb[0].mxu0 %v3490
  %v3747 = vpop.f32.mrb[0].mxu0
  %v3748 = vadd.f32 %v3486, %v3747
  %v3749 = vpop.f32.mrb[0].mxu0
  %3750 = vmatprep.mubr.f32.mxu0 0.0
  %3751 = vmatmul.mubr.f32.gmra.mrb[0].mxu0 %v3493
  %v3752 = vpop.f32.mrb[0].mxu0
  %v3753 = vadd.f32 %v3486, %v3752
  %v3754 = vpop.f32.mrb[0].mxu0
  %3755 = vmatprep.mubr.f32.mxu0 0.0
  %3756 = vmatmul.mubr.f32.gmra.mrb[0].mxu0 %v3496
  %v3757 = vpop.f32.mrb[0].mxu0
  %v3758 = vadd.f32 %v3486, %v3757
  %v3759 = vpop.f32.mrb[0].mxu0
  %3760 = vmatprep.mubr.f32.mxu0 0.0
  %3761 = vmatmul.mubr.f32.gmra.mrb[0].mxu0 %v3499
  %v3762 = vpop.f32.mrb[0].mxu0
  %v3763 = vadd.f32 %v3486, %v3762
  %v3764 = vpop.f32.mrb[0].mxu0
  %3765 = vmatprep.mubr.f32.mxu0 0.0
  %3766 = vmatmul.mubr.f32.gmra.mrb[0].mxu0 %v3502
  %v3767 = vpop.f32.mrb[0].mxu0
  %v3768 = vadd.f32 %v3486, %v3767
  %v3769 = vpop.f32.mrb[0].mxu0
  %3770 = vmatprep.mubr.f32.mxu0 0.0
  %3771 = vmatmul.mubr.f32.gmra.mrb[0].mxu0 %v3505
  %v3772 = vpop.f32.mrb[0].mxu0
  %v3773 = vadd.f32 %v3486, %v3772
  %v3774 = vpop.f32.mrb[0].mxu0
  %3775 = vmatprep.mubr.f32.mxu0 0.0
  %3776 = vmatmul.mubr.f32.gmra.mrb[0].mxu0 %v3508
  %v3777 = vpop.f32.mrb[0].mxu0
  %v3778 = vadd.f32 %v3486, %v3777
  %v3779 = vpop.f32.mrb[0].mxu0
  %3780 = vmatprep.mubr.f32.mxu0 0.0
  %3781 = vmatmul.mubr.f32.gmra.mrb[0].mxu0 %v3511
  %v3782 = vpop.f32.mrb[0].mxu0
  %v3783 = vadd.f32 %v3486, %v3782
  %v3784 = vpop.f32.mrb[0].mxu0
  %3785 = vmatprep.mubr.f32.mxu0 0.0
  %3786 = vmatmul.mubr.f32.gmra.mrb[0].mxu0 %v3514
  %v3787 = vpop.f32.mrb[0].mxu0
  %v3788 = vadd.f32 %v3486, %v3787
  %v3789 = vpop.f32.mrb[0].mxu0
  %3790 = vmatprep.mubr.f32.mxu0 0.0
  %3791 = vmatmul.mubr.f32.gmra.mrb[0].mxu0 %v3517
  %v3792 = vpop.f32.mrb[0].mxu0
  %v3793 = vadd.f32 %v3486, %v3792
  %v3794 = vpop.f32.mrb[0].mxu0
  %3795 = vmatprep.mubr.f32.mxu0 0.0
  %3796 = vmatmul.mubr.f32.gmra.mrb[0].mxu0 %v3520
  %v3797 = vpop.f32.mrb[0].mxu0
  %v3798 = vadd.f32 %v3486, %v3797
  %v3799 = vpop.f32.mrb[0].mxu0
  %3800 = vmatprep.mubr.f32.mxu0 0.0
  %3801 = vmatmul.mubr.f32.gmra.mrb[0].mxu0 %v3523
  %v3802 = vpop.f32.mrb[0].mxu0
  %v3803 = vadd.f32 %v3486, %v3802
  %v3804 = vpop.f32.mrb[0].mxu0
  %3805 = vmatprep.mubr.f32.mxu0 0.0
  %3806 = vmatmul.mubr.f32.gmra.mrb[0].mxu0 %v3526
  %v3807 = vpop.f32.mrb[0].mxu0
  %v3808 = vadd.f32 %v3486, %v3807
  %v3809 = vpop.f32.mrb[0].mxu0
  %3810 = vmatprep.mubr.f32.mxu0 0.0
  %3811 = vmatmul.mubr.f32.gmra.mrb[0].mxu0 %v3529
  %v3812 = vpop.f32.mrb[0].mxu0
  %v3813 = vadd.f32 %v3486, %v3812
  %v3814 = vpop.f32.mrb[0].mxu0
  %3815 = vmatprep.mubr.f32.mxu0 0.0
  %3816 = vmatmul.mubr.f32.gmra.mrb[0].mxu0 %v3532
  %v3817 = vpop.f32.mrb[0].mxu0
  %v3818 = vadd.f32 %v3486, %v3817
  %v3819 = vpop.f32.mrb[0].mxu0
  %3820 = vmatprep.mubr.f32.mxu0 0.0
  %3821 = vmatmul.mubr.f32.gmra.mrb[0].mxu0 %v3535
  %v3822 = vpop.f32.mrb[0].mxu0
  %v3823 = vadd.f32 %v3486, %v3822
  %v3824 = vpop.f32.mrb[0].mxu0
  %3825 = vmatprep.mubr.f32.mxu0 0.0
  %3826 = vmatmul.mubr.f32.gmra.mrb[0].mxu0 %v3538
  %v3827 = vpop.f32.mrb[0].mxu0
  %v3828 = vadd.f32 %v3486, %v3827
  %v3829 = vpop.f32.mrb[0].mxu0
  %3830 = vmatprep.mubr.f32.mxu0 0.0
  %3831 = vmatmul.mubr.f32.gmra.mrb[0].mxu0 %v3541
  %v3832 = vpop.f32.mrb[0].mxu0
  %v3833 = vadd.f32 %v3486, %v3832
  %v3834 = vpop.f32.mrb[0].mxu0
  %3835 = vmatprep.mubr.f32.mxu0 0.0
  %3836 = vmatmul.mubr.f32.gmra.mrb[0].mxu0 %v3544
  %v3837 = vpop.f32.mrb[0].mxu0
  %v3838 = vadd.f32 %v3486, %v3837
  %v3839 = vpop.f32.mrb[0].mxu0
  %3840 = vmatprep.mubr.f32.mxu0 0.0
  %3841 = vmatmul.mubr.f32.gmra.mrb[0].mxu0 %v3547
  %v3842 = vpop.f32.mrb[0].mxu0
  %v3843 = vadd.f32 %v3486, %v3842
  %v3844 = vpop.f32.mrb[0].mxu0
  %3845 = vmatprep.mubr.f32.mxu0 0.0
  %3846 = vmatmul.mubr.f32.gmra.mrb[0].mxu0 %v3550
  %v3847 = vpop.f32.mrb[0].mxu0
  %v3848 = vadd.f32 %v3486, %v3847
  %v3849 = vpop.f32.mrb[0].mxu0
  %3850 = vmatprep.mubr.f32.mxu0 0.0
  %3851 = vmatmul.mubr.f32.gmra.mrb[0].mxu0 %v3553
  %v3852 = vpop.f32.mrb[0].mxu0
  %v3853 = vadd.f32 %v3486, %v3852
  %v3854 = vpop.f32.mrb[0].mxu0
  %3855 = vmatprep.mubr.f32.mxu0 0.0
  %3856 = vmatmul.mubr.f32.gmra.mrb[0].mxu0 %v3556
  %v3857 = vpop.f32.mrb[0].mxu0
  %v3858 = vadd.f32 %v3486, %v3857
  %v3859 = vpop.f32.mrb[0].mxu0
  %3860 = vmatprep.mubr.f32.mxu0 0.0
  %3861 = vmatmul.mubr.f32.gmra.mrb[0].mxu0 %v3559
  %v3862 = vpop.f32.mrb[0].mxu0
  %v3863 = vadd.f32 %v3486, %v3862
  %v3864 = vpop.f32.mrb[0].mxu0
  %3865 = vmatprep.mubr.f32.mxu0 0.0
  %3866 = vmatmul.mubr.f32.gmra.mrb[0].mxu0 %v3562
  %v3867 = vpop.f32.mrb[0].mxu0
  %v3868 = vadd.f32 %v3486, %v3867
  %v3869 = vpop.f32.mrb[0].mxu0
  %3870 = vmatprep.mubr.f32.mxu0 0.0
  %3871 = vmatmul.mubr.f32.gmra.mrb[0].mxu0 %v3565
  %v3872 = vpop.f32.mrb[0].mxu0
  %v3873 = vadd.f32 %v3486, %v3872
  %v3874 = vpop.f32.mrb[0].mxu0
  %3875 = vmatprep.mubr.f32.mxu0 0.0
  %3876 = vmatmul.mubr.f32.gmra.mrb[0].mxu0 %v3568
  %v3877 = vpop.f32.mrb[0].mxu0
  %v3878 = vadd.f32 %v3486, %v3877
  %v3879 = vpop.f32.mrb[0].mxu0
  %3880 = vmatprep.mubr.f32.mxu0 0.0
  %3881 = vmatmul.mubr.f32.gmra.mrb[0].mxu0 %v3571
  %v3882 = vpop.f32.mrb[0].mxu0
  %v3883 = vadd.f32 %v3486, %v3882
  %v3884 = vpop.f32.mrb[0].mxu0
  %3885 = vmatprep.mubr.f32.mxu0 0.0
  %3886 = vmatmul.mubr.f32.gmra.mrb[0].mxu0 %v3574
  %v3887 = vpop.f32.mrb[0].mxu0
  %v3888 = vadd.f32 %v3486, %v3887
  %v3889 = vpop.f32.mrb[0].mxu0
  %3890 = vmatprep.mubr.f32.mxu0 0.0
  %3891 = vmatmul.mubr.f32.gmra.mrb[0].mxu0 %v3577
  %v3892 = vpop.f32.mrb[0].mxu0
  %v3893 = vadd.f32 %v3486, %v3892
  %v3894 = vpop.f32.mrb[0].mxu0
  %3895 = vmatprep.mubr.f32.mxu0 0.0
  %3896 = vmatmul.mubr.f32.gmra.mrb[0].mxu0 %v3580
  %v3897 = vpop.f32.mrb[0].mxu0
  %v3898 = vadd.f32 %v3486, %v3897
  %v3899 = vpop.f32.mrb[0].mxu0
  %3900 = vmatprep.mubr.f32.mxu0 0.0
  %3901 = vmatmul.mubr.f32.gmra.mrb[0].mxu0 %v3583
  %v3902 = vpop.f32.mrb[0].mxu0
  %v3903 = vadd.f32 %v3486, %v3902
  %v3904 = vpop.f32.mrb[0].mxu0
  %3905 = vmatprep.mubr.f32.mxu0 0.0
  %3906 = vmatmul.mubr.f32.gmra.mrb[0].mxu0 %v3586
  %v3907 = vpop.f32.mrb[0].mxu0
  %v3908 = vadd.f32 %v3486, %v3907
  %v3909 = vpop.f32.mrb[0].mxu0
  %3910 = vmatprep.mubr.f32.mxu0 0.0
  %3911 = vmatmul.mubr.f32.gmra.mrb[0].mxu0 %v3589
  %v3912 = vpop.f32.mrb[0].mxu0
  %v3913 = vadd.f32 %v3486, %v3912
  %v3914 = vpop.f32.mrb[0].mxu0
  %3915 = vmatprep.mubr.f32.mxu0 0.0
  %3916 = vmatmul.mubr.f32.gmra.mrb[0].mxu0 %v3592
  %v3917 = vpop.f32.mrb[0].mxu0
  %v3918 = vadd.f32 %v3486, %v3917
  %v3919 = vpop.f32.mrb[0].mxu0
  %3920 = vmatprep.mubr.f32.mxu0 0.0
  %3921 = vmatmul.mubr.f32.gmra.mrb[0].mxu0 %v3595
  %v3922 = vpop.f32.mrb[0].mxu0
  %v3923 = vadd.f32 %v3486, %v3922
  %v3924 = vpop.f32.mrb[0].mxu0
  %3925 = vmatprep.mubr.f32.mxu0 0.0
  %3926 = vmatmul.mubr.f32.gmra.mrb[0].mxu0 %v3598
  %v3927 = vpop.f32.mrb[0].mxu0
  %v3928 = vadd.f32 %v3486, %v3927
  %v3929 = vpop.f32.mrb[0].mxu0
  %3930 = vmatprep.mubr.f32.mxu0 0.0
  %3931 = vmatmul.mubr.f32.gmra.mrb[0].mxu0 %v3601
  %v3932 = vpop.f32.mrb[0].mxu0
  %v3933 = vadd.f32 %v3486, %v3932
  %v3934 = vpop.f32.mrb[0].mxu0
  %3935 = vmatprep.mubr.f32.mxu0 0.0
  %3936 = vmatmul.mubr.f32.gmra.mrb[0].mxu0 %v3604
  %v3937 = vpop.f32.mrb[0].mxu0
  %v3938 = vadd.f32 %v3486, %v3937
  %v3939 = vpop.f32.mrb[0].mxu0
  %3940 = vmatprep.mubr.f32.mxu0 0.0
  %3941 = vmatmul.mubr.f32.gmra.mrb[0].mxu0 %v3607
  %v3942 = vpop.f32.mrb[0].mxu0
  %v3943 = vadd.f32 %v3486, %v3942
  %v3944 = vpop.f32.mrb[0].mxu0
  %3945 = vmatprep.mubr.f32.mxu0 0.0
  %3946 = vmatmul.mubr.f32.gmra.mrb[0].mxu0 %v3610
  %v3947 = vpop.f32.mrb[0].mxu0
  %v3948 = vadd.f32 %v3486, %v3947
  %v3949 = vpop.f32.mrb[0].mxu0
  %3950 = vmatprep.mubr.f32.mxu0 0.0
  %3951 = vmatmul.mubr.f32.gmra.mrb[0].mxu0 %v3613
  %v3952 = vpop.f32.mrb[0].mxu0
  %v3953 = vadd.f32 %v3486, %v3952
  %v3954 = vpop.f32.mrb[0].mxu0
  %3955 = vmatprep.mubr.f32.mxu0 0.0
  %3956 = vmatmul.mubr.f32.gmra.mrb[0].mxu0 %v3616
  %v3957 = vpop.f32.mrb[0].mxu0
  %v3958 = vadd.f32 %v3486, %v3957
  %v3959 = vpop.f32.mrb[0].mxu0
  %3960 = vmatprep.mubr.f32.mxu0 0.0
  %3961 = vmatmul.mubr.f32.gmra.mrb[0].mxu0 %v3619
  %v3962 = vpop.f32.mrb[0].mxu0
  %v3963 = vadd.f32 %v3486, %v3962
  %v3964 = vpop.f32.mrb[0].mxu0
  %3965 = vmatprep.mubr.f32.mxu0 0.0
  %3966 = vmatmul.mubr.f32.gmra.mrb[0].mxu0 %v3622
  %v3967 = vpop.f32.mrb[0].mxu0
  %v3968 = vadd.f32 %v3486, %v3967
  %v3969 = vpop.f32.mrb[0].mxu0
  %3970 = vmatprep.mubr.f32.mxu0 0.0
  %3971 = vmatmul.mubr.f32.gmra.mrb[0].mxu0 %v3625
  %v3972 = vpop.f32.mrb[0].mxu0
  %v3973 = vadd.f32 %v3486, %v3972
  %v3974 = vpop.f32.mrb[0].mxu0
  %3975 = vmatprep.mubr.f32.mxu0 0.0
  %3976 = vmatmul.mubr.f32.gmra.mrb[0].mxu0 %v3628
  %v3977 = vpop.f32.mrb[0].mxu0
  %v3978 = vadd.f32 %v3486, %v3977
  %v3979 = vpop.f32.mrb[0].mxu0
  %3980 = vmatprep.mubr.f32.mxu0 0.0
  %3981 = vmatmul.mubr.f32.gmra.mrb[0].mxu0 %v3631
  %v3982 = vpop.f32.mrb[0].mxu0
  %v3983 = vadd.f32 %v3486, %v3982
  %v3984 = vpop.f32.mrb[0].mxu0
  %3985 = vmatprep.mubr.f32.mxu0 0.0
  %3986 = vmatmul.mubr.f32.gmra.mrb[0].mxu0 %v3634
  %v3987 = vpop.f32.mrb[0].mxu0
  %v3988 = vadd.f32 %v3486, %v3987
  %v3989 = vpop.f32.mrb[0].mxu0
  %3990 = vmatprep.mubr.f32.mxu0 0.0
  %3991 = vmatmul.mubr.f32.gmra.mrb[0].mxu0 %v3637
  %v3992 = vpop.f32.mrb[0].mxu0
  %v3993 = vadd.f32 %v3486, %v3992
  %v3994 = vpop.f32.mrb[0].mxu0
  %3995 = vmatprep.mubr.f32.mxu0 0.0
  %3996 = vmatmul.mubr.f32.gmra.mrb[0].mxu0 %v3640
  %v3997 = vpop.f32.mrb[0].mxu0
  %v3998 = vadd.f32 %v3486, %v3997
  %v3999 = vpop.f32.mrb[0].mxu0
  %4000 = vmatprep.mubr.f32.mxu0 0.0
  %4001 = vmatmul.mubr.f32.gmra.mrb[0].mxu0 %v3643
  %v4002 = vpop.f32.mrb[0].mxu0
  %v4003 = vadd.f32 %v3486, %v4002
  %v4004 = vpop.f32.mrb[0].mxu0
  %4005 = vmatprep.mubr.f32.mxu0 0.0
  %4006 = vmatmul.mubr.f32.gmra.mrb[0].mxu0 %v3646
  %v4007 = vpop.f32.mrb[0].mxu0
  %v4008 = vadd.f32 %v3486, %v4007
  %v4009 = vpop.f32.mrb[0].mxu0
  %4010 = vmatprep.mubr.f32.mxu0 0.0
  %4011 = vmatmul.mubr.f32.gmra.mrb[0].mxu0 %v3649
  %v4012 = vpop.f32.mrb[0].mxu0
  %v4013 = vadd.f32 %v3486, %v4012
  %v4014 = vpop.f32.mrb[0].mxu0
  %4015 = vmatprep.mubr.f32.mxu0 0.0
  %4016 = vmatmul.mubr.f32.gmra.mrb[0].mxu0 %v3652
  %v4017 = vpop.f32.mrb[0].mxu0
  %v4018 = vadd.f32 %v3486, %v4017
  %v4019 = vpop.f32.mrb[0].mxu0
  %4020 = vmatprep.mubr.f32.mxu0 0.0
  %4021 = vmatmul.mubr.f32.gmra.mrb[0].mxu0 %v3655
  %v4022 = vpop.f32.mrb[0].mxu0
  %v4023 = vadd.f32 %v3486, %v4022
  %v4024 = vpop.f32.mrb[0].mxu0
  %4025 = vmatprep.mubr.f32.mxu0 0.0
  %4026 = vmatmul.mubr.f32.gmra.mrb[0].mxu0 %v3658
  %v4027 = vpop.f32.mrb[0].mxu0
  %v4028 = vadd.f32 %v3486, %v4027
  %v4029 = vpop.f32.mrb[0].mxu0
  %4030 = vmatprep.mubr.f32.mxu0 0.0
  %4031 = vmatmul.mubr.f32.gmra.mrb[0].mxu0 %v3661
  %v4032 = vpop.f32.mrb[0].mxu0
  %v4033 = vadd.f32 %v3486, %v4032
  %v4034 = vpop.f32.mrb[0].mxu0
  %4035 = vmatprep.mubr.f32.mxu0 0.0
  %4036 = vmatmul.mubr.f32.gmra.mrb[0].mxu0 %v3664
  %v4037 = vpop.f32.mrb[0].mxu0
  %v4038 = vadd.f32 %v3486, %v4037
  %v4039 = vpop.f32.mrb[0].mxu0
  %4040 = vmatprep.mubr.f32.mxu0 0.0
  %4041 = vmatmul.mubr.f32.gmra.mrb[0].mxu0 %v3667
  %v4042 = vpop.f32.mrb[0].mxu0
  %v4043 = vadd.f32 %v3486, %v4042
  %v4044 = vpop.f32.mrb[0].mxu0
  %4045 = vmatprep.mubr.f32.mxu0 0.0
  %4046 = vmatmul.mubr.f32.gmra.mrb[0].mxu0 %v3670
  %v4047 = vpop.f32.mrb[0].mxu0
  %v4048 = vadd.f32 %v3486, %v4047
  %v4049 = vpop.f32.mrb[0].mxu0
  %4050 = vmatprep.mubr.f32.mxu0 0.0
  %4051 = vmatmul.mubr.f32.gmra.mrb[0].mxu0 %v3673
  %v4052 = vpop.f32.mrb[0].mxu0
  %v4053 = vadd.f32 %v3486, %v4052
  %v4054 = vpop.f32.mrb[0].mxu0
  %4055 = vmatprep.mubr.f32.mxu0 0.0
  %4056 = vmatmul.mubr.f32.gmra.mrb[0].mxu0 %v3676
  %v4057 = vpop.f32.mrb[0].mxu0
  %v4058 = vadd.f32 %v3486, %v4057
  %v4059 = vpop.f32.mrb[0].mxu0
  %4060 = vmatprep.mubr.f32.mxu0 0.0
  %4061 = vmatmul.mubr.f32.gmra.mrb[0].mxu0 %v3679
  %v4062 = vpop.f32.mrb[0].mxu0
  %v4063 = vadd.f32 %v3486, %v4062
  %v4064 = vpop.f32.mrb[0].mxu0
  %4065 = vdwg.mxu0
  %v4066 = vmax.f32 %v3748, 0.0
  %v4067 = vmax.f32 %v3753, 0.0
  %v4068 = vmax.f32 %v3758, 0.0
  %v4069 = vmax.f32 %v3763, 0.0
  %v4070 = vmax.f32 %v3768, 0.0
  %v4071 = vmax.f32 %v3773, 0.0
  %v4072 = vmax.f32 %v3778, 0.0
  %v4073 = vmax.f32 %v3783, 0.0
  %v4074 = vmax.f32 %v3788, 0.0
  %v4075 = vmax.f32 %v3793, 0.0
  %v4076 = vmax.f32 %v3798, 0.0
  %v4077 = vmax.f32 %v3803, 0.0
  %v4078 = vmax.f32 %v3808, 0.0
  %v4079 = vmax.f32 %v3813, 0.0
  %v4080 = vmax.f32 %v3818, 0.0
  %v4081 = vmax.f32 %v3823, 0.0
  %v4082 = vmax.f32 %v3828, 0.0
  %v4083 = vmax.f32 %v3833, 0.0
  %v4084 = vmax.f32 %v3838, 0.0
  %v4085 = vmax.f32 %v3843, 0.0
  %v4086 = vmax.f32 %v3848, 0.0
  %v4087 = vmax.f32 %v3853, 0.0
  %v4088 = vmax.f32 %v3858, 0.0
  %v4089 = vmax.f32 %v3863, 0.0
  %v4090 = vmax.f32 %v3868, 0.0
  %v4091 = vmax.f32 %v3873, 0.0
  %v4092 = vmax.f32 %v3878, 0.0
  %v4093 = vmax.f32 %v3883, 0.0
  %v4094 = vmax.f32 %v3888, 0.0
  %v4095 = vmax.f32 %v3893, 0.0
  %v4096 = vmax.f32 %v3898, 0.0
  %v4097 = vmax.f32 %v3903, 0.0
  %v4098 = vmax.f32 %v3908, 0.0
  %v4099 = vmax.f32 %v3913, 0.0
  %v4100 = vmax.f32 %v3918, 0.0
  %v4101 = vmax.f32 %v3923, 0.0
  %v4102 = vmax.f32 %v3928, 0.0
  %v4103 = vmax.f32 %v3933, 0.0
  %v4104 = vmax.f32 %v3938, 0.0
  %v4105 = vmax.f32 %v3943, 0.0
  %v4106 = vmax.f32 %v3948, 0.0
  %v4107 = vmax.f32 %v3953, 0.0
  %v4108 = vmax.f32 %v3958, 0.0
  %v4109 = vmax.f32 %v3963, 0.0
  %v4110 = vmax.f32 %v3968, 0.0
  %v4111 = vmax.f32 %v3973, 0.0
  %v4112 = vmax.f32 %v3978, 0.0
  %v4113 = vmax.f32 %v3983, 0.0
  %v4114 = vmax.f32 %v3988, 0.0
  %v4115 = vmax.f32 %v3993, 0.0
  %v4116 = vmax.f32 %v3998, 0.0
  %v4117 = vmax.f32 %v4003, 0.0
  %v4118 = vmax.f32 %v4008, 0.0
  %v4119 = vmax.f32 %v4013, 0.0
  %v4120 = vmax.f32 %v4018, 0.0
  %v4121 = vmax.f32 %v4023, 0.0
  %v4122 = vmax.f32 %v4028, 0.0
  %v4123 = vmax.f32 %v4033, 0.0
  %v4124 = vmax.f32 %v4038, 0.0
  %v4125 = vmax.f32 %v4043, 0.0
  %v4126 = vmax.f32 %v4048, 0.0
  %v4127 = vmax.f32 %v4053, 0.0
  %v4128 = vmax.f32 %v4058, 0.0
  %v4129 = vmax.f32 %v4063, 0.0
  %v4130 = vld [vmem:[%s14] sm:$0xff]
  %v4131 = vld [vmem:[%s14 + $0x8] sm:$0xff]
  %v4132 = vld [vmem:[%s14 + $0x10] sm:$0xff]
  %v4133 = vld [vmem:[%s14 + $0x18] sm:$0xff]
  %v4134 = vld [vmem:[%s15] sm:$0x1]
  %v4136 = vlaneseq
  %v4137 = vshrl.u32 %v4136, 7
  %v4138 = vsub.s32 0, %v4137
  %v4139 = vrot.slane %v4134, %v4138
  %v4142 = vsel %vm3488, %v4066, 0
  %v4145 = vsel %vm3488, %v4067, 0
  %v4148 = vsel %vm3488, %v4068, 0
  %v4151 = vsel %vm3488, %v4069, 0
  %v4154 = vsel %vm3488, %v4070, 0
  %v4157 = vsel %vm3488, %v4071, 0
  %v4160 = vsel %vm3488, %v4072, 0
  %v4163 = vsel %vm3488, %v4073, 0
  %v4166 = vsel %vm3488, %v4074, 0
  %v4169 = vsel %vm3488, %v4075, 0
  %v4172 = vsel %vm3488, %v4076, 0
  %v4175 = vsel %vm3488, %v4077, 0
  %v4178 = vsel %vm3488, %v4078, 0
  %v4181 = vsel %vm3488, %v4079, 0
  %v4184 = vsel %vm3488, %v4080, 0
  %v4187 = vsel %vm3488, %v4081, 0
  %v4190 = vsel %vm3488, %v4082, 0
  %v4193 = vsel %vm3488, %v4083, 0
  %v4196 = vsel %vm3488, %v4084, 0
  %v4199 = vsel %vm3488, %v4085, 0
  %v4202 = vsel %vm3488, %v4086, 0
  %v4205 = vsel %vm3488, %v4087, 0
  %v4208 = vsel %vm3488, %v4088, 0
  %v4211 = vsel %vm3488, %v4089, 0
  %v4214 = vsel %vm3488, %v4090, 0
  %v4217 = vsel %vm3488, %v4091, 0
  %v4220 = vsel %vm3488, %v4092, 0
  %v4223 = vsel %vm3488, %v4093, 0
  %v4226 = vsel %vm3488, %v4094, 0
  %v4229 = vsel %vm3488, %v4095, 0
  %v4232 = vsel %vm3488, %v4096, 0
  %v4235 = vsel %vm3488, %v4097, 0
  %v4238 = vsel %vm3488, %v4098, 0
  %v4241 = vsel %vm3488, %v4099, 0
  %v4244 = vsel %vm3488, %v4100, 0
  %v4247 = vsel %vm3488, %v4101, 0
  %v4250 = vsel %vm3488, %v4102, 0
  %v4253 = vsel %vm3488, %v4103, 0
  %v4256 = vsel %vm3488, %v4104, 0
  %v4259 = vsel %vm3488, %v4105, 0
  %v4262 = vsel %vm3488, %v4106, 0
  %v4265 = vsel %vm3488, %v4107, 0
  %v4268 = vsel %vm3488, %v4108, 0
  %v4271 = vsel %vm3488, %v4109, 0
  %v4274 = vsel %vm3488, %v4110, 0
  %v4277 = vsel %vm3488, %v4111, 0
  %v4280 = vsel %vm3488, %v4112, 0
  %v4283 = vsel %vm3488, %v4113, 0
  %v4286 = vsel %vm3488, %v4114, 0
  %v4289 = vsel %vm3488, %v4115, 0
  %v4292 = vsel %vm3488, %v4116, 0
  %v4295 = vsel %vm3488, %v4117, 0
  %v4298 = vsel %vm3488, %v4118, 0
  %v4301 = vsel %vm3488, %v4119, 0
  %v4304 = vsel %vm3488, %v4120, 0
  %v4307 = vsel %vm3488, %v4121, 0
  %v4310 = vsel %vm3488, %v4122, 0
  %v4313 = vsel %vm3488, %v4123, 0
  %v4316 = vsel %vm3488, %v4124, 0
  %v4319 = vsel %vm3488, %v4125, 0
  %v4322 = vsel %vm3488, %v4126, 0
  %v4325 = vsel %vm3488, %v4127, 0
  %v4328 = vsel %vm3488, %v4128, 0
  %v4331 = vsel %vm3488, %v4129, 0
  %4333 = vmatprep.subr.mxu0 0.0
  %4334 = vmatpush1.msra.mxu0 %v4130
  %4335 = vmatprep.subr.mxu0 0.0
  %4336 = vmatpush1.msra.mxu0 %v4131
  %4337 = vmatprep.subr.mxu0 0.0
  %4338 = vmatpush1.msra.mxu0 %v4132
  %4339 = vmatprep.subr.mxu0 0.0
  %4340 = vmatpush1.msra.mxu0 %v4133
  %4341 = vmatprep.subr.mxu0 0.0
  %4342 = vmatpush1.msra.mxu0 0.0
  %4343 = vmatprep.subr.mxu0 0.0
  %4344 = vmatpush1.msra.mxu0 0.0
  %4345 = vmatprep.subr.mxu0 0.0
  %4346 = vmatpush1.msra.mxu0 0.0
  %4347 = vmatprep.subr.mxu0 0.0
  %4348 = vmatpush1.msra.mxu0 0.0
  %4349 = vmatprep.subr.mxu0 0.0
  %4350 = vmatpush1.msra.mxu0 0.0
  %4351 = vmatprep.subr.mxu0 0.0
  %4352 = vmatpush1.msra.mxu0 0.0
  %4353 = vmatprep.subr.mxu0 0.0
  %4354 = vmatpush1.msra.mxu0 0.0
  %4355 = vmatprep.subr.mxu0 0.0
  %4356 = vmatpush1.msra.mxu0 0.0
  %4357 = vmatprep.subr.mxu0 0.0
  %4358 = vmatpush1.msra.mxu0 0.0
  %4359 = vmatprep.subr.mxu0 0.0
  %4360 = vmatpush1.msra.mxu0 0.0
  %4361 = vmatprep.subr.mxu0 0.0
  %4362 = vmatpush1.msra.mxu0 0.0
  %4363 = vmatprep.subr.mxu0 0.0
  %4364 = vmatpush1.msra.mxu0 0.0
  %4365 = vmatprep.subr.mxu0 0.0
  %4366 = vmatpush1.msra.mxu0 0.0
  %4367 = vmatprep.subr.mxu0 0.0
  %4368 = vmatpush1.msra.mxu0 0.0
  %4369 = vmatprep.subr.mxu0 0.0
  %4370 = vmatpush1.msra.mxu0 0.0
  %4371 = vmatprep.subr.mxu0 0.0
  %4372 = vmatpush1.msra.mxu0 0.0
  %4373 = vmatprep.subr.mxu0 0.0
  %4374 = vmatpush1.msra.mxu0 0.0
  %4375 = vmatprep.subr.mxu0 0.0
  %4376 = vmatpush1.msra.mxu0 0.0
  %4377 = vmatprep.subr.mxu0 0.0
  %4378 = vmatpush1.msra.mxu0 0.0
  %4379 = vmatprep.subr.mxu0 0.0
  %4380 = vmatpush1.msra.mxu0 0.0
  %4381 = vmatprep.subr.mxu0 0.0
  %4382 = vmatpush1.msra.mxu0 0.0
  %4383 = vmatprep.subr.mxu0 0.0
  %4384 = vmatpush1.msra.mxu0 0.0
  %4385 = vmatprep.subr.mxu0 0.0
  %4386 = vmatpush1.msra.mxu0 0.0
  %4387 = vmatprep.subr.mxu0 0.0
  %4388 = vmatpush1.msra.mxu0 0.0
  %4389 = vmatprep.subr.mxu0 0.0
  %4390 = vmatpush1.msra.mxu0 0.0
  %4391 = vmatprep.subr.mxu0 0.0
  %4392 = vmatpush1.msra.mxu0 0.0
  %4393 = vmatprep.subr.mxu0 0.0
  %4394 = vmatpush1.msra.mxu0 0.0
  %4395 = vmatprep.subr.mxu0 0.0
  %4396 = vmatpush1.msra.mxu0 0.0
  %4397 = vmatprep.mubr.f32.mxu0 0.0
  %4398 = vmatmul.mubr.f32.gmra.mrb[0].mxu0 %v4142
  %v4399 = vpop.f32.mrb[0].mxu0
  %v4400 = vadd.f32 %v4139, %v4399
  %v4401 = vpop.f32.mrb[0].mxu0
  %4402 = vmatprep.mubr.f32.mxu0 0.0
  %4403 = vmatmul.mubr.f32.gmra.mrb[0].mxu0 %v4145
  %v4404 = vpop.f32.mrb[0].mxu0
  %v4405 = vadd.f32 %v4139, %v4404
  %v4406 = vpop.f32.mrb[0].mxu0
  %4407 = vmatprep.mubr.f32.mxu0 0.0
  %4408 = vmatmul.mubr.f32.gmra.mrb[0].mxu0 %v4148
  %v4409 = vpop.f32.mrb[0].mxu0
  %v4410 = vadd.f32 %v4139, %v4409
  %v4411 = vpop.f32.mrb[0].mxu0
  %4412 = vmatprep.mubr.f32.mxu0 0.0
  %4413 = vmatmul.mubr.f32.gmra.mrb[0].mxu0 %v4151
  %v4414 = vpop.f32.mrb[0].mxu0
  %v4415 = vadd.f32 %v4139, %v4414
  %v4416 = vpop.f32.mrb[0].mxu0
  %4417 = vmatprep.mubr.f32.mxu0 0.0
  %4418 = vmatmul.mubr.f32.gmra.mrb[0].mxu0 %v4154
  %v4419 = vpop.f32.mrb[0].mxu0
  %v4420 = vadd.f32 %v4139, %v4419
  %v4421 = vpop.f32.mrb[0].mxu0
  %4422 = vmatprep.mubr.f32.mxu0 0.0
  %4423 = vmatmul.mubr.f32.gmra.mrb[0].mxu0 %v4157
  %v4424 = vpop.f32.mrb[0].mxu0
  %v4425 = vadd.f32 %v4139, %v4424
  %v4426 = vpop.f32.mrb[0].mxu0
  %4427 = vmatprep.mubr.f32.mxu0 0.0
  %4428 = vmatmul.mubr.f32.gmra.mrb[0].mxu0 %v4160
  %v4429 = vpop.f32.mrb[0].mxu0
  %v4430 = vadd.f32 %v4139, %v4429
  %v4431 = vpop.f32.mrb[0].mxu0
  %4432 = vmatprep.mubr.f32.mxu0 0.0
  %4433 = vmatmul.mubr.f32.gmra.mrb[0].mxu0 %v4163
  %v4434 = vpop.f32.mrb[0].mxu0
  %v4435 = vadd.f32 %v4139, %v4434
  %v4436 = vpop.f32.mrb[0].mxu0
  %4437 = vmatprep.mubr.f32.mxu0 0.0
  %4438 = vmatmul.mubr.f32.gmra.mrb[0].mxu0 %v4166
  %v4439 = vpop.f32.mrb[0].mxu0
  %v4440 = vadd.f32 %v4139, %v4439
  %v4441 = vpop.f32.mrb[0].mxu0
  %4442 = vmatprep.mubr.f32.mxu0 0.0
  %4443 = vmatmul.mubr.f32.gmra.mrb[0].mxu0 %v4169
  %v4444 = vpop.f32.mrb[0].mxu0
  %v4445 = vadd.f32 %v4139, %v4444
  %v4446 = vpop.f32.mrb[0].mxu0
  %4447 = vmatprep.mubr.f32.mxu0 0.0
  %4448 = vmatmul.mubr.f32.gmra.mrb[0].mxu0 %v4172
  %v4449 = vpop.f32.mrb[0].mxu0
  %v4450 = vadd.f32 %v4139, %v4449
  %v4451 = vpop.f32.mrb[0].mxu0
  %4452 = vmatprep.mubr.f32.mxu0 0.0
  %4453 = vmatmul.mubr.f32.gmra.mrb[0].mxu0 %v4175
  %v4454 = vpop.f32.mrb[0].mxu0
  %v4455 = vadd.f32 %v4139, %v4454
  %v4456 = vpop.f32.mrb[0].mxu0
  %4457 = vmatprep.mubr.f32.mxu0 0.0
  %4458 = vmatmul.mubr.f32.gmra.mrb[0].mxu0 %v4178
  %v4459 = vpop.f32.mrb[0].mxu0
  %v4460 = vadd.f32 %v4139, %v4459
  %v4461 = vpop.f32.mrb[0].mxu0
  %4462 = vmatprep.mubr.f32.mxu0 0.0
  %4463 = vmatmul.mubr.f32.gmra.mrb[0].mxu0 %v4181
  %v4464 = vpop.f32.mrb[0].mxu0
  %v4465 = vadd.f32 %v4139, %v4464
  %v4466 = vpop.f32.mrb[0].mxu0
  %4467 = vmatprep.mubr.f32.mxu0 0.0
  %4468 = vmatmul.mubr.f32.gmra.mrb[0].mxu0 %v4184
  %v4469 = vpop.f32.mrb[0].mxu0
  %v4470 = vadd.f32 %v4139, %v4469
  %v4471 = vpop.f32.mrb[0].mxu0
  %4472 = vmatprep.mubr.f32.mxu0 0.0
  %4473 = vmatmul.mubr.f32.gmra.mrb[0].mxu0 %v4187
  %v4474 = vpop.f32.mrb[0].mxu0
  %v4475 = vadd.f32 %v4139, %v4474
  %v4476 = vpop.f32.mrb[0].mxu0
  %4477 = vmatprep.mubr.f32.mxu0 0.0
  %4478 = vmatmul.mubr.f32.gmra.mrb[0].mxu0 %v4190
  %v4479 = vpop.f32.mrb[0].mxu0
  %v4480 = vadd.f32 %v4139, %v4479
  %v4481 = vpop.f32.mrb[0].mxu0
  %4482 = vmatprep.mubr.f32.mxu0 0.0
  %4483 = vmatmul.mubr.f32.gmra.mrb[0].mxu0 %v4193
  %v4484 = vpop.f32.mrb[0].mxu0
  %v4485 = vadd.f32 %v4139, %v4484
  %v4486 = vpop.f32.mrb[0].mxu0
  %4487 = vmatprep.mubr.f32.mxu0 0.0
  %4488 = vmatmul.mubr.f32.gmra.mrb[0].mxu0 %v4196
  %v4489 = vpop.f32.mrb[0].mxu0
  %v4490 = vadd.f32 %v4139, %v4489
  %v4491 = vpop.f32.mrb[0].mxu0
  %4492 = vmatprep.mubr.f32.mxu0 0.0
  %4493 = vmatmul.mubr.f32.gmra.mrb[0].mxu0 %v4199
  %v4494 = vpop.f32.mrb[0].mxu0
  %v4495 = vadd.f32 %v4139, %v4494
  %v4496 = vpop.f32.mrb[0].mxu0
  %4497 = vmatprep.mubr.f32.mxu0 0.0
  %4498 = vmatmul.mubr.f32.gmra.mrb[0].mxu0 %v4202
  %v4499 = vpop.f32.mrb[0].mxu0
  %v4500 = vadd.f32 %v4139, %v4499
  %v4501 = vpop.f32.mrb[0].mxu0
  %4502 = vmatprep.mubr.f32.mxu0 0.0
  %4503 = vmatmul.mubr.f32.gmra.mrb[0].mxu0 %v4205
  %v4504 = vpop.f32.mrb[0].mxu0
  %v4505 = vadd.f32 %v4139, %v4504
  %v4506 = vpop.f32.mrb[0].mxu0
  %4507 = vmatprep.mubr.f32.mxu0 0.0
  %4508 = vmatmul.mubr.f32.gmra.mrb[0].mxu0 %v4208
  %v4509 = vpop.f32.mrb[0].mxu0
  %v4510 = vadd.f32 %v4139, %v4509
  %v4511 = vpop.f32.mrb[0].mxu0
  %4512 = vmatprep.mubr.f32.mxu0 0.0
  %4513 = vmatmul.mubr.f32.gmra.mrb[0].mxu0 %v4211
  %v4514 = vpop.f32.mrb[0].mxu0
  %v4515 = vadd.f32 %v4139, %v4514
  %v4516 = vpop.f32.mrb[0].mxu0
  %4517 = vmatprep.mubr.f32.mxu0 0.0
  %4518 = vmatmul.mubr.f32.gmra.mrb[0].mxu0 %v4214
  %v4519 = vpop.f32.mrb[0].mxu0
  %v4520 = vadd.f32 %v4139, %v4519
  %v4521 = vpop.f32.mrb[0].mxu0
  %4522 = vmatprep.mubr.f32.mxu0 0.0
  %4523 = vmatmul.mubr.f32.gmra.mrb[0].mxu0 %v4217
  %v4524 = vpop.f32.mrb[0].mxu0
  %v4525 = vadd.f32 %v4139, %v4524
  %v4526 = vpop.f32.mrb[0].mxu0
  %4527 = vmatprep.mubr.f32.mxu0 0.0
  %4528 = vmatmul.mubr.f32.gmra.mrb[0].mxu0 %v4220
  %v4529 = vpop.f32.mrb[0].mxu0
  %v4530 = vadd.f32 %v4139, %v4529
  %v4531 = vpop.f32.mrb[0].mxu0
  %4532 = vmatprep.mubr.f32.mxu0 0.0
  %4533 = vmatmul.mubr.f32.gmra.mrb[0].mxu0 %v4223
  %v4534 = vpop.f32.mrb[0].mxu0
  %v4535 = vadd.f32 %v4139, %v4534
  %v4536 = vpop.f32.mrb[0].mxu0
  %4537 = vmatprep.mubr.f32.mxu0 0.0
  %4538 = vmatmul.mubr.f32.gmra.mrb[0].mxu0 %v4226
  %v4539 = vpop.f32.mrb[0].mxu0
  %v4540 = vadd.f32 %v4139, %v4539
  %v4541 = vpop.f32.mrb[0].mxu0
  %4542 = vmatprep.mubr.f32.mxu0 0.0
  %4543 = vmatmul.mubr.f32.gmra.mrb[0].mxu0 %v4229
  %v4544 = vpop.f32.mrb[0].mxu0
  %v4545 = vadd.f32 %v4139, %v4544
  %v4546 = vpop.f32.mrb[0].mxu0
  %4547 = vmatprep.mubr.f32.mxu0 0.0
  %4548 = vmatmul.mubr.f32.gmra.mrb[0].mxu0 %v4232
  %v4549 = vpop.f32.mrb[0].mxu0
  %v4550 = vadd.f32 %v4139, %v4549
  %v4551 = vpop.f32.mrb[0].mxu0
  %4552 = vmatprep.mubr.f32.mxu0 0.0
  %4553 = vmatmul.mubr.f32.gmra.mrb[0].mxu0 %v4235
  %v4554 = vpop.f32.mrb[0].mxu0
  %v4555 = vadd.f32 %v4139, %v4554
  %v4556 = vpop.f32.mrb[0].mxu0
  %4557 = vmatprep.mubr.f32.mxu0 0.0
  %4558 = vmatmul.mubr.f32.gmra.mrb[0].mxu0 %v4238
  %v4559 = vpop.f32.mrb[0].mxu0
  %v4560 = vadd.f32 %v4139, %v4559
  %v4561 = vpop.f32.mrb[0].mxu0
  %4562 = vmatprep.mubr.f32.mxu0 0.0
  %4563 = vmatmul.mubr.f32.gmra.mrb[0].mxu0 %v4241
  %v4564 = vpop.f32.mrb[0].mxu0
  %v4565 = vadd.f32 %v4139, %v4564
  %v4566 = vpop.f32.mrb[0].mxu0
  %4567 = vmatprep.mubr.f32.mxu0 0.0
  %4568 = vmatmul.mubr.f32.gmra.mrb[0].mxu0 %v4244
  %v4569 = vpop.f32.mrb[0].mxu0
  %v4570 = vadd.f32 %v4139, %v4569
  %v4571 = vpop.f32.mrb[0].mxu0
  %4572 = vmatprep.mubr.f32.mxu0 0.0
  %4573 = vmatmul.mubr.f32.gmra.mrb[0].mxu0 %v4247
  %v4574 = vpop.f32.mrb[0].mxu0
  %v4575 = vadd.f32 %v4139, %v4574
  %v4576 = vpop.f32.mrb[0].mxu0
  %4577 = vmatprep.mubr.f32.mxu0 0.0
  %4578 = vmatmul.mubr.f32.gmra.mrb[0].mxu0 %v4250
  %v4579 = vpop.f32.mrb[0].mxu0
  %v4580 = vadd.f32 %v4139, %v4579
  %v4581 = vpop.f32.mrb[0].mxu0
  %4582 = vmatprep.mubr.f32.mxu0 0.0
  %4583 = vmatmul.mubr.f32.gmra.mrb[0].mxu0 %v4253
  %v4584 = vpop.f32.mrb[0].mxu0
  %v4585 = vadd.f32 %v4139, %v4584
  %v4586 = vpop.f32.mrb[0].mxu0
  %4587 = vmatprep.mubr.f32.mxu0 0.0
  %4588 = vmatmul.mubr.f32.gmra.mrb[0].mxu0 %v4256
  %v4589 = vpop.f32.mrb[0].mxu0
  %v4590 = vadd.f32 %v4139, %v4589
  %v4591 = vpop.f32.mrb[0].mxu0
  %4592 = vmatprep.mubr.f32.mxu0 0.0
  %4593 = vmatmul.mubr.f32.gmra.mrb[0].mxu0 %v4259
  %v4594 = vpop.f32.mrb[0].mxu0
  %v4595 = vadd.f32 %v4139, %v4594
  %v4596 = vpop.f32.mrb[0].mxu0
  %4597 = vmatprep.mubr.f32.mxu0 0.0
  %4598 = vmatmul.mubr.f32.gmra.mrb[0].mxu0 %v4262
  %v4599 = vpop.f32.mrb[0].mxu0
  %v4600 = vadd.f32 %v4139, %v4599
  %v4601 = vpop.f32.mrb[0].mxu0
  %4602 = vmatprep.mubr.f32.mxu0 0.0
  %4603 = vmatmul.mubr.f32.gmra.mrb[0].mxu0 %v4265
  %v4604 = vpop.f32.mrb[0].mxu0
  %v4605 = vadd.f32 %v4139, %v4604
  %v4606 = vpop.f32.mrb[0].mxu0
  %4607 = vmatprep.mubr.f32.mxu0 0.0
  %4608 = vmatmul.mubr.f32.gmra.mrb[0].mxu0 %v4268
  %v4609 = vpop.f32.mrb[0].mxu0
  %v4610 = vadd.f32 %v4139, %v4609
  %v4611 = vpop.f32.mrb[0].mxu0
  %4612 = vmatprep.mubr.f32.mxu0 0.0
  %4613 = vmatmul.mubr.f32.gmra.mrb[0].mxu0 %v4271
  %v4614 = vpop.f32.mrb[0].mxu0
  %v4615 = vadd.f32 %v4139, %v4614
  %v4616 = vpop.f32.mrb[0].mxu0
  %4617 = vmatprep.mubr.f32.mxu0 0.0
  %4618 = vmatmul.mubr.f32.gmra.mrb[0].mxu0 %v4274
  %v4619 = vpop.f32.mrb[0].mxu0
  %v4620 = vadd.f32 %v4139, %v4619
  %v4621 = vpop.f32.mrb[0].mxu0
  %4622 = vmatprep.mubr.f32.mxu0 0.0
  %4623 = vmatmul.mubr.f32.gmra.mrb[0].mxu0 %v4277
  %v4624 = vpop.f32.mrb[0].mxu0
  %v4625 = vadd.f32 %v4139, %v4624
  %v4626 = vpop.f32.mrb[0].mxu0
  %4627 = vmatprep.mubr.f32.mxu0 0.0
  %4628 = vmatmul.mubr.f32.gmra.mrb[0].mxu0 %v4280
  %v4629 = vpop.f32.mrb[0].mxu0
  %v4630 = vadd.f32 %v4139, %v4629
  %v4631 = vpop.f32.mrb[0].mxu0
  %4632 = vmatprep.mubr.f32.mxu0 0.0
  %4633 = vmatmul.mubr.f32.gmra.mrb[0].mxu0 %v4283
  %v4634 = vpop.f32.mrb[0].mxu0
  %v4635 = vadd.f32 %v4139, %v4634
  %v4636 = vpop.f32.mrb[0].mxu0
  %4637 = vmatprep.mubr.f32.mxu0 0.0
  %4638 = vmatmul.mubr.f32.gmra.mrb[0].mxu0 %v4286
  %v4639 = vpop.f32.mrb[0].mxu0
  %v4640 = vadd.f32 %v4139, %v4639
  %v4641 = vpop.f32.mrb[0].mxu0
  %4642 = vmatprep.mubr.f32.mxu0 0.0
  %4643 = vmatmul.mubr.f32.gmra.mrb[0].mxu0 %v4289
  %v4644 = vpop.f32.mrb[0].mxu0
  %v4645 = vadd.f32 %v4139, %v4644
  %v4646 = vpop.f32.mrb[0].mxu0
  %4647 = vmatprep.mubr.f32.mxu0 0.0
  %4648 = vmatmul.mubr.f32.gmra.mrb[0].mxu0 %v4292
  %v4649 = vpop.f32.mrb[0].mxu0
  %v4650 = vadd.f32 %v4139, %v4649
  %v4651 = vpop.f32.mrb[0].mxu0
  %4652 = vmatprep.mubr.f32.mxu0 0.0
  %4653 = vmatmul.mubr.f32.gmra.mrb[0].mxu0 %v4295
  %v4654 = vpop.f32.mrb[0].mxu0
  %v4655 = vadd.f32 %v4139, %v4654
  %v4656 = vpop.f32.mrb[0].mxu0
  %4657 = vmatprep.mubr.f32.mxu0 0.0
  %4658 = vmatmul.mubr.f32.gmra.mrb[0].mxu0 %v4298
  %v4659 = vpop.f32.mrb[0].mxu0
  %v4660 = vadd.f32 %v4139, %v4659
  %v4661 = vpop.f32.mrb[0].mxu0
  %4662 = vmatprep.mubr.f32.mxu0 0.0
  %4663 = vmatmul.mubr.f32.gmra.mrb[0].mxu0 %v4301
  %v4664 = vpop.f32.mrb[0].mxu0
  %v4665 = vadd.f32 %v4139, %v4664
  %v4666 = vpop.f32.mrb[0].mxu0
  %4667 = vmatprep.mubr.f32.mxu0 0.0
  %4668 = vmatmul.mubr.f32.gmra.mrb[0].mxu0 %v4304
  %v4669 = vpop.f32.mrb[0].mxu0
  %v4670 = vadd.f32 %v4139, %v4669
  %v4671 = vpop.f32.mrb[0].mxu0
  %4672 = vmatprep.mubr.f32.mxu0 0.0
  %4673 = vmatmul.mubr.f32.gmra.mrb[0].mxu0 %v4307
  %v4674 = vpop.f32.mrb[0].mxu0
  %v4675 = vadd.f32 %v4139, %v4674
  %v4676 = vpop.f32.mrb[0].mxu0
  %4677 = vmatprep.mubr.f32.mxu0 0.0
  %4678 = vmatmul.mubr.f32.gmra.mrb[0].mxu0 %v4310
  %v4679 = vpop.f32.mrb[0].mxu0
  %v4680 = vadd.f32 %v4139, %v4679
  %v4681 = vpop.f32.mrb[0].mxu0
  %4682 = vmatprep.mubr.f32.mxu0 0.0
  %4683 = vmatmul.mubr.f32.gmra.mrb[0].mxu0 %v4313
  %v4684 = vpop.f32.mrb[0].mxu0
  %v4685 = vadd.f32 %v4139, %v4684
  %v4686 = vpop.f32.mrb[0].mxu0
  %4687 = vmatprep.mubr.f32.mxu0 0.0
  %4688 = vmatmul.mubr.f32.gmra.mrb[0].mxu0 %v4316
  %v4689 = vpop.f32.mrb[0].mxu0
  %v4690 = vadd.f32 %v4139, %v4689
  %v4691 = vpop.f32.mrb[0].mxu0
  %4692 = vmatprep.mubr.f32.mxu0 0.0
  %4693 = vmatmul.mubr.f32.gmra.mrb[0].mxu0 %v4319
  %v4694 = vpop.f32.mrb[0].mxu0
  %v4695 = vadd.f32 %v4139, %v4694
  %v4696 = vpop.f32.mrb[0].mxu0
  %4697 = vmatprep.mubr.f32.mxu0 0.0
  %4698 = vmatmul.mubr.f32.gmra.mrb[0].mxu0 %v4322
  %v4699 = vpop.f32.mrb[0].mxu0
  %v4700 = vadd.f32 %v4139, %v4699
  %v4701 = vpop.f32.mrb[0].mxu0
  %4702 = vmatprep.mubr.f32.mxu0 0.0
  %4703 = vmatmul.mubr.f32.gmra.mrb[0].mxu0 %v4325
  %v4704 = vpop.f32.mrb[0].mxu0
  %v4705 = vadd.f32 %v4139, %v4704
  %v4706 = vpop.f32.mrb[0].mxu0
  %4707 = vmatprep.mubr.f32.mxu0 0.0
  %4708 = vmatmul.mubr.f32.gmra.mrb[0].mxu0 %v4328
  %v4709 = vpop.f32.mrb[0].mxu0
  %v4710 = vadd.f32 %v4139, %v4709
  %v4711 = vpop.f32.mrb[0].mxu0
  %4712 = vmatprep.mubr.f32.mxu0 0.0
  %4713 = vmatmul.mubr.f32.gmra.mrb[0].mxu0 %v4331
  %v4714 = vpop.f32.mrb[0].mxu0
  %v4715 = vadd.f32 %v4139, %v4714
  %v4716 = vpop.f32.mrb[0].mxu0
  %4717 = vdwg.mxu0
  %v4718 = vld [vmem:[%s5] sm:$0xff]
  %v4719 = vld [vmem:[%s5 + $0x8] sm:$0xff]
  %v4720 = vld [vmem:[%s5 + $0x10] sm:$0xff]
  %v4721 = vld [vmem:[%s5 + $0x18] sm:$0xff]
  %v4722 = vld [vmem:[%s5 + $0x20] sm:$0xff]
  %v4723 = vld [vmem:[%s5 + $0x28] sm:$0xff]
  %v4724 = vld [vmem:[%s5 + $0x30] sm:$0xff]
  %v4725 = vld [vmem:[%s5 + $0x38] sm:$0xff]
  %v4726 = vld [vmem:[%s5 + $0x40] sm:$0xff]
  %v4727 = vld [vmem:[%s5 + $0x48] sm:$0xff]
  %v4728 = vld [vmem:[%s5 + $0x50] sm:$0xff]
  %v4729 = vld [vmem:[%s5 + $0x58] sm:$0xff]
  %v4730 = vld [vmem:[%s5 + $0x60] sm:$0xff]
  %v4731 = vld [vmem:[%s5 + $0x68] sm:$0xff]
  %v4732 = vld [vmem:[%s5 + $0x70] sm:$0xff]
  %v4733 = vld [vmem:[%s5 + $0x78] sm:$0xff]
  %v4734 = vld [vmem:[%s5 + $0x80] sm:$0xff]
  %v4735 = vld [vmem:[%s5 + $0x88] sm:$0xff]
  %v4736 = vld [vmem:[%s5 + $0x90] sm:$0xff]
  %v4737 = vld [vmem:[%s5 + $0x98] sm:$0xff]
  %v4738 = vld [vmem:[%s5 + $0xa0] sm:$0xff]
  %v4739 = vld [vmem:[%s5 + $0xa8] sm:$0xff]
  %v4740 = vld [vmem:[%s5 + $0xb0] sm:$0xff]
  %v4741 = vld [vmem:[%s5 + $0xb8] sm:$0xff]
  %v4742 = vld [vmem:[%s5 + $0xc0] sm:$0xff]
  %v4743 = vld [vmem:[%s5 + $0xc8] sm:$0xff]
  %v4744 = vld [vmem:[%s5 + $0xd0] sm:$0xff]
  %v4745 = vld [vmem:[%s5 + $0xd8] sm:$0xff]
  %v4746 = vld [vmem:[%s5 + $0xe0] sm:$0xff]
  %v4747 = vld [vmem:[%s5 + $0xe8] sm:$0xff]
  %v4748 = vld [vmem:[%s5 + $0xf0] sm:$0xff]
  %v4749 = vld [vmem:[%s5 + $0xf8] sm:$0xff]
  %v4750 = vld [vmem:[%s5 + $0x100] sm:$0xff]
  %v4751 = vld [vmem:[%s5 + $0x108] sm:$0xff]
  %v4752 = vld [vmem:[%s5 + $0x110] sm:$0xff]
  %v4753 = vld [vmem:[%s5 + $0x118] sm:$0xff]
  %v4754 = vld [vmem:[%s5 + $0x120] sm:$0xff]
  %v4755 = vld [vmem:[%s5 + $0x128] sm:$0xff]
  %v4756 = vld [vmem:[%s5 + $0x130] sm:$0xff]
  %v4757 = vld [vmem:[%s5 + $0x138] sm:$0xff]
  %v4758 = vld [vmem:[%s5 + $0x140] sm:$0xff]
  %v4759 = vld [vmem:[%s5 + $0x148] sm:$0xff]
  %v4760 = vld [vmem:[%s5 + $0x150] sm:$0xff]
  %v4761 = vld [vmem:[%s5 + $0x158] sm:$0xff]
  %v4762 = vld [vmem:[%s5 + $0x160] sm:$0xff]
  %v4763 = vld [vmem:[%s5 + $0x168] sm:$0xff]
  %v4764 = vld [vmem:[%s5 + $0x170] sm:$0xff]
  %v4765 = vld [vmem:[%s5 + $0x178] sm:$0xff]
  %v4766 = vld [vmem:[%s5 + $0x180] sm:$0xff]
  %v4767 = vld [vmem:[%s5 + $0x188] sm:$0xff]
  %v4768 = vld [vmem:[%s5 + $0x190] sm:$0xff]
  %v4769 = vld [vmem:[%s5 + $0x198] sm:$0xff]
  %v4770 = vld [vmem:[%s5 + $0x1a0] sm:$0xff]
  %v4771 = vld [vmem:[%s5 + $0x1a8] sm:$0xff]
  %v4772 = vld [vmem:[%s5 + $0x1b0] sm:$0xff]
  %v4773 = vld [vmem:[%s5 + $0x1b8] sm:$0xff]
  %v4774 = vld [vmem:[%s5 + $0x1c0] sm:$0xff]
  %v4775 = vld [vmem:[%s5 + $0x1c8] sm:$0xff]
  %v4776 = vld [vmem:[%s5 + $0x1d0] sm:$0xff]
  %v4777 = vld [vmem:[%s5 + $0x1d8] sm:$0xff]
  %v4778 = vld [vmem:[%s5 + $0x1e0] sm:$0xff]
  %v4779 = vld [vmem:[%s5 + $0x1e8] sm:$0xff]
  %v4780 = vld [vmem:[%s5 + $0x1f0] sm:$0xff]
  %v4781 = vld [vmem:[%s5 + $0x1f8] sm:$0xff]
  %v4782 = vadd.f32 %v4400, %v4718
  %v4783 = vadd.f32 %v4405, %v4719
  %v4784 = vadd.f32 %v4410, %v4720
  %v4785 = vadd.f32 %v4415, %v4721
  %v4786 = vadd.f32 %v4420, %v4722
  %v4787 = vadd.f32 %v4425, %v4723
  %v4788 = vadd.f32 %v4430, %v4724
  %v4789 = vadd.f32 %v4435, %v4725
  %v4790 = vadd.f32 %v4440, %v4726
  %v4791 = vadd.f32 %v4445, %v4727
  %v4792 = vadd.f32 %v4450, %v4728
  %v4793 = vadd.f32 %v4455, %v4729
  %v4794 = vadd.f32 %v4460, %v4730
  %v4795 = vadd.f32 %v4465, %v4731
  %v4796 = vadd.f32 %v4470, %v4732
  %v4797 = vadd.f32 %v4475, %v4733
  %v4798 = vadd.f32 %v4480, %v4734
  %v4799 = vadd.f32 %v4485, %v4735
  %v4800 = vadd.f32 %v4490, %v4736
  %v4801 = vadd.f32 %v4495, %v4737
  %v4802 = vadd.f32 %v4500, %v4738
  %v4803 = vadd.f32 %v4505, %v4739
  %v4804 = vadd.f32 %v4510, %v4740
  %v4805 = vadd.f32 %v4515, %v4741
  %v4806 = vadd.f32 %v4520, %v4742
  %v4807 = vadd.f32 %v4525, %v4743
  %v4808 = vadd.f32 %v4530, %v4744
  %v4809 = vadd.f32 %v4535, %v4745
  %v4810 = vadd.f32 %v4540, %v4746
  %v4811 = vadd.f32 %v4545, %v4747
  %v4812 = vadd.f32 %v4550, %v4748
  %v4813 = vadd.f32 %v4555, %v4749
  %v4814 = vadd.f32 %v4560, %v4750
  %v4815 = vadd.f32 %v4565, %v4751
  %v4816 = vadd.f32 %v4570, %v4752
  %v4817 = vadd.f32 %v4575, %v4753
  %v4818 = vadd.f32 %v4580, %v4754
  %v4819 = vadd.f32 %v4585, %v4755
  %v4820 = vadd.f32 %v4590, %v4756
  %v4821 = vadd.f32 %v4595, %v4757
  %v4822 = vadd.f32 %v4600, %v4758
  %v4823 = vadd.f32 %v4605, %v4759
  %v4824 = vadd.f32 %v4610, %v4760
  %v4825 = vadd.f32 %v4615, %v4761
  %v4826 = vadd.f32 %v4620, %v4762
  %v4827 = vadd.f32 %v4625, %v4763
  %v4828 = vadd.f32 %v4630, %v4764
  %v4829 = vadd.f32 %v4635, %v4765
  %v4830 = vadd.f32 %v4640, %v4766
  %v4831 = vadd.f32 %v4645, %v4767
  %v4832 = vadd.f32 %v4650, %v4768
  %v4833 = vadd.f32 %v4655, %v4769
  %v4834 = vadd.f32 %v4660, %v4770
  %v4835 = vadd.f32 %v4665, %v4771
  %v4836 = vadd.f32 %v4670, %v4772
  %v4837 = vadd.f32 %v4675, %v4773
  %v4838 = vadd.f32 %v4680, %v4774
  %v4839 = vadd.f32 %v4685, %v4775
  %v4840 = vadd.f32 %v4690, %v4776
  %v4841 = vadd.f32 %v4695, %v4777
  %v4842 = vadd.f32 %v4700, %v4778
  %v4843 = vadd.f32 %v4705, %v4779
  %v4844 = vadd.f32 %v4710, %v4780
  %v4845 = vadd.f32 %v4715, %v4781
  %4846 = vst [vmem:[%s16] sm:$0xff] %v4782
  %4847 = vst [vmem:[%s16 + $0x8] sm:$0xff] %v4783
  %4848 = vst [vmem:[%s16 + $0x10] sm:$0xff] %v4784
  %4849 = vst [vmem:[%s16 + $0x18] sm:$0xff] %v4785
  %4850 = vst [vmem:[%s16 + $0x20] sm:$0xff] %v4786
  %4851 = vst [vmem:[%s16 + $0x28] sm:$0xff] %v4787
  %4852 = vst [vmem:[%s16 + $0x30] sm:$0xff] %v4788
  %4853 = vst [vmem:[%s16 + $0x38] sm:$0xff] %v4789
  %4854 = vst [vmem:[%s16 + $0x40] sm:$0xff] %v4790
  %4855 = vst [vmem:[%s16 + $0x48] sm:$0xff] %v4791
  %4856 = vst [vmem:[%s16 + $0x50] sm:$0xff] %v4792
  %4857 = vst [vmem:[%s16 + $0x58] sm:$0xff] %v4793
  %4858 = vst [vmem:[%s16 + $0x60] sm:$0xff] %v4794
  %4859 = vst [vmem:[%s16 + $0x68] sm:$0xff] %v4795
  %4860 = vst [vmem:[%s16 + $0x70] sm:$0xff] %v4796
  %4861 = vst [vmem:[%s16 + $0x78] sm:$0xff] %v4797
  %4862 = vst [vmem:[%s16 + $0x80] sm:$0xff] %v4798
  %4863 = vst [vmem:[%s16 + $0x88] sm:$0xff] %v4799
  %4864 = vst [vmem:[%s16 + $0x90] sm:$0xff] %v4800
  %4865 = vst [vmem:[%s16 + $0x98] sm:$0xff] %v4801
  %4866 = vst [vmem:[%s16 + $0xa0] sm:$0xff] %v4802
  %4867 = vst [vmem:[%s16 + $0xa8] sm:$0xff] %v4803
  %4868 = vst [vmem:[%s16 + $0xb0] sm:$0xff] %v4804
  %4869 = vst [vmem:[%s16 + $0xb8] sm:$0xff] %v4805
  %4870 = vst [vmem:[%s16 + $0xc0] sm:$0xff] %v4806
  %4871 = vst [vmem:[%s16 + $0xc8] sm:$0xff] %v4807
  %4872 = vst [vmem:[%s16 + $0xd0] sm:$0xff] %v4808
  %4873 = vst [vmem:[%s16 + $0xd8] sm:$0xff] %v4809
  %4874 = vst [vmem:[%s16 + $0xe0] sm:$0xff] %v4810
  %4875 = vst [vmem:[%s16 + $0xe8] sm:$0xff] %v4811
  %4876 = vst [vmem:[%s16 + $0xf0] sm:$0xff] %v4812
  %4877 = vst [vmem:[%s16 + $0xf8] sm:$0xff] %v4813
  %4878 = vst [vmem:[%s16 + $0x100] sm:$0xff] %v4814
  %4879 = vst [vmem:[%s16 + $0x108] sm:$0xff] %v4815
  %4880 = vst [vmem:[%s16 + $0x110] sm:$0xff] %v4816
  %4881 = vst [vmem:[%s16 + $0x118] sm:$0xff] %v4817
  %4882 = vst [vmem:[%s16 + $0x120] sm:$0xff] %v4818
  %4883 = vst [vmem:[%s16 + $0x128] sm:$0xff] %v4819
  %4884 = vst [vmem:[%s16 + $0x130] sm:$0xff] %v4820
  %4885 = vst [vmem:[%s16 + $0x138] sm:$0xff] %v4821
  %4886 = vst [vmem:[%s16 + $0x140] sm:$0xff] %v4822
  %4887 = vst [vmem:[%s16 + $0x148] sm:$0xff] %v4823
  %4888 = vst [vmem:[%s16 + $0x150] sm:$0xff] %v4824
  %4889 = vst [vmem:[%s16 + $0x158] sm:$0xff] %v4825
  %4890 = vst [vmem:[%s16 + $0x160] sm:$0xff] %v4826
  %4891 = vst [vmem:[%s16 + $0x168] sm:$0xff] %v4827
  %4892 = vst [vmem:[%s16 + $0x170] sm:$0xff] %v4828
  %4893 = vst [vmem:[%s16 + $0x178] sm:$0xff] %v4829
  %4894 = vst [vmem:[%s16 + $0x180] sm:$0xff] %v4830
  %4895 = vst [vmem:[%s16 + $0x188] sm:$0xff] %v4831
  %4896 = vst [vmem:[%s16 + $0x190] sm:$0xff] %v4832
  %4897 = vst [vmem:[%s16 + $0x198] sm:$0xff] %v4833
  %4898 = vst [vmem:[%s16 + $0x1a0] sm:$0xff] %v4834
  %4899 = vst [vmem:[%s16 + $0x1a8] sm:$0xff] %v4835
  %4900 = vst [vmem:[%s16 + $0x1b0] sm:$0xff] %v4836
  %4901 = vst [vmem:[%s16 + $0x1b8] sm:$0xff] %v4837
  %4902 = vst [vmem:[%s16 + $0x1c0] sm:$0xff] %v4838
  %4903 = vst [vmem:[%s16 + $0x1c8] sm:$0xff] %v4839
  %4904 = vst [vmem:[%s16 + $0x1d0] sm:$0xff] %v4840
  %4905 = vst [vmem:[%s16 + $0x1d8] sm:$0xff] %v4841
  %4906 = vst [vmem:[%s16 + $0x1e0] sm:$0xff] %v4842
  %4907 = vst [vmem:[%s16 + $0x1e8] sm:$0xff] %v4843
  %4908 = vst [vmem:[%s16 + $0x1f0] sm:$0xff] %v4844
  %4909 = vst [vmem:[%s16 + $0x1f8] sm:$0xff] %v4845
  // Predicated region
  $region66: #{liif_fpn_pred_forward.13} parent=0 // pred_check
    _
  $region67: #{liif_fpn_pred_forward.13} parent=0 // pred_check_branch
    %4911 = sbr.rel (0) target = $region69
  $region68: #{liif_fpn_pred_forward.13} parent=0 // pred_region
    _
  $region69: #{liif_fpn_pred_forward.13} parent=0 // pred_fallthru
    _
  // Predicated region
  $region70: #{liif_fpn_pred_forward.13} parent=0 // pred_check
    _
  $region71: #{liif_fpn_pred_forward.13} parent=0 // pred_check_branch
    %4913 = sbr.rel (0) target = $region73
  $region72: #{liif_fpn_pred_forward.13} parent=0 // pred_region
    _
  $region73: #{liif_fpn_pred_forward.13} parent=0 // pred_fallthru
    _

</llo_original>
